<compile_context>
chip_gen: v6e
topology: v6e:2x2x1
jax: 0.10.0
libtpu: 0.0.40
codegen_flags: <defaults>
</compile_context>

<pallas_src>
import functools

import jax
import jax.numpy as jnp
from jax import lax
from jax.experimental import pallas as pl
from jax.experimental.pallas import tpu as pltpu


# ----------------------------------------------------------------------------
# Fused bidirectional LSTM layer kernel (single grid step, time loop inside).
# PyTorch gate order: i, f, g, o.  gates = x@Wih + h@Whh + (b_ih + b_hh)
# ----------------------------------------------------------------------------
def _bilstm_layer_kernel(
    x_ref, wih_f_ref, whh_f_ref, b_f_ref, wih_b_ref, whh_b_ref, b_b_ref,  # inputs
    out_ref,                                                               # output
    gx_f, gx_b, hf_all, hb_all, h_f, c_f, h_b, c_b,                        # scratch
    *, seq_len, batch,
):
    T, B = seq_len, batch
    H = whh_f_ref.shape[0]

    x = x_ref[...]  # (T*B, I)

    # Hoisted input projections with folded biases: one big MXU matmul per
    # direction for the whole sequence (no per-step x@Wih on the critical path).
    gx_f[...] = (
        jnp.dot(x, wih_f_ref[...], preferred_element_type=jnp.float32) + b_f_ref[...]
    )
    gx_b[...] = (
        jnp.dot(x, wih_b_ref[...], preferred_element_type=jnp.float32) + b_b_ref[...]
    )

    # Zero initial states.
    h_f[...] = jnp.zeros_like(h_f)
    c_f[...] = jnp.zeros_like(c_f)
    h_b[...] = jnp.zeros_like(h_b)
    c_b[...] = jnp.zeros_like(c_b)

    # Hoist recurrent weights out of the loop (values stay in vregs/VMEM).
    whh_f = whh_f_ref[...]
    whh_b = whh_b_ref[...]

    def cell(gates, c):
        # NOTE: H-wide gate slices are sub-128-lane at this toy size; they become
        # whole-vreg slices once H is a multiple of 128.
        i_g = jax.nn.sigmoid(gates[:, 0 * H:1 * H])
        f_g = jax.nn.sigmoid(gates[:, 1 * H:2 * H])
        g_g = jnp.tanh(gates[:, 2 * H:3 * H])
        o_g = jax.nn.sigmoid(gates[:, 3 * H:4 * H])
        c_new = f_g * c + i_g * g_g
        h_new = o_g * jnp.tanh(c_new)
        return h_new, c_new

    def step(t, carry):
        row_f = t * B            # forward processes time t
        row_b = (T - 1 - t) * B  # backward processes time T-1-t

        # Forward direction.
        g = gx_f[pl.ds(row_f, B), :] + jnp.dot(
            h_f[...], whh_f, preferred_element_type=jnp.float32
        )
        h_new, c_new = cell(g, c_f[...])
        h_f[...] = h_new
        c_f[...] = c_new
        hf_all[pl.ds(row_f, B), :] = h_new

        # Backward direction (independent recurrence over reversed time).
        g = gx_b[pl.ds(row_b, B), :] + jnp.dot(
            h_b[...], whh_b, preferred_element_type=jnp.float32
        )
        h_new, c_new = cell(g, c_b[...])
        h_b[...] = h_new
        c_b[...] = c_new
        hb_all[pl.ds(row_b, B), :] = h_new
        return carry

    lax.fori_loop(0, T, step, 0, unroll=(T <= 16))

    # Fused direction concat: one full-block lane-dense store to the output.
    out_ref[...] = jnp.concatenate([hf_all[...], hb_all[...]], axis=-1)


def bilstm_layer(x2, fwd, bwd, *, seq_len, batch):
    """Fused bidirectional LSTM layer.

    x2: (T*B, I) float32 -> (T*B, 2H) float32, row = t*B + b (time-major flattened).
    fwd/bwd: (Wih (I,4H), Whh (H,4H), b (1,4H)) per direction.
    """
    TB, I = x2.shape
    H = fwd[1].shape[0]
    kernel = functools.partial(_bilstm_layer_kernel, seq_len=seq_len, batch=batch)
    return pl.pallas_call(
        kernel,
        out_shape=jax.ShapeDtypeStruct((TB, 2 * H), jnp.float32),
        grid_spec=pltpu.PrefetchScalarGridSpec(
            num_scalar_prefetch=0,
            grid=(1,),
            in_specs=[
                pl.BlockSpec((TB, I), lambda i: (0, 0)),
                pl.BlockSpec((I, 4 * H), lambda i: (0, 0)),
                pl.BlockSpec((H, 4 * H), lambda i: (0, 0)),
                pl.BlockSpec((1, 4 * H), lambda i: (0, 0)),
                pl.BlockSpec((I, 4 * H), lambda i: (0, 0)),
                pl.BlockSpec((H, 4 * H), lambda i: (0, 0)),
                pl.BlockSpec((1, 4 * H), lambda i: (0, 0)),
            ],
            out_specs=pl.BlockSpec((TB, 2 * H), lambda i: (0, 0)),
            scratch_shapes=[
                pltpu.VMEM((TB, 4 * H), jnp.float32),   # gx_f: precomputed x@Wih_f + b
                pltpu.VMEM((TB, 4 * H), jnp.float32),   # gx_b
                pltpu.VMEM((TB, H), jnp.float32),       # forward outputs (all steps)
                pltpu.VMEM((TB, H), jnp.float32),       # backward outputs (all steps)
                pltpu.VMEM((batch, H), jnp.float32),    # h_f
                pltpu.VMEM((batch, H), jnp.float32),    # c_f
                pltpu.VMEM((batch, H), jnp.float32),    # h_b
                pltpu.VMEM((batch, H), jnp.float32),    # c_b
            ],
        ),
        compiler_params=pltpu.CompilerParams(dimension_semantics=("arbitrary",)),
    )(x2, fwd[0], fwd[1], fwd[2], bwd[0], bwd[1], bwd[2])


# ----------------------------------------------------------------------------
# Parameter construction (deterministic, mirrors PyTorch module shapes).
# ----------------------------------------------------------------------------
def make_birnn_params(key, vocab_size, embed_size, num_hiddens, num_layers):
    keys = iter(jax.random.split(key, 4 + num_layers * 2 * 4))
    params = {}
    # nn.Embedding default init: N(0, 1)
    params["embedding"] = jax.random.normal(
        next(keys), (vocab_size, embed_size), jnp.float32
    )
    # nn.LSTM default init: U(-1/sqrt(H), 1/sqrt(H)); weights stored transposed
    # (in_features, 4H) so the kernel does x @ W; biases folded (b_ih + b_hh).
    bound = 1.0 / float(num_hiddens) ** 0.5
    lstm = []
    for layer in range(num_layers):
        in_size = embed_size if layer == 0 else 2 * num_hiddens
        dirs = []
        for _direction in range(2):
            wih = jax.random.uniform(
                next(keys), (in_size, 4 * num_hiddens), jnp.float32, -bound, bound
            )
            whh = jax.random.uniform(
                next(keys), (num_hiddens, 4 * num_hiddens), jnp.float32, -bound, bound
            )
            bih = jax.random.uniform(
                next(keys), (4 * num_hiddens,), jnp.float32, -bound, bound
            )
            bhh = jax.random.uniform(
                next(keys), (4 * num_hiddens,), jnp.float32, -bound, bound
            )
            dirs.append((wih, whh, (bih + bhh).reshape(1, 4 * num_hiddens)))
        lstm.append(tuple(dirs))
    params["lstm"] = lstm
    # nn.Linear default init: U(-1/sqrt(fan_in), 1/sqrt(fan_in))
    dec_bound = 1.0 / float(4 * num_hiddens) ** 0.5
    params["dec_w"] = jax.random.uniform(
        next(keys), (4 * num_hiddens, 2), jnp.float32, -dec_bound, dec_bound
    )
    params["dec_b"] = jax.random.uniform(
        next(keys), (1, 2), jnp.float32, -dec_bound, dec_bound
    )
    return params


# ----------------------------------------------------------------------------
# Forward pass matching BiRNN.forward.
# ----------------------------------------------------------------------------
def birnn_forward(params, inputs):
    # inputs: (B, T) int32 token ids (the PyTorch module transposes internally).
    B, T = inputs.shape
    emb = jnp.take(params["embedding"], inputs.T, axis=0)  # (T, B, E) time-major
    x2 = emb.reshape(T * B, -1)                            # (T*B, E), row = t*B + b
    for (fwd, bwd) in params["lstm"]:
        x2 = bilstm_layer(x2, fwd, bwd, seq_len=T, batch=B)  # (T*B, 2H)
    # encoding = concat(outputs[0], outputs[-1]) -> (B, 4H)
    encoding = jnp.concatenate([x2[0:B], x2[(T - 1) * B:]], axis=-1)
    # Decoder left to XLA (lane width 2 output; not worth a pallas_call).
    return jnp.dot(encoding, params["dec_w"]) + params["dec_b"]  # (B, 2)


# ----------------------------------------------------------------------------
# Pure-JAX reference (for a correctness sanity check).
# ----------------------------------------------------------------------------
def _lstm_ref(x, wih, whh, b):
    H = whh.shape[0]
    Bb = x.shape[1]

    def step(carry, x_t):
        h, c = carry
        g = x_t @ wih + h @ whh + b
        i = jax.nn.sigmoid(g[:, 0 * H:1 * H])
        f = jax.nn.sigmoid(g[:, 1 * H:2 * H])
        gg = jnp.tanh(g[:, 2 * H:3 * H])
        o = jax.nn.sigmoid(g[:, 3 * H:4 * H])
        c = f * c + i * gg
        h = o * jnp.tanh(c)
        return (h, c), h

    init = (jnp.zeros((Bb, H), jnp.float32), jnp.zeros((Bb, H), jnp.float32))
    _, hs = lax.scan(step, init, x)
    return hs


def birnn_forward_ref(params, inputs):
    emb = jnp.take(params["embedding"], inputs.T, axis=0)  # (T, B, E)
    x = emb
    for (fwd, bwd) in params["lstm"]:
        hf = _lstm_ref(x, *fwd)
        hb = _lstm_ref(x[::-1], *bwd)[::-1]
        x = jnp.concatenate([hf, hb], axis=-1)
    enc = jnp.concatenate([x[0], x[-1]], axis=-1)
    return enc @ params["dec_w"] + params["dec_b"]


if __name__ == "__main__":
    vocab_size, embed_size, num_hiddens, num_layers = 50, 32, 32, 2
    batch, seq_len = 2, 8

    key = jax.random.PRNGKey(0)
    pkey, dkey = jax.random.split(key)
    params = make_birnn_params(pkey, vocab_size, embed_size, num_hiddens, num_layers)
    inputs = jax.random.randint(dkey, (batch, seq_len), 0, vocab_size, dtype=jnp.int32)

    out = jax.block_until_ready(jax.jit(birnn_forward)(params, inputs))
    assert out.shape == (batch, 2), out.shape
    assert out.dtype == jnp.float32

    ref = jax.block_until_ready(birnn_forward_ref(params, inputs))
    assert bool(jnp.allclose(out, ref, atol=1e-3, rtol=1e-3)), (out, ref)

    print("KERNEL_OK")
</pallas_src>

<mosaic_0001>
module attributes {stable_mosaic.version = 11 : i64} {
  func.func @_bilstm_layer_kernel(%arg0: i32, %arg1: memref<16x32xf32, #tpu.memory_space<vmem>>, %arg2: memref<32x128xf32, #tpu.memory_space<vmem>>, %arg3: memref<32x128xf32, #tpu.memory_space<vmem>>, %arg4: memref<1x128xf32, #tpu.memory_space<vmem>>, %arg5: memref<32x128xf32, #tpu.memory_space<vmem>>, %arg6: memref<32x128xf32, #tpu.memory_space<vmem>>, %arg7: memref<1x128xf32, #tpu.memory_space<vmem>>, %arg8: memref<16x64xf32, #tpu.memory_space<vmem>>, %arg9: memref<16x128xf32, #tpu.memory_space<vmem>>, %arg10: memref<16x128xf32, #tpu.memory_space<vmem>>, %arg11: memref<16x32xf32, #tpu.memory_space<vmem>>, %arg12: memref<16x32xf32, #tpu.memory_space<vmem>>, %arg13: memref<2x32xf32, #tpu.memory_space<vmem>>, %arg14: memref<2x32xf32, #tpu.memory_space<vmem>>, %arg15: memref<2x32xf32, #tpu.memory_space<vmem>>, %arg16: memref<2x32xf32, #tpu.memory_space<vmem>>) attributes {dimension_semantics = [#tpu.dimension_semantics<arbitrary>], iteration_bounds = array<i64: 1>, scalar_prefetch = 0 : i64, scratch_operands = 8 : i64, tpu.core_type = #tpu.core_type<tc>, window_params = [{pipeline_mode = #tpu.pipeline_mode<synchronous>, transform_indices = @transform_0, window_bounds = array<i64: 16, 32>}, {pipeline_mode = #tpu.pipeline_mode<synchronous>, transform_indices = @transform_1, window_bounds = array<i64: 32, 128>}, {pipeline_mode = #tpu.pipeline_mode<synchronous>, transform_indices = @transform_2, window_bounds = array<i64: 32, 128>}, {pipeline_mode = #tpu.pipeline_mode<synchronous>, transform_indices = @transform_3, window_bounds = array<i64: 1, 128>}, {pipeline_mode = #tpu.pipeline_mode<synchronous>, transform_indices = @transform_4, window_bounds = array<i64: 32, 128>}, {pipeline_mode = #tpu.pipeline_mode<synchronous>, transform_indices = @transform_5, window_bounds = array<i64: 32, 128>}, {pipeline_mode = #tpu.pipeline_mode<synchronous>, transform_indices = @transform_6, window_bounds = array<i64: 1, 128>}, {pipeline_mode = #tpu.pipeline_mode<synchronous>, transform_indices = @transform_7, window_bounds = array<i64: 16, 64>}]} {
    %c0 = arith.constant 0 : index
    %c0_0 = arith.constant 0 : index
    %0 = vector.load %arg1[%c0, %c0_0] : memref<16x32xf32, #tpu.memory_space<vmem>>, vector<16x32xf32>
    %c0_1 = arith.constant 0 : index
    %c0_2 = arith.constant 0 : index
    %1 = vector.load %arg2[%c0_1, %c0_2] : memref<32x128xf32, #tpu.memory_space<vmem>>, vector<32x128xf32>
    %cst = arith.constant dense<0.000000e+00> : vector<16x128xf32>
    %2 = tpu.matmul %0, %1, %cst {dimension_numbers = #tpu.dot_dimension_numbers<[1], [0], [0], [1], [0, 0, 1, 1], [], []>} : vector<16x32xf32>, vector<32x128xf32>, vector<16x128xf32> -> vector<16x128xf32>
    %c0_3 = arith.constant 0 : index
    %c0_4 = arith.constant 0 : index
    %3 = vector.load %arg4[%c0_3, %c0_4] : memref<1x128xf32, #tpu.memory_space<vmem>>, vector<1x128xf32>
    %4 = vector.broadcast %3 : vector<1x128xf32> to vector<16x128xf32>
    %5 = arith.addf %2, %4 : vector<16x128xf32>
    %c0_5 = arith.constant 0 : index
    %c0_6 = arith.constant 0 : index
    %6 = vector.load %arg9[%c0_5, %c0_6] : memref<16x128xf32, #tpu.memory_space<vmem>>, vector<16x128xf32>
    tpu.vector_store %arg9[%c0_5, %c0_6], %5 {strides = array<i32>} : memref<16x128xf32, #tpu.memory_space<vmem>>, vector<16x128xf32>,
    %c0_7 = arith.constant 0 : index
    %c0_8 = arith.constant 0 : index
    %7 = vector.load %arg5[%c0_7, %c0_8] : memref<32x128xf32, #tpu.memory_space<vmem>>, vector<32x128xf32>
    %cst_9 = arith.constant dense<0.000000e+00> : vector<16x128xf32>
    %8 = tpu.matmul %0, %7, %cst_9 {dimension_numbers = #tpu.dot_dimension_numbers<[1], [0], [0], [1], [0, 0, 1, 1], [], []>} : vector<16x32xf32>, vector<32x128xf32>, vector<16x128xf32> -> vector<16x128xf32>
    %c0_10 = arith.constant 0 : index
    %c0_11 = arith.constant 0 : index
    %9 = vector.load %arg7[%c0_10, %c0_11] : memref<1x128xf32, #tpu.memory_space<vmem>>, vector<1x128xf32>
    %10 = vector.broadcast %9 : vector<1x128xf32> to vector<16x128xf32>
    %11 = arith.addf %8, %10 : vector<16x128xf32>
    %c0_12 = arith.constant 0 : index
    %c0_13 = arith.constant 0 : index
    %12 = vector.load %arg10[%c0_12, %c0_13] : memref<16x128xf32, #tpu.memory_space<vmem>>, vector<16x128xf32>
    tpu.vector_store %arg10[%c0_12, %c0_13], %11 {strides = array<i32>} : memref<16x128xf32, #tpu.memory_space<vmem>>, vector<16x128xf32>,
    %cst_14 = arith.constant 0.000000e+00 : f32
    %13 = vector.broadcast %cst_14 : f32 to vector<2x32xf32>
    %c0_15 = arith.constant 0 : index
    %c0_16 = arith.constant 0 : index
    %14 = vector.load %arg13[%c0_15, %c0_16] : memref<2x32xf32, #tpu.memory_space<vmem>>, vector<2x32xf32>
    tpu.vector_store %arg13[%c0_15, %c0_16], %13 {strides = array<i32>} : memref<2x32xf32, #tpu.memory_space<vmem>>, vector<2x32xf32>,
    %cst_17 = arith.constant 0.000000e+00 : f32
    %15 = vector.broadcast %cst_17 : f32 to vector<2x32xf32>
    %c0_18 = arith.constant 0 : index
    %c0_19 = arith.constant 0 : index
    %16 = vector.load %arg14[%c0_18, %c0_19] : memref<2x32xf32, #tpu.memory_space<vmem>>, vector<2x32xf32>
    tpu.vector_store %arg14[%c0_18, %c0_19], %15 {strides = array<i32>} : memref<2x32xf32, #tpu.memory_space<vmem>>, vector<2x32xf32>,
    %cst_20 = arith.constant 0.000000e+00 : f32
    %17 = vector.broadcast %cst_20 : f32 to vector<2x32xf32>
    %c0_21 = arith.constant 0 : index
    %c0_22 = arith.constant 0 : index
    %18 = vector.load %arg15[%c0_21, %c0_22] : memref<2x32xf32, #tpu.memory_space<vmem>>, vector<2x32xf32>
    tpu.vector_store %arg15[%c0_21, %c0_22], %17 {strides = array<i32>} : memref<2x32xf32, #tpu.memory_space<vmem>>, vector<2x32xf32>,
    %cst_23 = arith.constant 0.000000e+00 : f32
    %19 = vector.broadcast %cst_23 : f32 to vector<2x32xf32>
    %c0_24 = arith.constant 0 : index
    %c0_25 = arith.constant 0 : index
    %20 = vector.load %arg16[%c0_24, %c0_25] : memref<2x32xf32, #tpu.memory_space<vmem>>, vector<2x32xf32>
    tpu.vector_store %arg16[%c0_24, %c0_25], %19 {strides = array<i32>} : memref<2x32xf32, #tpu.memory_space<vmem>>, vector<2x32xf32>,
    %c0_26 = arith.constant 0 : index
    %c0_27 = arith.constant 0 : index
    %21 = vector.load %arg3[%c0_26, %c0_27] : memref<32x128xf32, #tpu.memory_space<vmem>>, vector<32x128xf32>
    %c0_28 = arith.constant 0 : index
    %c0_29 = arith.constant 0 : index
    %22 = vector.load %arg6[%c0_28, %c0_29] : memref<32x128xf32, #tpu.memory_space<vmem>>, vector<32x128xf32>
    %c0_i32 = arith.constant 0 : i32
    %c2_i32 = arith.constant 2 : i32
    %23 = arith.muli %c0_i32, %c2_i32 : i32
    %c7_i32 = arith.constant 7 : i32
    %24 = arith.subi %c7_i32, %c0_i32 : i32
    %c2_i32_30 = arith.constant 2 : i32
    %25 = arith.muli %24, %c2_i32_30 : i32
    %26 = arith.index_cast %23 : i32 to index
    %c0_31 = arith.constant 0 : index
    %27 = vector.load %arg9[%26, %c0_31] : memref<16x128xf32, #tpu.memory_space<vmem>>, vector<2x128xf32>
    %c0_32 = arith.constant 0 : index
    %c0_33 = arith.constant 0 : index
    %28 = vector.load %arg13[%c0_32, %c0_33] : memref<2x32xf32, #tpu.memory_space<vmem>>, vector<2x32xf32>
    %cst_34 = arith.constant dense<0.000000e+00> : vector<2x128xf32>
    %29 = tpu.matmul %28, %21, %cst_34 {dimension_numbers = #tpu.dot_dimension_numbers<[1], [0], [0], [1], [0, 0, 1, 1], [], []>} : vector<2x32xf32>, vector<32x128xf32>, vector<2x128xf32> -> vector<2x128xf32>
    %30 = arith.addf %27, %29 : vector<2x128xf32>
    %c0_35 = arith.constant 0 : index
    %c0_36 = arith.constant 0 : index
    %31 = vector.load %arg14[%c0_35, %c0_36] : memref<2x32xf32, #tpu.memory_space<vmem>>, vector<2x32xf32>
    %32 = vector.extract_strided_slice %30 {offsets = [0, 0], sizes = [2, 32], strides = [1, 1]} : vector<2x128xf32> to vector<2x32xf32>
    %33 = arith.negf %32 : vector<2x32xf32>
    %34 = math.exp %33 : vector<2x32xf32>
    %cst_37 = arith.constant 1.000000e+00 : f32
    %35 = vector.broadcast %cst_37 : f32 to vector<2x32xf32>
    %36 = arith.addf %35, %34 : vector<2x32xf32>
    %37 = arith.divf %35, %36 : vector<2x32xf32>
    %38 = vector.extract_strided_slice %30 {offsets = [0, 32], sizes = [2, 32], strides = [1, 1]} : vector<2x128xf32> to vector<2x32xf32>
    %39 = arith.negf %38 : vector<2x32xf32>
    %40 = math.exp %39 : vector<2x32xf32>
    %cst_38 = arith.constant 1.000000e+00 : f32
    %41 = vector.broadcast %cst_38 : f32 to vector<2x32xf32>
    %42 = arith.addf %41, %40 : vector<2x32xf32>
    %43 = arith.divf %41, %42 : vector<2x32xf32>
    %44 = vector.extract_strided_slice %30 {offsets = [0, 64], sizes = [2, 32], strides = [1, 1]} : vector<2x128xf32> to vector<2x32xf32>
    %45 = math.tanh %44 : vector<2x32xf32>
    %46 = vector.extract_strided_slice %30 {offsets = [0, 96], sizes = [2, 32], strides = [1, 1]} : vector<2x128xf32> to vector<2x32xf32>
    %47 = arith.negf %46 : vector<2x32xf32>
    %48 = math.exp %47 : vector<2x32xf32>
    %cst_39 = arith.constant 1.000000e+00 : f32
    %49 = vector.broadcast %cst_39 : f32 to vector<2x32xf32>
    %50 = arith.addf %49, %48 : vector<2x32xf32>
    %51 = arith.divf %49, %50 : vector<2x32xf32>
    %52 = arith.mulf %43, %31 : vector<2x32xf32>
    %53 = arith.mulf %37, %45 : vector<2x32xf32>
    %54 = arith.addf %52, %53 : vector<2x32xf32>
    %55 = math.tanh %54 : vector<2x32xf32>
    %56 = arith.mulf %51, %55 : vector<2x32xf32>
    %c0_40 = arith.constant 0 : index
    %c0_41 = arith.constant 0 : index
    %57 = vector.load %arg13[%c0_40, %c0_41] : memref<2x32xf32, #tpu.memory_space<vmem>>, vector<2x32xf32>
    tpu.vector_store %arg13[%c0_40, %c0_41], %56 {strides = array<i32>} : memref<2x32xf32, #tpu.memory_space<vmem>>, vector<2x32xf32>,
    %c0_42 = arith.constant 0 : index
    %c0_43 = arith.constant 0 : index
    %58 = vector.load %arg14[%c0_42, %c0_43] : memref<2x32xf32, #tpu.memory_space<vmem>>, vector<2x32xf32>
    tpu.vector_store %arg14[%c0_42, %c0_43], %54 {strides = array<i32>} : memref<2x32xf32, #tpu.memory_space<vmem>>, vector<2x32xf32>,
    %59 = arith.index_cast %23 : i32 to index
    %c0_44 = arith.constant 0 : index
    %60 = vector.load %arg11[%59, %c0_44] : memref<16x32xf32, #tpu.memory_space<vmem>>, vector<2x32xf32>
    tpu.vector_store %arg11[%59, %c0_44], %56 {strides = array<i32>} : memref<16x32xf32, #tpu.memory_space<vmem>>, vector<2x32xf32>,
    %61 = arith.index_cast %25 : i32 to index
    %c0_45 = arith.constant 0 : index
    %62 = vector.load %arg10[%61, %c0_45] : memref<16x128xf32, #tpu.memory_space<vmem>>, vector<2x128xf32>
    %c0_46 = arith.constant 0 : index
    %c0_47 = arith.constant 0 : index
    %63 = vector.load %arg15[%c0_46, %c0_47] : memref<2x32xf32, #tpu.memory_space<vmem>>, vector<2x32xf32>
    %cst_48 = arith.constant dense<0.000000e+00> : vector<2x128xf32>
    %64 = tpu.matmul %63, %22, %cst_48 {dimension_numbers = #tpu.dot_dimension_numbers<[1], [0], [0], [1], [0, 0, 1, 1], [], []>} : vector<2x32xf32>, vector<32x128xf32>, vector<2x128xf32> -> vector<2x128xf32>
    %65 = arith.addf %62, %64 : vector<2x128xf32>
    %c0_49 = arith.constant 0 : index
    %c0_50 = arith.constant 0 : index
    %66 = vector.load %arg16[%c0_49, %c0_50] : memref<2x32xf32, #tpu.memory_space<vmem>>, vector<2x32xf32>
    %67 = vector.extract_strided_slice %65 {offsets = [0, 0], sizes = [2, 32], strides = [1, 1]} : vector<2x128xf32> to vector<2x32xf32>
    %68 = arith.negf %67 : vector<2x32xf32>
    %69 = math.exp %68 : vector<2x32xf32>
    %cst_51 = arith.constant 1.000000e+00 : f32
    %70 = vector.broadcast %cst_51 : f32 to vector<2x32xf32>
    %71 = arith.addf %70, %69 : vector<2x32xf32>
    %72 = arith.divf %70, %71 : vector<2x32xf32>
    %73 = vector.extract_strided_slice %65 {offsets = [0, 32], sizes = [2, 32], strides = [1, 1]} : vector<2x128xf32> to vector<2x32xf32>
    %74 = arith.negf %73 : vector<2x32xf32>
    %75 = math.exp %74 : vector<2x32xf32>
    %cst_52 = arith.constant 1.000000e+00 : f32
    %76 = vector.broadcast %cst_52 : f32 to vector<2x32xf32>
    %77 = arith.addf %76, %75 : vector<2x32xf32>
    %78 = arith.divf %76, %77 : vector<2x32xf32>
    %79 = vector.extract_strided_slice %65 {offsets = [0, 64], sizes = [2, 32], strides = [1, 1]} : vector<2x128xf32> to vector<2x32xf32>
    %80 = math.tanh %79 : vector<2x32xf32>
    %81 = vector.extract_strided_slice %65 {offsets = [0, 96], sizes = [2, 32], strides = [1, 1]} : vector<2x128xf32> to vector<2x32xf32>
    %82 = arith.negf %81 : vector<2x32xf32>
    %83 = math.exp %82 : vector<2x32xf32>
    %cst_53 = arith.constant 1.000000e+00 : f32
    %84 = vector.broadcast %cst_53 : f32 to vector<2x32xf32>
    %85 = arith.addf %84, %83 : vector<2x32xf32>
    %86 = arith.divf %84, %85 : vector<2x32xf32>
    %87 = arith.mulf %78, %66 : vector<2x32xf32>
    %88 = arith.mulf %72, %80 : vector<2x32xf32>
    %89 = arith.addf %87, %88 : vector<2x32xf32>
    %90 = math.tanh %89 : vector<2x32xf32>
    %91 = arith.mulf %86, %90 : vector<2x32xf32>
    %c0_54 = arith.constant 0 : index
    %c0_55 = arith.constant 0 : index
    %92 = vector.load %arg15[%c0_54, %c0_55] : memref<2x32xf32, #tpu.memory_space<vmem>>, vector<2x32xf32>
    tpu.vector_store %arg15[%c0_54, %c0_55], %91 {strides = array<i32>} : memref<2x32xf32, #tpu.memory_space<vmem>>, vector<2x32xf32>,
    %c0_56 = arith.constant 0 : index
    %c0_57 = arith.constant 0 : index
    %93 = vector.load %arg16[%c0_56, %c0_57] : memref<2x32xf32, #tpu.memory_space<vmem>>, vector<2x32xf32>
    tpu.vector_store %arg16[%c0_56, %c0_57], %89 {strides = array<i32>} : memref<2x32xf32, #tpu.memory_space<vmem>>, vector<2x32xf32>,
    %94 = arith.index_cast %25 : i32 to index
    %c0_58 = arith.constant 0 : index
    %95 = vector.load %arg12[%94, %c0_58] : memref<16x32xf32, #tpu.memory_space<vmem>>, vector<2x32xf32>
    tpu.vector_store %arg12[%94, %c0_58], %91 {strides = array<i32>} : memref<16x32xf32, #tpu.memory_space<vmem>>, vector<2x32xf32>,
    %c1_i32 = arith.constant 1 : i32
    %c2_i32_59 = arith.constant 2 : i32
    %96 = arith.muli %c1_i32, %c2_i32_59 : i32
    %c7_i32_60 = arith.constant 7 : i32
    %97 = arith.subi %c7_i32_60, %c1_i32 : i32
    %c2_i32_61 = arith.constant 2 : i32
    %98 = arith.muli %97, %c2_i32_61 : i32
    %99 = arith.index_cast %96 : i32 to index
    %c0_62 = arith.constant 0 : index
    %100 = vector.load %arg9[%99, %c0_62] : memref<16x128xf32, #tpu.memory_space<vmem>>, vector<2x128xf32>
    %c0_63 = arith.constant 0 : index
    %c0_64 = arith.constant 0 : index
    %101 = vector.load %arg13[%c0_63, %c0_64] : memref<2x32xf32, #tpu.memory_space<vmem>>, vector<2x32xf32>
    %cst_65 = arith.constant dense<0.000000e+00> : vector<2x128xf32>
    %102 = tpu.matmul %101, %21, %cst_65 {dimension_numbers = #tpu.dot_dimension_numbers<[1], [0], [0], [1], [0, 0, 1, 1], [], []>} : vector<2x32xf32>, vector<32x128xf32>, vector<2x128xf32> -> vector<2x128xf32>
    %103 = arith.addf %100, %102 : vector<2x128xf32>
    %c0_66 = arith.constant 0 : index
    %c0_67 = arith.constant 0 : index
    %104 = vector.load %arg14[%c0_66, %c0_67] : memref<2x32xf32, #tpu.memory_space<vmem>>, vector<2x32xf32>
    %105 = vector.extract_strided_slice %103 {offsets = [0, 0], sizes = [2, 32], strides = [1, 1]} : vector<2x128xf32> to vector<2x32xf32>
    %106 = arith.negf %105 : vector<2x32xf32>
    %107 = math.exp %106 : vector<2x32xf32>
    %cst_68 = arith.constant 1.000000e+00 : f32
    %108 = vector.broadcast %cst_68 : f32 to vector<2x32xf32>
    %109 = arith.addf %108, %107 : vector<2x32xf32>
    %110 = arith.divf %108, %109 : vector<2x32xf32>
    %111 = vector.extract_strided_slice %103 {offsets = [0, 32], sizes = [2, 32], strides = [1, 1]} : vector<2x128xf32> to vector<2x32xf32>
    %112 = arith.negf %111 : vector<2x32xf32>
    %113 = math.exp %112 : vector<2x32xf32>
    %cst_69 = arith.constant 1.000000e+00 : f32
    %114 = vector.broadcast %cst_69 : f32 to vector<2x32xf32>
    %115 = arith.addf %114, %113 : vector<2x32xf32>
    %116 = arith.divf %114, %115 : vector<2x32xf32>
    %117 = vector.extract_strided_slice %103 {offsets = [0, 64], sizes = [2, 32], strides = [1, 1]} : vector<2x128xf32> to vector<2x32xf32>
    %118 = math.tanh %117 : vector<2x32xf32>
    %119 = vector.extract_strided_slice %103 {offsets = [0, 96], sizes = [2, 32], strides = [1, 1]} : vector<2x128xf32> to vector<2x32xf32>
    %120 = arith.negf %119 : vector<2x32xf32>
    %121 = math.exp %120 : vector<2x32xf32>
    %cst_70 = arith.constant 1.000000e+00 : f32
    %122 = vector.broadcast %cst_70 : f32 to vector<2x32xf32>
    %123 = arith.addf %122, %121 : vector<2x32xf32>
    %124 = arith.divf %122, %123 : vector<2x32xf32>
    %125 = arith.mulf %116, %104 : vector<2x32xf32>
    %126 = arith.mulf %110, %118 : vector<2x32xf32>
    %127 = arith.addf %125, %126 : vector<2x32xf32>
    %128 = math.tanh %127 : vector<2x32xf32>
    %129 = arith.mulf %124, %128 : vector<2x32xf32>
    %c0_71 = arith.constant 0 : index
    %c0_72 = arith.constant 0 : index
    %130 = vector.load %arg13[%c0_71, %c0_72] : memref<2x32xf32, #tpu.memory_space<vmem>>, vector<2x32xf32>
    tpu.vector_store %arg13[%c0_71, %c0_72], %129 {strides = array<i32>} : memref<2x32xf32, #tpu.memory_space<vmem>>, vector<2x32xf32>,
    %c0_73 = arith.constant 0 : index
    %c0_74 = arith.constant 0 : index
    %131 = vector.load %arg14[%c0_73, %c0_74] : memref<2x32xf32, #tpu.memory_space<vmem>>, vector<2x32xf32>
    tpu.vector_store %arg14[%c0_73, %c0_74], %127 {strides = array<i32>} : memref<2x32xf32, #tpu.memory_space<vmem>>, vector<2x32xf32>,
    %132 = arith.index_cast %96 : i32 to index
    %c0_75 = arith.constant 0 : index
    %133 = vector.load %arg11[%132, %c0_75] : memref<16x32xf32, #tpu.memory_space<vmem>>, vector<2x32xf32>
    tpu.vector_store %arg11[%132, %c0_75], %129 {strides = array<i32>} : memref<16x32xf32, #tpu.memory_space<vmem>>, vector<2x32xf32>,
    %134 = arith.index_cast %98 : i32 to index
    %c0_76 = arith.constant 0 : index
    %135 = vector.load %arg10[%134, %c0_76] : memref<16x128xf32, #tpu.memory_space<vmem>>, vector<2x128xf32>
    %c0_77 = arith.constant 0 : index
    %c0_78 = arith.constant 0 : index
    %136 = vector.load %arg15[%c0_77, %c0_78] : memref<2x32xf32, #tpu.memory_space<vmem>>, vector<2x32xf32>
    %cst_79 = arith.constant dense<0.000000e+00> : vector<2x128xf32>
    %137 = tpu.matmul %136, %22, %cst_79 {dimension_numbers = #tpu.dot_dimension_numbers<[1], [0], [0], [1], [0, 0, 1, 1], [], []>} : vector<2x32xf32>, vector<32x128xf32>, vector<2x128xf32> -> vector<2x128xf32>
    %138 = arith.addf %135, %137 : vector<2x128xf32>
    %c0_80 = arith.constant 0 : index
    %c0_81 = arith.constant 0 : index
    %139 = vector.load %arg16[%c0_80, %c0_81] : memref<2x32xf32, #tpu.memory_space<vmem>>, vector<2x32xf32>
    %140 = vector.extract_strided_slice %138 {offsets = [0, 0], sizes = [2, 32], strides = [1, 1]} : vector<2x128xf32> to vector<2x32xf32>
    %141 = arith.negf %140 : vector<2x32xf32>
    %142 = math.exp %141 : vector<2x32xf32>
    %cst_82 = arith.constant 1.000000e+00 : f32
    %143 = vector.broadcast %cst_82 : f32 to vector<2x32xf32>
    %144 = arith.addf %143, %142 : vector<2x32xf32>
    %145 = arith.divf %143, %144 : vector<2x32xf32>
    %146 = vector.extract_strided_slice %138 {offsets = [0, 32], sizes = [2, 32], strides = [1, 1]} : vector<2x128xf32> to vector<2x32xf32>
    %147 = arith.negf %146 : vector<2x32xf32>
    %148 = math.exp %147 : vector<2x32xf32>
    %cst_83 = arith.constant 1.000000e+00 : f32
    %149 = vector.broadcast %cst_83 : f32 to vector<2x32xf32>
    %150 = arith.addf %149, %148 : vector<2x32xf32>
    %151 = arith.divf %149, %150 : vector<2x32xf32>
    %152 = vector.extract_strided_slice %138 {offsets = [0, 64], sizes = [2, 32], strides = [1, 1]} : vector<2x128xf32> to vector<2x32xf32>
    %153 = math.tanh %152 : vector<2x32xf32>
    %154 = vector.extract_strided_slice %138 {offsets = [0, 96], sizes = [2, 32], strides = [1, 1]} : vector<2x128xf32> to vector<2x32xf32>
    %155 = arith.negf %154 : vector<2x32xf32>
    %156 = math.exp %155 : vector<2x32xf32>
    %cst_84 = arith.constant 1.000000e+00 : f32
    %157 = vector.broadcast %cst_84 : f32 to vector<2x32xf32>
    %158 = arith.addf %157, %156 : vector<2x32xf32>
    %159 = arith.divf %157, %158 : vector<2x32xf32>
    %160 = arith.mulf %151, %139 : vector<2x32xf32>
    %161 = arith.mulf %145, %153 : vector<2x32xf32>
    %162 = arith.addf %160, %161 : vector<2x32xf32>
    %163 = math.tanh %162 : vector<2x32xf32>
    %164 = arith.mulf %159, %163 : vector<2x32xf32>
    %c0_85 = arith.constant 0 : index
    %c0_86 = arith.constant 0 : index
    %165 = vector.load %arg15[%c0_85, %c0_86] : memref<2x32xf32, #tpu.memory_space<vmem>>, vector<2x32xf32>
    tpu.vector_store %arg15[%c0_85, %c0_86], %164 {strides = array<i32>} : memref<2x32xf32, #tpu.memory_space<vmem>>, vector<2x32xf32>,
    %c0_87 = arith.constant 0 : index
    %c0_88 = arith.constant 0 : index
    %166 = vector.load %arg16[%c0_87, %c0_88] : memref<2x32xf32, #tpu.memory_space<vmem>>, vector<2x32xf32>
    tpu.vector_store %arg16[%c0_87, %c0_88], %162 {strides = array<i32>} : memref<2x32xf32, #tpu.memory_space<vmem>>, vector<2x32xf32>,
    %167 = arith.index_cast %98 : i32 to index
    %c0_89 = arith.constant 0 : index
    %168 = vector.load %arg12[%167, %c0_89] : memref<16x32xf32, #tpu.memory_space<vmem>>, vector<2x32xf32>
    tpu.vector_store %arg12[%167, %c0_89], %164 {strides = array<i32>} : memref<16x32xf32, #tpu.memory_space<vmem>>, vector<2x32xf32>,
    %c2_i32_90 = arith.constant 2 : i32
    %c2_i32_91 = arith.constant 2 : i32
    %169 = arith.muli %c2_i32_90, %c2_i32_91 : i32
    %c7_i32_92 = arith.constant 7 : i32
    %170 = arith.subi %c7_i32_92, %c2_i32_90 : i32
    %c2_i32_93 = arith.constant 2 : i32
    %171 = arith.muli %170, %c2_i32_93 : i32
    %172 = arith.index_cast %169 : i32 to index
    %c0_94 = arith.constant 0 : index
    %173 = vector.load %arg9[%172, %c0_94] : memref<16x128xf32, #tpu.memory_space<vmem>>, vector<2x128xf32>
    %c0_95 = arith.constant 0 : index
    %c0_96 = arith.constant 0 : index
    %174 = vector.load %arg13[%c0_95, %c0_96] : memref<2x32xf32, #tpu.memory_space<vmem>>, vector<2x32xf32>
    %cst_97 = arith.constant dense<0.000000e+00> : vector<2x128xf32>
    %175 = tpu.matmul %174, %21, %cst_97 {dimension_numbers = #tpu.dot_dimension_numbers<[1], [0], [0], [1], [0, 0, 1, 1], [], []>} : vector<2x32xf32>, vector<32x128xf32>, vector<2x128xf32> -> vector<2x128xf32>
    %176 = arith.addf %173, %175 : vector<2x128xf32>
    %c0_98 = arith.constant 0 : index
    %c0_99 = arith.constant 0 : index
    %177 = vector.load %arg14[%c0_98, %c0_99] : memref<2x32xf32, #tpu.memory_space<vmem>>, vector<2x32xf32>
    %178 = vector.extract_strided_slice %176 {offsets = [0, 0], sizes = [2, 32], strides = [1, 1]} : vector<2x128xf32> to vector<2x32xf32>
    %179 = arith.negf %178 : vector<2x32xf32>
    %180 = math.exp %179 : vector<2x32xf32>
    %cst_100 = arith.constant 1.000000e+00 : f32
    %181 = vector.broadcast %cst_100 : f32 to vector<2x32xf32>
    %182 = arith.addf %181, %180 : vector<2x32xf32>
    %183 = arith.divf %181, %182 : vector<2x32xf32>
    %184 = vector.extract_strided_slice %176 {offsets = [0, 32], sizes = [2, 32], strides = [1, 1]} : vector<2x128xf32> to vector<2x32xf32>
    %185 = arith.negf %184 : vector<2x32xf32>
    %186 = math.exp %185 : vector<2x32xf32>
    %cst_101 = arith.constant 1.000000e+00 : f32
    %187 = vector.broadcast %cst_101 : f32 to vector<2x32xf32>
    %188 = arith.addf %187, %186 : vector<2x32xf32>
    %189 = arith.divf %187, %188 : vector<2x32xf32>
    %190 = vector.extract_strided_slice %176 {offsets = [0, 64], sizes = [2, 32], strides = [1, 1]} : vector<2x128xf32> to vector<2x32xf32>
    %191 = math.tanh %190 : vector<2x32xf32>
    %192 = vector.extract_strided_slice %176 {offsets = [0, 96], sizes = [2, 32], strides = [1, 1]} : vector<2x128xf32> to vector<2x32xf32>
    %193 = arith.negf %192 : vector<2x32xf32>
    %194 = math.exp %193 : vector<2x32xf32>
    %cst_102 = arith.constant 1.000000e+00 : f32
    %195 = vector.broadcast %cst_102 : f32 to vector<2x32xf32>
    %196 = arith.addf %195, %194 : vector<2x32xf32>
    %197 = arith.divf %195, %196 : vector<2x32xf32>
    %198 = arith.mulf %189, %177 : vector<2x32xf32>
    %199 = arith.mulf %183, %191 : vector<2x32xf32>
    %200 = arith.addf %198, %199 : vector<2x32xf32>
    %201 = math.tanh %200 : vector<2x32xf32>
    %202 = arith.mulf %197, %201 : vector<2x32xf32>
    %c0_103 = arith.constant 0 : index
    %c0_104 = arith.constant 0 : index
    %203 = vector.load %arg13[%c0_103, %c0_104] : memref<2x32xf32, #tpu.memory_space<vmem>>, vector<2x32xf32>
    tpu.vector_store %arg13[%c0_103, %c0_104], %202 {strides = array<i32>} : memref<2x32xf32, #tpu.memory_space<vmem>>, vector<2x32xf32>,
    %c0_105 = arith.constant 0 : index
    %c0_106 = arith.constant 0 : index
    %204 = vector.load %arg14[%c0_105, %c0_106] : memref<2x32xf32, #tpu.memory_space<vmem>>, vector<2x32xf32>
    tpu.vector_store %arg14[%c0_105, %c0_106], %200 {strides = array<i32>} : memref<2x32xf32, #tpu.memory_space<vmem>>, vector<2x32xf32>,
    %205 = arith.index_cast %169 : i32 to index
    %c0_107 = arith.constant 0 : index
    %206 = vector.load %arg11[%205, %c0_107] : memref<16x32xf32, #tpu.memory_space<vmem>>, vector<2x32xf32>
    tpu.vector_store %arg11[%205, %c0_107], %202 {strides = array<i32>} : memref<16x32xf32, #tpu.memory_space<vmem>>, vector<2x32xf32>,
    %207 = arith.index_cast %171 : i32 to index
    %c0_108 = arith.constant 0 : index
    %208 = vector.load %arg10[%207, %c0_108] : memref<16x128xf32, #tpu.memory_space<vmem>>, vector<2x128xf32>
    %c0_109 = arith.constant 0 : index
    %c0_110 = arith.constant 0 : index
    %209 = vector.load %arg15[%c0_109, %c0_110] : memref<2x32xf32, #tpu.memory_space<vmem>>, vector<2x32xf32>
    %cst_111 = arith.constant dense<0.000000e+00> : vector<2x128xf32>
    %210 = tpu.matmul %209, %22, %cst_111 {dimension_numbers = #tpu.dot_dimension_numbers<[1], [0], [0], [1], [0, 0, 1, 1], [], []>} : vector<2x32xf32>, vector<32x128xf32>, vector<2x128xf32> -> vector<2x128xf32>
    %211 = arith.addf %208, %210 : vector<2x128xf32>
    %c0_112 = arith.constant 0 : index
    %c0_113 = arith.constant 0 : index
    %212 = vector.load %arg16[%c0_112, %c0_113] : memref<2x32xf32, #tpu.memory_space<vmem>>, vector<2x32xf32>
    %213 = vector.extract_strided_slice %211 {offsets = [0, 0], sizes = [2, 32], strides = [1, 1]} : vector<2x128xf32> to vector<2x32xf32>
    %214 = arith.negf %213 : vector<2x32xf32>
    %215 = math.exp %214 : vector<2x32xf32>
    %cst_114 = arith.constant 1.000000e+00 : f32
    %216 = vector.broadcast %cst_114 : f32 to vector<2x32xf32>
    %217 = arith.addf %216, %215 : vector<2x32xf32>
    %218 = arith.divf %216, %217 : vector<2x32xf32>
    %219 = vector.extract_strided_slice %211 {offsets = [0, 32], sizes = [2, 32], strides = [1, 1]} : vector<2x128xf32> to vector<2x32xf32>
    %220 = arith.negf %219 : vector<2x32xf32>
    %221 = math.exp %220 : vector<2x32xf32>
    %cst_115 = arith.constant 1.000000e+00 : f32
    %222 = vector.broadcast %cst_115 : f32 to vector<2x32xf32>
    %223 = arith.addf %222, %221 : vector<2x32xf32>
    %224 = arith.divf %222, %223 : vector<2x32xf32>
    %225 = vector.extract_strided_slice %211 {offsets = [0, 64], sizes = [2, 32], strides = [1, 1]} : vector<2x128xf32> to vector<2x32xf32>
    %226 = math.tanh %225 : vector<2x32xf32>
    %227 = vector.extract_strided_slice %211 {offsets = [0, 96], sizes = [2, 32], strides = [1, 1]} : vector<2x128xf32> to vector<2x32xf32>
    %228 = arith.negf %227 : vector<2x32xf32>
    %229 = math.exp %228 : vector<2x32xf32>
    %cst_116 = arith.constant 1.000000e+00 : f32
    %230 = vector.broadcast %cst_116 : f32 to vector<2x32xf32>
    %231 = arith.addf %230, %229 : vector<2x32xf32>
    %232 = arith.divf %230, %231 : vector<2x32xf32>
    %233 = arith.mulf %224, %212 : vector<2x32xf32>
    %234 = arith.mulf %218, %226 : vector<2x32xf32>
    %235 = arith.addf %233, %234 : vector<2x32xf32>
    %236 = math.tanh %235 : vector<2x32xf32>
    %237 = arith.mulf %232, %236 : vector<2x32xf32>
    %c0_117 = arith.constant 0 : index
    %c0_118 = arith.constant 0 : index
    %238 = vector.load %arg15[%c0_117, %c0_118] : memref<2x32xf32, #tpu.memory_space<vmem>>, vector<2x32xf32>
    tpu.vector_store %arg15[%c0_117, %c0_118], %237 {strides = array<i32>} : memref<2x32xf32, #tpu.memory_space<vmem>>, vector<2x32xf32>,
    %c0_119 = arith.constant 0 : index
    %c0_120 = arith.constant 0 : index
    %239 = vector.load %arg16[%c0_119, %c0_120] : memref<2x32xf32, #tpu.memory_space<vmem>>, vector<2x32xf32>
    tpu.vector_store %arg16[%c0_119, %c0_120], %235 {strides = array<i32>} : memref<2x32xf32, #tpu.memory_space<vmem>>, vector<2x32xf32>,
    %240 = arith.index_cast %171 : i32 to index
    %c0_121 = arith.constant 0 : index
    %241 = vector.load %arg12[%240, %c0_121] : memref<16x32xf32, #tpu.memory_space<vmem>>, vector<2x32xf32>
    tpu.vector_store %arg12[%240, %c0_121], %237 {strides = array<i32>} : memref<16x32xf32, #tpu.memory_space<vmem>>, vector<2x32xf32>,
    %c3_i32 = arith.constant 3 : i32
    %c2_i32_122 = arith.constant 2 : i32
    %242 = arith.muli %c3_i32, %c2_i32_122 : i32
    %c7_i32_123 = arith.constant 7 : i32
    %243 = arith.subi %c7_i32_123, %c3_i32 : i32
    %c2_i32_124 = arith.constant 2 : i32
    %244 = arith.muli %243, %c2_i32_124 : i32
    %245 = arith.index_cast %242 : i32 to index
    %c0_125 = arith.constant 0 : index
    %246 = vector.load %arg9[%245, %c0_125] : memref<16x128xf32, #tpu.memory_space<vmem>>, vector<2x128xf32>
    %c0_126 = arith.constant 0 : index
    %c0_127 = arith.constant 0 : index
    %247 = vector.load %arg13[%c0_126, %c0_127] : memref<2x32xf32, #tpu.memory_space<vmem>>, vector<2x32xf32>
    %cst_128 = arith.constant dense<0.000000e+00> : vector<2x128xf32>
    %248 = tpu.matmul %247, %21, %cst_128 {dimension_numbers = #tpu.dot_dimension_numbers<[1], [0], [0], [1], [0, 0, 1, 1], [], []>} : vector<2x32xf32>, vector<32x128xf32>, vector<2x128xf32> -> vector<2x128xf32>
    %249 = arith.addf %246, %248 : vector<2x128xf32>
    %c0_129 = arith.constant 0 : index
    %c0_130 = arith.constant 0 : index
    %250 = vector.load %arg14[%c0_129, %c0_130] : memref<2x32xf32, #tpu.memory_space<vmem>>, vector<2x32xf32>
    %251 = vector.extract_strided_slice %249 {offsets = [0, 0], sizes = [2, 32], strides = [1, 1]} : vector<2x128xf32> to vector<2x32xf32>
    %252 = arith.negf %251 : vector<2x32xf32>
    %253 = math.exp %252 : vector<2x32xf32>
    %cst_131 = arith.constant 1.000000e+00 : f32
    %254 = vector.broadcast %cst_131 : f32 to vector<2x32xf32>
    %255 = arith.addf %254, %253 : vector<2x32xf32>
    %256 = arith.divf %254, %255 : vector<2x32xf32>
    %257 = vector.extract_strided_slice %249 {offsets = [0, 32], sizes = [2, 32], strides = [1, 1]} : vector<2x128xf32> to vector<2x32xf32>
    %258 = arith.negf %257 : vector<2x32xf32>
    %259 = math.exp %258 : vector<2x32xf32>
    %cst_132 = arith.constant 1.000000e+00 : f32
    %260 = vector.broadcast %cst_132 : f32 to vector<2x32xf32>
    %261 = arith.addf %260, %259 : vector<2x32xf32>
    %262 = arith.divf %260, %261 : vector<2x32xf32>
    %263 = vector.extract_strided_slice %249 {offsets = [0, 64], sizes = [2, 32], strides = [1, 1]} : vector<2x128xf32> to vector<2x32xf32>
    %264 = math.tanh %263 : vector<2x32xf32>
    %265 = vector.extract_strided_slice %249 {offsets = [0, 96], sizes = [2, 32], strides = [1, 1]} : vector<2x128xf32> to vector<2x32xf32>
    %266 = arith.negf %265 : vector<2x32xf32>
    %267 = math.exp %266 : vector<2x32xf32>
    %cst_133 = arith.constant 1.000000e+00 : f32
    %268 = vector.broadcast %cst_133 : f32 to vector<2x32xf32>
    %269 = arith.addf %268, %267 : vector<2x32xf32>
    %270 = arith.divf %268, %269 : vector<2x32xf32>
    %271 = arith.mulf %262, %250 : vector<2x32xf32>
    %272 = arith.mulf %256, %264 : vector<2x32xf32>
    %273 = arith.addf %271, %272 : vector<2x32xf32>
    %274 = math.tanh %273 : vector<2x32xf32>
    %275 = arith.mulf %270, %274 : vector<2x32xf32>
    %c0_134 = arith.constant 0 : index
    %c0_135 = arith.constant 0 : index
    %276 = vector.load %arg13[%c0_134, %c0_135] : memref<2x32xf32, #tpu.memory_space<vmem>>, vector<2x32xf32>
    tpu.vector_store %arg13[%c0_134, %c0_135], %275 {strides = array<i32>} : memref<2x32xf32, #tpu.memory_space<vmem>>, vector<2x32xf32>,
    %c0_136 = arith.constant 0 : index
    %c0_137 = arith.constant 0 : index
    %277 = vector.load %arg14[%c0_136, %c0_137] : memref<2x32xf32, #tpu.memory_space<vmem>>, vector<2x32xf32>
    tpu.vector_store %arg14[%c0_136, %c0_137], %273 {strides = array<i32>} : memref<2x32xf32, #tpu.memory_space<vmem>>, vector<2x32xf32>,
    %278 = arith.index_cast %242 : i32 to index
    %c0_138 = arith.constant 0 : index
    %279 = vector.load %arg11[%278, %c0_138] : memref<16x32xf32, #tpu.memory_space<vmem>>, vector<2x32xf32>
    tpu.vector_store %arg11[%278, %c0_138], %275 {strides = array<i32>} : memref<16x32xf32, #tpu.memory_space<vmem>>, vector<2x32xf32>,
    %280 = arith.index_cast %244 : i32 to index
    %c0_139 = arith.constant 0 : index
    %281 = vector.load %arg10[%280, %c0_139] : memref<16x128xf32, #tpu.memory_space<vmem>>, vector<2x128xf32>
    %c0_140 = arith.constant 0 : index
    %c0_141 = arith.constant 0 : index
    %282 = vector.load %arg15[%c0_140, %c0_141] : memref<2x32xf32, #tpu.memory_space<vmem>>, vector<2x32xf32>
    %cst_142 = arith.constant dense<0.000000e+00> : vector<2x128xf32>
    %283 = tpu.matmul %282, %22, %cst_142 {dimension_numbers = #tpu.dot_dimension_numbers<[1], [0], [0], [1], [0, 0, 1, 1], [], []>} : vector<2x32xf32>, vector<32x128xf32>, vector<2x128xf32> -> vector<2x128xf32>
    %284 = arith.addf %281, %283 : vector<2x128xf32>
    %c0_143 = arith.constant 0 : index
    %c0_144 = arith.constant 0 : index
    %285 = vector.load %arg16[%c0_143, %c0_144] : memref<2x32xf32, #tpu.memory_space<vmem>>, vector<2x32xf32>
    %286 = vector.extract_strided_slice %284 {offsets = [0, 0], sizes = [2, 32], strides = [1, 1]} : vector<2x128xf32> to vector<2x32xf32>
    %287 = arith.negf %286 : vector<2x32xf32>
    %288 = math.exp %287 : vector<2x32xf32>
    %cst_145 = arith.constant 1.000000e+00 : f32
    %289 = vector.broadcast %cst_145 : f32 to vector<2x32xf32>
    %290 = arith.addf %289, %288 : vector<2x32xf32>
    %291 = arith.divf %289, %290 : vector<2x32xf32>
    %292 = vector.extract_strided_slice %284 {offsets = [0, 32], sizes = [2, 32], strides = [1, 1]} : vector<2x128xf32> to vector<2x32xf32>
    %293 = arith.negf %292 : vector<2x32xf32>
    %294 = math.exp %293 : vector<2x32xf32>
    %cst_146 = arith.constant 1.000000e+00 : f32
    %295 = vector.broadcast %cst_146 : f32 to vector<2x32xf32>
    %296 = arith.addf %295, %294 : vector<2x32xf32>
    %297 = arith.divf %295, %296 : vector<2x32xf32>
    %298 = vector.extract_strided_slice %284 {offsets = [0, 64], sizes = [2, 32], strides = [1, 1]} : vector<2x128xf32> to vector<2x32xf32>
    %299 = math.tanh %298 : vector<2x32xf32>
    %300 = vector.extract_strided_slice %284 {offsets = [0, 96], sizes = [2, 32], strides = [1, 1]} : vector<2x128xf32> to vector<2x32xf32>
    %301 = arith.negf %300 : vector<2x32xf32>
    %302 = math.exp %301 : vector<2x32xf32>
    %cst_147 = arith.constant 1.000000e+00 : f32
    %303 = vector.broadcast %cst_147 : f32 to vector<2x32xf32>
    %304 = arith.addf %303, %302 : vector<2x32xf32>
    %305 = arith.divf %303, %304 : vector<2x32xf32>
    %306 = arith.mulf %297, %285 : vector<2x32xf32>
    %307 = arith.mulf %291, %299 : vector<2x32xf32>
    %308 = arith.addf %306, %307 : vector<2x32xf32>
    %309 = math.tanh %308 : vector<2x32xf32>
    %310 = arith.mulf %305, %309 : vector<2x32xf32>
    %c0_148 = arith.constant 0 : index
    %c0_149 = arith.constant 0 : index
    %311 = vector.load %arg15[%c0_148, %c0_149] : memref<2x32xf32, #tpu.memory_space<vmem>>, vector<2x32xf32>
    tpu.vector_store %arg15[%c0_148, %c0_149], %310 {strides = array<i32>} : memref<2x32xf32, #tpu.memory_space<vmem>>, vector<2x32xf32>,
    %c0_150 = arith.constant 0 : index
    %c0_151 = arith.constant 0 : index
    %312 = vector.load %arg16[%c0_150, %c0_151] : memref<2x32xf32, #tpu.memory_space<vmem>>, vector<2x32xf32>
    tpu.vector_store %arg16[%c0_150, %c0_151], %308 {strides = array<i32>} : memref<2x32xf32, #tpu.memory_space<vmem>>, vector<2x32xf32>,
    %313 = arith.index_cast %244 : i32 to index
    %c0_152 = arith.constant 0 : index
    %314 = vector.load %arg12[%313, %c0_152] : memref<16x32xf32, #tpu.memory_space<vmem>>, vector<2x32xf32>
    tpu.vector_store %arg12[%313, %c0_152], %310 {strides = array<i32>} : memref<16x32xf32, #tpu.memory_space<vmem>>, vector<2x32xf32>,
    %c4_i32 = arith.constant 4 : i32
    %c2_i32_153 = arith.constant 2 : i32
    %315 = arith.muli %c4_i32, %c2_i32_153 : i32
    %c7_i32_154 = arith.constant 7 : i32
    %316 = arith.subi %c7_i32_154, %c4_i32 : i32
    %c2_i32_155 = arith.constant 2 : i32
    %317 = arith.muli %316, %c2_i32_155 : i32
    %318 = arith.index_cast %315 : i32 to index
    %c0_156 = arith.constant 0 : index
    %319 = vector.load %arg9[%318, %c0_156] : memref<16x128xf32, #tpu.memory_space<vmem>>, vector<2x128xf32>
    %c0_157 = arith.constant 0 : index
    %c0_158 = arith.constant 0 : index
    %320 = vector.load %arg13[%c0_157, %c0_158] : memref<2x32xf32, #tpu.memory_space<vmem>>, vector<2x32xf32>
    %cst_159 = arith.constant dense<0.000000e+00> : vector<2x128xf32>
    %321 = tpu.matmul %320, %21, %cst_159 {dimension_numbers = #tpu.dot_dimension_numbers<[1], [0], [0], [1], [0, 0, 1, 1], [], []>} : vector<2x32xf32>, vector<32x128xf32>, vector<2x128xf32> -> vector<2x128xf32>
    %322 = arith.addf %319, %321 : vector<2x128xf32>
    %c0_160 = arith.constant 0 : index
    %c0_161 = arith.constant 0 : index
    %323 = vector.load %arg14[%c0_160, %c0_161] : memref<2x32xf32, #tpu.memory_space<vmem>>, vector<2x32xf32>
    %324 = vector.extract_strided_slice %322 {offsets = [0, 0], sizes = [2, 32], strides = [1, 1]} : vector<2x128xf32> to vector<2x32xf32>
    %325 = arith.negf %324 : vector<2x32xf32>
    %326 = math.exp %325 : vector<2x32xf32>
    %cst_162 = arith.constant 1.000000e+00 : f32
    %327 = vector.broadcast %cst_162 : f32 to vector<2x32xf32>
    %328 = arith.addf %327, %326 : vector<2x32xf32>
    %329 = arith.divf %327, %328 : vector<2x32xf32>
    %330 = vector.extract_strided_slice %322 {offsets = [0, 32], sizes = [2, 32], strides = [1, 1]} : vector<2x128xf32> to vector<2x32xf32>
    %331 = arith.negf %330 : vector<2x32xf32>
    %332 = math.exp %331 : vector<2x32xf32>
    %cst_163 = arith.constant 1.000000e+00 : f32
    %333 = vector.broadcast %cst_163 : f32 to vector<2x32xf32>
    %334 = arith.addf %333, %332 : vector<2x32xf32>
    %335 = arith.divf %333, %334 : vector<2x32xf32>
    %336 = vector.extract_strided_slice %322 {offsets = [0, 64], sizes = [2, 32], strides = [1, 1]} : vector<2x128xf32> to vector<2x32xf32>
    %337 = math.tanh %336 : vector<2x32xf32>
    %338 = vector.extract_strided_slice %322 {offsets = [0, 96], sizes = [2, 32], strides = [1, 1]} : vector<2x128xf32> to vector<2x32xf32>
    %339 = arith.negf %338 : vector<2x32xf32>
    %340 = math.exp %339 : vector<2x32xf32>
    %cst_164 = arith.constant 1.000000e+00 : f32
    %341 = vector.broadcast %cst_164 : f32 to vector<2x32xf32>
    %342 = arith.addf %341, %340 : vector<2x32xf32>
    %343 = arith.divf %341, %342 : vector<2x32xf32>
    %344 = arith.mulf %335, %323 : vector<2x32xf32>
    %345 = arith.mulf %329, %337 : vector<2x32xf32>
    %346 = arith.addf %344, %345 : vector<2x32xf32>
    %347 = math.tanh %346 : vector<2x32xf32>
    %348 = arith.mulf %343, %347 : vector<2x32xf32>
    %c0_165 = arith.constant 0 : index
    %c0_166 = arith.constant 0 : index
    %349 = vector.load %arg13[%c0_165, %c0_166] : memref<2x32xf32, #tpu.memory_space<vmem>>, vector<2x32xf32>
    tpu.vector_store %arg13[%c0_165, %c0_166], %348 {strides = array<i32>} : memref<2x32xf32, #tpu.memory_space<vmem>>, vector<2x32xf32>,
    %c0_167 = arith.constant 0 : index
    %c0_168 = arith.constant 0 : index
    %350 = vector.load %arg14[%c0_167, %c0_168] : memref<2x32xf32, #tpu.memory_space<vmem>>, vector<2x32xf32>
    tpu.vector_store %arg14[%c0_167, %c0_168], %346 {strides = array<i32>} : memref<2x32xf32, #tpu.memory_space<vmem>>, vector<2x32xf32>,
    %351 = arith.index_cast %315 : i32 to index
    %c0_169 = arith.constant 0 : index
    %352 = vector.load %arg11[%351, %c0_169] : memref<16x32xf32, #tpu.memory_space<vmem>>, vector<2x32xf32>
    tpu.vector_store %arg11[%351, %c0_169], %348 {strides = array<i32>} : memref<16x32xf32, #tpu.memory_space<vmem>>, vector<2x32xf32>,
    %353 = arith.index_cast %317 : i32 to index
    %c0_170 = arith.constant 0 : index
    %354 = vector.load %arg10[%353, %c0_170] : memref<16x128xf32, #tpu.memory_space<vmem>>, vector<2x128xf32>
    %c0_171 = arith.constant 0 : index
    %c0_172 = arith.constant 0 : index
    %355 = vector.load %arg15[%c0_171, %c0_172] : memref<2x32xf32, #tpu.memory_space<vmem>>, vector<2x32xf32>
    %cst_173 = arith.constant dense<0.000000e+00> : vector<2x128xf32>
    %356 = tpu.matmul %355, %22, %cst_173 {dimension_numbers = #tpu.dot_dimension_numbers<[1], [0], [0], [1], [0, 0, 1, 1], [], []>} : vector<2x32xf32>, vector<32x128xf32>, vector<2x128xf32> -> vector<2x128xf32>
    %357 = arith.addf %354, %356 : vector<2x128xf32>
    %c0_174 = arith.constant 0 : index
    %c0_175 = arith.constant 0 : index
    %358 = vector.load %arg16[%c0_174, %c0_175] : memref<2x32xf32, #tpu.memory_space<vmem>>, vector<2x32xf32>
    %359 = vector.extract_strided_slice %357 {offsets = [0, 0], sizes = [2, 32], strides = [1, 1]} : vector<2x128xf32> to vector<2x32xf32>
    %360 = arith.negf %359 : vector<2x32xf32>
    %361 = math.exp %360 : vector<2x32xf32>
    %cst_176 = arith.constant 1.000000e+00 : f32
    %362 = vector.broadcast %cst_176 : f32 to vector<2x32xf32>
    %363 = arith.addf %362, %361 : vector<2x32xf32>
    %364 = arith.divf %362, %363 : vector<2x32xf32>
    %365 = vector.extract_strided_slice %357 {offsets = [0, 32], sizes = [2, 32], strides = [1, 1]} : vector<2x128xf32> to vector<2x32xf32>
    %366 = arith.negf %365 : vector<2x32xf32>
    %367 = math.exp %366 : vector<2x32xf32>
    %cst_177 = arith.constant 1.000000e+00 : f32
    %368 = vector.broadcast %cst_177 : f32 to vector<2x32xf32>
    %369 = arith.addf %368, %367 : vector<2x32xf32>
    %370 = arith.divf %368, %369 : vector<2x32xf32>
    %371 = vector.extract_strided_slice %357 {offsets = [0, 64], sizes = [2, 32], strides = [1, 1]} : vector<2x128xf32> to vector<2x32xf32>
    %372 = math.tanh %371 : vector<2x32xf32>
    %373 = vector.extract_strided_slice %357 {offsets = [0, 96], sizes = [2, 32], strides = [1, 1]} : vector<2x128xf32> to vector<2x32xf32>
    %374 = arith.negf %373 : vector<2x32xf32>
    %375 = math.exp %374 : vector<2x32xf32>
    %cst_178 = arith.constant 1.000000e+00 : f32
    %376 = vector.broadcast %cst_178 : f32 to vector<2x32xf32>
    %377 = arith.addf %376, %375 : vector<2x32xf32>
    %378 = arith.divf %376, %377 : vector<2x32xf32>
    %379 = arith.mulf %370, %358 : vector<2x32xf32>
    %380 = arith.mulf %364, %372 : vector<2x32xf32>
    %381 = arith.addf %379, %380 : vector<2x32xf32>
    %382 = math.tanh %381 : vector<2x32xf32>
    %383 = arith.mulf %378, %382 : vector<2x32xf32>
    %c0_179 = arith.constant 0 : index
    %c0_180 = arith.constant 0 : index
    %384 = vector.load %arg15[%c0_179, %c0_180] : memref<2x32xf32, #tpu.memory_space<vmem>>, vector<2x32xf32>
    tpu.vector_store %arg15[%c0_179, %c0_180], %383 {strides = array<i32>} : memref<2x32xf32, #tpu.memory_space<vmem>>, vector<2x32xf32>,
    %c0_181 = arith.constant 0 : index
    %c0_182 = arith.constant 0 : index
    %385 = vector.load %arg16[%c0_181, %c0_182] : memref<2x32xf32, #tpu.memory_space<vmem>>, vector<2x32xf32>
    tpu.vector_store %arg16[%c0_181, %c0_182], %381 {strides = array<i32>} : memref<2x32xf32, #tpu.memory_space<vmem>>, vector<2x32xf32>,
    %386 = arith.index_cast %317 : i32 to index
    %c0_183 = arith.constant 0 : index
    %387 = vector.load %arg12[%386, %c0_183] : memref<16x32xf32, #tpu.memory_space<vmem>>, vector<2x32xf32>
    tpu.vector_store %arg12[%386, %c0_183], %383 {strides = array<i32>} : memref<16x32xf32, #tpu.memory_space<vmem>>, vector<2x32xf32>,
    %c5_i32 = arith.constant 5 : i32
    %c2_i32_184 = arith.constant 2 : i32
    %388 = arith.muli %c5_i32, %c2_i32_184 : i32
    %c7_i32_185 = arith.constant 7 : i32
    %389 = arith.subi %c7_i32_185, %c5_i32 : i32
    %c2_i32_186 = arith.constant 2 : i32
    %390 = arith.muli %389, %c2_i32_186 : i32
    %391 = arith.index_cast %388 : i32 to index
    %c0_187 = arith.constant 0 : index
    %392 = vector.load %arg9[%391, %c0_187] : memref<16x128xf32, #tpu.memory_space<vmem>>, vector<2x128xf32>
    %c0_188 = arith.constant 0 : index
    %c0_189 = arith.constant 0 : index
    %393 = vector.load %arg13[%c0_188, %c0_189] : memref<2x32xf32, #tpu.memory_space<vmem>>, vector<2x32xf32>
    %cst_190 = arith.constant dense<0.000000e+00> : vector<2x128xf32>
    %394 = tpu.matmul %393, %21, %cst_190 {dimension_numbers = #tpu.dot_dimension_numbers<[1], [0], [0], [1], [0, 0, 1, 1], [], []>} : vector<2x32xf32>, vector<32x128xf32>, vector<2x128xf32> -> vector<2x128xf32>
    %395 = arith.addf %392, %394 : vector<2x128xf32>
    %c0_191 = arith.constant 0 : index
    %c0_192 = arith.constant 0 : index
    %396 = vector.load %arg14[%c0_191, %c0_192] : memref<2x32xf32, #tpu.memory_space<vmem>>, vector<2x32xf32>
    %397 = vector.extract_strided_slice %395 {offsets = [0, 0], sizes = [2, 32], strides = [1, 1]} : vector<2x128xf32> to vector<2x32xf32>
    %398 = arith.negf %397 : vector<2x32xf32>
    %399 = math.exp %398 : vector<2x32xf32>
    %cst_193 = arith.constant 1.000000e+00 : f32
    %400 = vector.broadcast %cst_193 : f32 to vector<2x32xf32>
    %401 = arith.addf %400, %399 : vector<2x32xf32>
    %402 = arith.divf %400, %401 : vector<2x32xf32>
    %403 = vector.extract_strided_slice %395 {offsets = [0, 32], sizes = [2, 32], strides = [1, 1]} : vector<2x128xf32> to vector<2x32xf32>
    %404 = arith.negf %403 : vector<2x32xf32>
    %405 = math.exp %404 : vector<2x32xf32>
    %cst_194 = arith.constant 1.000000e+00 : f32
    %406 = vector.broadcast %cst_194 : f32 to vector<2x32xf32>
    %407 = arith.addf %406, %405 : vector<2x32xf32>
    %408 = arith.divf %406, %407 : vector<2x32xf32>
    %409 = vector.extract_strided_slice %395 {offsets = [0, 64], sizes = [2, 32], strides = [1, 1]} : vector<2x128xf32> to vector<2x32xf32>
    %410 = math.tanh %409 : vector<2x32xf32>
    %411 = vector.extract_strided_slice %395 {offsets = [0, 96], sizes = [2, 32], strides = [1, 1]} : vector<2x128xf32> to vector<2x32xf32>
    %412 = arith.negf %411 : vector<2x32xf32>
    %413 = math.exp %412 : vector<2x32xf32>
    %cst_195 = arith.constant 1.000000e+00 : f32
    %414 = vector.broadcast %cst_195 : f32 to vector<2x32xf32>
    %415 = arith.addf %414, %413 : vector<2x32xf32>
    %416 = arith.divf %414, %415 : vector<2x32xf32>
    %417 = arith.mulf %408, %396 : vector<2x32xf32>
    %418 = arith.mulf %402, %410 : vector<2x32xf32>
    %419 = arith.addf %417, %418 : vector<2x32xf32>
    %420 = math.tanh %419 : vector<2x32xf32>
    %421 = arith.mulf %416, %420 : vector<2x32xf32>
    %c0_196 = arith.constant 0 : index
    %c0_197 = arith.constant 0 : index
    %422 = vector.load %arg13[%c0_196, %c0_197] : memref<2x32xf32, #tpu.memory_space<vmem>>, vector<2x32xf32>
    tpu.vector_store %arg13[%c0_196, %c0_197], %421 {strides = array<i32>} : memref<2x32xf32, #tpu.memory_space<vmem>>, vector<2x32xf32>,
    %c0_198 = arith.constant 0 : index
    %c0_199 = arith.constant 0 : index
    %423 = vector.load %arg14[%c0_198, %c0_199] : memref<2x32xf32, #tpu.memory_space<vmem>>, vector<2x32xf32>
    tpu.vector_store %arg14[%c0_198, %c0_199], %419 {strides = array<i32>} : memref<2x32xf32, #tpu.memory_space<vmem>>, vector<2x32xf32>,
    %424 = arith.index_cast %388 : i32 to index
    %c0_200 = arith.constant 0 : index
    %425 = vector.load %arg11[%424, %c0_200] : memref<16x32xf32, #tpu.memory_space<vmem>>, vector<2x32xf32>
    tpu.vector_store %arg11[%424, %c0_200], %421 {strides = array<i32>} : memref<16x32xf32, #tpu.memory_space<vmem>>, vector<2x32xf32>,
    %426 = arith.index_cast %390 : i32 to index
    %c0_201 = arith.constant 0 : index
    %427 = vector.load %arg10[%426, %c0_201] : memref<16x128xf32, #tpu.memory_space<vmem>>, vector<2x128xf32>
    %c0_202 = arith.constant 0 : index
    %c0_203 = arith.constant 0 : index
    %428 = vector.load %arg15[%c0_202, %c0_203] : memref<2x32xf32, #tpu.memory_space<vmem>>, vector<2x32xf32>
    %cst_204 = arith.constant dense<0.000000e+00> : vector<2x128xf32>
    %429 = tpu.matmul %428, %22, %cst_204 {dimension_numbers = #tpu.dot_dimension_numbers<[1], [0], [0], [1], [0, 0, 1, 1], [], []>} : vector<2x32xf32>, vector<32x128xf32>, vector<2x128xf32> -> vector<2x128xf32>
    %430 = arith.addf %427, %429 : vector<2x128xf32>
    %c0_205 = arith.constant 0 : index
    %c0_206 = arith.constant 0 : index
    %431 = vector.load %arg16[%c0_205, %c0_206] : memref<2x32xf32, #tpu.memory_space<vmem>>, vector<2x32xf32>
    %432 = vector.extract_strided_slice %430 {offsets = [0, 0], sizes = [2, 32], strides = [1, 1]} : vector<2x128xf32> to vector<2x32xf32>
    %433 = arith.negf %432 : vector<2x32xf32>
    %434 = math.exp %433 : vector<2x32xf32>
    %cst_207 = arith.constant 1.000000e+00 : f32
    %435 = vector.broadcast %cst_207 : f32 to vector<2x32xf32>
    %436 = arith.addf %435, %434 : vector<2x32xf32>
    %437 = arith.divf %435, %436 : vector<2x32xf32>
    %438 = vector.extract_strided_slice %430 {offsets = [0, 32], sizes = [2, 32], strides = [1, 1]} : vector<2x128xf32> to vector<2x32xf32>
    %439 = arith.negf %438 : vector<2x32xf32>
    %440 = math.exp %439 : vector<2x32xf32>
    %cst_208 = arith.constant 1.000000e+00 : f32
    %441 = vector.broadcast %cst_208 : f32 to vector<2x32xf32>
    %442 = arith.addf %441, %440 : vector<2x32xf32>
    %443 = arith.divf %441, %442 : vector<2x32xf32>
    %444 = vector.extract_strided_slice %430 {offsets = [0, 64], sizes = [2, 32], strides = [1, 1]} : vector<2x128xf32> to vector<2x32xf32>
    %445 = math.tanh %444 : vector<2x32xf32>
    %446 = vector.extract_strided_slice %430 {offsets = [0, 96], sizes = [2, 32], strides = [1, 1]} : vector<2x128xf32> to vector<2x32xf32>
    %447 = arith.negf %446 : vector<2x32xf32>
    %448 = math.exp %447 : vector<2x32xf32>
    %cst_209 = arith.constant 1.000000e+00 : f32
    %449 = vector.broadcast %cst_209 : f32 to vector<2x32xf32>
    %450 = arith.addf %449, %448 : vector<2x32xf32>
    %451 = arith.divf %449, %450 : vector<2x32xf32>
    %452 = arith.mulf %443, %431 : vector<2x32xf32>
    %453 = arith.mulf %437, %445 : vector<2x32xf32>
    %454 = arith.addf %452, %453 : vector<2x32xf32>
    %455 = math.tanh %454 : vector<2x32xf32>
    %456 = arith.mulf %451, %455 : vector<2x32xf32>
    %c0_210 = arith.constant 0 : index
    %c0_211 = arith.constant 0 : index
    %457 = vector.load %arg15[%c0_210, %c0_211] : memref<2x32xf32, #tpu.memory_space<vmem>>, vector<2x32xf32>
    tpu.vector_store %arg15[%c0_210, %c0_211], %456 {strides = array<i32>} : memref<2x32xf32, #tpu.memory_space<vmem>>, vector<2x32xf32>,
    %c0_212 = arith.constant 0 : index
    %c0_213 = arith.constant 0 : index
    %458 = vector.load %arg16[%c0_212, %c0_213] : memref<2x32xf32, #tpu.memory_space<vmem>>, vector<2x32xf32>
    tpu.vector_store %arg16[%c0_212, %c0_213], %454 {strides = array<i32>} : memref<2x32xf32, #tpu.memory_space<vmem>>, vector<2x32xf32>,
    %459 = arith.index_cast %390 : i32 to index
    %c0_214 = arith.constant 0 : index
    %460 = vector.load %arg12[%459, %c0_214] : memref<16x32xf32, #tpu.memory_space<vmem>>, vector<2x32xf32>
    tpu.vector_store %arg12[%459, %c0_214], %456 {strides = array<i32>} : memref<16x32xf32, #tpu.memory_space<vmem>>, vector<2x32xf32>,
    %c6_i32 = arith.constant 6 : i32
    %c2_i32_215 = arith.constant 2 : i32
    %461 = arith.muli %c6_i32, %c2_i32_215 : i32
    %c7_i32_216 = arith.constant 7 : i32
    %462 = arith.subi %c7_i32_216, %c6_i32 : i32
    %c2_i32_217 = arith.constant 2 : i32
    %463 = arith.muli %462, %c2_i32_217 : i32
    %464 = arith.index_cast %461 : i32 to index
    %c0_218 = arith.constant 0 : index
    %465 = vector.load %arg9[%464, %c0_218] : memref<16x128xf32, #tpu.memory_space<vmem>>, vector<2x128xf32>
    %c0_219 = arith.constant 0 : index
    %c0_220 = arith.constant 0 : index
    %466 = vector.load %arg13[%c0_219, %c0_220] : memref<2x32xf32, #tpu.memory_space<vmem>>, vector<2x32xf32>
    %cst_221 = arith.constant dense<0.000000e+00> : vector<2x128xf32>
    %467 = tpu.matmul %466, %21, %cst_221 {dimension_numbers = #tpu.dot_dimension_numbers<[1], [0], [0], [1], [0, 0, 1, 1], [], []>} : vector<2x32xf32>, vector<32x128xf32>, vector<2x128xf32> -> vector<2x128xf32>
    %468 = arith.addf %465, %467 : vector<2x128xf32>
    %c0_222 = arith.constant 0 : index
    %c0_223 = arith.constant 0 : index
    %469 = vector.load %arg14[%c0_222, %c0_223] : memref<2x32xf32, #tpu.memory_space<vmem>>, vector<2x32xf32>
    %470 = vector.extract_strided_slice %468 {offsets = [0, 0], sizes = [2, 32], strides = [1, 1]} : vector<2x128xf32> to vector<2x32xf32>
    %471 = arith.negf %470 : vector<2x32xf32>
    %472 = math.exp %471 : vector<2x32xf32>
    %cst_224 = arith.constant 1.000000e+00 : f32
    %473 = vector.broadcast %cst_224 : f32 to vector<2x32xf32>
    %474 = arith.addf %473, %472 : vector<2x32xf32>
    %475 = arith.divf %473, %474 : vector<2x32xf32>
    %476 = vector.extract_strided_slice %468 {offsets = [0, 32], sizes = [2, 32], strides = [1, 1]} : vector<2x128xf32> to vector<2x32xf32>
    %477 = arith.negf %476 : vector<2x32xf32>
    %478 = math.exp %477 : vector<2x32xf32>
    %cst_225 = arith.constant 1.000000e+00 : f32
    %479 = vector.broadcast %cst_225 : f32 to vector<2x32xf32>
    %480 = arith.addf %479, %478 : vector<2x32xf32>
    %481 = arith.divf %479, %480 : vector<2x32xf32>
    %482 = vector.extract_strided_slice %468 {offsets = [0, 64], sizes = [2, 32], strides = [1, 1]} : vector<2x128xf32> to vector<2x32xf32>
    %483 = math.tanh %482 : vector<2x32xf32>
    %484 = vector.extract_strided_slice %468 {offsets = [0, 96], sizes = [2, 32], strides = [1, 1]} : vector<2x128xf32> to vector<2x32xf32>
    %485 = arith.negf %484 : vector<2x32xf32>
    %486 = math.exp %485 : vector<2x32xf32>
    %cst_226 = arith.constant 1.000000e+00 : f32
    %487 = vector.broadcast %cst_226 : f32 to vector<2x32xf32>
    %488 = arith.addf %487, %486 : vector<2x32xf32>
    %489 = arith.divf %487, %488 : vector<2x32xf32>
    %490 = arith.mulf %481, %469 : vector<2x32xf32>
    %491 = arith.mulf %475, %483 : vector<2x32xf32>
    %492 = arith.addf %490, %491 : vector<2x32xf32>
    %493 = math.tanh %492 : vector<2x32xf32>
    %494 = arith.mulf %489, %493 : vector<2x32xf32>
    %c0_227 = arith.constant 0 : index
    %c0_228 = arith.constant 0 : index
    %495 = vector.load %arg13[%c0_227, %c0_228] : memref<2x32xf32, #tpu.memory_space<vmem>>, vector<2x32xf32>
    tpu.vector_store %arg13[%c0_227, %c0_228], %494 {strides = array<i32>} : memref<2x32xf32, #tpu.memory_space<vmem>>, vector<2x32xf32>,
    %c0_229 = arith.constant 0 : index
    %c0_230 = arith.constant 0 : index
    %496 = vector.load %arg14[%c0_229, %c0_230] : memref<2x32xf32, #tpu.memory_space<vmem>>, vector<2x32xf32>
    tpu.vector_store %arg14[%c0_229, %c0_230], %492 {strides = array<i32>} : memref<2x32xf32, #tpu.memory_space<vmem>>, vector<2x32xf32>,
    %497 = arith.index_cast %461 : i32 to index
    %c0_231 = arith.constant 0 : index
    %498 = vector.load %arg11[%497, %c0_231] : memref<16x32xf32, #tpu.memory_space<vmem>>, vector<2x32xf32>
    tpu.vector_store %arg11[%497, %c0_231], %494 {strides = array<i32>} : memref<16x32xf32, #tpu.memory_space<vmem>>, vector<2x32xf32>,
    %499 = arith.index_cast %463 : i32 to index
    %c0_232 = arith.constant 0 : index
    %500 = vector.load %arg10[%499, %c0_232] : memref<16x128xf32, #tpu.memory_space<vmem>>, vector<2x128xf32>
    %c0_233 = arith.constant 0 : index
    %c0_234 = arith.constant 0 : index
    %501 = vector.load %arg15[%c0_233, %c0_234] : memref<2x32xf32, #tpu.memory_space<vmem>>, vector<2x32xf32>
    %cst_235 = arith.constant dense<0.000000e+00> : vector<2x128xf32>
    %502 = tpu.matmul %501, %22, %cst_235 {dimension_numbers = #tpu.dot_dimension_numbers<[1], [0], [0], [1], [0, 0, 1, 1], [], []>} : vector<2x32xf32>, vector<32x128xf32>, vector<2x128xf32> -> vector<2x128xf32>
    %503 = arith.addf %500, %502 : vector<2x128xf32>
    %c0_236 = arith.constant 0 : index
    %c0_237 = arith.constant 0 : index
    %504 = vector.load %arg16[%c0_236, %c0_237] : memref<2x32xf32, #tpu.memory_space<vmem>>, vector<2x32xf32>
    %505 = vector.extract_strided_slice %503 {offsets = [0, 0], sizes = [2, 32], strides = [1, 1]} : vector<2x128xf32> to vector<2x32xf32>
    %506 = arith.negf %505 : vector<2x32xf32>
    %507 = math.exp %506 : vector<2x32xf32>
    %cst_238 = arith.constant 1.000000e+00 : f32
    %508 = vector.broadcast %cst_238 : f32 to vector<2x32xf32>
    %509 = arith.addf %508, %507 : vector<2x32xf32>
    %510 = arith.divf %508, %509 : vector<2x32xf32>
    %511 = vector.extract_strided_slice %503 {offsets = [0, 32], sizes = [2, 32], strides = [1, 1]} : vector<2x128xf32> to vector<2x32xf32>
    %512 = arith.negf %511 : vector<2x32xf32>
    %513 = math.exp %512 : vector<2x32xf32>
    %cst_239 = arith.constant 1.000000e+00 : f32
    %514 = vector.broadcast %cst_239 : f32 to vector<2x32xf32>
    %515 = arith.addf %514, %513 : vector<2x32xf32>
    %516 = arith.divf %514, %515 : vector<2x32xf32>
    %517 = vector.extract_strided_slice %503 {offsets = [0, 64], sizes = [2, 32], strides = [1, 1]} : vector<2x128xf32> to vector<2x32xf32>
    %518 = math.tanh %517 : vector<2x32xf32>
    %519 = vector.extract_strided_slice %503 {offsets = [0, 96], sizes = [2, 32], strides = [1, 1]} : vector<2x128xf32> to vector<2x32xf32>
    %520 = arith.negf %519 : vector<2x32xf32>
    %521 = math.exp %520 : vector<2x32xf32>
    %cst_240 = arith.constant 1.000000e+00 : f32
    %522 = vector.broadcast %cst_240 : f32 to vector<2x32xf32>
    %523 = arith.addf %522, %521 : vector<2x32xf32>
    %524 = arith.divf %522, %523 : vector<2x32xf32>
    %525 = arith.mulf %516, %504 : vector<2x32xf32>
    %526 = arith.mulf %510, %518 : vector<2x32xf32>
    %527 = arith.addf %525, %526 : vector<2x32xf32>
    %528 = math.tanh %527 : vector<2x32xf32>
    %529 = arith.mulf %524, %528 : vector<2x32xf32>
    %c0_241 = arith.constant 0 : index
    %c0_242 = arith.constant 0 : index
    %530 = vector.load %arg15[%c0_241, %c0_242] : memref<2x32xf32, #tpu.memory_space<vmem>>, vector<2x32xf32>
    tpu.vector_store %arg15[%c0_241, %c0_242], %529 {strides = array<i32>} : memref<2x32xf32, #tpu.memory_space<vmem>>, vector<2x32xf32>,
    %c0_243 = arith.constant 0 : index
    %c0_244 = arith.constant 0 : index
    %531 = vector.load %arg16[%c0_243, %c0_244] : memref<2x32xf32, #tpu.memory_space<vmem>>, vector<2x32xf32>
    tpu.vector_store %arg16[%c0_243, %c0_244], %527 {strides = array<i32>} : memref<2x32xf32, #tpu.memory_space<vmem>>, vector<2x32xf32>,
    %532 = arith.index_cast %463 : i32 to index
    %c0_245 = arith.constant 0 : index
    %533 = vector.load %arg12[%532, %c0_245] : memref<16x32xf32, #tpu.memory_space<vmem>>, vector<2x32xf32>
    tpu.vector_store %arg12[%532, %c0_245], %529 {strides = array<i32>} : memref<16x32xf32, #tpu.memory_space<vmem>>, vector<2x32xf32>,
    %c7_i32_246 = arith.constant 7 : i32
    %c2_i32_247 = arith.constant 2 : i32
    %534 = arith.muli %c7_i32_246, %c2_i32_247 : i32
    %c7_i32_248 = arith.constant 7 : i32
    %535 = arith.subi %c7_i32_248, %c7_i32_246 : i32
    %c2_i32_249 = arith.constant 2 : i32
    %536 = arith.muli %535, %c2_i32_249 : i32
    %537 = arith.index_cast %534 : i32 to index
    %c0_250 = arith.constant 0 : index
    %538 = vector.load %arg9[%537, %c0_250] : memref<16x128xf32, #tpu.memory_space<vmem>>, vector<2x128xf32>
    %c0_251 = arith.constant 0 : index
    %c0_252 = arith.constant 0 : index
    %539 = vector.load %arg13[%c0_251, %c0_252] : memref<2x32xf32, #tpu.memory_space<vmem>>, vector<2x32xf32>
    %cst_253 = arith.constant dense<0.000000e+00> : vector<2x128xf32>
    %540 = tpu.matmul %539, %21, %cst_253 {dimension_numbers = #tpu.dot_dimension_numbers<[1], [0], [0], [1], [0, 0, 1, 1], [], []>} : vector<2x32xf32>, vector<32x128xf32>, vector<2x128xf32> -> vector<2x128xf32>
    %541 = arith.addf %538, %540 : vector<2x128xf32>
    %c0_254 = arith.constant 0 : index
    %c0_255 = arith.constant 0 : index
    %542 = vector.load %arg14[%c0_254, %c0_255] : memref<2x32xf32, #tpu.memory_space<vmem>>, vector<2x32xf32>
    %543 = vector.extract_strided_slice %541 {offsets = [0, 0], sizes = [2, 32], strides = [1, 1]} : vector<2x128xf32> to vector<2x32xf32>
    %544 = arith.negf %543 : vector<2x32xf32>
    %545 = math.exp %544 : vector<2x32xf32>
    %cst_256 = arith.constant 1.000000e+00 : f32
    %546 = vector.broadcast %cst_256 : f32 to vector<2x32xf32>
    %547 = arith.addf %546, %545 : vector<2x32xf32>
    %548 = arith.divf %546, %547 : vector<2x32xf32>
    %549 = vector.extract_strided_slice %541 {offsets = [0, 32], sizes = [2, 32], strides = [1, 1]} : vector<2x128xf32> to vector<2x32xf32>
    %550 = arith.negf %549 : vector<2x32xf32>
    %551 = math.exp %550 : vector<2x32xf32>
    %cst_257 = arith.constant 1.000000e+00 : f32
    %552 = vector.broadcast %cst_257 : f32 to vector<2x32xf32>
    %553 = arith.addf %552, %551 : vector<2x32xf32>
    %554 = arith.divf %552, %553 : vector<2x32xf32>
    %555 = vector.extract_strided_slice %541 {offsets = [0, 64], sizes = [2, 32], strides = [1, 1]} : vector<2x128xf32> to vector<2x32xf32>
    %556 = math.tanh %555 : vector<2x32xf32>
    %557 = vector.extract_strided_slice %541 {offsets = [0, 96], sizes = [2, 32], strides = [1, 1]} : vector<2x128xf32> to vector<2x32xf32>
    %558 = arith.negf %557 : vector<2x32xf32>
    %559 = math.exp %558 : vector<2x32xf32>
    %cst_258 = arith.constant 1.000000e+00 : f32
    %560 = vector.broadcast %cst_258 : f32 to vector<2x32xf32>
    %561 = arith.addf %560, %559 : vector<2x32xf32>
    %562 = arith.divf %560, %561 : vector<2x32xf32>
    %563 = arith.mulf %554, %542 : vector<2x32xf32>
    %564 = arith.mulf %548, %556 : vector<2x32xf32>
    %565 = arith.addf %563, %564 : vector<2x32xf32>
    %566 = math.tanh %565 : vector<2x32xf32>
    %567 = arith.mulf %562, %566 : vector<2x32xf32>
    %c0_259 = arith.constant 0 : index
    %c0_260 = arith.constant 0 : index
    %568 = vector.load %arg13[%c0_259, %c0_260] : memref<2x32xf32, #tpu.memory_space<vmem>>, vector<2x32xf32>
    tpu.vector_store %arg13[%c0_259, %c0_260], %567 {strides = array<i32>} : memref<2x32xf32, #tpu.memory_space<vmem>>, vector<2x32xf32>,
    %c0_261 = arith.constant 0 : index
    %c0_262 = arith.constant 0 : index
    %569 = vector.load %arg14[%c0_261, %c0_262] : memref<2x32xf32, #tpu.memory_space<vmem>>, vector<2x32xf32>
    tpu.vector_store %arg14[%c0_261, %c0_262], %565 {strides = array<i32>} : memref<2x32xf32, #tpu.memory_space<vmem>>, vector<2x32xf32>,
    %570 = arith.index_cast %534 : i32 to index
    %c0_263 = arith.constant 0 : index
    %571 = vector.load %arg11[%570, %c0_263] : memref<16x32xf32, #tpu.memory_space<vmem>>, vector<2x32xf32>
    tpu.vector_store %arg11[%570, %c0_263], %567 {strides = array<i32>} : memref<16x32xf32, #tpu.memory_space<vmem>>, vector<2x32xf32>,
    %572 = arith.index_cast %536 : i32 to index
    %c0_264 = arith.constant 0 : index
    %573 = vector.load %arg10[%572, %c0_264] : memref<16x128xf32, #tpu.memory_space<vmem>>, vector<2x128xf32>
    %c0_265 = arith.constant 0 : index
    %c0_266 = arith.constant 0 : index
    %574 = vector.load %arg15[%c0_265, %c0_266] : memref<2x32xf32, #tpu.memory_space<vmem>>, vector<2x32xf32>
    %cst_267 = arith.constant dense<0.000000e+00> : vector<2x128xf32>
    %575 = tpu.matmul %574, %22, %cst_267 {dimension_numbers = #tpu.dot_dimension_numbers<[1], [0], [0], [1], [0, 0, 1, 1], [], []>} : vector<2x32xf32>, vector<32x128xf32>, vector<2x128xf32> -> vector<2x128xf32>
    %576 = arith.addf %573, %575 : vector<2x128xf32>
    %c0_268 = arith.constant 0 : index
    %c0_269 = arith.constant 0 : index
    %577 = vector.load %arg16[%c0_268, %c0_269] : memref<2x32xf32, #tpu.memory_space<vmem>>, vector<2x32xf32>
    %578 = vector.extract_strided_slice %576 {offsets = [0, 0], sizes = [2, 32], strides = [1, 1]} : vector<2x128xf32> to vector<2x32xf32>
    %579 = arith.negf %578 : vector<2x32xf32>
    %580 = math.exp %579 : vector<2x32xf32>
    %cst_270 = arith.constant 1.000000e+00 : f32
    %581 = vector.broadcast %cst_270 : f32 to vector<2x32xf32>
    %582 = arith.addf %581, %580 : vector<2x32xf32>
    %583 = arith.divf %581, %582 : vector<2x32xf32>
    %584 = vector.extract_strided_slice %576 {offsets = [0, 32], sizes = [2, 32], strides = [1, 1]} : vector<2x128xf32> to vector<2x32xf32>
    %585 = arith.negf %584 : vector<2x32xf32>
    %586 = math.exp %585 : vector<2x32xf32>
    %cst_271 = arith.constant 1.000000e+00 : f32
    %587 = vector.broadcast %cst_271 : f32 to vector<2x32xf32>
    %588 = arith.addf %587, %586 : vector<2x32xf32>
    %589 = arith.divf %587, %588 : vector<2x32xf32>
    %590 = vector.extract_strided_slice %576 {offsets = [0, 64], sizes = [2, 32], strides = [1, 1]} : vector<2x128xf32> to vector<2x32xf32>
    %591 = math.tanh %590 : vector<2x32xf32>
    %592 = vector.extract_strided_slice %576 {offsets = [0, 96], sizes = [2, 32], strides = [1, 1]} : vector<2x128xf32> to vector<2x32xf32>
    %593 = arith.negf %592 : vector<2x32xf32>
    %594 = math.exp %593 : vector<2x32xf32>
    %cst_272 = arith.constant 1.000000e+00 : f32
    %595 = vector.broadcast %cst_272 : f32 to vector<2x32xf32>
    %596 = arith.addf %595, %594 : vector<2x32xf32>
    %597 = arith.divf %595, %596 : vector<2x32xf32>
    %598 = arith.mulf %589, %577 : vector<2x32xf32>
    %599 = arith.mulf %583, %591 : vector<2x32xf32>
    %600 = arith.addf %598, %599 : vector<2x32xf32>
    %601 = math.tanh %600 : vector<2x32xf32>
    %602 = arith.mulf %597, %601 : vector<2x32xf32>
    %c0_273 = arith.constant 0 : index
    %c0_274 = arith.constant 0 : index
    %603 = vector.load %arg15[%c0_273, %c0_274] : memref<2x32xf32, #tpu.memory_space<vmem>>, vector<2x32xf32>
    tpu.vector_store %arg15[%c0_273, %c0_274], %602 {strides = array<i32>} : memref<2x32xf32, #tpu.memory_space<vmem>>, vector<2x32xf32>,
    %c0_275 = arith.constant 0 : index
    %c0_276 = arith.constant 0 : index
    %604 = vector.load %arg16[%c0_275, %c0_276] : memref<2x32xf32, #tpu.memory_space<vmem>>, vector<2x32xf32>
    tpu.vector_store %arg16[%c0_275, %c0_276], %600 {strides = array<i32>} : memref<2x32xf32, #tpu.memory_space<vmem>>, vector<2x32xf32>,
    %605 = arith.index_cast %536 : i32 to index
    %c0_277 = arith.constant 0 : index
    %606 = vector.load %arg12[%605, %c0_277] : memref<16x32xf32, #tpu.memory_space<vmem>>, vector<2x32xf32>
    tpu.vector_store %arg12[%605, %c0_277], %602 {strides = array<i32>} : memref<16x32xf32, #tpu.memory_space<vmem>>, vector<2x32xf32>,
    %c8_i32 = arith.constant 8 : i32
    %c0_278 = arith.constant 0 : index
    %c0_279 = arith.constant 0 : index
    %607 = vector.load %arg11[%c0_278, %c0_279] : memref<16x32xf32, #tpu.memory_space<vmem>>, vector<16x32xf32>
    %c0_280 = arith.constant 0 : index
    %c0_281 = arith.constant 0 : index
    %608 = vector.load %arg12[%c0_280, %c0_281] : memref<16x32xf32, #tpu.memory_space<vmem>>, vector<16x32xf32>
    %609 = tpu.concatenate %607, %608 in 1 : vector<16x32xf32>, vector<16x32xf32> -> vector<16x64xf32>
    %c0_282 = arith.constant 0 : index
    %c0_283 = arith.constant 0 : index
    %610 = vector.load %arg8[%c0_282, %c0_283] : memref<16x64xf32, #tpu.memory_space<vmem>>, vector<16x64xf32>
    tpu.vector_store %arg8[%c0_282, %c0_283], %609 {strides = array<i32>} : memref<16x64xf32, #tpu.memory_space<vmem>>, vector<16x64xf32>,
    return
  }
  func.func @transform_0(%arg0: i32) -> (i32, i32) {
    %c0_i32 = arith.constant 0 : i32
    %c0_i32_0 = arith.constant 0 : i32
    %c0_i32_1 = arith.constant 0 : i32
    return %c0_i32, %c0_i32_0 : i32, i32
  }
  func.func @transform_1(%arg0: i32) -> (i32, i32) {
    %c0_i32 = arith.constant 0 : i32
    %c0_i32_0 = arith.constant 0 : i32
    %c0_i32_1 = arith.constant 0 : i32
    return %c0_i32, %c0_i32_0 : i32, i32
  }
  func.func @transform_2(%arg0: i32) -> (i32, i32) {
    %c0_i32 = arith.constant 0 : i32
    %c0_i32_0 = arith.constant 0 : i32
    %c0_i32_1 = arith.constant 0 : i32
    return %c0_i32, %c0_i32_0 : i32, i32
  }
  func.func @transform_3(%arg0: i32) -> (i32, i32) {
    %c0_i32 = arith.constant 0 : i32
    %c0_i32_0 = arith.constant 0 : i32
    %c0_i32_1 = arith.constant 0 : i32
    return %c0_i32, %c0_i32_0 : i32, i32
  }
  func.func @transform_4(%arg0: i32) -> (i32, i32) {
    %c0_i32 = arith.constant 0 : i32
    %c0_i32_0 = arith.constant 0 : i32
    %c0_i32_1 = arith.constant 0 : i32
    return %c0_i32, %c0_i32_0 : i32, i32
  }
  func.func @transform_5(%arg0: i32) -> (i32, i32) {
    %c0_i32 = arith.constant 0 : i32
    %c0_i32_0 = arith.constant 0 : i32
    %c0_i32_1 = arith.constant 0 : i32
    return %c0_i32, %c0_i32_0 : i32, i32
  }
  func.func @transform_6(%arg0: i32) -> (i32, i32) {
    %c0_i32 = arith.constant 0 : i32
    %c0_i32_0 = arith.constant 0 : i32
    %c0_i32_1 = arith.constant 0 : i32
    return %c0_i32, %c0_i32_0 : i32, i32
  }
  func.func @transform_7(%arg0: i32) -> (i32, i32) {
    %c0_i32 = arith.constant 0 : i32
    %c0_i32_0 = arith.constant 0 : i32
    %c0_i32_1 = arith.constant 0 : i32
    return %c0_i32, %c0_i32_0 : i32, i32
  }
}

module attributes {stable_mosaic.version = 11 : i64} {
  func.func @_bilstm_layer_kernel(%arg0: i32, %arg1: memref<16x64xf32, #tpu.memory_space<vmem>>, %arg2: memref<64x128xf32, #tpu.memory_space<vmem>>, %arg3: memref<32x128xf32, #tpu.memory_space<vmem>>, %arg4: memref<1x128xf32, #tpu.memory_space<vmem>>, %arg5: memref<64x128xf32, #tpu.memory_space<vmem>>, %arg6: memref<32x128xf32, #tpu.memory_space<vmem>>, %arg7: memref<1x128xf32, #tpu.memory_space<vmem>>, %arg8: memref<16x64xf32, #tpu.memory_space<vmem>>, %arg9: memref<16x128xf32, #tpu.memory_space<vmem>>, %arg10: memref<16x128xf32, #tpu.memory_space<vmem>>, %arg11: memref<16x32xf32, #tpu.memory_space<vmem>>, %arg12: memref<16x32xf32, #tpu.memory_space<vmem>>, %arg13: memref<2x32xf32, #tpu.memory_space<vmem>>, %arg14: memref<2x32xf32, #tpu.memory_space<vmem>>, %arg15: memref<2x32xf32, #tpu.memory_space<vmem>>, %arg16: memref<2x32xf32, #tpu.memory_space<vmem>>) attributes {dimension_semantics = [#tpu.dimension_semantics<arbitrary>], iteration_bounds = array<i64: 1>, scalar_prefetch = 0 : i64, scratch_operands = 8 : i64, tpu.core_type = #tpu.core_type<tc>, window_params = [{pipeline_mode = #tpu.pipeline_mode<synchronous>, transform_indices = @transform_0, window_bounds = array<i64: 16, 64>}, {pipeline_mode = #tpu.pipeline_mode<synchronous>, transform_indices = @transform_1, window_bounds = array<i64: 64, 128>}, {pipeline_mode = #tpu.pipeline_mode<synchronous>, transform_indices = @transform_2, window_bounds = array<i64: 32, 128>}, {pipeline_mode = #tpu.pipeline_mode<synchronous>, transform_indices = @transform_3, window_bounds = array<i64: 1, 128>}, {pipeline_mode = #tpu.pipeline_mode<synchronous>, transform_indices = @transform_4, window_bounds = array<i64: 64, 128>}, {pipeline_mode = #tpu.pipeline_mode<synchronous>, transform_indices = @transform_5, window_bounds = array<i64: 32, 128>}, {pipeline_mode = #tpu.pipeline_mode<synchronous>, transform_indices = @transform_6, window_bounds = array<i64: 1, 128>}, {pipeline_mode = #tpu.pipeline_mode<synchronous>, transform_indices = @transform_7, window_bounds = array<i64: 16, 64>}]} {
    %c0 = arith.constant 0 : index
    %c0_0 = arith.constant 0 : index
    %0 = vector.load %arg1[%c0, %c0_0] : memref<16x64xf32, #tpu.memory_space<vmem>>, vector<16x64xf32>
    %c0_1 = arith.constant 0 : index
    %c0_2 = arith.constant 0 : index
    %1 = vector.load %arg2[%c0_1, %c0_2] : memref<64x128xf32, #tpu.memory_space<vmem>>, vector<64x128xf32>
    %cst = arith.constant dense<0.000000e+00> : vector<16x128xf32>
    %2 = tpu.matmul %0, %1, %cst {dimension_numbers = #tpu.dot_dimension_numbers<[1], [0], [0], [1], [0, 0, 1, 1], [], []>} : vector<16x64xf32>, vector<64x128xf32>, vector<16x128xf32> -> vector<16x128xf32>
    %c0_3 = arith.constant 0 : index
    %c0_4 = arith.constant 0 : index
    %3 = vector.load %arg4[%c0_3, %c0_4] : memref<1x128xf32, #tpu.memory_space<vmem>>, vector<1x128xf32>
    %4 = vector.broadcast %3 : vector<1x128xf32> to vector<16x128xf32>
    %5 = arith.addf %2, %4 : vector<16x128xf32>
    %c0_5 = arith.constant 0 : index
    %c0_6 = arith.constant 0 : index
    %6 = vector.load %arg9[%c0_5, %c0_6] : memref<16x128xf32, #tpu.memory_space<vmem>>, vector<16x128xf32>
    tpu.vector_store %arg9[%c0_5, %c0_6], %5 {strides = array<i32>} : memref<16x128xf32, #tpu.memory_space<vmem>>, vector<16x128xf32>,
    %c0_7 = arith.constant 0 : index
    %c0_8 = arith.constant 0 : index
    %7 = vector.load %arg5[%c0_7, %c0_8] : memref<64x128xf32, #tpu.memory_space<vmem>>, vector<64x128xf32>
    %cst_9 = arith.constant dense<0.000000e+00> : vector<16x128xf32>
    %8 = tpu.matmul %0, %7, %cst_9 {dimension_numbers = #tpu.dot_dimension_numbers<[1], [0], [0], [1], [0, 0, 1, 1], [], []>} : vector<16x64xf32>, vector<64x128xf32>, vector<16x128xf32> -> vector<16x128xf32>
    %c0_10 = arith.constant 0 : index
    %c0_11 = arith.constant 0 : index
    %9 = vector.load %arg7[%c0_10, %c0_11] : memref<1x128xf32, #tpu.memory_space<vmem>>, vector<1x128xf32>
    %10 = vector.broadcast %9 : vector<1x128xf32> to vector<16x128xf32>
    %11 = arith.addf %8, %10 : vector<16x128xf32>
    %c0_12 = arith.constant 0 : index
    %c0_13 = arith.constant 0 : index
    %12 = vector.load %arg10[%c0_12, %c0_13] : memref<16x128xf32, #tpu.memory_space<vmem>>, vector<16x128xf32>
    tpu.vector_store %arg10[%c0_12, %c0_13], %11 {strides = array<i32>} : memref<16x128xf32, #tpu.memory_space<vmem>>, vector<16x128xf32>,
    %cst_14 = arith.constant 0.000000e+00 : f32
    %13 = vector.broadcast %cst_14 : f32 to vector<2x32xf32>
    %c0_15 = arith.constant 0 : index
    %c0_16 = arith.constant 0 : index
    %14 = vector.load %arg13[%c0_15, %c0_16] : memref<2x32xf32, #tpu.memory_space<vmem>>, vector<2x32xf32>
    tpu.vector_store %arg13[%c0_15, %c0_16], %13 {strides = array<i32>} : memref<2x32xf32, #tpu.memory_space<vmem>>, vector<2x32xf32>,
    %cst_17 = arith.constant 0.000000e+00 : f32
    %15 = vector.broadcast %cst_17 : f32 to vector<2x32xf32>
    %c0_18 = arith.constant 0 : index
    %c0_19 = arith.constant 0 : index
    %16 = vector.load %arg14[%c0_18, %c0_19] : memref<2x32xf32, #tpu.memory_space<vmem>>, vector<2x32xf32>
    tpu.vector_store %arg14[%c0_18, %c0_19], %15 {strides = array<i32>} : memref<2x32xf32, #tpu.memory_space<vmem>>, vector<2x32xf32>,
    %cst_20 = arith.constant 0.000000e+00 : f32
    %17 = vector.broadcast %cst_20 : f32 to vector<2x32xf32>
    %c0_21 = arith.constant 0 : index
    %c0_22 = arith.constant 0 : index
    %18 = vector.load %arg15[%c0_21, %c0_22] : memref<2x32xf32, #tpu.memory_space<vmem>>, vector<2x32xf32>
    tpu.vector_store %arg15[%c0_21, %c0_22], %17 {strides = array<i32>} : memref<2x32xf32, #tpu.memory_space<vmem>>, vector<2x32xf32>,
    %cst_23 = arith.constant 0.000000e+00 : f32
    %19 = vector.broadcast %cst_23 : f32 to vector<2x32xf32>
    %c0_24 = arith.constant 0 : index
    %c0_25 = arith.constant 0 : index
    %20 = vector.load %arg16[%c0_24, %c0_25] : memref<2x32xf32, #tpu.memory_space<vmem>>, vector<2x32xf32>
    tpu.vector_store %arg16[%c0_24, %c0_25], %19 {strides = array<i32>} : memref<2x32xf32, #tpu.memory_space<vmem>>, vector<2x32xf32>,
    %c0_26 = arith.constant 0 : index
    %c0_27 = arith.constant 0 : index
    %21 = vector.load %arg3[%c0_26, %c0_27] : memref<32x128xf32, #tpu.memory_space<vmem>>, vector<32x128xf32>
    %c0_28 = arith.constant 0 : index
    %c0_29 = arith.constant 0 : index
    %22 = vector.load %arg6[%c0_28, %c0_29] : memref<32x128xf32, #tpu.memory_space<vmem>>, vector<32x128xf32>
    %c0_i32 = arith.constant 0 : i32
    %c2_i32 = arith.constant 2 : i32
    %23 = arith.muli %c0_i32, %c2_i32 : i32
    %c7_i32 = arith.constant 7 : i32
    %24 = arith.subi %c7_i32, %c0_i32 : i32
    %c2_i32_30 = arith.constant 2 : i32
    %25 = arith.muli %24, %c2_i32_30 : i32
    %26 = arith.index_cast %23 : i32 to index
    %c0_31 = arith.constant 0 : index
    %27 = vector.load %arg9[%26, %c0_31] : memref<16x128xf32, #tpu.memory_space<vmem>>, vector<2x128xf32>
    %c0_32 = arith.constant 0 : index
    %c0_33 = arith.constant 0 : index
    %28 = vector.load %arg13[%c0_32, %c0_33] : memref<2x32xf32, #tpu.memory_space<vmem>>, vector<2x32xf32>
    %cst_34 = arith.constant dense<0.000000e+00> : vector<2x128xf32>
    %29 = tpu.matmul %28, %21, %cst_34 {dimension_numbers = #tpu.dot_dimension_numbers<[1], [0], [0], [1], [0, 0, 1, 1], [], []>} : vector<2x32xf32>, vector<32x128xf32>, vector<2x128xf32> -> vector<2x128xf32>
    %30 = arith.addf %27, %29 : vector<2x128xf32>
    %c0_35 = arith.constant 0 : index
    %c0_36 = arith.constant 0 : index
    %31 = vector.load %arg14[%c0_35, %c0_36] : memref<2x32xf32, #tpu.memory_space<vmem>>, vector<2x32xf32>
    %32 = vector.extract_strided_slice %30 {offsets = [0, 0], sizes = [2, 32], strides = [1, 1]} : vector<2x128xf32> to vector<2x32xf32>
    %33 = arith.negf %32 : vector<2x32xf32>
    %34 = math.exp %33 : vector<2x32xf32>
    %cst_37 = arith.constant 1.000000e+00 : f32
    %35 = vector.broadcast %cst_37 : f32 to vector<2x32xf32>
    %36 = arith.addf %35, %34 : vector<2x32xf32>
    %37 = arith.divf %35, %36 : vector<2x32xf32>
    %38 = vector.extract_strided_slice %30 {offsets = [0, 32], sizes = [2, 32], strides = [1, 1]} : vector<2x128xf32> to vector<2x32xf32>
    %39 = arith.negf %38 : vector<2x32xf32>
    %40 = math.exp %39 : vector<2x32xf32>
    %cst_38 = arith.constant 1.000000e+00 : f32
    %41 = vector.broadcast %cst_38 : f32 to vector<2x32xf32>
    %42 = arith.addf %41, %40 : vector<2x32xf32>
    %43 = arith.divf %41, %42 : vector<2x32xf32>
    %44 = vector.extract_strided_slice %30 {offsets = [0, 64], sizes = [2, 32], strides = [1, 1]} : vector<2x128xf32> to vector<2x32xf32>
    %45 = math.tanh %44 : vector<2x32xf32>
    %46 = vector.extract_strided_slice %30 {offsets = [0, 96], sizes = [2, 32], strides = [1, 1]} : vector<2x128xf32> to vector<2x32xf32>
    %47 = arith.negf %46 : vector<2x32xf32>
    %48 = math.exp %47 : vector<2x32xf32>
    %cst_39 = arith.constant 1.000000e+00 : f32
    %49 = vector.broadcast %cst_39 : f32 to vector<2x32xf32>
    %50 = arith.addf %49, %48 : vector<2x32xf32>
    %51 = arith.divf %49, %50 : vector<2x32xf32>
    %52 = arith.mulf %43, %31 : vector<2x32xf32>
    %53 = arith.mulf %37, %45 : vector<2x32xf32>
    %54 = arith.addf %52, %53 : vector<2x32xf32>
    %55 = math.tanh %54 : vector<2x32xf32>
    %56 = arith.mulf %51, %55 : vector<2x32xf32>
    %c0_40 = arith.constant 0 : index
    %c0_41 = arith.constant 0 : index
    %57 = vector.load %arg13[%c0_40, %c0_41] : memref<2x32xf32, #tpu.memory_space<vmem>>, vector<2x32xf32>
    tpu.vector_store %arg13[%c0_40, %c0_41], %56 {strides = array<i32>} : memref<2x32xf32, #tpu.memory_space<vmem>>, vector<2x32xf32>,
    %c0_42 = arith.constant 0 : index
    %c0_43 = arith.constant 0 : index
    %58 = vector.load %arg14[%c0_42, %c0_43] : memref<2x32xf32, #tpu.memory_space<vmem>>, vector<2x32xf32>
    tpu.vector_store %arg14[%c0_42, %c0_43], %54 {strides = array<i32>} : memref<2x32xf32, #tpu.memory_space<vmem>>, vector<2x32xf32>,
    %59 = arith.index_cast %23 : i32 to index
    %c0_44 = arith.constant 0 : index
    %60 = vector.load %arg11[%59, %c0_44] : memref<16x32xf32, #tpu.memory_space<vmem>>, vector<2x32xf32>
    tpu.vector_store %arg11[%59, %c0_44], %56 {strides = array<i32>} : memref<16x32xf32, #tpu.memory_space<vmem>>, vector<2x32xf32>,
    %61 = arith.index_cast %25 : i32 to index
    %c0_45 = arith.constant 0 : index
    %62 = vector.load %arg10[%61, %c0_45] : memref<16x128xf32, #tpu.memory_space<vmem>>, vector<2x128xf32>
    %c0_46 = arith.constant 0 : index
    %c0_47 = arith.constant 0 : index
    %63 = vector.load %arg15[%c0_46, %c0_47] : memref<2x32xf32, #tpu.memory_space<vmem>>, vector<2x32xf32>
    %cst_48 = arith.constant dense<0.000000e+00> : vector<2x128xf32>
    %64 = tpu.matmul %63, %22, %cst_48 {dimension_numbers = #tpu.dot_dimension_numbers<[1], [0], [0], [1], [0, 0, 1, 1], [], []>} : vector<2x32xf32>, vector<32x128xf32>, vector<2x128xf32> -> vector<2x128xf32>
    %65 = arith.addf %62, %64 : vector<2x128xf32>
    %c0_49 = arith.constant 0 : index
    %c0_50 = arith.constant 0 : index
    %66 = vector.load %arg16[%c0_49, %c0_50] : memref<2x32xf32, #tpu.memory_space<vmem>>, vector<2x32xf32>
    %67 = vector.extract_strided_slice %65 {offsets = [0, 0], sizes = [2, 32], strides = [1, 1]} : vector<2x128xf32> to vector<2x32xf32>
    %68 = arith.negf %67 : vector<2x32xf32>
    %69 = math.exp %68 : vector<2x32xf32>
    %cst_51 = arith.constant 1.000000e+00 : f32
    %70 = vector.broadcast %cst_51 : f32 to vector<2x32xf32>
    %71 = arith.addf %70, %69 : vector<2x32xf32>
    %72 = arith.divf %70, %71 : vector<2x32xf32>
    %73 = vector.extract_strided_slice %65 {offsets = [0, 32], sizes = [2, 32], strides = [1, 1]} : vector<2x128xf32> to vector<2x32xf32>
    %74 = arith.negf %73 : vector<2x32xf32>
    %75 = math.exp %74 : vector<2x32xf32>
    %cst_52 = arith.constant 1.000000e+00 : f32
    %76 = vector.broadcast %cst_52 : f32 to vector<2x32xf32>
    %77 = arith.addf %76, %75 : vector<2x32xf32>
    %78 = arith.divf %76, %77 : vector<2x32xf32>
    %79 = vector.extract_strided_slice %65 {offsets = [0, 64], sizes = [2, 32], strides = [1, 1]} : vector<2x128xf32> to vector<2x32xf32>
    %80 = math.tanh %79 : vector<2x32xf32>
    %81 = vector.extract_strided_slice %65 {offsets = [0, 96], sizes = [2, 32], strides = [1, 1]} : vector<2x128xf32> to vector<2x32xf32>
    %82 = arith.negf %81 : vector<2x32xf32>
    %83 = math.exp %82 : vector<2x32xf32>
    %cst_53 = arith.constant 1.000000e+00 : f32
    %84 = vector.broadcast %cst_53 : f32 to vector<2x32xf32>
    %85 = arith.addf %84, %83 : vector<2x32xf32>
    %86 = arith.divf %84, %85 : vector<2x32xf32>
    %87 = arith.mulf %78, %66 : vector<2x32xf32>
    %88 = arith.mulf %72, %80 : vector<2x32xf32>
    %89 = arith.addf %87, %88 : vector<2x32xf32>
    %90 = math.tanh %89 : vector<2x32xf32>
    %91 = arith.mulf %86, %90 : vector<2x32xf32>
    %c0_54 = arith.constant 0 : index
    %c0_55 = arith.constant 0 : index
    %92 = vector.load %arg15[%c0_54, %c0_55] : memref<2x32xf32, #tpu.memory_space<vmem>>, vector<2x32xf32>
    tpu.vector_store %arg15[%c0_54, %c0_55], %91 {strides = array<i32>} : memref<2x32xf32, #tpu.memory_space<vmem>>, vector<2x32xf32>,
    %c0_56 = arith.constant 0 : index
    %c0_57 = arith.constant 0 : index
    %93 = vector.load %arg16[%c0_56, %c0_57] : memref<2x32xf32, #tpu.memory_space<vmem>>, vector<2x32xf32>
    tpu.vector_store %arg16[%c0_56, %c0_57], %89 {strides = array<i32>} : memref<2x32xf32, #tpu.memory_space<vmem>>, vector<2x32xf32>,
    %94 = arith.index_cast %25 : i32 to index
    %c0_58 = arith.constant 0 : index
    %95 = vector.load %arg12[%94, %c0_58] : memref<16x32xf32, #tpu.memory_space<vmem>>, vector<2x32xf32>
    tpu.vector_store %arg12[%94, %c0_58], %91 {strides = array<i32>} : memref<16x32xf32, #tpu.memory_space<vmem>>, vector<2x32xf32>,
    %c1_i32 = arith.constant 1 : i32
    %c2_i32_59 = arith.constant 2 : i32
    %96 = arith.muli %c1_i32, %c2_i32_59 : i32
    %c7_i32_60 = arith.constant 7 : i32
    %97 = arith.subi %c7_i32_60, %c1_i32 : i32
    %c2_i32_61 = arith.constant 2 : i32
    %98 = arith.muli %97, %c2_i32_61 : i32
    %99 = arith.index_cast %96 : i32 to index
    %c0_62 = arith.constant 0 : index
    %100 = vector.load %arg9[%99, %c0_62] : memref<16x128xf32, #tpu.memory_space<vmem>>, vector<2x128xf32>
    %c0_63 = arith.constant 0 : index
    %c0_64 = arith.constant 0 : index
    %101 = vector.load %arg13[%c0_63, %c0_64] : memref<2x32xf32, #tpu.memory_space<vmem>>, vector<2x32xf32>
    %cst_65 = arith.constant dense<0.000000e+00> : vector<2x128xf32>
    %102 = tpu.matmul %101, %21, %cst_65 {dimension_numbers = #tpu.dot_dimension_numbers<[1], [0], [0], [1], [0, 0, 1, 1], [], []>} : vector<2x32xf32>, vector<32x128xf32>, vector<2x128xf32> -> vector<2x128xf32>
    %103 = arith.addf %100, %102 : vector<2x128xf32>
    %c0_66 = arith.constant 0 : index
    %c0_67 = arith.constant 0 : index
    %104 = vector.load %arg14[%c0_66, %c0_67] : memref<2x32xf32, #tpu.memory_space<vmem>>, vector<2x32xf32>
    %105 = vector.extract_strided_slice %103 {offsets = [0, 0], sizes = [2, 32], strides = [1, 1]} : vector<2x128xf32> to vector<2x32xf32>
    %106 = arith.negf %105 : vector<2x32xf32>
    %107 = math.exp %106 : vector<2x32xf32>
    %cst_68 = arith.constant 1.000000e+00 : f32
    %108 = vector.broadcast %cst_68 : f32 to vector<2x32xf32>
    %109 = arith.addf %108, %107 : vector<2x32xf32>
    %110 = arith.divf %108, %109 : vector<2x32xf32>
    %111 = vector.extract_strided_slice %103 {offsets = [0, 32], sizes = [2, 32], strides = [1, 1]} : vector<2x128xf32> to vector<2x32xf32>
    %112 = arith.negf %111 : vector<2x32xf32>
    %113 = math.exp %112 : vector<2x32xf32>
    %cst_69 = arith.constant 1.000000e+00 : f32
    %114 = vector.broadcast %cst_69 : f32 to vector<2x32xf32>
    %115 = arith.addf %114, %113 : vector<2x32xf32>
    %116 = arith.divf %114, %115 : vector<2x32xf32>
    %117 = vector.extract_strided_slice %103 {offsets = [0, 64], sizes = [2, 32], strides = [1, 1]} : vector<2x128xf32> to vector<2x32xf32>
    %118 = math.tanh %117 : vector<2x32xf32>
    %119 = vector.extract_strided_slice %103 {offsets = [0, 96], sizes = [2, 32], strides = [1, 1]} : vector<2x128xf32> to vector<2x32xf32>
    %120 = arith.negf %119 : vector<2x32xf32>
    %121 = math.exp %120 : vector<2x32xf32>
    %cst_70 = arith.constant 1.000000e+00 : f32
    %122 = vector.broadcast %cst_70 : f32 to vector<2x32xf32>
    %123 = arith.addf %122, %121 : vector<2x32xf32>
    %124 = arith.divf %122, %123 : vector<2x32xf32>
    %125 = arith.mulf %116, %104 : vector<2x32xf32>
    %126 = arith.mulf %110, %118 : vector<2x32xf32>
    %127 = arith.addf %125, %126 : vector<2x32xf32>
    %128 = math.tanh %127 : vector<2x32xf32>
    %129 = arith.mulf %124, %128 : vector<2x32xf32>
    %c0_71 = arith.constant 0 : index
    %c0_72 = arith.constant 0 : index
    %130 = vector.load %arg13[%c0_71, %c0_72] : memref<2x32xf32, #tpu.memory_space<vmem>>, vector<2x32xf32>
    tpu.vector_store %arg13[%c0_71, %c0_72], %129 {strides = array<i32>} : memref<2x32xf32, #tpu.memory_space<vmem>>, vector<2x32xf32>,
    %c0_73 = arith.constant 0 : index
    %c0_74 = arith.constant 0 : index
    %131 = vector.load %arg14[%c0_73, %c0_74] : memref<2x32xf32, #tpu.memory_space<vmem>>, vector<2x32xf32>
    tpu.vector_store %arg14[%c0_73, %c0_74], %127 {strides = array<i32>} : memref<2x32xf32, #tpu.memory_space<vmem>>, vector<2x32xf32>,
    %132 = arith.index_cast %96 : i32 to index
    %c0_75 = arith.constant 0 : index
    %133 = vector.load %arg11[%132, %c0_75] : memref<16x32xf32, #tpu.memory_space<vmem>>, vector<2x32xf32>
    tpu.vector_store %arg11[%132, %c0_75], %129 {strides = array<i32>} : memref<16x32xf32, #tpu.memory_space<vmem>>, vector<2x32xf32>,
    %134 = arith.index_cast %98 : i32 to index
    %c0_76 = arith.constant 0 : index
    %135 = vector.load %arg10[%134, %c0_76] : memref<16x128xf32, #tpu.memory_space<vmem>>, vector<2x128xf32>
    %c0_77 = arith.constant 0 : index
    %c0_78 = arith.constant 0 : index
    %136 = vector.load %arg15[%c0_77, %c0_78] : memref<2x32xf32, #tpu.memory_space<vmem>>, vector<2x32xf32>
    %cst_79 = arith.constant dense<0.000000e+00> : vector<2x128xf32>
    %137 = tpu.matmul %136, %22, %cst_79 {dimension_numbers = #tpu.dot_dimension_numbers<[1], [0], [0], [1], [0, 0, 1, 1], [], []>} : vector<2x32xf32>, vector<32x128xf32>, vector<2x128xf32> -> vector<2x128xf32>
    %138 = arith.addf %135, %137 : vector<2x128xf32>
    %c0_80 = arith.constant 0 : index
    %c0_81 = arith.constant 0 : index
    %139 = vector.load %arg16[%c0_80, %c0_81] : memref<2x32xf32, #tpu.memory_space<vmem>>, vector<2x32xf32>
    %140 = vector.extract_strided_slice %138 {offsets = [0, 0], sizes = [2, 32], strides = [1, 1]} : vector<2x128xf32> to vector<2x32xf32>
    %141 = arith.negf %140 : vector<2x32xf32>
    %142 = math.exp %141 : vector<2x32xf32>
    %cst_82 = arith.constant 1.000000e+00 : f32
    %143 = vector.broadcast %cst_82 : f32 to vector<2x32xf32>
    %144 = arith.addf %143, %142 : vector<2x32xf32>
    %145 = arith.divf %143, %144 : vector<2x32xf32>
    %146 = vector.extract_strided_slice %138 {offsets = [0, 32], sizes = [2, 32], strides = [1, 1]} : vector<2x128xf32> to vector<2x32xf32>
    %147 = arith.negf %146 : vector<2x32xf32>
    %148 = math.exp %147 : vector<2x32xf32>
    %cst_83 = arith.constant 1.000000e+00 : f32
    %149 = vector.broadcast %cst_83 : f32 to vector<2x32xf32>
    %150 = arith.addf %149, %148 : vector<2x32xf32>
    %151 = arith.divf %149, %150 : vector<2x32xf32>
    %152 = vector.extract_strided_slice %138 {offsets = [0, 64], sizes = [2, 32], strides = [1, 1]} : vector<2x128xf32> to vector<2x32xf32>
    %153 = math.tanh %152 : vector<2x32xf32>
    %154 = vector.extract_strided_slice %138 {offsets = [0, 96], sizes = [2, 32], strides = [1, 1]} : vector<2x128xf32> to vector<2x32xf32>
    %155 = arith.negf %154 : vector<2x32xf32>
    %156 = math.exp %155 : vector<2x32xf32>
    %cst_84 = arith.constant 1.000000e+00 : f32
    %157 = vector.broadcast %cst_84 : f32 to vector<2x32xf32>
    %158 = arith.addf %157, %156 : vector<2x32xf32>
    %159 = arith.divf %157, %158 : vector<2x32xf32>
    %160 = arith.mulf %151, %139 : vector<2x32xf32>
    %161 = arith.mulf %145, %153 : vector<2x32xf32>
    %162 = arith.addf %160, %161 : vector<2x32xf32>
    %163 = math.tanh %162 : vector<2x32xf32>
    %164 = arith.mulf %159, %163 : vector<2x32xf32>
    %c0_85 = arith.constant 0 : index
    %c0_86 = arith.constant 0 : index
    %165 = vector.load %arg15[%c0_85, %c0_86] : memref<2x32xf32, #tpu.memory_space<vmem>>, vector<2x32xf32>
    tpu.vector_store %arg15[%c0_85, %c0_86], %164 {strides = array<i32>} : memref<2x32xf32, #tpu.memory_space<vmem>>, vector<2x32xf32>,
    %c0_87 = arith.constant 0 : index
    %c0_88 = arith.constant 0 : index
    %166 = vector.load %arg16[%c0_87, %c0_88] : memref<2x32xf32, #tpu.memory_space<vmem>>, vector<2x32xf32>
    tpu.vector_store %arg16[%c0_87, %c0_88], %162 {strides = array<i32>} : memref<2x32xf32, #tpu.memory_space<vmem>>, vector<2x32xf32>,
    %167 = arith.index_cast %98 : i32 to index
    %c0_89 = arith.constant 0 : index
    %168 = vector.load %arg12[%167, %c0_89] : memref<16x32xf32, #tpu.memory_space<vmem>>, vector<2x32xf32>
    tpu.vector_store %arg12[%167, %c0_89], %164 {strides = array<i32>} : memref<16x32xf32, #tpu.memory_space<vmem>>, vector<2x32xf32>,
    %c2_i32_90 = arith.constant 2 : i32
    %c2_i32_91 = arith.constant 2 : i32
    %169 = arith.muli %c2_i32_90, %c2_i32_91 : i32
    %c7_i32_92 = arith.constant 7 : i32
    %170 = arith.subi %c7_i32_92, %c2_i32_90 : i32
    %c2_i32_93 = arith.constant 2 : i32
    %171 = arith.muli %170, %c2_i32_93 : i32
    %172 = arith.index_cast %169 : i32 to index
    %c0_94 = arith.constant 0 : index
    %173 = vector.load %arg9[%172, %c0_94] : memref<16x128xf32, #tpu.memory_space<vmem>>, vector<2x128xf32>
    %c0_95 = arith.constant 0 : index
    %c0_96 = arith.constant 0 : index
    %174 = vector.load %arg13[%c0_95, %c0_96] : memref<2x32xf32, #tpu.memory_space<vmem>>, vector<2x32xf32>
    %cst_97 = arith.constant dense<0.000000e+00> : vector<2x128xf32>
    %175 = tpu.matmul %174, %21, %cst_97 {dimension_numbers = #tpu.dot_dimension_numbers<[1], [0], [0], [1], [0, 0, 1, 1], [], []>} : vector<2x32xf32>, vector<32x128xf32>, vector<2x128xf32> -> vector<2x128xf32>
    %176 = arith.addf %173, %175 : vector<2x128xf32>
    %c0_98 = arith.constant 0 : index
    %c0_99 = arith.constant 0 : index
    %177 = vector.load %arg14[%c0_98, %c0_99] : memref<2x32xf32, #tpu.memory_space<vmem>>, vector<2x32xf32>
    %178 = vector.extract_strided_slice %176 {offsets = [0, 0], sizes = [2, 32], strides = [1, 1]} : vector<2x128xf32> to vector<2x32xf32>
    %179 = arith.negf %178 : vector<2x32xf32>
    %180 = math.exp %179 : vector<2x32xf32>
    %cst_100 = arith.constant 1.000000e+00 : f32
    %181 = vector.broadcast %cst_100 : f32 to vector<2x32xf32>
    %182 = arith.addf %181, %180 : vector<2x32xf32>
    %183 = arith.divf %181, %182 : vector<2x32xf32>
    %184 = vector.extract_strided_slice %176 {offsets = [0, 32], sizes = [2, 32], strides = [1, 1]} : vector<2x128xf32> to vector<2x32xf32>
    %185 = arith.negf %184 : vector<2x32xf32>
    %186 = math.exp %185 : vector<2x32xf32>
    %cst_101 = arith.constant 1.000000e+00 : f32
    %187 = vector.broadcast %cst_101 : f32 to vector<2x32xf32>
    %188 = arith.addf %187, %186 : vector<2x32xf32>
    %189 = arith.divf %187, %188 : vector<2x32xf32>
    %190 = vector.extract_strided_slice %176 {offsets = [0, 64], sizes = [2, 32], strides = [1, 1]} : vector<2x128xf32> to vector<2x32xf32>
    %191 = math.tanh %190 : vector<2x32xf32>
    %192 = vector.extract_strided_slice %176 {offsets = [0, 96], sizes = [2, 32], strides = [1, 1]} : vector<2x128xf32> to vector<2x32xf32>
    %193 = arith.negf %192 : vector<2x32xf32>
    %194 = math.exp %193 : vector<2x32xf32>
    %cst_102 = arith.constant 1.000000e+00 : f32
    %195 = vector.broadcast %cst_102 : f32 to vector<2x32xf32>
    %196 = arith.addf %195, %194 : vector<2x32xf32>
    %197 = arith.divf %195, %196 : vector<2x32xf32>
    %198 = arith.mulf %189, %177 : vector<2x32xf32>
    %199 = arith.mulf %183, %191 : vector<2x32xf32>
    %200 = arith.addf %198, %199 : vector<2x32xf32>
    %201 = math.tanh %200 : vector<2x32xf32>
    %202 = arith.mulf %197, %201 : vector<2x32xf32>
    %c0_103 = arith.constant 0 : index
    %c0_104 = arith.constant 0 : index
    %203 = vector.load %arg13[%c0_103, %c0_104] : memref<2x32xf32, #tpu.memory_space<vmem>>, vector<2x32xf32>
    tpu.vector_store %arg13[%c0_103, %c0_104], %202 {strides = array<i32>} : memref<2x32xf32, #tpu.memory_space<vmem>>, vector<2x32xf32>,
    %c0_105 = arith.constant 0 : index
    %c0_106 = arith.constant 0 : index
    %204 = vector.load %arg14[%c0_105, %c0_106] : memref<2x32xf32, #tpu.memory_space<vmem>>, vector<2x32xf32>
    tpu.vector_store %arg14[%c0_105, %c0_106], %200 {strides = array<i32>} : memref<2x32xf32, #tpu.memory_space<vmem>>, vector<2x32xf32>,
    %205 = arith.index_cast %169 : i32 to index
    %c0_107 = arith.constant 0 : index
    %206 = vector.load %arg11[%205, %c0_107] : memref<16x32xf32, #tpu.memory_space<vmem>>, vector<2x32xf32>
    tpu.vector_store %arg11[%205, %c0_107], %202 {strides = array<i32>} : memref<16x32xf32, #tpu.memory_space<vmem>>, vector<2x32xf32>,
    %207 = arith.index_cast %171 : i32 to index
    %c0_108 = arith.constant 0 : index
    %208 = vector.load %arg10[%207, %c0_108] : memref<16x128xf32, #tpu.memory_space<vmem>>, vector<2x128xf32>
    %c0_109 = arith.constant 0 : index
    %c0_110 = arith.constant 0 : index
    %209 = vector.load %arg15[%c0_109, %c0_110] : memref<2x32xf32, #tpu.memory_space<vmem>>, vector<2x32xf32>
    %cst_111 = arith.constant dense<0.000000e+00> : vector<2x128xf32>
    %210 = tpu.matmul %209, %22, %cst_111 {dimension_numbers = #tpu.dot_dimension_numbers<[1], [0], [0], [1], [0, 0, 1, 1], [], []>} : vector<2x32xf32>, vector<32x128xf32>, vector<2x128xf32> -> vector<2x128xf32>
    %211 = arith.addf %208, %210 : vector<2x128xf32>
    %c0_112 = arith.constant 0 : index
    %c0_113 = arith.constant 0 : index
    %212 = vector.load %arg16[%c0_112, %c0_113] : memref<2x32xf32, #tpu.memory_space<vmem>>, vector<2x32xf32>
    %213 = vector.extract_strided_slice %211 {offsets = [0, 0], sizes = [2, 32], strides = [1, 1]} : vector<2x128xf32> to vector<2x32xf32>
    %214 = arith.negf %213 : vector<2x32xf32>
    %215 = math.exp %214 : vector<2x32xf32>
    %cst_114 = arith.constant 1.000000e+00 : f32
    %216 = vector.broadcast %cst_114 : f32 to vector<2x32xf32>
    %217 = arith.addf %216, %215 : vector<2x32xf32>
    %218 = arith.divf %216, %217 : vector<2x32xf32>
    %219 = vector.extract_strided_slice %211 {offsets = [0, 32], sizes = [2, 32], strides = [1, 1]} : vector<2x128xf32> to vector<2x32xf32>
    %220 = arith.negf %219 : vector<2x32xf32>
    %221 = math.exp %220 : vector<2x32xf32>
    %cst_115 = arith.constant 1.000000e+00 : f32
    %222 = vector.broadcast %cst_115 : f32 to vector<2x32xf32>
    %223 = arith.addf %222, %221 : vector<2x32xf32>
    %224 = arith.divf %222, %223 : vector<2x32xf32>
    %225 = vector.extract_strided_slice %211 {offsets = [0, 64], sizes = [2, 32], strides = [1, 1]} : vector<2x128xf32> to vector<2x32xf32>
    %226 = math.tanh %225 : vector<2x32xf32>
    %227 = vector.extract_strided_slice %211 {offsets = [0, 96], sizes = [2, 32], strides = [1, 1]} : vector<2x128xf32> to vector<2x32xf32>
    %228 = arith.negf %227 : vector<2x32xf32>
    %229 = math.exp %228 : vector<2x32xf32>
    %cst_116 = arith.constant 1.000000e+00 : f32
    %230 = vector.broadcast %cst_116 : f32 to vector<2x32xf32>
    %231 = arith.addf %230, %229 : vector<2x32xf32>
    %232 = arith.divf %230, %231 : vector<2x32xf32>
    %233 = arith.mulf %224, %212 : vector<2x32xf32>
    %234 = arith.mulf %218, %226 : vector<2x32xf32>
    %235 = arith.addf %233, %234 : vector<2x32xf32>
    %236 = math.tanh %235 : vector<2x32xf32>
    %237 = arith.mulf %232, %236 : vector<2x32xf32>
    %c0_117 = arith.constant 0 : index
    %c0_118 = arith.constant 0 : index
    %238 = vector.load %arg15[%c0_117, %c0_118] : memref<2x32xf32, #tpu.memory_space<vmem>>, vector<2x32xf32>
    tpu.vector_store %arg15[%c0_117, %c0_118], %237 {strides = array<i32>} : memref<2x32xf32, #tpu.memory_space<vmem>>, vector<2x32xf32>,
    %c0_119 = arith.constant 0 : index
    %c0_120 = arith.constant 0 : index
    %239 = vector.load %arg16[%c0_119, %c0_120] : memref<2x32xf32, #tpu.memory_space<vmem>>, vector<2x32xf32>
    tpu.vector_store %arg16[%c0_119, %c0_120], %235 {strides = array<i32>} : memref<2x32xf32, #tpu.memory_space<vmem>>, vector<2x32xf32>,
    %240 = arith.index_cast %171 : i32 to index
    %c0_121 = arith.constant 0 : index
    %241 = vector.load %arg12[%240, %c0_121] : memref<16x32xf32, #tpu.memory_space<vmem>>, vector<2x32xf32>
    tpu.vector_store %arg12[%240, %c0_121], %237 {strides = array<i32>} : memref<16x32xf32, #tpu.memory_space<vmem>>, vector<2x32xf32>,
    %c3_i32 = arith.constant 3 : i32
    %c2_i32_122 = arith.constant 2 : i32
    %242 = arith.muli %c3_i32, %c2_i32_122 : i32
    %c7_i32_123 = arith.constant 7 : i32
    %243 = arith.subi %c7_i32_123, %c3_i32 : i32
    %c2_i32_124 = arith.constant 2 : i32
    %244 = arith.muli %243, %c2_i32_124 : i32
    %245 = arith.index_cast %242 : i32 to index
    %c0_125 = arith.constant 0 : index
    %246 = vector.load %arg9[%245, %c0_125] : memref<16x128xf32, #tpu.memory_space<vmem>>, vector<2x128xf32>
    %c0_126 = arith.constant 0 : index
    %c0_127 = arith.constant 0 : index
    %247 = vector.load %arg13[%c0_126, %c0_127] : memref<2x32xf32, #tpu.memory_space<vmem>>, vector<2x32xf32>
    %cst_128 = arith.constant dense<0.000000e+00> : vector<2x128xf32>
    %248 = tpu.matmul %247, %21, %cst_128 {dimension_numbers = #tpu.dot_dimension_numbers<[1], [0], [0], [1], [0, 0, 1, 1], [], []>} : vector<2x32xf32>, vector<32x128xf32>, vector<2x128xf32> -> vector<2x128xf32>
    %249 = arith.addf %246, %248 : vector<2x128xf32>
    %c0_129 = arith.constant 0 : index
    %c0_130 = arith.constant 0 : index
    %250 = vector.load %arg14[%c0_129, %c0_130] : memref<2x32xf32, #tpu.memory_space<vmem>>, vector<2x32xf32>
    %251 = vector.extract_strided_slice %249 {offsets = [0, 0], sizes = [2, 32], strides = [1, 1]} : vector<2x128xf32> to vector<2x32xf32>
    %252 = arith.negf %251 : vector<2x32xf32>
    %253 = math.exp %252 : vector<2x32xf32>
    %cst_131 = arith.constant 1.000000e+00 : f32
    %254 = vector.broadcast %cst_131 : f32 to vector<2x32xf32>
    %255 = arith.addf %254, %253 : vector<2x32xf32>
    %256 = arith.divf %254, %255 : vector<2x32xf32>
    %257 = vector.extract_strided_slice %249 {offsets = [0, 32], sizes = [2, 32], strides = [1, 1]} : vector<2x128xf32> to vector<2x32xf32>
    %258 = arith.negf %257 : vector<2x32xf32>
    %259 = math.exp %258 : vector<2x32xf32>
    %cst_132 = arith.constant 1.000000e+00 : f32
    %260 = vector.broadcast %cst_132 : f32 to vector<2x32xf32>
    %261 = arith.addf %260, %259 : vector<2x32xf32>
    %262 = arith.divf %260, %261 : vector<2x32xf32>
    %263 = vector.extract_strided_slice %249 {offsets = [0, 64], sizes = [2, 32], strides = [1, 1]} : vector<2x128xf32> to vector<2x32xf32>
    %264 = math.tanh %263 : vector<2x32xf32>
    %265 = vector.extract_strided_slice %249 {offsets = [0, 96], sizes = [2, 32], strides = [1, 1]} : vector<2x128xf32> to vector<2x32xf32>
    %266 = arith.negf %265 : vector<2x32xf32>
    %267 = math.exp %266 : vector<2x32xf32>
    %cst_133 = arith.constant 1.000000e+00 : f32
    %268 = vector.broadcast %cst_133 : f32 to vector<2x32xf32>
    %269 = arith.addf %268, %267 : vector<2x32xf32>
    %270 = arith.divf %268, %269 : vector<2x32xf32>
    %271 = arith.mulf %262, %250 : vector<2x32xf32>
    %272 = arith.mulf %256, %264 : vector<2x32xf32>
    %273 = arith.addf %271, %272 : vector<2x32xf32>
    %274 = math.tanh %273 : vector<2x32xf32>
    %275 = arith.mulf %270, %274 : vector<2x32xf32>
    %c0_134 = arith.constant 0 : index
    %c0_135 = arith.constant 0 : index
    %276 = vector.load %arg13[%c0_134, %c0_135] : memref<2x32xf32, #tpu.memory_space<vmem>>, vector<2x32xf32>
    tpu.vector_store %arg13[%c0_134, %c0_135], %275 {strides = array<i32>} : memref<2x32xf32, #tpu.memory_space<vmem>>, vector<2x32xf32>,
    %c0_136 = arith.constant 0 : index
    %c0_137 = arith.constant 0 : index
    %277 = vector.load %arg14[%c0_136, %c0_137] : memref<2x32xf32, #tpu.memory_space<vmem>>, vector<2x32xf32>
    tpu.vector_store %arg14[%c0_136, %c0_137], %273 {strides = array<i32>} : memref<2x32xf32, #tpu.memory_space<vmem>>, vector<2x32xf32>,
    %278 = arith.index_cast %242 : i32 to index
    %c0_138 = arith.constant 0 : index
    %279 = vector.load %arg11[%278, %c0_138] : memref<16x32xf32, #tpu.memory_space<vmem>>, vector<2x32xf32>
    tpu.vector_store %arg11[%278, %c0_138], %275 {strides = array<i32>} : memref<16x32xf32, #tpu.memory_space<vmem>>, vector<2x32xf32>,
    %280 = arith.index_cast %244 : i32 to index
    %c0_139 = arith.constant 0 : index
    %281 = vector.load %arg10[%280, %c0_139] : memref<16x128xf32, #tpu.memory_space<vmem>>, vector<2x128xf32>
    %c0_140 = arith.constant 0 : index
    %c0_141 = arith.constant 0 : index
    %282 = vector.load %arg15[%c0_140, %c0_141] : memref<2x32xf32, #tpu.memory_space<vmem>>, vector<2x32xf32>
    %cst_142 = arith.constant dense<0.000000e+00> : vector<2x128xf32>
    %283 = tpu.matmul %282, %22, %cst_142 {dimension_numbers = #tpu.dot_dimension_numbers<[1], [0], [0], [1], [0, 0, 1, 1], [], []>} : vector<2x32xf32>, vector<32x128xf32>, vector<2x128xf32> -> vector<2x128xf32>
    %284 = arith.addf %281, %283 : vector<2x128xf32>
    %c0_143 = arith.constant 0 : index
    %c0_144 = arith.constant 0 : index
    %285 = vector.load %arg16[%c0_143, %c0_144] : memref<2x32xf32, #tpu.memory_space<vmem>>, vector<2x32xf32>
    %286 = vector.extract_strided_slice %284 {offsets = [0, 0], sizes = [2, 32], strides = [1, 1]} : vector<2x128xf32> to vector<2x32xf32>
    %287 = arith.negf %286 : vector<2x32xf32>
    %288 = math.exp %287 : vector<2x32xf32>
    %cst_145 = arith.constant 1.000000e+00 : f32
    %289 = vector.broadcast %cst_145 : f32 to vector<2x32xf32>
    %290 = arith.addf %289, %288 : vector<2x32xf32>
    %291 = arith.divf %289, %290 : vector<2x32xf32>
    %292 = vector.extract_strided_slice %284 {offsets = [0, 32], sizes = [2, 32], strides = [1, 1]} : vector<2x128xf32> to vector<2x32xf32>
    %293 = arith.negf %292 : vector<2x32xf32>
    %294 = math.exp %293 : vector<2x32xf32>
    %cst_146 = arith.constant 1.000000e+00 : f32
    %295 = vector.broadcast %cst_146 : f32 to vector<2x32xf32>
    %296 = arith.addf %295, %294 : vector<2x32xf32>
    %297 = arith.divf %295, %296 : vector<2x32xf32>
    %298 = vector.extract_strided_slice %284 {offsets = [0, 64], sizes = [2, 32], strides = [1, 1]} : vector<2x128xf32> to vector<2x32xf32>
    %299 = math.tanh %298 : vector<2x32xf32>
    %300 = vector.extract_strided_slice %284 {offsets = [0, 96], sizes = [2, 32], strides = [1, 1]} : vector<2x128xf32> to vector<2x32xf32>
    %301 = arith.negf %300 : vector<2x32xf32>
    %302 = math.exp %301 : vector<2x32xf32>
    %cst_147 = arith.constant 1.000000e+00 : f32
    %303 = vector.broadcast %cst_147 : f32 to vector<2x32xf32>
    %304 = arith.addf %303, %302 : vector<2x32xf32>
    %305 = arith.divf %303, %304 : vector<2x32xf32>
    %306 = arith.mulf %297, %285 : vector<2x32xf32>
    %307 = arith.mulf %291, %299 : vector<2x32xf32>
    %308 = arith.addf %306, %307 : vector<2x32xf32>
    %309 = math.tanh %308 : vector<2x32xf32>
    %310 = arith.mulf %305, %309 : vector<2x32xf32>
    %c0_148 = arith.constant 0 : index
    %c0_149 = arith.constant 0 : index
    %311 = vector.load %arg15[%c0_148, %c0_149] : memref<2x32xf32, #tpu.memory_space<vmem>>, vector<2x32xf32>
    tpu.vector_store %arg15[%c0_148, %c0_149], %310 {strides = array<i32>} : memref<2x32xf32, #tpu.memory_space<vmem>>, vector<2x32xf32>,
    %c0_150 = arith.constant 0 : index
    %c0_151 = arith.constant 0 : index
    %312 = vector.load %arg16[%c0_150, %c0_151] : memref<2x32xf32, #tpu.memory_space<vmem>>, vector<2x32xf32>
    tpu.vector_store %arg16[%c0_150, %c0_151], %308 {strides = array<i32>} : memref<2x32xf32, #tpu.memory_space<vmem>>, vector<2x32xf32>,
    %313 = arith.index_cast %244 : i32 to index
    %c0_152 = arith.constant 0 : index
    %314 = vector.load %arg12[%313, %c0_152] : memref<16x32xf32, #tpu.memory_space<vmem>>, vector<2x32xf32>
    tpu.vector_store %arg12[%313, %c0_152], %310 {strides = array<i32>} : memref<16x32xf32, #tpu.memory_space<vmem>>, vector<2x32xf32>,
    %c4_i32 = arith.constant 4 : i32
    %c2_i32_153 = arith.constant 2 : i32
    %315 = arith.muli %c4_i32, %c2_i32_153 : i32
    %c7_i32_154 = arith.constant 7 : i32
    %316 = arith.subi %c7_i32_154, %c4_i32 : i32
    %c2_i32_155 = arith.constant 2 : i32
    %317 = arith.muli %316, %c2_i32_155 : i32
    %318 = arith.index_cast %315 : i32 to index
    %c0_156 = arith.constant 0 : index
    %319 = vector.load %arg9[%318, %c0_156] : memref<16x128xf32, #tpu.memory_space<vmem>>, vector<2x128xf32>
    %c0_157 = arith.constant 0 : index
    %c0_158 = arith.constant 0 : index
    %320 = vector.load %arg13[%c0_157, %c0_158] : memref<2x32xf32, #tpu.memory_space<vmem>>, vector<2x32xf32>
    %cst_159 = arith.constant dense<0.000000e+00> : vector<2x128xf32>
    %321 = tpu.matmul %320, %21, %cst_159 {dimension_numbers = #tpu.dot_dimension_numbers<[1], [0], [0], [1], [0, 0, 1, 1], [], []>} : vector<2x32xf32>, vector<32x128xf32>, vector<2x128xf32> -> vector<2x128xf32>
    %322 = arith.addf %319, %321 : vector<2x128xf32>
    %c0_160 = arith.constant 0 : index
    %c0_161 = arith.constant 0 : index
    %323 = vector.load %arg14[%c0_160, %c0_161] : memref<2x32xf32, #tpu.memory_space<vmem>>, vector<2x32xf32>
    %324 = vector.extract_strided_slice %322 {offsets = [0, 0], sizes = [2, 32], strides = [1, 1]} : vector<2x128xf32> to vector<2x32xf32>
    %325 = arith.negf %324 : vector<2x32xf32>
    %326 = math.exp %325 : vector<2x32xf32>
    %cst_162 = arith.constant 1.000000e+00 : f32
    %327 = vector.broadcast %cst_162 : f32 to vector<2x32xf32>
    %328 = arith.addf %327, %326 : vector<2x32xf32>
    %329 = arith.divf %327, %328 : vector<2x32xf32>
    %330 = vector.extract_strided_slice %322 {offsets = [0, 32], sizes = [2, 32], strides = [1, 1]} : vector<2x128xf32> to vector<2x32xf32>
    %331 = arith.negf %330 : vector<2x32xf32>
    %332 = math.exp %331 : vector<2x32xf32>
    %cst_163 = arith.constant 1.000000e+00 : f32
    %333 = vector.broadcast %cst_163 : f32 to vector<2x32xf32>
    %334 = arith.addf %333, %332 : vector<2x32xf32>
    %335 = arith.divf %333, %334 : vector<2x32xf32>
    %336 = vector.extract_strided_slice %322 {offsets = [0, 64], sizes = [2, 32], strides = [1, 1]} : vector<2x128xf32> to vector<2x32xf32>
    %337 = math.tanh %336 : vector<2x32xf32>
    %338 = vector.extract_strided_slice %322 {offsets = [0, 96], sizes = [2, 32], strides = [1, 1]} : vector<2x128xf32> to vector<2x32xf32>
    %339 = arith.negf %338 : vector<2x32xf32>
    %340 = math.exp %339 : vector<2x32xf32>
    %cst_164 = arith.constant 1.000000e+00 : f32
    %341 = vector.broadcast %cst_164 : f32 to vector<2x32xf32>
    %342 = arith.addf %341, %340 : vector<2x32xf32>
    %343 = arith.divf %341, %342 : vector<2x32xf32>
    %344 = arith.mulf %335, %323 : vector<2x32xf32>
    %345 = arith.mulf %329, %337 : vector<2x32xf32>
    %346 = arith.addf %344, %345 : vector<2x32xf32>
    %347 = math.tanh %346 : vector<2x32xf32>
    %348 = arith.mulf %343, %347 : vector<2x32xf32>
    %c0_165 = arith.constant 0 : index
    %c0_166 = arith.constant 0 : index
    %349 = vector.load %arg13[%c0_165, %c0_166] : memref<2x32xf32, #tpu.memory_space<vmem>>, vector<2x32xf32>
    tpu.vector_store %arg13[%c0_165, %c0_166], %348 {strides = array<i32>} : memref<2x32xf32, #tpu.memory_space<vmem>>, vector<2x32xf32>,
    %c0_167 = arith.constant 0 : index
    %c0_168 = arith.constant 0 : index
    %350 = vector.load %arg14[%c0_167, %c0_168] : memref<2x32xf32, #tpu.memory_space<vmem>>, vector<2x32xf32>
    tpu.vector_store %arg14[%c0_167, %c0_168], %346 {strides = array<i32>} : memref<2x32xf32, #tpu.memory_space<vmem>>, vector<2x32xf32>,
    %351 = arith.index_cast %315 : i32 to index
    %c0_169 = arith.constant 0 : index
    %352 = vector.load %arg11[%351, %c0_169] : memref<16x32xf32, #tpu.memory_space<vmem>>, vector<2x32xf32>
    tpu.vector_store %arg11[%351, %c0_169], %348 {strides = array<i32>} : memref<16x32xf32, #tpu.memory_space<vmem>>, vector<2x32xf32>,
    %353 = arith.index_cast %317 : i32 to index
    %c0_170 = arith.constant 0 : index
    %354 = vector.load %arg10[%353, %c0_170] : memref<16x128xf32, #tpu.memory_space<vmem>>, vector<2x128xf32>
    %c0_171 = arith.constant 0 : index
    %c0_172 = arith.constant 0 : index
    %355 = vector.load %arg15[%c0_171, %c0_172] : memref<2x32xf32, #tpu.memory_space<vmem>>, vector<2x32xf32>
    %cst_173 = arith.constant dense<0.000000e+00> : vector<2x128xf32>
    %356 = tpu.matmul %355, %22, %cst_173 {dimension_numbers = #tpu.dot_dimension_numbers<[1], [0], [0], [1], [0, 0, 1, 1], [], []>} : vector<2x32xf32>, vector<32x128xf32>, vector<2x128xf32> -> vector<2x128xf32>
    %357 = arith.addf %354, %356 : vector<2x128xf32>
    %c0_174 = arith.constant 0 : index
    %c0_175 = arith.constant 0 : index
    %358 = vector.load %arg16[%c0_174, %c0_175] : memref<2x32xf32, #tpu.memory_space<vmem>>, vector<2x32xf32>
    %359 = vector.extract_strided_slice %357 {offsets = [0, 0], sizes = [2, 32], strides = [1, 1]} : vector<2x128xf32> to vector<2x32xf32>
    %360 = arith.negf %359 : vector<2x32xf32>
    %361 = math.exp %360 : vector<2x32xf32>
    %cst_176 = arith.constant 1.000000e+00 : f32
    %362 = vector.broadcast %cst_176 : f32 to vector<2x32xf32>
    %363 = arith.addf %362, %361 : vector<2x32xf32>
    %364 = arith.divf %362, %363 : vector<2x32xf32>
    %365 = vector.extract_strided_slice %357 {offsets = [0, 32], sizes = [2, 32], strides = [1, 1]} : vector<2x128xf32> to vector<2x32xf32>
    %366 = arith.negf %365 : vector<2x32xf32>
    %367 = math.exp %366 : vector<2x32xf32>
    %cst_177 = arith.constant 1.000000e+00 : f32
    %368 = vector.broadcast %cst_177 : f32 to vector<2x32xf32>
    %369 = arith.addf %368, %367 : vector<2x32xf32>
    %370 = arith.divf %368, %369 : vector<2x32xf32>
    %371 = vector.extract_strided_slice %357 {offsets = [0, 64], sizes = [2, 32], strides = [1, 1]} : vector<2x128xf32> to vector<2x32xf32>
    %372 = math.tanh %371 : vector<2x32xf32>
    %373 = vector.extract_strided_slice %357 {offsets = [0, 96], sizes = [2, 32], strides = [1, 1]} : vector<2x128xf32> to vector<2x32xf32>
    %374 = arith.negf %373 : vector<2x32xf32>
    %375 = math.exp %374 : vector<2x32xf32>
    %cst_178 = arith.constant 1.000000e+00 : f32
    %376 = vector.broadcast %cst_178 : f32 to vector<2x32xf32>
    %377 = arith.addf %376, %375 : vector<2x32xf32>
    %378 = arith.divf %376, %377 : vector<2x32xf32>
    %379 = arith.mulf %370, %358 : vector<2x32xf32>
    %380 = arith.mulf %364, %372 : vector<2x32xf32>
    %381 = arith.addf %379, %380 : vector<2x32xf32>
    %382 = math.tanh %381 : vector<2x32xf32>
    %383 = arith.mulf %378, %382 : vector<2x32xf32>
    %c0_179 = arith.constant 0 : index
    %c0_180 = arith.constant 0 : index
    %384 = vector.load %arg15[%c0_179, %c0_180] : memref<2x32xf32, #tpu.memory_space<vmem>>, vector<2x32xf32>
    tpu.vector_store %arg15[%c0_179, %c0_180], %383 {strides = array<i32>} : memref<2x32xf32, #tpu.memory_space<vmem>>, vector<2x32xf32>,
    %c0_181 = arith.constant 0 : index
    %c0_182 = arith.constant 0 : index
    %385 = vector.load %arg16[%c0_181, %c0_182] : memref<2x32xf32, #tpu.memory_space<vmem>>, vector<2x32xf32>
    tpu.vector_store %arg16[%c0_181, %c0_182], %381 {strides = array<i32>} : memref<2x32xf32, #tpu.memory_space<vmem>>, vector<2x32xf32>,
    %386 = arith.index_cast %317 : i32 to index
    %c0_183 = arith.constant 0 : index
    %387 = vector.load %arg12[%386, %c0_183] : memref<16x32xf32, #tpu.memory_space<vmem>>, vector<2x32xf32>
    tpu.vector_store %arg12[%386, %c0_183], %383 {strides = array<i32>} : memref<16x32xf32, #tpu.memory_space<vmem>>, vector<2x32xf32>,
    %c5_i32 = arith.constant 5 : i32
    %c2_i32_184 = arith.constant 2 : i32
    %388 = arith.muli %c5_i32, %c2_i32_184 : i32
    %c7_i32_185 = arith.constant 7 : i32
    %389 = arith.subi %c7_i32_185, %c5_i32 : i32
    %c2_i32_186 = arith.constant 2 : i32
    %390 = arith.muli %389, %c2_i32_186 : i32
    %391 = arith.index_cast %388 : i32 to index
    %c0_187 = arith.constant 0 : index
    %392 = vector.load %arg9[%391, %c0_187] : memref<16x128xf32, #tpu.memory_space<vmem>>, vector<2x128xf32>
    %c0_188 = arith.constant 0 : index
    %c0_189 = arith.constant 0 : index
    %393 = vector.load %arg13[%c0_188, %c0_189] : memref<2x32xf32, #tpu.memory_space<vmem>>, vector<2x32xf32>
    %cst_190 = arith.constant dense<0.000000e+00> : vector<2x128xf32>
    %394 = tpu.matmul %393, %21, %cst_190 {dimension_numbers = #tpu.dot_dimension_numbers<[1], [0], [0], [1], [0, 0, 1, 1], [], []>} : vector<2x32xf32>, vector<32x128xf32>, vector<2x128xf32> -> vector<2x128xf32>
    %395 = arith.addf %392, %394 : vector<2x128xf32>
    %c0_191 = arith.constant 0 : index
    %c0_192 = arith.constant 0 : index
    %396 = vector.load %arg14[%c0_191, %c0_192] : memref<2x32xf32, #tpu.memory_space<vmem>>, vector<2x32xf32>
    %397 = vector.extract_strided_slice %395 {offsets = [0, 0], sizes = [2, 32], strides = [1, 1]} : vector<2x128xf32> to vector<2x32xf32>
    %398 = arith.negf %397 : vector<2x32xf32>
    %399 = math.exp %398 : vector<2x32xf32>
    %cst_193 = arith.constant 1.000000e+00 : f32
    %400 = vector.broadcast %cst_193 : f32 to vector<2x32xf32>
    %401 = arith.addf %400, %399 : vector<2x32xf32>
    %402 = arith.divf %400, %401 : vector<2x32xf32>
    %403 = vector.extract_strided_slice %395 {offsets = [0, 32], sizes = [2, 32], strides = [1, 1]} : vector<2x128xf32> to vector<2x32xf32>
    %404 = arith.negf %403 : vector<2x32xf32>
    %405 = math.exp %404 : vector<2x32xf32>
    %cst_194 = arith.constant 1.000000e+00 : f32
    %406 = vector.broadcast %cst_194 : f32 to vector<2x32xf32>
    %407 = arith.addf %406, %405 : vector<2x32xf32>
    %408 = arith.divf %406, %407 : vector<2x32xf32>
    %409 = vector.extract_strided_slice %395 {offsets = [0, 64], sizes = [2, 32], strides = [1, 1]} : vector<2x128xf32> to vector<2x32xf32>
    %410 = math.tanh %409 : vector<2x32xf32>
    %411 = vector.extract_strided_slice %395 {offsets = [0, 96], sizes = [2, 32], strides = [1, 1]} : vector<2x128xf32> to vector<2x32xf32>
    %412 = arith.negf %411 : vector<2x32xf32>
    %413 = math.exp %412 : vector<2x32xf32>
    %cst_195 = arith.constant 1.000000e+00 : f32
    %414 = vector.broadcast %cst_195 : f32 to vector<2x32xf32>
    %415 = arith.addf %414, %413 : vector<2x32xf32>
    %416 = arith.divf %414, %415 : vector<2x32xf32>
    %417 = arith.mulf %408, %396 : vector<2x32xf32>
    %418 = arith.mulf %402, %410 : vector<2x32xf32>
    %419 = arith.addf %417, %418 : vector<2x32xf32>
    %420 = math.tanh %419 : vector<2x32xf32>
    %421 = arith.mulf %416, %420 : vector<2x32xf32>
    %c0_196 = arith.constant 0 : index
    %c0_197 = arith.constant 0 : index
    %422 = vector.load %arg13[%c0_196, %c0_197] : memref<2x32xf32, #tpu.memory_space<vmem>>, vector<2x32xf32>
    tpu.vector_store %arg13[%c0_196, %c0_197], %421 {strides = array<i32>} : memref<2x32xf32, #tpu.memory_space<vmem>>, vector<2x32xf32>,
    %c0_198 = arith.constant 0 : index
    %c0_199 = arith.constant 0 : index
    %423 = vector.load %arg14[%c0_198, %c0_199] : memref<2x32xf32, #tpu.memory_space<vmem>>, vector<2x32xf32>
    tpu.vector_store %arg14[%c0_198, %c0_199], %419 {strides = array<i32>} : memref<2x32xf32, #tpu.memory_space<vmem>>, vector<2x32xf32>,
    %424 = arith.index_cast %388 : i32 to index
    %c0_200 = arith.constant 0 : index
    %425 = vector.load %arg11[%424, %c0_200] : memref<16x32xf32, #tpu.memory_space<vmem>>, vector<2x32xf32>
    tpu.vector_store %arg11[%424, %c0_200], %421 {strides = array<i32>} : memref<16x32xf32, #tpu.memory_space<vmem>>, vector<2x32xf32>,
    %426 = arith.index_cast %390 : i32 to index
    %c0_201 = arith.constant 0 : index
    %427 = vector.load %arg10[%426, %c0_201] : memref<16x128xf32, #tpu.memory_space<vmem>>, vector<2x128xf32>
    %c0_202 = arith.constant 0 : index
    %c0_203 = arith.constant 0 : index
    %428 = vector.load %arg15[%c0_202, %c0_203] : memref<2x32xf32, #tpu.memory_space<vmem>>, vector<2x32xf32>
    %cst_204 = arith.constant dense<0.000000e+00> : vector<2x128xf32>
    %429 = tpu.matmul %428, %22, %cst_204 {dimension_numbers = #tpu.dot_dimension_numbers<[1], [0], [0], [1], [0, 0, 1, 1], [], []>} : vector<2x32xf32>, vector<32x128xf32>, vector<2x128xf32> -> vector<2x128xf32>
    %430 = arith.addf %427, %429 : vector<2x128xf32>
    %c0_205 = arith.constant 0 : index
    %c0_206 = arith.constant 0 : index
    %431 = vector.load %arg16[%c0_205, %c0_206] : memref<2x32xf32, #tpu.memory_space<vmem>>, vector<2x32xf32>
    %432 = vector.extract_strided_slice %430 {offsets = [0, 0], sizes = [2, 32], strides = [1, 1]} : vector<2x128xf32> to vector<2x32xf32>
    %433 = arith.negf %432 : vector<2x32xf32>
    %434 = math.exp %433 : vector<2x32xf32>
    %cst_207 = arith.constant 1.000000e+00 : f32
    %435 = vector.broadcast %cst_207 : f32 to vector<2x32xf32>
    %436 = arith.addf %435, %434 : vector<2x32xf32>
    %437 = arith.divf %435, %436 : vector<2x32xf32>
    %438 = vector.extract_strided_slice %430 {offsets = [0, 32], sizes = [2, 32], strides = [1, 1]} : vector<2x128xf32> to vector<2x32xf32>
    %439 = arith.negf %438 : vector<2x32xf32>
    %440 = math.exp %439 : vector<2x32xf32>
    %cst_208 = arith.constant 1.000000e+00 : f32
    %441 = vector.broadcast %cst_208 : f32 to vector<2x32xf32>
    %442 = arith.addf %441, %440 : vector<2x32xf32>
    %443 = arith.divf %441, %442 : vector<2x32xf32>
    %444 = vector.extract_strided_slice %430 {offsets = [0, 64], sizes = [2, 32], strides = [1, 1]} : vector<2x128xf32> to vector<2x32xf32>
    %445 = math.tanh %444 : vector<2x32xf32>
    %446 = vector.extract_strided_slice %430 {offsets = [0, 96], sizes = [2, 32], strides = [1, 1]} : vector<2x128xf32> to vector<2x32xf32>
    %447 = arith.negf %446 : vector<2x32xf32>
    %448 = math.exp %447 : vector<2x32xf32>
    %cst_209 = arith.constant 1.000000e+00 : f32
    %449 = vector.broadcast %cst_209 : f32 to vector<2x32xf32>
    %450 = arith.addf %449, %448 : vector<2x32xf32>
    %451 = arith.divf %449, %450 : vector<2x32xf32>
    %452 = arith.mulf %443, %431 : vector<2x32xf32>
    %453 = arith.mulf %437, %445 : vector<2x32xf32>
    %454 = arith.addf %452, %453 : vector<2x32xf32>
    %455 = math.tanh %454 : vector<2x32xf32>
    %456 = arith.mulf %451, %455 : vector<2x32xf32>
    %c0_210 = arith.constant 0 : index
    %c0_211 = arith.constant 0 : index
    %457 = vector.load %arg15[%c0_210, %c0_211] : memref<2x32xf32, #tpu.memory_space<vmem>>, vector<2x32xf32>
    tpu.vector_store %arg15[%c0_210, %c0_211], %456 {strides = array<i32>} : memref<2x32xf32, #tpu.memory_space<vmem>>, vector<2x32xf32>,
    %c0_212 = arith.constant 0 : index
    %c0_213 = arith.constant 0 : index
    %458 = vector.load %arg16[%c0_212, %c0_213] : memref<2x32xf32, #tpu.memory_space<vmem>>, vector<2x32xf32>
    tpu.vector_store %arg16[%c0_212, %c0_213], %454 {strides = array<i32>} : memref<2x32xf32, #tpu.memory_space<vmem>>, vector<2x32xf32>,
    %459 = arith.index_cast %390 : i32 to index
    %c0_214 = arith.constant 0 : index
    %460 = vector.load %arg12[%459, %c0_214] : memref<16x32xf32, #tpu.memory_space<vmem>>, vector<2x32xf32>
    tpu.vector_store %arg12[%459, %c0_214], %456 {strides = array<i32>} : memref<16x32xf32, #tpu.memory_space<vmem>>, vector<2x32xf32>,
    %c6_i32 = arith.constant 6 : i32
    %c2_i32_215 = arith.constant 2 : i32
    %461 = arith.muli %c6_i32, %c2_i32_215 : i32
    %c7_i32_216 = arith.constant 7 : i32
    %462 = arith.subi %c7_i32_216, %c6_i32 : i32
    %c2_i32_217 = arith.constant 2 : i32
    %463 = arith.muli %462, %c2_i32_217 : i32
    %464 = arith.index_cast %461 : i32 to index
    %c0_218 = arith.constant 0 : index
    %465 = vector.load %arg9[%464, %c0_218] : memref<16x128xf32, #tpu.memory_space<vmem>>, vector<2x128xf32>
    %c0_219 = arith.constant 0 : index
    %c0_220 = arith.constant 0 : index
    %466 = vector.load %arg13[%c0_219, %c0_220] : memref<2x32xf32, #tpu.memory_space<vmem>>, vector<2x32xf32>
    %cst_221 = arith.constant dense<0.000000e+00> : vector<2x128xf32>
    %467 = tpu.matmul %466, %21, %cst_221 {dimension_numbers = #tpu.dot_dimension_numbers<[1], [0], [0], [1], [0, 0, 1, 1], [], []>} : vector<2x32xf32>, vector<32x128xf32>, vector<2x128xf32> -> vector<2x128xf32>
    %468 = arith.addf %465, %467 : vector<2x128xf32>
    %c0_222 = arith.constant 0 : index
    %c0_223 = arith.constant 0 : index
    %469 = vector.load %arg14[%c0_222, %c0_223] : memref<2x32xf32, #tpu.memory_space<vmem>>, vector<2x32xf32>
    %470 = vector.extract_strided_slice %468 {offsets = [0, 0], sizes = [2, 32], strides = [1, 1]} : vector<2x128xf32> to vector<2x32xf32>
    %471 = arith.negf %470 : vector<2x32xf32>
    %472 = math.exp %471 : vector<2x32xf32>
    %cst_224 = arith.constant 1.000000e+00 : f32
    %473 = vector.broadcast %cst_224 : f32 to vector<2x32xf32>
    %474 = arith.addf %473, %472 : vector<2x32xf32>
    %475 = arith.divf %473, %474 : vector<2x32xf32>
    %476 = vector.extract_strided_slice %468 {offsets = [0, 32], sizes = [2, 32], strides = [1, 1]} : vector<2x128xf32> to vector<2x32xf32>
    %477 = arith.negf %476 : vector<2x32xf32>
    %478 = math.exp %477 : vector<2x32xf32>
    %cst_225 = arith.constant 1.000000e+00 : f32
    %479 = vector.broadcast %cst_225 : f32 to vector<2x32xf32>
    %480 = arith.addf %479, %478 : vector<2x32xf32>
    %481 = arith.divf %479, %480 : vector<2x32xf32>
    %482 = vector.extract_strided_slice %468 {offsets = [0, 64], sizes = [2, 32], strides = [1, 1]} : vector<2x128xf32> to vector<2x32xf32>
    %483 = math.tanh %482 : vector<2x32xf32>
    %484 = vector.extract_strided_slice %468 {offsets = [0, 96], sizes = [2, 32], strides = [1, 1]} : vector<2x128xf32> to vector<2x32xf32>
    %485 = arith.negf %484 : vector<2x32xf32>
    %486 = math.exp %485 : vector<2x32xf32>
    %cst_226 = arith.constant 1.000000e+00 : f32
    %487 = vector.broadcast %cst_226 : f32 to vector<2x32xf32>
    %488 = arith.addf %487, %486 : vector<2x32xf32>
    %489 = arith.divf %487, %488 : vector<2x32xf32>
    %490 = arith.mulf %481, %469 : vector<2x32xf32>
    %491 = arith.mulf %475, %483 : vector<2x32xf32>
    %492 = arith.addf %490, %491 : vector<2x32xf32>
    %493 = math.tanh %492 : vector<2x32xf32>
    %494 = arith.mulf %489, %493 : vector<2x32xf32>
    %c0_227 = arith.constant 0 : index
    %c0_228 = arith.constant 0 : index
    %495 = vector.load %arg13[%c0_227, %c0_228] : memref<2x32xf32, #tpu.memory_space<vmem>>, vector<2x32xf32>
    tpu.vector_store %arg13[%c0_227, %c0_228], %494 {strides = array<i32>} : memref<2x32xf32, #tpu.memory_space<vmem>>, vector<2x32xf32>,
    %c0_229 = arith.constant 0 : index
    %c0_230 = arith.constant 0 : index
    %496 = vector.load %arg14[%c0_229, %c0_230] : memref<2x32xf32, #tpu.memory_space<vmem>>, vector<2x32xf32>
    tpu.vector_store %arg14[%c0_229, %c0_230], %492 {strides = array<i32>} : memref<2x32xf32, #tpu.memory_space<vmem>>, vector<2x32xf32>,
    %497 = arith.index_cast %461 : i32 to index
    %c0_231 = arith.constant 0 : index
    %498 = vector.load %arg11[%497, %c0_231] : memref<16x32xf32, #tpu.memory_space<vmem>>, vector<2x32xf32>
    tpu.vector_store %arg11[%497, %c0_231], %494 {strides = array<i32>} : memref<16x32xf32, #tpu.memory_space<vmem>>, vector<2x32xf32>,
    %499 = arith.index_cast %463 : i32 to index
    %c0_232 = arith.constant 0 : index
    %500 = vector.load %arg10[%499, %c0_232] : memref<16x128xf32, #tpu.memory_space<vmem>>, vector<2x128xf32>
    %c0_233 = arith.constant 0 : index
    %c0_234 = arith.constant 0 : index
    %501 = vector.load %arg15[%c0_233, %c0_234] : memref<2x32xf32, #tpu.memory_space<vmem>>, vector<2x32xf32>
    %cst_235 = arith.constant dense<0.000000e+00> : vector<2x128xf32>
    %502 = tpu.matmul %501, %22, %cst_235 {dimension_numbers = #tpu.dot_dimension_numbers<[1], [0], [0], [1], [0, 0, 1, 1], [], []>} : vector<2x32xf32>, vector<32x128xf32>, vector<2x128xf32> -> vector<2x128xf32>
    %503 = arith.addf %500, %502 : vector<2x128xf32>
    %c0_236 = arith.constant 0 : index
    %c0_237 = arith.constant 0 : index
    %504 = vector.load %arg16[%c0_236, %c0_237] : memref<2x32xf32, #tpu.memory_space<vmem>>, vector<2x32xf32>
    %505 = vector.extract_strided_slice %503 {offsets = [0, 0], sizes = [2, 32], strides = [1, 1]} : vector<2x128xf32> to vector<2x32xf32>
    %506 = arith.negf %505 : vector<2x32xf32>
    %507 = math.exp %506 : vector<2x32xf32>
    %cst_238 = arith.constant 1.000000e+00 : f32
    %508 = vector.broadcast %cst_238 : f32 to vector<2x32xf32>
    %509 = arith.addf %508, %507 : vector<2x32xf32>
    %510 = arith.divf %508, %509 : vector<2x32xf32>
    %511 = vector.extract_strided_slice %503 {offsets = [0, 32], sizes = [2, 32], strides = [1, 1]} : vector<2x128xf32> to vector<2x32xf32>
    %512 = arith.negf %511 : vector<2x32xf32>
    %513 = math.exp %512 : vector<2x32xf32>
    %cst_239 = arith.constant 1.000000e+00 : f32
    %514 = vector.broadcast %cst_239 : f32 to vector<2x32xf32>
    %515 = arith.addf %514, %513 : vector<2x32xf32>
    %516 = arith.divf %514, %515 : vector<2x32xf32>
    %517 = vector.extract_strided_slice %503 {offsets = [0, 64], sizes = [2, 32], strides = [1, 1]} : vector<2x128xf32> to vector<2x32xf32>
    %518 = math.tanh %517 : vector<2x32xf32>
    %519 = vector.extract_strided_slice %503 {offsets = [0, 96], sizes = [2, 32], strides = [1, 1]} : vector<2x128xf32> to vector<2x32xf32>
    %520 = arith.negf %519 : vector<2x32xf32>
    %521 = math.exp %520 : vector<2x32xf32>
    %cst_240 = arith.constant 1.000000e+00 : f32
    %522 = vector.broadcast %cst_240 : f32 to vector<2x32xf32>
    %523 = arith.addf %522, %521 : vector<2x32xf32>
    %524 = arith.divf %522, %523 : vector<2x32xf32>
    %525 = arith.mulf %516, %504 : vector<2x32xf32>
    %526 = arith.mulf %510, %518 : vector<2x32xf32>
    %527 = arith.addf %525, %526 : vector<2x32xf32>
    %528 = math.tanh %527 : vector<2x32xf32>
    %529 = arith.mulf %524, %528 : vector<2x32xf32>
    %c0_241 = arith.constant 0 : index
    %c0_242 = arith.constant 0 : index
    %530 = vector.load %arg15[%c0_241, %c0_242] : memref<2x32xf32, #tpu.memory_space<vmem>>, vector<2x32xf32>
    tpu.vector_store %arg15[%c0_241, %c0_242], %529 {strides = array<i32>} : memref<2x32xf32, #tpu.memory_space<vmem>>, vector<2x32xf32>,
    %c0_243 = arith.constant 0 : index
    %c0_244 = arith.constant 0 : index
    %531 = vector.load %arg16[%c0_243, %c0_244] : memref<2x32xf32, #tpu.memory_space<vmem>>, vector<2x32xf32>
    tpu.vector_store %arg16[%c0_243, %c0_244], %527 {strides = array<i32>} : memref<2x32xf32, #tpu.memory_space<vmem>>, vector<2x32xf32>,
    %532 = arith.index_cast %463 : i32 to index
    %c0_245 = arith.constant 0 : index
    %533 = vector.load %arg12[%532, %c0_245] : memref<16x32xf32, #tpu.memory_space<vmem>>, vector<2x32xf32>
    tpu.vector_store %arg12[%532, %c0_245], %529 {strides = array<i32>} : memref<16x32xf32, #tpu.memory_space<vmem>>, vector<2x32xf32>,
    %c7_i32_246 = arith.constant 7 : i32
    %c2_i32_247 = arith.constant 2 : i32
    %534 = arith.muli %c7_i32_246, %c2_i32_247 : i32
    %c7_i32_248 = arith.constant 7 : i32
    %535 = arith.subi %c7_i32_248, %c7_i32_246 : i32
    %c2_i32_249 = arith.constant 2 : i32
    %536 = arith.muli %535, %c2_i32_249 : i32
    %537 = arith.index_cast %534 : i32 to index
    %c0_250 = arith.constant 0 : index
    %538 = vector.load %arg9[%537, %c0_250] : memref<16x128xf32, #tpu.memory_space<vmem>>, vector<2x128xf32>
    %c0_251 = arith.constant 0 : index
    %c0_252 = arith.constant 0 : index
    %539 = vector.load %arg13[%c0_251, %c0_252] : memref<2x32xf32, #tpu.memory_space<vmem>>, vector<2x32xf32>
    %cst_253 = arith.constant dense<0.000000e+00> : vector<2x128xf32>
    %540 = tpu.matmul %539, %21, %cst_253 {dimension_numbers = #tpu.dot_dimension_numbers<[1], [0], [0], [1], [0, 0, 1, 1], [], []>} : vector<2x32xf32>, vector<32x128xf32>, vector<2x128xf32> -> vector<2x128xf32>
    %541 = arith.addf %538, %540 : vector<2x128xf32>
    %c0_254 = arith.constant 0 : index
    %c0_255 = arith.constant 0 : index
    %542 = vector.load %arg14[%c0_254, %c0_255] : memref<2x32xf32, #tpu.memory_space<vmem>>, vector<2x32xf32>
    %543 = vector.extract_strided_slice %541 {offsets = [0, 0], sizes = [2, 32], strides = [1, 1]} : vector<2x128xf32> to vector<2x32xf32>
    %544 = arith.negf %543 : vector<2x32xf32>
    %545 = math.exp %544 : vector<2x32xf32>
    %cst_256 = arith.constant 1.000000e+00 : f32
    %546 = vector.broadcast %cst_256 : f32 to vector<2x32xf32>
    %547 = arith.addf %546, %545 : vector<2x32xf32>
    %548 = arith.divf %546, %547 : vector<2x32xf32>
    %549 = vector.extract_strided_slice %541 {offsets = [0, 32], sizes = [2, 32], strides = [1, 1]} : vector<2x128xf32> to vector<2x32xf32>
    %550 = arith.negf %549 : vector<2x32xf32>
    %551 = math.exp %550 : vector<2x32xf32>
    %cst_257 = arith.constant 1.000000e+00 : f32
    %552 = vector.broadcast %cst_257 : f32 to vector<2x32xf32>
    %553 = arith.addf %552, %551 : vector<2x32xf32>
    %554 = arith.divf %552, %553 : vector<2x32xf32>
    %555 = vector.extract_strided_slice %541 {offsets = [0, 64], sizes = [2, 32], strides = [1, 1]} : vector<2x128xf32> to vector<2x32xf32>
    %556 = math.tanh %555 : vector<2x32xf32>
    %557 = vector.extract_strided_slice %541 {offsets = [0, 96], sizes = [2, 32], strides = [1, 1]} : vector<2x128xf32> to vector<2x32xf32>
    %558 = arith.negf %557 : vector<2x32xf32>
    %559 = math.exp %558 : vector<2x32xf32>
    %cst_258 = arith.constant 1.000000e+00 : f32
    %560 = vector.broadcast %cst_258 : f32 to vector<2x32xf32>
    %561 = arith.addf %560, %559 : vector<2x32xf32>
    %562 = arith.divf %560, %561 : vector<2x32xf32>
    %563 = arith.mulf %554, %542 : vector<2x32xf32>
    %564 = arith.mulf %548, %556 : vector<2x32xf32>
    %565 = arith.addf %563, %564 : vector<2x32xf32>
    %566 = math.tanh %565 : vector<2x32xf32>
    %567 = arith.mulf %562, %566 : vector<2x32xf32>
    %c0_259 = arith.constant 0 : index
    %c0_260 = arith.constant 0 : index
    %568 = vector.load %arg13[%c0_259, %c0_260] : memref<2x32xf32, #tpu.memory_space<vmem>>, vector<2x32xf32>
    tpu.vector_store %arg13[%c0_259, %c0_260], %567 {strides = array<i32>} : memref<2x32xf32, #tpu.memory_space<vmem>>, vector<2x32xf32>,
    %c0_261 = arith.constant 0 : index
    %c0_262 = arith.constant 0 : index
    %569 = vector.load %arg14[%c0_261, %c0_262] : memref<2x32xf32, #tpu.memory_space<vmem>>, vector<2x32xf32>
    tpu.vector_store %arg14[%c0_261, %c0_262], %565 {strides = array<i32>} : memref<2x32xf32, #tpu.memory_space<vmem>>, vector<2x32xf32>,
    %570 = arith.index_cast %534 : i32 to index
    %c0_263 = arith.constant 0 : index
    %571 = vector.load %arg11[%570, %c0_263] : memref<16x32xf32, #tpu.memory_space<vmem>>, vector<2x32xf32>
    tpu.vector_store %arg11[%570, %c0_263], %567 {strides = array<i32>} : memref<16x32xf32, #tpu.memory_space<vmem>>, vector<2x32xf32>,
    %572 = arith.index_cast %536 : i32 to index
    %c0_264 = arith.constant 0 : index
    %573 = vector.load %arg10[%572, %c0_264] : memref<16x128xf32, #tpu.memory_space<vmem>>, vector<2x128xf32>
    %c0_265 = arith.constant 0 : index
    %c0_266 = arith.constant 0 : index
    %574 = vector.load %arg15[%c0_265, %c0_266] : memref<2x32xf32, #tpu.memory_space<vmem>>, vector<2x32xf32>
    %cst_267 = arith.constant dense<0.000000e+00> : vector<2x128xf32>
    %575 = tpu.matmul %574, %22, %cst_267 {dimension_numbers = #tpu.dot_dimension_numbers<[1], [0], [0], [1], [0, 0, 1, 1], [], []>} : vector<2x32xf32>, vector<32x128xf32>, vector<2x128xf32> -> vector<2x128xf32>
    %576 = arith.addf %573, %575 : vector<2x128xf32>
    %c0_268 = arith.constant 0 : index
    %c0_269 = arith.constant 0 : index
    %577 = vector.load %arg16[%c0_268, %c0_269] : memref<2x32xf32, #tpu.memory_space<vmem>>, vector<2x32xf32>
    %578 = vector.extract_strided_slice %576 {offsets = [0, 0], sizes = [2, 32], strides = [1, 1]} : vector<2x128xf32> to vector<2x32xf32>
    %579 = arith.negf %578 : vector<2x32xf32>
    %580 = math.exp %579 : vector<2x32xf32>
    %cst_270 = arith.constant 1.000000e+00 : f32
    %581 = vector.broadcast %cst_270 : f32 to vector<2x32xf32>
    %582 = arith.addf %581, %580 : vector<2x32xf32>
    %583 = arith.divf %581, %582 : vector<2x32xf32>
    %584 = vector.extract_strided_slice %576 {offsets = [0, 32], sizes = [2, 32], strides = [1, 1]} : vector<2x128xf32> to vector<2x32xf32>
    %585 = arith.negf %584 : vector<2x32xf32>
    %586 = math.exp %585 : vector<2x32xf32>
    %cst_271 = arith.constant 1.000000e+00 : f32
    %587 = vector.broadcast %cst_271 : f32 to vector<2x32xf32>
    %588 = arith.addf %587, %586 : vector<2x32xf32>
    %589 = arith.divf %587, %588 : vector<2x32xf32>
    %590 = vector.extract_strided_slice %576 {offsets = [0, 64], sizes = [2, 32], strides = [1, 1]} : vector<2x128xf32> to vector<2x32xf32>
    %591 = math.tanh %590 : vector<2x32xf32>
    %592 = vector.extract_strided_slice %576 {offsets = [0, 96], sizes = [2, 32], strides = [1, 1]} : vector<2x128xf32> to vector<2x32xf32>
    %593 = arith.negf %592 : vector<2x32xf32>
    %594 = math.exp %593 : vector<2x32xf32>
    %cst_272 = arith.constant 1.000000e+00 : f32
    %595 = vector.broadcast %cst_272 : f32 to vector<2x32xf32>
    %596 = arith.addf %595, %594 : vector<2x32xf32>
    %597 = arith.divf %595, %596 : vector<2x32xf32>
    %598 = arith.mulf %589, %577 : vector<2x32xf32>
    %599 = arith.mulf %583, %591 : vector<2x32xf32>
    %600 = arith.addf %598, %599 : vector<2x32xf32>
    %601 = math.tanh %600 : vector<2x32xf32>
    %602 = arith.mulf %597, %601 : vector<2x32xf32>
    %c0_273 = arith.constant 0 : index
    %c0_274 = arith.constant 0 : index
    %603 = vector.load %arg15[%c0_273, %c0_274] : memref<2x32xf32, #tpu.memory_space<vmem>>, vector<2x32xf32>
    tpu.vector_store %arg15[%c0_273, %c0_274], %602 {strides = array<i32>} : memref<2x32xf32, #tpu.memory_space<vmem>>, vector<2x32xf32>,
    %c0_275 = arith.constant 0 : index
    %c0_276 = arith.constant 0 : index
    %604 = vector.load %arg16[%c0_275, %c0_276] : memref<2x32xf32, #tpu.memory_space<vmem>>, vector<2x32xf32>
    tpu.vector_store %arg16[%c0_275, %c0_276], %600 {strides = array<i32>} : memref<2x32xf32, #tpu.memory_space<vmem>>, vector<2x32xf32>,
    %605 = arith.index_cast %536 : i32 to index
    %c0_277 = arith.constant 0 : index
    %606 = vector.load %arg12[%605, %c0_277] : memref<16x32xf32, #tpu.memory_space<vmem>>, vector<2x32xf32>
    tpu.vector_store %arg12[%605, %c0_277], %602 {strides = array<i32>} : memref<16x32xf32, #tpu.memory_space<vmem>>, vector<2x32xf32>,
    %c8_i32 = arith.constant 8 : i32
    %c0_278 = arith.constant 0 : index
    %c0_279 = arith.constant 0 : index
    %607 = vector.load %arg11[%c0_278, %c0_279] : memref<16x32xf32, #tpu.memory_space<vmem>>, vector<16x32xf32>
    %c0_280 = arith.constant 0 : index
    %c0_281 = arith.constant 0 : index
    %608 = vector.load %arg12[%c0_280, %c0_281] : memref<16x32xf32, #tpu.memory_space<vmem>>, vector<16x32xf32>
    %609 = tpu.concatenate %607, %608 in 1 : vector<16x32xf32>, vector<16x32xf32> -> vector<16x64xf32>
    %c0_282 = arith.constant 0 : index
    %c0_283 = arith.constant 0 : index
    %610 = vector.load %arg8[%c0_282, %c0_283] : memref<16x64xf32, #tpu.memory_space<vmem>>, vector<16x64xf32>
    tpu.vector_store %arg8[%c0_282, %c0_283], %609 {strides = array<i32>} : memref<16x64xf32, #tpu.memory_space<vmem>>, vector<16x64xf32>,
    return
  }
  func.func @transform_0(%arg0: i32) -> (i32, i32) {
    %c0_i32 = arith.constant 0 : i32
    %c0_i32_0 = arith.constant 0 : i32
    %c0_i32_1 = arith.constant 0 : i32
    return %c0_i32, %c0_i32_0 : i32, i32
  }
  func.func @transform_1(%arg0: i32) -> (i32, i32) {
    %c0_i32 = arith.constant 0 : i32
    %c0_i32_0 = arith.constant 0 : i32
    %c0_i32_1 = arith.constant 0 : i32
    return %c0_i32, %c0_i32_0 : i32, i32
  }
  func.func @transform_2(%arg0: i32) -> (i32, i32) {
    %c0_i32 = arith.constant 0 : i32
    %c0_i32_0 = arith.constant 0 : i32
    %c0_i32_1 = arith.constant 0 : i32
    return %c0_i32, %c0_i32_0 : i32, i32
  }
  func.func @transform_3(%arg0: i32) -> (i32, i32) {
    %c0_i32 = arith.constant 0 : i32
    %c0_i32_0 = arith.constant 0 : i32
    %c0_i32_1 = arith.constant 0 : i32
    return %c0_i32, %c0_i32_0 : i32, i32
  }
  func.func @transform_4(%arg0: i32) -> (i32, i32) {
    %c0_i32 = arith.constant 0 : i32
    %c0_i32_0 = arith.constant 0 : i32
    %c0_i32_1 = arith.constant 0 : i32
    return %c0_i32, %c0_i32_0 : i32, i32
  }
  func.func @transform_5(%arg0: i32) -> (i32, i32) {
    %c0_i32 = arith.constant 0 : i32
    %c0_i32_0 = arith.constant 0 : i32
    %c0_i32_1 = arith.constant 0 : i32
    return %c0_i32, %c0_i32_0 : i32, i32
  }
  func.func @transform_6(%arg0: i32) -> (i32, i32) {
    %c0_i32 = arith.constant 0 : i32
    %c0_i32_0 = arith.constant 0 : i32
    %c0_i32_1 = arith.constant 0 : i32
    return %c0_i32, %c0_i32_0 : i32, i32
  }
  func.func @transform_7(%arg0: i32) -> (i32, i32) {
    %c0_i32 = arith.constant 0 : i32
    %c0_i32_0 = arith.constant 0 : i32
    %c0_i32_1 = arith.constant 0 : i32
    return %c0_i32, %c0_i32_0 : i32, i32
  }
}

</mosaic_0001>

<llo_original>
// kernel: birnn_forward.2
$region0: #{birnn_forward.2}
  #allocation0 [shape = 'u32[]', space=smem, size = 0x4, offset = 0x4, fixed_abs, tag = 'smem constant byte address 0x4 - core index']
  #allocation1 [shape = 'u32[144,128]{1,0:T(1,128)}', space=vmem, size = 0x12000, scoped, tag = 'internal scratch']
  #allocation2 [shape = 'f32[16,128]{1,0:T(8,128)}', space=vmem, size = 0x2000, scoped, tag = 'scratch operand']
  #allocation3 [shape = 'f32[16,128]{1,0:T(8,128)}', space=vmem, size = 0x2000, scoped, tag = 'scratch operand']
  #allocation4 [shape = 'f32[16,32]{1,0:T(8,128)}', space=vmem, size = 0x2000, scoped, tag = 'scratch operand']
  #allocation5 [shape = 'f32[16,32]{1,0:T(8,128)}', space=vmem, size = 0x2000, scoped, tag = 'scratch operand']
  #allocation6 [shape = 'f32[2,32]{1,0:T(2,128)}', space=vmem, size = 0x400, scoped, tag = 'scratch operand']
  #allocation7 [shape = 'f32[2,32]{1,0:T(2,128)}', space=vmem, size = 0x400, scoped, tag = 'scratch operand']
  #allocation8 [shape = 'f32[2,32]{1,0:T(2,128)}', space=vmem, size = 0x400, scoped, tag = 'scratch operand']
  #allocation9 [shape = 'f32[2,32]{1,0:T(2,128)}', space=vmem, size = 0x400, scoped, tag = 'scratch operand']
  %s0 = inlined_call_operand.vmem [shape: f32[16,32], index: 0, kind: input, shape index: {}]
  %s1 = inlined_call_operand.vmem [shape: f32[32,128], index: 1, kind: input, shape index: {}]
  %s2 = inlined_call_operand.vmem [shape: f32[32,128], index: 2, kind: input, shape index: {}]
  %s3 = inlined_call_operand.vmem [shape: f32[1,128], index: 3, kind: input, shape index: {}]
  %s4 = inlined_call_operand.vmem [shape: f32[32,128], index: 4, kind: input, shape index: {}]
  %s5 = inlined_call_operand.vmem [shape: f32[32,128], index: 5, kind: input, shape index: {}]
  %s6 = inlined_call_operand.vmem [shape: f32[1,128], index: 6, kind: input, shape index: {}]
  %s7 = inlined_call_operand.vmem [shape: f32[16,64], index: 7, kind: output, shape index: {}]
  %s8 = sld [smem:[#allocation0]]
  $region38: #{birnn_forward.2} parent=0
    _
  %s10 = ssub.s32 1, %s8
  %s11 = scalar_select 0, %s10, %s8
  // Predicated region
  $region2: #{birnn_forward.2} parent=0 // pred_check
    _
  $region3: #{birnn_forward.2} parent=0 // pred_check_branch
    %13 = sbr.rel (0) target = $region5
  $region4: #{birnn_forward.2} parent=0 // pred_region
    _
  $region5: #{birnn_forward.2} parent=0 // pred_fallthru
    _
  // Predicated region
  $region6: #{birnn_forward.2} parent=0 // pred_check
    _
  $region7: #{birnn_forward.2} parent=0 // pred_check_branch
    %15 = sbr.rel (0) target = $region9
  $region8: #{birnn_forward.2} parent=0 // pred_region
    _
  $region9: #{birnn_forward.2} parent=0 // pred_fallthru
    _
  // Predicated region
  $region10: #{birnn_forward.2} parent=0 // pred_check
    _
  $region11: #{birnn_forward.2} parent=0 // pred_check_branch
    %17 = sbr.rel (0) target = $region13
  $region12: #{birnn_forward.2} parent=0 // pred_region
    _
  $region13: #{birnn_forward.2} parent=0 // pred_fallthru
    _
  // Predicated region
  $region14: #{birnn_forward.2} parent=0 // pred_check
    _
  $region15: #{birnn_forward.2} parent=0 // pred_check_branch
    %19 = sbr.rel (0) target = $region17
  $region16: #{birnn_forward.2} parent=0 // pred_region
    _
  $region17: #{birnn_forward.2} parent=0 // pred_fallthru
    _
  // Predicated region
  $region18: #{birnn_forward.2} parent=0 // pred_check
    _
  $region19: #{birnn_forward.2} parent=0 // pred_check_branch
    %21 = sbr.rel (0) target = $region21
  $region20: #{birnn_forward.2} parent=0 // pred_region
    _
  $region21: #{birnn_forward.2} parent=0 // pred_fallthru
    _
  // Predicated region
  $region22: #{birnn_forward.2} parent=0 // pred_check
    _
  $region23: #{birnn_forward.2} parent=0 // pred_check_branch
    %23 = sbr.rel (0) target = $region25
  $region24: #{birnn_forward.2} parent=0 // pred_region
    _
  $region25: #{birnn_forward.2} parent=0 // pred_fallthru
    _
  // Predicated region
  $region26: #{birnn_forward.2} parent=0 // pred_check
    _
  $region27: #{birnn_forward.2} parent=0 // pred_check_branch
    %25 = sbr.rel (0) target = $region29
  $region28: #{birnn_forward.2} parent=0 // pred_region
    _
  $region29: #{birnn_forward.2} parent=0 // pred_fallthru
    _
  %v26 = vld [vmem:[%s0] sm:$0xff]
  %v27 = vld [vmem:[%s0 + $0x8] sm:$0xff]
  %v28 = vld [vmem:[%s1] sm:$0xff]
  %v29 = vld [vmem:[%s1 + $0x8] sm:$0xff]
  %v30 = vld [vmem:[%s1 + $0x10] sm:$0xff]
  %v31 = vld [vmem:[%s1 + $0x18] sm:$0xff]
  %v32 = vld [vmem:[%s3] sm:$0x1]
  %v34 = vlaneseq
  %v35 = vshrl.u32 %v34, 7
  %v36 = vsub.s32 0, %v35
  %v37 = vrot.slane %v32, %v36
  %vm39 = vcmask 261120
  %v41 = vsel %vm39, %v26, 0
  %v44 = vsel %vm39, %v27, 0
  %46 = vmatprep.subr.mxu0 0.0
  %47 = vmatpush1.msra.mxu0 0.0
  %48 = vmatprep.subr.mxu0 0.0
  %49 = vmatpush1.msra.mxu0 0.0
  %50 = vmatprep.subr.mxu0 0.0
  %51 = vmatpush1.msra.mxu0 0.0
  %52 = vmatprep.subr.mxu0 0.0
  %53 = vmatpush1.msra.mxu0 0.0
  %54 = vmatprep.subr.mxu0 0.0
  %55 = vmatpush1.msra.mxu0 0.0
  %56 = vmatprep.subr.mxu0 0.0
  %57 = vmatpush1.msra.mxu0 0.0
  %58 = vmatprep.subr.mxu0 0.0
  %59 = vmatpush1.msra.mxu0 0.0
  %60 = vmatprep.subr.mxu0 0.0
  %61 = vmatpush1.msra.mxu0 0.0
  %62 = vmatprep.subr.mxu0 0.0
  %63 = vmatpush1.msra.mxu0 0.0
  %64 = vmatprep.subr.mxu0 0.0
  %65 = vmatpush1.msra.mxu0 0.0
  %66 = vmatprep.subr.mxu0 0.0
  %67 = vmatpush1.msra.mxu0 0.0
  %68 = vmatprep.subr.mxu0 0.0
  %69 = vmatpush1.msra.mxu0 0.0
  %70 = vmatprep.subr.mxu0 0.0
  %71 = vmatpush1.msra.mxu0 %v31
  %72 = vmatprep.subr.mxu0 0.0
  %73 = vmatpush1.msra.mxu0 %v30
  %74 = vmatprep.subr.mxu0 0.0
  %75 = vmatpush1.msra.mxu0 %v29
  %76 = vmatprep.subr.mxu0 0.0
  %77 = vmatpush1.msra.mxu0 %v28
  %78 = vmatprep.subr.mxu0 0.0
  %79 = vmatpush2.msra.mxu0 0.0
  %80 = vmatprep.subr.mxu0 0.0
  %81 = vmatpush2.msra.mxu0 0.0
  %82 = vmatprep.subr.mxu0 0.0
  %83 = vmatpush2.msra.mxu0 0.0
  %84 = vmatprep.subr.mxu0 0.0
  %85 = vmatpush2.msra.mxu0 0.0
  %86 = vmatprep.subr.mxu0 0.0
  %87 = vmatpush2.msra.mxu0 0.0
  %88 = vmatprep.subr.mxu0 0.0
  %89 = vmatpush2.msra.mxu0 0.0
  %90 = vmatprep.subr.mxu0 0.0
  %91 = vmatpush2.msra.mxu0 0.0
  %92 = vmatprep.subr.mxu0 0.0
  %93 = vmatpush2.msra.mxu0 0.0
  %94 = vmatprep.subr.mxu0 0.0
  %95 = vmatpush2.msra.mxu0 0.0
  %96 = vmatprep.subr.mxu0 0.0
  %97 = vmatpush2.msra.mxu0 0.0
  %98 = vmatprep.subr.mxu0 0.0
  %99 = vmatpush2.msra.mxu0 0.0
  %100 = vmatprep.subr.mxu0 0.0
  %101 = vmatpush2.msra.mxu0 0.0
  %102 = vmatprep.subr.mxu0 0.0
  %103 = vmatpush2.msra.mxu0 0.0
  %104 = vmatprep.subr.mxu0 0.0
  %105 = vmatpush2.msra.mxu0 0.0
  %106 = vmatprep.subr.mxu0 0.0
  %107 = vmatpush2.msra.mxu0 0.0
  %108 = vmatprep.subr.mxu0 0.0
  %109 = vmatpush2.msra.mxu0 0.0
  %110 = vmatprep.mubr.f32.mxu0 0.0
  %111 = vmatmul.mubr.f32.gmra.mxu0 %v41
  %v112 = vpop.f32.mrf.mxu0
  %v113 = vadd.f32 %v37, %v112
  %v114 = vpop.f32.mrf.mxu0
  %115 = vmatprep.mubr.f32.mxu0 0.0
  %116 = vmatmul.mubr.f32.gmra.mxu0 %v44
  %v117 = vpop.f32.mrf.mxu0
  %v118 = vadd.f32 %v37, %v117
  %v119 = vpop.f32.mrf.mxu0
  %120 = vdwg.mxu0
  %121 = vst [vmem:[#allocation2] sm:$0xff] %v113
  %122 = vst [vmem:[#allocation2 + $0x8] sm:$0xff] %v118
  %v123 = vld [vmem:[%s4] sm:$0xff]
  %v124 = vld [vmem:[%s4 + $0x8] sm:$0xff]
  %v125 = vld [vmem:[%s4 + $0x10] sm:$0xff]
  %v126 = vld [vmem:[%s4 + $0x18] sm:$0xff]
  %v127 = vld [vmem:[%s6] sm:$0x1]
  %v129 = vlaneseq
  %v130 = vshrl.u32 %v129, 7
  %v131 = vsub.s32 0, %v130
  %v132 = vrot.slane %v127, %v131
  %134 = vmatprep.subr.mxu0 0.0
  %135 = vmatpush1.msra.mxu0 0.0
  %136 = vmatprep.subr.mxu0 0.0
  %137 = vmatpush1.msra.mxu0 0.0
  %138 = vmatprep.subr.mxu0 0.0
  %139 = vmatpush1.msra.mxu0 0.0
  %140 = vmatprep.subr.mxu0 0.0
  %141 = vmatpush1.msra.mxu0 0.0
  %142 = vmatprep.subr.mxu0 0.0
  %143 = vmatpush1.msra.mxu0 0.0
  %144 = vmatprep.subr.mxu0 0.0
  %145 = vmatpush1.msra.mxu0 0.0
  %146 = vmatprep.subr.mxu0 0.0
  %147 = vmatpush1.msra.mxu0 0.0
  %148 = vmatprep.subr.mxu0 0.0
  %149 = vmatpush1.msra.mxu0 0.0
  %150 = vmatprep.subr.mxu0 0.0
  %151 = vmatpush1.msra.mxu0 0.0
  %152 = vmatprep.subr.mxu0 0.0
  %153 = vmatpush1.msra.mxu0 0.0
  %154 = vmatprep.subr.mxu0 0.0
  %155 = vmatpush1.msra.mxu0 0.0
  %156 = vmatprep.subr.mxu0 0.0
  %157 = vmatpush1.msra.mxu0 0.0
  %158 = vmatprep.subr.mxu0 0.0
  %159 = vmatpush1.msra.mxu0 %v126
  %160 = vmatprep.subr.mxu0 0.0
  %161 = vmatpush1.msra.mxu0 %v125
  %162 = vmatprep.subr.mxu0 0.0
  %163 = vmatpush1.msra.mxu0 %v124
  %164 = vmatprep.subr.mxu0 0.0
  %165 = vmatpush1.msra.mxu0 %v123
  %166 = vmatprep.subr.mxu0 0.0
  %167 = vmatpush2.msra.mxu0 0.0
  %168 = vmatprep.subr.mxu0 0.0
  %169 = vmatpush2.msra.mxu0 0.0
  %170 = vmatprep.subr.mxu0 0.0
  %171 = vmatpush2.msra.mxu0 0.0
  %172 = vmatprep.subr.mxu0 0.0
  %173 = vmatpush2.msra.mxu0 0.0
  %174 = vmatprep.subr.mxu0 0.0
  %175 = vmatpush2.msra.mxu0 0.0
  %176 = vmatprep.subr.mxu0 0.0
  %177 = vmatpush2.msra.mxu0 0.0
  %178 = vmatprep.subr.mxu0 0.0
  %179 = vmatpush2.msra.mxu0 0.0
  %180 = vmatprep.subr.mxu0 0.0
  %181 = vmatpush2.msra.mxu0 0.0
  %182 = vmatprep.subr.mxu0 0.0
  %183 = vmatpush2.msra.mxu0 0.0
  %184 = vmatprep.subr.mxu0 0.0
  %185 = vmatpush2.msra.mxu0 0.0
  %186 = vmatprep.subr.mxu0 0.0
  %187 = vmatpush2.msra.mxu0 0.0
  %188 = vmatprep.subr.mxu0 0.0
  %189 = vmatpush2.msra.mxu0 0.0
  %190 = vmatprep.subr.mxu0 0.0
  %191 = vmatpush2.msra.mxu0 0.0
  %192 = vmatprep.subr.mxu0 0.0
  %193 = vmatpush2.msra.mxu0 0.0
  %194 = vmatprep.subr.mxu0 0.0
  %195 = vmatpush2.msra.mxu0 0.0
  %196 = vmatprep.subr.mxu0 0.0
  %197 = vmatpush2.msra.mxu0 0.0
  %198 = vmatprep.mubr.f32.mxu0 0.0
  %199 = vmatmul.mubr.f32.gmra.mxu0 %v41
  %v200 = vpop.f32.mrf.mxu0
  %v201 = vadd.f32 %v132, %v200
  %v202 = vpop.f32.mrf.mxu0
  %203 = vmatprep.mubr.f32.mxu0 0.0
  %204 = vmatmul.mubr.f32.gmra.mxu0 %v44
  %v205 = vpop.f32.mrf.mxu0
  %v206 = vadd.f32 %v132, %v205
  %v207 = vpop.f32.mrf.mxu0
  %208 = vdwg.mxu0
  %209 = vst [vmem:[#allocation3] sm:$0xff] %v201
  %210 = vst [vmem:[#allocation3 + $0x8] sm:$0xff] %v206
  %vm211 = vcmask 254976
  %212 = vst.msk [vmem:[#allocation6] sm:$0x3] %vm211, 0.0
  %213 = vst.msk [vmem:[#allocation7] sm:$0x3] %vm211, 0.0
  %214 = vst.msk [vmem:[#allocation8] sm:$0x3] %vm211, 0.0
  %215 = vst.msk [vmem:[#allocation9] sm:$0x3] %vm211, 0.0
  %v216 = vld [vmem:[%s2] sm:$0xff]
  %v217 = vld [vmem:[%s2 + $0x8] sm:$0xff]
  %v218 = vld [vmem:[%s2 + $0x10] sm:$0xff]
  %v219 = vld [vmem:[%s2 + $0x18] sm:$0xff]
  %v220 = vld [vmem:[%s5] sm:$0xff]
  %v221 = vld [vmem:[%s5 + $0x8] sm:$0xff]
  %v222 = vld [vmem:[%s5 + $0x10] sm:$0xff]
  %v223 = vld [vmem:[%s5 + $0x18] sm:$0xff]
  %v224 = vld [vmem:[#allocation2] sm:$0x3]
  %v225 = vld [vmem:[#allocation6] sm:$0x3]
  %v227 = vsel %vm39, %v225, 0
  %229 = vmatprep.subr.mxu0 0.0
  %230 = vmatpush1.msra.mxu0 0.0
  %231 = vmatprep.subr.mxu0 0.0
  %232 = vmatpush1.msra.mxu0 0.0
  %233 = vmatprep.subr.mxu0 0.0
  %234 = vmatpush1.msra.mxu0 0.0
  %235 = vmatprep.subr.mxu0 0.0
  %236 = vmatpush1.msra.mxu0 0.0
  %237 = vmatprep.subr.mxu0 0.0
  %238 = vmatpush1.msra.mxu0 0.0
  %239 = vmatprep.subr.mxu0 0.0
  %240 = vmatpush1.msra.mxu0 0.0
  %241 = vmatprep.subr.mxu0 0.0
  %242 = vmatpush1.msra.mxu0 0.0
  %243 = vmatprep.subr.mxu0 0.0
  %244 = vmatpush1.msra.mxu0 0.0
  %245 = vmatprep.subr.mxu0 0.0
  %246 = vmatpush1.msra.mxu0 0.0
  %247 = vmatprep.subr.mxu0 0.0
  %248 = vmatpush1.msra.mxu0 0.0
  %249 = vmatprep.subr.mxu0 0.0
  %250 = vmatpush1.msra.mxu0 0.0
  %251 = vmatprep.subr.mxu0 0.0
  %252 = vmatpush1.msra.mxu0 0.0
  %253 = vmatprep.subr.mxu0 0.0
  %254 = vmatpush1.msra.mxu0 %v219
  %255 = vmatprep.subr.mxu0 0.0
  %256 = vmatpush1.msra.mxu0 %v218
  %257 = vmatprep.subr.mxu0 0.0
  %258 = vmatpush1.msra.mxu0 %v217
  %259 = vmatprep.subr.mxu0 0.0
  %260 = vmatpush1.msra.mxu0 %v216
  %261 = vmatprep.subr.mxu0 0.0
  %262 = vmatpush2.msra.mxu0 0.0
  %263 = vmatprep.subr.mxu0 0.0
  %264 = vmatpush2.msra.mxu0 0.0
  %265 = vmatprep.subr.mxu0 0.0
  %266 = vmatpush2.msra.mxu0 0.0
  %267 = vmatprep.subr.mxu0 0.0
  %268 = vmatpush2.msra.mxu0 0.0
  %269 = vmatprep.subr.mxu0 0.0
  %270 = vmatpush2.msra.mxu0 0.0
  %271 = vmatprep.subr.mxu0 0.0
  %272 = vmatpush2.msra.mxu0 0.0
  %273 = vmatprep.subr.mxu0 0.0
  %274 = vmatpush2.msra.mxu0 0.0
  %275 = vmatprep.subr.mxu0 0.0
  %276 = vmatpush2.msra.mxu0 0.0
  %277 = vmatprep.subr.mxu0 0.0
  %278 = vmatpush2.msra.mxu0 0.0
  %279 = vmatprep.subr.mxu0 0.0
  %280 = vmatpush2.msra.mxu0 0.0
  %281 = vmatprep.subr.mxu0 0.0
  %282 = vmatpush2.msra.mxu0 0.0
  %283 = vmatprep.subr.mxu0 0.0
  %284 = vmatpush2.msra.mxu0 0.0
  %285 = vmatprep.subr.mxu0 0.0
  %286 = vmatpush2.msra.mxu0 0.0
  %287 = vmatprep.subr.mxu0 0.0
  %288 = vmatpush2.msra.mxu0 0.0
  %289 = vmatprep.subr.mxu0 0.0
  %290 = vmatpush2.msra.mxu0 0.0
  %291 = vmatprep.subr.mxu0 0.0
  %292 = vmatpush2.msra.mxu0 0.0
  %293 = vmatprep.mubr.f32.mxu0 0.0
  %294 = vmatmul.mubr.f32.gmra.mxu0 %v227
  %v295 = vpop.f32.mrf.mxu0
  %v296 = vadd.f32 0.0, %v295
  %v297 = vpop.f32.mrf.mxu0
  %298 = vdwg.mxu0
  %v299 = vadd.f32 %v224, %v296
  %v300 = vld [vmem:[#allocation7] sm:$0x3]
  %v301 = vxor.u32 %v299, 2147483648
  %v302 = vmul.f32 %v301, 1.442695
  %v303 = vpow.pop %v302
  %v304 = vadd.f32 %v303, 1.0
  %v305 = vrcp.pop %v304
  %v306 = vmul.f32 1.0, %v305
  %v307 = vtanh.pop %v299
  %309 = vrot.lane.b32.xlu0 %v300, 32
  %v310 = vpop.permute.xlu0 %309
  %v312 = vmul.f32 %v306, %v310
  %314 = vrot.lane.b32.xlu0 %v307, 64
  %v315 = vpop.permute.xlu0 %314
  %v317 = vmul.f32 %v306, %v315
  %319 = vrot.lane.b32.xlu0 %v317, 32
  %v320 = vpop.permute.xlu0 %319
  %v322 = vadd.f32 %v312, %v320
  %v323 = vtanh.pop %v322
  %325 = vrot.lane.b32.xlu0 %v323, 64
  %v326 = vpop.permute.xlu0 %325
  %v328 = vmul.f32 %v306, %v326
  %330 = vrot.lane.b32.xlu0 %v328, 32
  %v331 = vpop.permute.xlu0 %330
  %333 = vst.msk [vmem:[#allocation6] sm:$0x3] %vm211, %v331
  %335 = vrot.lane.b32.xlu0 %v322, 96
  %v336 = vpop.permute.xlu0 %335
  %338 = vst.msk [vmem:[#allocation7] sm:$0x3] %vm211, %v336
  %339 = vst.msk [vmem:[#allocation4] sm:$0x3] %vm211, %v331
  %v340 = vld [vmem:[#allocation3 + $0xe] sm:$0x3]
  %v341 = vld [vmem:[#allocation8] sm:$0x3]
  %v343 = vsel %vm39, %v341, 0
  %345 = vmatprep.subr.mxu0 0.0
  %346 = vmatpush1.msra.mxu0 0.0
  %347 = vmatprep.subr.mxu0 0.0
  %348 = vmatpush1.msra.mxu0 0.0
  %349 = vmatprep.subr.mxu0 0.0
  %350 = vmatpush1.msra.mxu0 0.0
  %351 = vmatprep.subr.mxu0 0.0
  %352 = vmatpush1.msra.mxu0 0.0
  %353 = vmatprep.subr.mxu0 0.0
  %354 = vmatpush1.msra.mxu0 0.0
  %355 = vmatprep.subr.mxu0 0.0
  %356 = vmatpush1.msra.mxu0 0.0
  %357 = vmatprep.subr.mxu0 0.0
  %358 = vmatpush1.msra.mxu0 0.0
  %359 = vmatprep.subr.mxu0 0.0
  %360 = vmatpush1.msra.mxu0 0.0
  %361 = vmatprep.subr.mxu0 0.0
  %362 = vmatpush1.msra.mxu0 0.0
  %363 = vmatprep.subr.mxu0 0.0
  %364 = vmatpush1.msra.mxu0 0.0
  %365 = vmatprep.subr.mxu0 0.0
  %366 = vmatpush1.msra.mxu0 0.0
  %367 = vmatprep.subr.mxu0 0.0
  %368 = vmatpush1.msra.mxu0 0.0
  %369 = vmatprep.subr.mxu0 0.0
  %370 = vmatpush1.msra.mxu0 %v223
  %371 = vmatprep.subr.mxu0 0.0
  %372 = vmatpush1.msra.mxu0 %v222
  %373 = vmatprep.subr.mxu0 0.0
  %374 = vmatpush1.msra.mxu0 %v221
  %375 = vmatprep.subr.mxu0 0.0
  %376 = vmatpush1.msra.mxu0 %v220
  %377 = vmatprep.subr.mxu0 0.0
  %378 = vmatpush2.msra.mxu0 0.0
  %379 = vmatprep.subr.mxu0 0.0
  %380 = vmatpush2.msra.mxu0 0.0
  %381 = vmatprep.subr.mxu0 0.0
  %382 = vmatpush2.msra.mxu0 0.0
  %383 = vmatprep.subr.mxu0 0.0
  %384 = vmatpush2.msra.mxu0 0.0
  %385 = vmatprep.subr.mxu0 0.0
  %386 = vmatpush2.msra.mxu0 0.0
  %387 = vmatprep.subr.mxu0 0.0
  %388 = vmatpush2.msra.mxu0 0.0
  %389 = vmatprep.subr.mxu0 0.0
  %390 = vmatpush2.msra.mxu0 0.0
  %391 = vmatprep.subr.mxu0 0.0
  %392 = vmatpush2.msra.mxu0 0.0
  %393 = vmatprep.subr.mxu0 0.0
  %394 = vmatpush2.msra.mxu0 0.0
  %395 = vmatprep.subr.mxu0 0.0
  %396 = vmatpush2.msra.mxu0 0.0
  %397 = vmatprep.subr.mxu0 0.0
  %398 = vmatpush2.msra.mxu0 0.0
  %399 = vmatprep.subr.mxu0 0.0
  %400 = vmatpush2.msra.mxu0 0.0
  %401 = vmatprep.subr.mxu0 0.0
  %402 = vmatpush2.msra.mxu0 0.0
  %403 = vmatprep.subr.mxu0 0.0
  %404 = vmatpush2.msra.mxu0 0.0
  %405 = vmatprep.subr.mxu0 0.0
  %406 = vmatpush2.msra.mxu0 0.0
  %407 = vmatprep.subr.mxu0 0.0
  %408 = vmatpush2.msra.mxu0 0.0
  %409 = vmatprep.mubr.f32.mxu0 0.0
  %410 = vmatmul.mubr.f32.gmra.mxu0 %v343
  %v411 = vpop.f32.mrf.mxu0
  %v412 = vadd.f32 0.0, %v411
  %v413 = vpop.f32.mrf.mxu0
  %414 = vdwg.mxu0
  %v415 = vadd.f32 %v340, %v412
  %v416 = vld [vmem:[#allocation9] sm:$0x3]
  %v417 = vxor.u32 %v415, 2147483648
  %v418 = vmul.f32 %v417, 1.442695
  %v419 = vpow.pop %v418
  %v420 = vadd.f32 %v419, 1.0
  %v421 = vrcp.pop %v420
  %v422 = vmul.f32 1.0, %v421
  %v423 = vtanh.pop %v415
  %425 = vrot.lane.b32.xlu0 %v416, 32
  %v426 = vpop.permute.xlu0 %425
  %v428 = vmul.f32 %v422, %v426
  %430 = vrot.lane.b32.xlu0 %v423, 64
  %v431 = vpop.permute.xlu0 %430
  %v433 = vmul.f32 %v422, %v431
  %435 = vrot.lane.b32.xlu0 %v433, 32
  %v436 = vpop.permute.xlu0 %435
  %v438 = vadd.f32 %v428, %v436
  %v439 = vtanh.pop %v438
  %441 = vrot.lane.b32.xlu0 %v439, 64
  %v442 = vpop.permute.xlu0 %441
  %v444 = vmul.f32 %v422, %v442
  %446 = vrot.lane.b32.xlu0 %v444, 32
  %v447 = vpop.permute.xlu0 %446
  %449 = vst.msk [vmem:[#allocation8] sm:$0x3] %vm211, %v447
  %451 = vrot.lane.b32.xlu0 %v438, 96
  %v452 = vpop.permute.xlu0 %451
  %454 = vst.msk [vmem:[#allocation9] sm:$0x3] %vm211, %v452
  %455 = vst.msk [vmem:[#allocation5 + $0xe] sm:$0x3] %vm211, %v447
  %v456 = vld [vmem:[#allocation2 + $0x2] sm:$0x3]
  %v457 = vld [vmem:[#allocation6] sm:$0x3]
  %v459 = vsel %vm39, %v457, 0
  %461 = vmatprep.subr.mxu0 0.0
  %462 = vmatpush1.msra.mxu0 0.0
  %463 = vmatprep.subr.mxu0 0.0
  %464 = vmatpush1.msra.mxu0 0.0
  %465 = vmatprep.subr.mxu0 0.0
  %466 = vmatpush1.msra.mxu0 0.0
  %467 = vmatprep.subr.mxu0 0.0
  %468 = vmatpush1.msra.mxu0 0.0
  %469 = vmatprep.subr.mxu0 0.0
  %470 = vmatpush1.msra.mxu0 0.0
  %471 = vmatprep.subr.mxu0 0.0
  %472 = vmatpush1.msra.mxu0 0.0
  %473 = vmatprep.subr.mxu0 0.0
  %474 = vmatpush1.msra.mxu0 0.0
  %475 = vmatprep.subr.mxu0 0.0
  %476 = vmatpush1.msra.mxu0 0.0
  %477 = vmatprep.subr.mxu0 0.0
  %478 = vmatpush1.msra.mxu0 0.0
  %479 = vmatprep.subr.mxu0 0.0
  %480 = vmatpush1.msra.mxu0 0.0
  %481 = vmatprep.subr.mxu0 0.0
  %482 = vmatpush1.msra.mxu0 0.0
  %483 = vmatprep.subr.mxu0 0.0
  %484 = vmatpush1.msra.mxu0 0.0
  %485 = vmatprep.subr.mxu0 0.0
  %486 = vmatpush1.msra.mxu0 %v219
  %487 = vmatprep.subr.mxu0 0.0
  %488 = vmatpush1.msra.mxu0 %v218
  %489 = vmatprep.subr.mxu0 0.0
  %490 = vmatpush1.msra.mxu0 %v217
  %491 = vmatprep.subr.mxu0 0.0
  %492 = vmatpush1.msra.mxu0 %v216
  %493 = vmatprep.subr.mxu0 0.0
  %494 = vmatpush2.msra.mxu0 0.0
  %495 = vmatprep.subr.mxu0 0.0
  %496 = vmatpush2.msra.mxu0 0.0
  %497 = vmatprep.subr.mxu0 0.0
  %498 = vmatpush2.msra.mxu0 0.0
  %499 = vmatprep.subr.mxu0 0.0
  %500 = vmatpush2.msra.mxu0 0.0
  %501 = vmatprep.subr.mxu0 0.0
  %502 = vmatpush2.msra.mxu0 0.0
  %503 = vmatprep.subr.mxu0 0.0
  %504 = vmatpush2.msra.mxu0 0.0
  %505 = vmatprep.subr.mxu0 0.0
  %506 = vmatpush2.msra.mxu0 0.0
  %507 = vmatprep.subr.mxu0 0.0
  %508 = vmatpush2.msra.mxu0 0.0
  %509 = vmatprep.subr.mxu0 0.0
  %510 = vmatpush2.msra.mxu0 0.0
  %511 = vmatprep.subr.mxu0 0.0
  %512 = vmatpush2.msra.mxu0 0.0
  %513 = vmatprep.subr.mxu0 0.0
  %514 = vmatpush2.msra.mxu0 0.0
  %515 = vmatprep.subr.mxu0 0.0
  %516 = vmatpush2.msra.mxu0 0.0
  %517 = vmatprep.subr.mxu0 0.0
  %518 = vmatpush2.msra.mxu0 0.0
  %519 = vmatprep.subr.mxu0 0.0
  %520 = vmatpush2.msra.mxu0 0.0
  %521 = vmatprep.subr.mxu0 0.0
  %522 = vmatpush2.msra.mxu0 0.0
  %523 = vmatprep.subr.mxu0 0.0
  %524 = vmatpush2.msra.mxu0 0.0
  %525 = vmatprep.mubr.f32.mxu0 0.0
  %526 = vmatmul.mubr.f32.gmra.mxu0 %v459
  %v527 = vpop.f32.mrf.mxu0
  %v528 = vadd.f32 0.0, %v527
  %v529 = vpop.f32.mrf.mxu0
  %530 = vdwg.mxu0
  %v531 = vadd.f32 %v456, %v528
  %v532 = vld [vmem:[#allocation7] sm:$0x3]
  %v533 = vxor.u32 %v531, 2147483648
  %v534 = vmul.f32 %v533, 1.442695
  %v535 = vpow.pop %v534
  %v536 = vadd.f32 %v535, 1.0
  %v537 = vrcp.pop %v536
  %v538 = vmul.f32 1.0, %v537
  %v539 = vtanh.pop %v531
  %541 = vrot.lane.b32.xlu0 %v532, 32
  %v542 = vpop.permute.xlu0 %541
  %v544 = vmul.f32 %v538, %v542
  %546 = vrot.lane.b32.xlu0 %v539, 64
  %v547 = vpop.permute.xlu0 %546
  %v549 = vmul.f32 %v538, %v547
  %551 = vrot.lane.b32.xlu0 %v549, 32
  %v552 = vpop.permute.xlu0 %551
  %v554 = vadd.f32 %v544, %v552
  %v555 = vtanh.pop %v554
  %557 = vrot.lane.b32.xlu0 %v555, 64
  %v558 = vpop.permute.xlu0 %557
  %v560 = vmul.f32 %v538, %v558
  %562 = vrot.lane.b32.xlu0 %v560, 32
  %v563 = vpop.permute.xlu0 %562
  %565 = vst.msk [vmem:[#allocation6] sm:$0x3] %vm211, %v563
  %567 = vrot.lane.b32.xlu0 %v554, 96
  %v568 = vpop.permute.xlu0 %567
  %570 = vst.msk [vmem:[#allocation7] sm:$0x3] %vm211, %v568
  %571 = vst.msk [vmem:[#allocation4 + $0x2] sm:$0x3] %vm211, %v563
  %v572 = vld [vmem:[#allocation3 + $0xc] sm:$0x3]
  %v573 = vld [vmem:[#allocation8] sm:$0x3]
  %v575 = vsel %vm39, %v573, 0
  %577 = vmatprep.subr.mxu0 0.0
  %578 = vmatpush1.msra.mxu0 0.0
  %579 = vmatprep.subr.mxu0 0.0
  %580 = vmatpush1.msra.mxu0 0.0
  %581 = vmatprep.subr.mxu0 0.0
  %582 = vmatpush1.msra.mxu0 0.0
  %583 = vmatprep.subr.mxu0 0.0
  %584 = vmatpush1.msra.mxu0 0.0
  %585 = vmatprep.subr.mxu0 0.0
  %586 = vmatpush1.msra.mxu0 0.0
  %587 = vmatprep.subr.mxu0 0.0
  %588 = vmatpush1.msra.mxu0 0.0
  %589 = vmatprep.subr.mxu0 0.0
  %590 = vmatpush1.msra.mxu0 0.0
  %591 = vmatprep.subr.mxu0 0.0
  %592 = vmatpush1.msra.mxu0 0.0
  %593 = vmatprep.subr.mxu0 0.0
  %594 = vmatpush1.msra.mxu0 0.0
  %595 = vmatprep.subr.mxu0 0.0
  %596 = vmatpush1.msra.mxu0 0.0
  %597 = vmatprep.subr.mxu0 0.0
  %598 = vmatpush1.msra.mxu0 0.0
  %599 = vmatprep.subr.mxu0 0.0
  %600 = vmatpush1.msra.mxu0 0.0
  %601 = vmatprep.subr.mxu0 0.0
  %602 = vmatpush1.msra.mxu0 %v223
  %603 = vmatprep.subr.mxu0 0.0
  %604 = vmatpush1.msra.mxu0 %v222
  %605 = vmatprep.subr.mxu0 0.0
  %606 = vmatpush1.msra.mxu0 %v221
  %607 = vmatprep.subr.mxu0 0.0
  %608 = vmatpush1.msra.mxu0 %v220
  %609 = vmatprep.subr.mxu0 0.0
  %610 = vmatpush2.msra.mxu0 0.0
  %611 = vmatprep.subr.mxu0 0.0
  %612 = vmatpush2.msra.mxu0 0.0
  %613 = vmatprep.subr.mxu0 0.0
  %614 = vmatpush2.msra.mxu0 0.0
  %615 = vmatprep.subr.mxu0 0.0
  %616 = vmatpush2.msra.mxu0 0.0
  %617 = vmatprep.subr.mxu0 0.0
  %618 = vmatpush2.msra.mxu0 0.0
  %619 = vmatprep.subr.mxu0 0.0
  %620 = vmatpush2.msra.mxu0 0.0
  %621 = vmatprep.subr.mxu0 0.0
  %622 = vmatpush2.msra.mxu0 0.0
  %623 = vmatprep.subr.mxu0 0.0
  %624 = vmatpush2.msra.mxu0 0.0
  %625 = vmatprep.subr.mxu0 0.0
  %626 = vmatpush2.msra.mxu0 0.0
  %627 = vmatprep.subr.mxu0 0.0
  %628 = vmatpush2.msra.mxu0 0.0
  %629 = vmatprep.subr.mxu0 0.0
  %630 = vmatpush2.msra.mxu0 0.0
  %631 = vmatprep.subr.mxu0 0.0
  %632 = vmatpush2.msra.mxu0 0.0
  %633 = vmatprep.subr.mxu0 0.0
  %634 = vmatpush2.msra.mxu0 0.0
  %635 = vmatprep.subr.mxu0 0.0
  %636 = vmatpush2.msra.mxu0 0.0
  %637 = vmatprep.subr.mxu0 0.0
  %638 = vmatpush2.msra.mxu0 0.0
  %639 = vmatprep.subr.mxu0 0.0
  %640 = vmatpush2.msra.mxu0 0.0
  %641 = vmatprep.mubr.f32.mxu0 0.0
  %642 = vmatmul.mubr.f32.gmra.mxu0 %v575
  %v643 = vpop.f32.mrf.mxu0
  %v644 = vadd.f32 0.0, %v643
  %v645 = vpop.f32.mrf.mxu0
  %646 = vdwg.mxu0
  %v647 = vadd.f32 %v572, %v644
  %v648 = vld [vmem:[#allocation9] sm:$0x3]
  %v649 = vxor.u32 %v647, 2147483648
  %v650 = vmul.f32 %v649, 1.442695
  %v651 = vpow.pop %v650
  %v652 = vadd.f32 %v651, 1.0
  %v653 = vrcp.pop %v652
  %v654 = vmul.f32 1.0, %v653
  %v655 = vtanh.pop %v647
  %657 = vrot.lane.b32.xlu0 %v648, 32
  %v658 = vpop.permute.xlu0 %657
  %v660 = vmul.f32 %v654, %v658
  %662 = vrot.lane.b32.xlu0 %v655, 64
  %v663 = vpop.permute.xlu0 %662
  %v665 = vmul.f32 %v654, %v663
  %667 = vrot.lane.b32.xlu0 %v665, 32
  %v668 = vpop.permute.xlu0 %667
  %v670 = vadd.f32 %v660, %v668
  %v671 = vtanh.pop %v670
  %673 = vrot.lane.b32.xlu0 %v671, 64
  %v674 = vpop.permute.xlu0 %673
  %v676 = vmul.f32 %v654, %v674
  %678 = vrot.lane.b32.xlu0 %v676, 32
  %v679 = vpop.permute.xlu0 %678
  %681 = vst.msk [vmem:[#allocation8] sm:$0x3] %vm211, %v679
  %683 = vrot.lane.b32.xlu0 %v670, 96
  %v684 = vpop.permute.xlu0 %683
  %686 = vst.msk [vmem:[#allocation9] sm:$0x3] %vm211, %v684
  %687 = vst.msk [vmem:[#allocation5 + $0xc] sm:$0x3] %vm211, %v679
  %v688 = vld [vmem:[#allocation2 + $0x4] sm:$0x3]
  %v689 = vld [vmem:[#allocation6] sm:$0x3]
  %v691 = vsel %vm39, %v689, 0
  %693 = vmatprep.subr.mxu0 0.0
  %694 = vmatpush1.msra.mxu0 0.0
  %695 = vmatprep.subr.mxu0 0.0
  %696 = vmatpush1.msra.mxu0 0.0
  %697 = vmatprep.subr.mxu0 0.0
  %698 = vmatpush1.msra.mxu0 0.0
  %699 = vmatprep.subr.mxu0 0.0
  %700 = vmatpush1.msra.mxu0 0.0
  %701 = vmatprep.subr.mxu0 0.0
  %702 = vmatpush1.msra.mxu0 0.0
  %703 = vmatprep.subr.mxu0 0.0
  %704 = vmatpush1.msra.mxu0 0.0
  %705 = vmatprep.subr.mxu0 0.0
  %706 = vmatpush1.msra.mxu0 0.0
  %707 = vmatprep.subr.mxu0 0.0
  %708 = vmatpush1.msra.mxu0 0.0
  %709 = vmatprep.subr.mxu0 0.0
  %710 = vmatpush1.msra.mxu0 0.0
  %711 = vmatprep.subr.mxu0 0.0
  %712 = vmatpush1.msra.mxu0 0.0
  %713 = vmatprep.subr.mxu0 0.0
  %714 = vmatpush1.msra.mxu0 0.0
  %715 = vmatprep.subr.mxu0 0.0
  %716 = vmatpush1.msra.mxu0 0.0
  %717 = vmatprep.subr.mxu0 0.0
  %718 = vmatpush1.msra.mxu0 %v219
  %719 = vmatprep.subr.mxu0 0.0
  %720 = vmatpush1.msra.mxu0 %v218
  %721 = vmatprep.subr.mxu0 0.0
  %722 = vmatpush1.msra.mxu0 %v217
  %723 = vmatprep.subr.mxu0 0.0
  %724 = vmatpush1.msra.mxu0 %v216
  %725 = vmatprep.subr.mxu0 0.0
  %726 = vmatpush2.msra.mxu0 0.0
  %727 = vmatprep.subr.mxu0 0.0
  %728 = vmatpush2.msra.mxu0 0.0
  %729 = vmatprep.subr.mxu0 0.0
  %730 = vmatpush2.msra.mxu0 0.0
  %731 = vmatprep.subr.mxu0 0.0
  %732 = vmatpush2.msra.mxu0 0.0
  %733 = vmatprep.subr.mxu0 0.0
  %734 = vmatpush2.msra.mxu0 0.0
  %735 = vmatprep.subr.mxu0 0.0
  %736 = vmatpush2.msra.mxu0 0.0
  %737 = vmatprep.subr.mxu0 0.0
  %738 = vmatpush2.msra.mxu0 0.0
  %739 = vmatprep.subr.mxu0 0.0
  %740 = vmatpush2.msra.mxu0 0.0
  %741 = vmatprep.subr.mxu0 0.0
  %742 = vmatpush2.msra.mxu0 0.0
  %743 = vmatprep.subr.mxu0 0.0
  %744 = vmatpush2.msra.mxu0 0.0
  %745 = vmatprep.subr.mxu0 0.0
  %746 = vmatpush2.msra.mxu0 0.0
  %747 = vmatprep.subr.mxu0 0.0
  %748 = vmatpush2.msra.mxu0 0.0
  %749 = vmatprep.subr.mxu0 0.0
  %750 = vmatpush2.msra.mxu0 0.0
  %751 = vmatprep.subr.mxu0 0.0
  %752 = vmatpush2.msra.mxu0 0.0
  %753 = vmatprep.subr.mxu0 0.0
  %754 = vmatpush2.msra.mxu0 0.0
  %755 = vmatprep.subr.mxu0 0.0
  %756 = vmatpush2.msra.mxu0 0.0
  %757 = vmatprep.mubr.f32.mxu0 0.0
  %758 = vmatmul.mubr.f32.gmra.mxu0 %v691
  %v759 = vpop.f32.mrf.mxu0
  %v760 = vadd.f32 0.0, %v759
  %v761 = vpop.f32.mrf.mxu0
  %762 = vdwg.mxu0
  %v763 = vadd.f32 %v688, %v760
  %v764 = vld [vmem:[#allocation7] sm:$0x3]
  %v765 = vxor.u32 %v763, 2147483648
  %v766 = vmul.f32 %v765, 1.442695
  %v767 = vpow.pop %v766
  %v768 = vadd.f32 %v767, 1.0
  %v769 = vrcp.pop %v768
  %v770 = vmul.f32 1.0, %v769
  %v771 = vtanh.pop %v763
  %773 = vrot.lane.b32.xlu0 %v764, 32
  %v774 = vpop.permute.xlu0 %773
  %v776 = vmul.f32 %v770, %v774
  %778 = vrot.lane.b32.xlu0 %v771, 64
  %v779 = vpop.permute.xlu0 %778
  %v781 = vmul.f32 %v770, %v779
  %783 = vrot.lane.b32.xlu0 %v781, 32
  %v784 = vpop.permute.xlu0 %783
  %v786 = vadd.f32 %v776, %v784
  %v787 = vtanh.pop %v786
  %789 = vrot.lane.b32.xlu0 %v787, 64
  %v790 = vpop.permute.xlu0 %789
  %v792 = vmul.f32 %v770, %v790
  %794 = vrot.lane.b32.xlu0 %v792, 32
  %v795 = vpop.permute.xlu0 %794
  %797 = vst.msk [vmem:[#allocation6] sm:$0x3] %vm211, %v795
  %799 = vrot.lane.b32.xlu0 %v786, 96
  %v800 = vpop.permute.xlu0 %799
  %802 = vst.msk [vmem:[#allocation7] sm:$0x3] %vm211, %v800
  %803 = vst.msk [vmem:[#allocation4 + $0x4] sm:$0x3] %vm211, %v795
  %v804 = vld [vmem:[#allocation3 + $0xa] sm:$0x3]
  %v805 = vld [vmem:[#allocation8] sm:$0x3]
  %v807 = vsel %vm39, %v805, 0
  %809 = vmatprep.subr.mxu0 0.0
  %810 = vmatpush1.msra.mxu0 0.0
  %811 = vmatprep.subr.mxu0 0.0
  %812 = vmatpush1.msra.mxu0 0.0
  %813 = vmatprep.subr.mxu0 0.0
  %814 = vmatpush1.msra.mxu0 0.0
  %815 = vmatprep.subr.mxu0 0.0
  %816 = vmatpush1.msra.mxu0 0.0
  %817 = vmatprep.subr.mxu0 0.0
  %818 = vmatpush1.msra.mxu0 0.0
  %819 = vmatprep.subr.mxu0 0.0
  %820 = vmatpush1.msra.mxu0 0.0
  %821 = vmatprep.subr.mxu0 0.0
  %822 = vmatpush1.msra.mxu0 0.0
  %823 = vmatprep.subr.mxu0 0.0
  %824 = vmatpush1.msra.mxu0 0.0
  %825 = vmatprep.subr.mxu0 0.0
  %826 = vmatpush1.msra.mxu0 0.0
  %827 = vmatprep.subr.mxu0 0.0
  %828 = vmatpush1.msra.mxu0 0.0
  %829 = vmatprep.subr.mxu0 0.0
  %830 = vmatpush1.msra.mxu0 0.0
  %831 = vmatprep.subr.mxu0 0.0
  %832 = vmatpush1.msra.mxu0 0.0
  %833 = vmatprep.subr.mxu0 0.0
  %834 = vmatpush1.msra.mxu0 %v223
  %835 = vmatprep.subr.mxu0 0.0
  %836 = vmatpush1.msra.mxu0 %v222
  %837 = vmatprep.subr.mxu0 0.0
  %838 = vmatpush1.msra.mxu0 %v221
  %839 = vmatprep.subr.mxu0 0.0
  %840 = vmatpush1.msra.mxu0 %v220
  %841 = vmatprep.subr.mxu0 0.0
  %842 = vmatpush2.msra.mxu0 0.0
  %843 = vmatprep.subr.mxu0 0.0
  %844 = vmatpush2.msra.mxu0 0.0
  %845 = vmatprep.subr.mxu0 0.0
  %846 = vmatpush2.msra.mxu0 0.0
  %847 = vmatprep.subr.mxu0 0.0
  %848 = vmatpush2.msra.mxu0 0.0
  %849 = vmatprep.subr.mxu0 0.0
  %850 = vmatpush2.msra.mxu0 0.0
  %851 = vmatprep.subr.mxu0 0.0
  %852 = vmatpush2.msra.mxu0 0.0
  %853 = vmatprep.subr.mxu0 0.0
  %854 = vmatpush2.msra.mxu0 0.0
  %855 = vmatprep.subr.mxu0 0.0
  %856 = vmatpush2.msra.mxu0 0.0
  %857 = vmatprep.subr.mxu0 0.0
  %858 = vmatpush2.msra.mxu0 0.0
  %859 = vmatprep.subr.mxu0 0.0
  %860 = vmatpush2.msra.mxu0 0.0
  %861 = vmatprep.subr.mxu0 0.0
  %862 = vmatpush2.msra.mxu0 0.0
  %863 = vmatprep.subr.mxu0 0.0
  %864 = vmatpush2.msra.mxu0 0.0
  %865 = vmatprep.subr.mxu0 0.0
  %866 = vmatpush2.msra.mxu0 0.0
  %867 = vmatprep.subr.mxu0 0.0
  %868 = vmatpush2.msra.mxu0 0.0
  %869 = vmatprep.subr.mxu0 0.0
  %870 = vmatpush2.msra.mxu0 0.0
  %871 = vmatprep.subr.mxu0 0.0
  %872 = vmatpush2.msra.mxu0 0.0
  %873 = vmatprep.mubr.f32.mxu0 0.0
  %874 = vmatmul.mubr.f32.gmra.mxu0 %v807
  %v875 = vpop.f32.mrf.mxu0
  %v876 = vadd.f32 0.0, %v875
  %v877 = vpop.f32.mrf.mxu0
  %878 = vdwg.mxu0
  %v879 = vadd.f32 %v804, %v876
  %v880 = vld [vmem:[#allocation9] sm:$0x3]
  %v881 = vxor.u32 %v879, 2147483648
  %v882 = vmul.f32 %v881, 1.442695
  %v883 = vpow.pop %v882
  %v884 = vadd.f32 %v883, 1.0
  %v885 = vrcp.pop %v884
  %v886 = vmul.f32 1.0, %v885
  %v887 = vtanh.pop %v879
  %889 = vrot.lane.b32.xlu0 %v880, 32
  %v890 = vpop.permute.xlu0 %889
  %v892 = vmul.f32 %v886, %v890
  %894 = vrot.lane.b32.xlu0 %v887, 64
  %v895 = vpop.permute.xlu0 %894
  %v897 = vmul.f32 %v886, %v895
  %899 = vrot.lane.b32.xlu0 %v897, 32
  %v900 = vpop.permute.xlu0 %899
  %v902 = vadd.f32 %v892, %v900
  %v903 = vtanh.pop %v902
  %905 = vrot.lane.b32.xlu0 %v903, 64
  %v906 = vpop.permute.xlu0 %905
  %v908 = vmul.f32 %v886, %v906
  %910 = vrot.lane.b32.xlu0 %v908, 32
  %v911 = vpop.permute.xlu0 %910
  %913 = vst.msk [vmem:[#allocation8] sm:$0x3] %vm211, %v911
  %915 = vrot.lane.b32.xlu0 %v902, 96
  %v916 = vpop.permute.xlu0 %915
  %918 = vst.msk [vmem:[#allocation9] sm:$0x3] %vm211, %v916
  %919 = vst.msk [vmem:[#allocation5 + $0xa] sm:$0x3] %vm211, %v911
  %v920 = vld [vmem:[#allocation2 + $0x6] sm:$0x3]
  %v921 = vld [vmem:[#allocation6] sm:$0x3]
  %v923 = vsel %vm39, %v921, 0
  %925 = vmatprep.subr.mxu0 0.0
  %926 = vmatpush1.msra.mxu0 0.0
  %927 = vmatprep.subr.mxu0 0.0
  %928 = vmatpush1.msra.mxu0 0.0
  %929 = vmatprep.subr.mxu0 0.0
  %930 = vmatpush1.msra.mxu0 0.0
  %931 = vmatprep.subr.mxu0 0.0
  %932 = vmatpush1.msra.mxu0 0.0
  %933 = vmatprep.subr.mxu0 0.0
  %934 = vmatpush1.msra.mxu0 0.0
  %935 = vmatprep.subr.mxu0 0.0
  %936 = vmatpush1.msra.mxu0 0.0
  %937 = vmatprep.subr.mxu0 0.0
  %938 = vmatpush1.msra.mxu0 0.0
  %939 = vmatprep.subr.mxu0 0.0
  %940 = vmatpush1.msra.mxu0 0.0
  %941 = vmatprep.subr.mxu0 0.0
  %942 = vmatpush1.msra.mxu0 0.0
  %943 = vmatprep.subr.mxu0 0.0
  %944 = vmatpush1.msra.mxu0 0.0
  %945 = vmatprep.subr.mxu0 0.0
  %946 = vmatpush1.msra.mxu0 0.0
  %947 = vmatprep.subr.mxu0 0.0
  %948 = vmatpush1.msra.mxu0 0.0
  %949 = vmatprep.subr.mxu0 0.0
  %950 = vmatpush1.msra.mxu0 %v219
  %951 = vmatprep.subr.mxu0 0.0
  %952 = vmatpush1.msra.mxu0 %v218
  %953 = vmatprep.subr.mxu0 0.0
  %954 = vmatpush1.msra.mxu0 %v217
  %955 = vmatprep.subr.mxu0 0.0
  %956 = vmatpush1.msra.mxu0 %v216
  %957 = vmatprep.subr.mxu0 0.0
  %958 = vmatpush2.msra.mxu0 0.0
  %959 = vmatprep.subr.mxu0 0.0
  %960 = vmatpush2.msra.mxu0 0.0
  %961 = vmatprep.subr.mxu0 0.0
  %962 = vmatpush2.msra.mxu0 0.0
  %963 = vmatprep.subr.mxu0 0.0
  %964 = vmatpush2.msra.mxu0 0.0
  %965 = vmatprep.subr.mxu0 0.0
  %966 = vmatpush2.msra.mxu0 0.0
  %967 = vmatprep.subr.mxu0 0.0
  %968 = vmatpush2.msra.mxu0 0.0
  %969 = vmatprep.subr.mxu0 0.0
  %970 = vmatpush2.msra.mxu0 0.0
  %971 = vmatprep.subr.mxu0 0.0
  %972 = vmatpush2.msra.mxu0 0.0
  %973 = vmatprep.subr.mxu0 0.0
  %974 = vmatpush2.msra.mxu0 0.0
  %975 = vmatprep.subr.mxu0 0.0
  %976 = vmatpush2.msra.mxu0 0.0
  %977 = vmatprep.subr.mxu0 0.0
  %978 = vmatpush2.msra.mxu0 0.0
  %979 = vmatprep.subr.mxu0 0.0
  %980 = vmatpush2.msra.mxu0 0.0
  %981 = vmatprep.subr.mxu0 0.0
  %982 = vmatpush2.msra.mxu0 0.0
  %983 = vmatprep.subr.mxu0 0.0
  %984 = vmatpush2.msra.mxu0 0.0
  %985 = vmatprep.subr.mxu0 0.0
  %986 = vmatpush2.msra.mxu0 0.0
  %987 = vmatprep.subr.mxu0 0.0
  %988 = vmatpush2.msra.mxu0 0.0
  %989 = vmatprep.mubr.f32.mxu0 0.0
  %990 = vmatmul.mubr.f32.gmra.mxu0 %v923
  %v991 = vpop.f32.mrf.mxu0
  %v992 = vadd.f32 0.0, %v991
  %v993 = vpop.f32.mrf.mxu0
  %994 = vdwg.mxu0
  %v995 = vadd.f32 %v920, %v992
  %v996 = vld [vmem:[#allocation7] sm:$0x3]
  %v997 = vxor.u32 %v995, 2147483648
  %v998 = vmul.f32 %v997, 1.442695
  %v999 = vpow.pop %v998
  %v1000 = vadd.f32 %v999, 1.0
  %v1001 = vrcp.pop %v1000
  %v1002 = vmul.f32 1.0, %v1001
  %v1003 = vtanh.pop %v995
  %1005 = vrot.lane.b32.xlu0 %v996, 32
  %v1006 = vpop.permute.xlu0 %1005
  %v1008 = vmul.f32 %v1002, %v1006
  %1010 = vrot.lane.b32.xlu0 %v1003, 64
  %v1011 = vpop.permute.xlu0 %1010
  %v1013 = vmul.f32 %v1002, %v1011
  %1015 = vrot.lane.b32.xlu0 %v1013, 32
  %v1016 = vpop.permute.xlu0 %1015
  %v1018 = vadd.f32 %v1008, %v1016
  %v1019 = vtanh.pop %v1018
  %1021 = vrot.lane.b32.xlu0 %v1019, 64
  %v1022 = vpop.permute.xlu0 %1021
  %v1024 = vmul.f32 %v1002, %v1022
  %1026 = vrot.lane.b32.xlu0 %v1024, 32
  %v1027 = vpop.permute.xlu0 %1026
  %1029 = vst.msk [vmem:[#allocation6] sm:$0x3] %vm211, %v1027
  %1031 = vrot.lane.b32.xlu0 %v1018, 96
  %v1032 = vpop.permute.xlu0 %1031
  %1034 = vst.msk [vmem:[#allocation7] sm:$0x3] %vm211, %v1032
  %1035 = vst.msk [vmem:[#allocation4 + $0x6] sm:$0x3] %vm211, %v1027
  %v1036 = vld [vmem:[#allocation3 + $0x8] sm:$0x3]
  %v1037 = vld [vmem:[#allocation8] sm:$0x3]
  %v1039 = vsel %vm39, %v1037, 0
  %1041 = vmatprep.subr.mxu0 0.0
  %1042 = vmatpush1.msra.mxu0 0.0
  %1043 = vmatprep.subr.mxu0 0.0
  %1044 = vmatpush1.msra.mxu0 0.0
  %1045 = vmatprep.subr.mxu0 0.0
  %1046 = vmatpush1.msra.mxu0 0.0
  %1047 = vmatprep.subr.mxu0 0.0
  %1048 = vmatpush1.msra.mxu0 0.0
  %1049 = vmatprep.subr.mxu0 0.0
  %1050 = vmatpush1.msra.mxu0 0.0
  %1051 = vmatprep.subr.mxu0 0.0
  %1052 = vmatpush1.msra.mxu0 0.0
  %1053 = vmatprep.subr.mxu0 0.0
  %1054 = vmatpush1.msra.mxu0 0.0
  %1055 = vmatprep.subr.mxu0 0.0
  %1056 = vmatpush1.msra.mxu0 0.0
  %1057 = vmatprep.subr.mxu0 0.0
  %1058 = vmatpush1.msra.mxu0 0.0
  %1059 = vmatprep.subr.mxu0 0.0
  %1060 = vmatpush1.msra.mxu0 0.0
  %1061 = vmatprep.subr.mxu0 0.0
  %1062 = vmatpush1.msra.mxu0 0.0
  %1063 = vmatprep.subr.mxu0 0.0
  %1064 = vmatpush1.msra.mxu0 0.0
  %1065 = vmatprep.subr.mxu0 0.0
  %1066 = vmatpush1.msra.mxu0 %v223
  %1067 = vmatprep.subr.mxu0 0.0
  %1068 = vmatpush1.msra.mxu0 %v222
  %1069 = vmatprep.subr.mxu0 0.0
  %1070 = vmatpush1.msra.mxu0 %v221
  %1071 = vmatprep.subr.mxu0 0.0
  %1072 = vmatpush1.msra.mxu0 %v220
  %1073 = vmatprep.subr.mxu0 0.0
  %1074 = vmatpush2.msra.mxu0 0.0
  %1075 = vmatprep.subr.mxu0 0.0
  %1076 = vmatpush2.msra.mxu0 0.0
  %1077 = vmatprep.subr.mxu0 0.0
  %1078 = vmatpush2.msra.mxu0 0.0
  %1079 = vmatprep.subr.mxu0 0.0
  %1080 = vmatpush2.msra.mxu0 0.0
  %1081 = vmatprep.subr.mxu0 0.0
  %1082 = vmatpush2.msra.mxu0 0.0
  %1083 = vmatprep.subr.mxu0 0.0
  %1084 = vmatpush2.msra.mxu0 0.0
  %1085 = vmatprep.subr.mxu0 0.0
  %1086 = vmatpush2.msra.mxu0 0.0
  %1087 = vmatprep.subr.mxu0 0.0
  %1088 = vmatpush2.msra.mxu0 0.0
  %1089 = vmatprep.subr.mxu0 0.0
  %1090 = vmatpush2.msra.mxu0 0.0
  %1091 = vmatprep.subr.mxu0 0.0
  %1092 = vmatpush2.msra.mxu0 0.0
  %1093 = vmatprep.subr.mxu0 0.0
  %1094 = vmatpush2.msra.mxu0 0.0
  %1095 = vmatprep.subr.mxu0 0.0
  %1096 = vmatpush2.msra.mxu0 0.0
  %1097 = vmatprep.subr.mxu0 0.0
  %1098 = vmatpush2.msra.mxu0 0.0
  %1099 = vmatprep.subr.mxu0 0.0
  %1100 = vmatpush2.msra.mxu0 0.0
  %1101 = vmatprep.subr.mxu0 0.0
  %1102 = vmatpush2.msra.mxu0 0.0
  %1103 = vmatprep.subr.mxu0 0.0
  %1104 = vmatpush2.msra.mxu0 0.0
  %1105 = vmatprep.mubr.f32.mxu0 0.0
  %1106 = vmatmul.mubr.f32.gmra.mxu0 %v1039
  %v1107 = vpop.f32.mrf.mxu0
  %v1108 = vadd.f32 0.0, %v1107
  %v1109 = vpop.f32.mrf.mxu0
  %1110 = vdwg.mxu0
  %v1111 = vadd.f32 %v1036, %v1108
  %v1112 = vld [vmem:[#allocation9] sm:$0x3]
  %v1113 = vxor.u32 %v1111, 2147483648
  %v1114 = vmul.f32 %v1113, 1.442695
  %v1115 = vpow.pop %v1114
  %v1116 = vadd.f32 %v1115, 1.0
  %v1117 = vrcp.pop %v1116
  %v1118 = vmul.f32 1.0, %v1117
  %v1119 = vtanh.pop %v1111
  %1121 = vrot.lane.b32.xlu0 %v1112, 32
  %v1122 = vpop.permute.xlu0 %1121
  %v1124 = vmul.f32 %v1118, %v1122
  %1126 = vrot.lane.b32.xlu0 %v1119, 64
  %v1127 = vpop.permute.xlu0 %1126
  %v1129 = vmul.f32 %v1118, %v1127
  %1131 = vrot.lane.b32.xlu0 %v1129, 32
  %v1132 = vpop.permute.xlu0 %1131
  %v1134 = vadd.f32 %v1124, %v1132
  %v1135 = vtanh.pop %v1134
  %1137 = vrot.lane.b32.xlu0 %v1135, 64
  %v1138 = vpop.permute.xlu0 %1137
  %v1140 = vmul.f32 %v1118, %v1138
  %1142 = vrot.lane.b32.xlu0 %v1140, 32
  %v1143 = vpop.permute.xlu0 %1142
  %1145 = vst.msk [vmem:[#allocation8] sm:$0x3] %vm211, %v1143
  %1147 = vrot.lane.b32.xlu0 %v1134, 96
  %v1148 = vpop.permute.xlu0 %1147
  %1150 = vst.msk [vmem:[#allocation9] sm:$0x3] %vm211, %v1148
  %1151 = vst.msk [vmem:[#allocation5 + $0x8] sm:$0x3] %vm211, %v1143
  %v1152 = vld [vmem:[#allocation2 + $0x8] sm:$0x3]
  %v1153 = vld [vmem:[#allocation6] sm:$0x3]
  %v1155 = vsel %vm39, %v1153, 0
  %1157 = vmatprep.subr.mxu0 0.0
  %1158 = vmatpush1.msra.mxu0 0.0
  %1159 = vmatprep.subr.mxu0 0.0
  %1160 = vmatpush1.msra.mxu0 0.0
  %1161 = vmatprep.subr.mxu0 0.0
  %1162 = vmatpush1.msra.mxu0 0.0
  %1163 = vmatprep.subr.mxu0 0.0
  %1164 = vmatpush1.msra.mxu0 0.0
  %1165 = vmatprep.subr.mxu0 0.0
  %1166 = vmatpush1.msra.mxu0 0.0
  %1167 = vmatprep.subr.mxu0 0.0
  %1168 = vmatpush1.msra.mxu0 0.0
  %1169 = vmatprep.subr.mxu0 0.0
  %1170 = vmatpush1.msra.mxu0 0.0
  %1171 = vmatprep.subr.mxu0 0.0
  %1172 = vmatpush1.msra.mxu0 0.0
  %1173 = vmatprep.subr.mxu0 0.0
  %1174 = vmatpush1.msra.mxu0 0.0
  %1175 = vmatprep.subr.mxu0 0.0
  %1176 = vmatpush1.msra.mxu0 0.0
  %1177 = vmatprep.subr.mxu0 0.0
  %1178 = vmatpush1.msra.mxu0 0.0
  %1179 = vmatprep.subr.mxu0 0.0
  %1180 = vmatpush1.msra.mxu0 0.0
  %1181 = vmatprep.subr.mxu0 0.0
  %1182 = vmatpush1.msra.mxu0 %v219
  %1183 = vmatprep.subr.mxu0 0.0
  %1184 = vmatpush1.msra.mxu0 %v218
  %1185 = vmatprep.subr.mxu0 0.0
  %1186 = vmatpush1.msra.mxu0 %v217
  %1187 = vmatprep.subr.mxu0 0.0
  %1188 = vmatpush1.msra.mxu0 %v216
  %1189 = vmatprep.subr.mxu0 0.0
  %1190 = vmatpush2.msra.mxu0 0.0
  %1191 = vmatprep.subr.mxu0 0.0
  %1192 = vmatpush2.msra.mxu0 0.0
  %1193 = vmatprep.subr.mxu0 0.0
  %1194 = vmatpush2.msra.mxu0 0.0
  %1195 = vmatprep.subr.mxu0 0.0
  %1196 = vmatpush2.msra.mxu0 0.0
  %1197 = vmatprep.subr.mxu0 0.0
  %1198 = vmatpush2.msra.mxu0 0.0
  %1199 = vmatprep.subr.mxu0 0.0
  %1200 = vmatpush2.msra.mxu0 0.0
  %1201 = vmatprep.subr.mxu0 0.0
  %1202 = vmatpush2.msra.mxu0 0.0
  %1203 = vmatprep.subr.mxu0 0.0
  %1204 = vmatpush2.msra.mxu0 0.0
  %1205 = vmatprep.subr.mxu0 0.0
  %1206 = vmatpush2.msra.mxu0 0.0
  %1207 = vmatprep.subr.mxu0 0.0
  %1208 = vmatpush2.msra.mxu0 0.0
  %1209 = vmatprep.subr.mxu0 0.0
  %1210 = vmatpush2.msra.mxu0 0.0
  %1211 = vmatprep.subr.mxu0 0.0
  %1212 = vmatpush2.msra.mxu0 0.0
  %1213 = vmatprep.subr.mxu0 0.0
  %1214 = vmatpush2.msra.mxu0 0.0
  %1215 = vmatprep.subr.mxu0 0.0
  %1216 = vmatpush2.msra.mxu0 0.0
  %1217 = vmatprep.subr.mxu0 0.0
  %1218 = vmatpush2.msra.mxu0 0.0
  %1219 = vmatprep.subr.mxu0 0.0
  %1220 = vmatpush2.msra.mxu0 0.0
  %1221 = vmatprep.mubr.f32.mxu0 0.0
  %1222 = vmatmul.mubr.f32.gmra.mxu0 %v1155
  %v1223 = vpop.f32.mrf.mxu0
  %v1224 = vadd.f32 0.0, %v1223
  %v1225 = vpop.f32.mrf.mxu0
  %1226 = vdwg.mxu0
  %v1227 = vadd.f32 %v1152, %v1224
  %v1228 = vld [vmem:[#allocation7] sm:$0x3]
  %v1229 = vxor.u32 %v1227, 2147483648
  %v1230 = vmul.f32 %v1229, 1.442695
  %v1231 = vpow.pop %v1230
  %v1232 = vadd.f32 %v1231, 1.0
  %v1233 = vrcp.pop %v1232
  %v1234 = vmul.f32 1.0, %v1233
  %v1235 = vtanh.pop %v1227
  %1237 = vrot.lane.b32.xlu0 %v1228, 32
  %v1238 = vpop.permute.xlu0 %1237
  %v1240 = vmul.f32 %v1234, %v1238
  %1242 = vrot.lane.b32.xlu0 %v1235, 64
  %v1243 = vpop.permute.xlu0 %1242
  %v1245 = vmul.f32 %v1234, %v1243
  %1247 = vrot.lane.b32.xlu0 %v1245, 32
  %v1248 = vpop.permute.xlu0 %1247
  %v1250 = vadd.f32 %v1240, %v1248
  %v1251 = vtanh.pop %v1250
  %1253 = vrot.lane.b32.xlu0 %v1251, 64
  %v1254 = vpop.permute.xlu0 %1253
  %v1256 = vmul.f32 %v1234, %v1254
  %1258 = vrot.lane.b32.xlu0 %v1256, 32
  %v1259 = vpop.permute.xlu0 %1258
  %1261 = vst.msk [vmem:[#allocation6] sm:$0x3] %vm211, %v1259
  %1263 = vrot.lane.b32.xlu0 %v1250, 96
  %v1264 = vpop.permute.xlu0 %1263
  %1266 = vst.msk [vmem:[#allocation7] sm:$0x3] %vm211, %v1264
  %1267 = vst.msk [vmem:[#allocation4 + $0x8] sm:$0x3] %vm211, %v1259
  %v1268 = vld [vmem:[#allocation3 + $0x6] sm:$0x3]
  %v1269 = vld [vmem:[#allocation8] sm:$0x3]
  %v1271 = vsel %vm39, %v1269, 0
  %1273 = vmatprep.subr.mxu0 0.0
  %1274 = vmatpush1.msra.mxu0 0.0
  %1275 = vmatprep.subr.mxu0 0.0
  %1276 = vmatpush1.msra.mxu0 0.0
  %1277 = vmatprep.subr.mxu0 0.0
  %1278 = vmatpush1.msra.mxu0 0.0
  %1279 = vmatprep.subr.mxu0 0.0
  %1280 = vmatpush1.msra.mxu0 0.0
  %1281 = vmatprep.subr.mxu0 0.0
  %1282 = vmatpush1.msra.mxu0 0.0
  %1283 = vmatprep.subr.mxu0 0.0
  %1284 = vmatpush1.msra.mxu0 0.0
  %1285 = vmatprep.subr.mxu0 0.0
  %1286 = vmatpush1.msra.mxu0 0.0
  %1287 = vmatprep.subr.mxu0 0.0
  %1288 = vmatpush1.msra.mxu0 0.0
  %1289 = vmatprep.subr.mxu0 0.0
  %1290 = vmatpush1.msra.mxu0 0.0
  %1291 = vmatprep.subr.mxu0 0.0
  %1292 = vmatpush1.msra.mxu0 0.0
  %1293 = vmatprep.subr.mxu0 0.0
  %1294 = vmatpush1.msra.mxu0 0.0
  %1295 = vmatprep.subr.mxu0 0.0
  %1296 = vmatpush1.msra.mxu0 0.0
  %1297 = vmatprep.subr.mxu0 0.0
  %1298 = vmatpush1.msra.mxu0 %v223
  %1299 = vmatprep.subr.mxu0 0.0
  %1300 = vmatpush1.msra.mxu0 %v222
  %1301 = vmatprep.subr.mxu0 0.0
  %1302 = vmatpush1.msra.mxu0 %v221
  %1303 = vmatprep.subr.mxu0 0.0
  %1304 = vmatpush1.msra.mxu0 %v220
  %1305 = vmatprep.subr.mxu0 0.0
  %1306 = vmatpush2.msra.mxu0 0.0
  %1307 = vmatprep.subr.mxu0 0.0
  %1308 = vmatpush2.msra.mxu0 0.0
  %1309 = vmatprep.subr.mxu0 0.0
  %1310 = vmatpush2.msra.mxu0 0.0
  %1311 = vmatprep.subr.mxu0 0.0
  %1312 = vmatpush2.msra.mxu0 0.0
  %1313 = vmatprep.subr.mxu0 0.0
  %1314 = vmatpush2.msra.mxu0 0.0
  %1315 = vmatprep.subr.mxu0 0.0
  %1316 = vmatpush2.msra.mxu0 0.0
  %1317 = vmatprep.subr.mxu0 0.0
  %1318 = vmatpush2.msra.mxu0 0.0
  %1319 = vmatprep.subr.mxu0 0.0
  %1320 = vmatpush2.msra.mxu0 0.0
  %1321 = vmatprep.subr.mxu0 0.0
  %1322 = vmatpush2.msra.mxu0 0.0
  %1323 = vmatprep.subr.mxu0 0.0
  %1324 = vmatpush2.msra.mxu0 0.0
  %1325 = vmatprep.subr.mxu0 0.0
  %1326 = vmatpush2.msra.mxu0 0.0
  %1327 = vmatprep.subr.mxu0 0.0
  %1328 = vmatpush2.msra.mxu0 0.0
  %1329 = vmatprep.subr.mxu0 0.0
  %1330 = vmatpush2.msra.mxu0 0.0
  %1331 = vmatprep.subr.mxu0 0.0
  %1332 = vmatpush2.msra.mxu0 0.0
  %1333 = vmatprep.subr.mxu0 0.0
  %1334 = vmatpush2.msra.mxu0 0.0
  %1335 = vmatprep.subr.mxu0 0.0
  %1336 = vmatpush2.msra.mxu0 0.0
  %1337 = vmatprep.mubr.f32.mxu0 0.0
  %1338 = vmatmul.mubr.f32.gmra.mxu0 %v1271
  %v1339 = vpop.f32.mrf.mxu0
  %v1340 = vadd.f32 0.0, %v1339
  %v1341 = vpop.f32.mrf.mxu0
  %1342 = vdwg.mxu0
  %v1343 = vadd.f32 %v1268, %v1340
  %v1344 = vld [vmem:[#allocation9] sm:$0x3]
  %v1345 = vxor.u32 %v1343, 2147483648
  %v1346 = vmul.f32 %v1345, 1.442695
  %v1347 = vpow.pop %v1346
  %v1348 = vadd.f32 %v1347, 1.0
  %v1349 = vrcp.pop %v1348
  %v1350 = vmul.f32 1.0, %v1349
  %v1351 = vtanh.pop %v1343
  %1353 = vrot.lane.b32.xlu0 %v1344, 32
  %v1354 = vpop.permute.xlu0 %1353
  %v1356 = vmul.f32 %v1350, %v1354
  %1358 = vrot.lane.b32.xlu0 %v1351, 64
  %v1359 = vpop.permute.xlu0 %1358
  %v1361 = vmul.f32 %v1350, %v1359
  %1363 = vrot.lane.b32.xlu0 %v1361, 32
  %v1364 = vpop.permute.xlu0 %1363
  %v1366 = vadd.f32 %v1356, %v1364
  %v1367 = vtanh.pop %v1366
  %1369 = vrot.lane.b32.xlu0 %v1367, 64
  %v1370 = vpop.permute.xlu0 %1369
  %v1372 = vmul.f32 %v1350, %v1370
  %1374 = vrot.lane.b32.xlu0 %v1372, 32
  %v1375 = vpop.permute.xlu0 %1374
  %1377 = vst.msk [vmem:[#allocation8] sm:$0x3] %vm211, %v1375
  %1379 = vrot.lane.b32.xlu0 %v1366, 96
  %v1380 = vpop.permute.xlu0 %1379
  %1382 = vst.msk [vmem:[#allocation9] sm:$0x3] %vm211, %v1380
  %1383 = vst.msk [vmem:[#allocation5 + $0x6] sm:$0x3] %vm211, %v1375
  %v1384 = vld [vmem:[#allocation2 + $0xa] sm:$0x3]
  %v1385 = vld [vmem:[#allocation6] sm:$0x3]
  %v1387 = vsel %vm39, %v1385, 0
  %1389 = vmatprep.subr.mxu0 0.0
  %1390 = vmatpush1.msra.mxu0 0.0
  %1391 = vmatprep.subr.mxu0 0.0
  %1392 = vmatpush1.msra.mxu0 0.0
  %1393 = vmatprep.subr.mxu0 0.0
  %1394 = vmatpush1.msra.mxu0 0.0
  %1395 = vmatprep.subr.mxu0 0.0
  %1396 = vmatpush1.msra.mxu0 0.0
  %1397 = vmatprep.subr.mxu0 0.0
  %1398 = vmatpush1.msra.mxu0 0.0
  %1399 = vmatprep.subr.mxu0 0.0
  %1400 = vmatpush1.msra.mxu0 0.0
  %1401 = vmatprep.subr.mxu0 0.0
  %1402 = vmatpush1.msra.mxu0 0.0
  %1403 = vmatprep.subr.mxu0 0.0
  %1404 = vmatpush1.msra.mxu0 0.0
  %1405 = vmatprep.subr.mxu0 0.0
  %1406 = vmatpush1.msra.mxu0 0.0
  %1407 = vmatprep.subr.mxu0 0.0
  %1408 = vmatpush1.msra.mxu0 0.0
  %1409 = vmatprep.subr.mxu0 0.0
  %1410 = vmatpush1.msra.mxu0 0.0
  %1411 = vmatprep.subr.mxu0 0.0
  %1412 = vmatpush1.msra.mxu0 0.0
  %1413 = vmatprep.subr.mxu0 0.0
  %1414 = vmatpush1.msra.mxu0 %v219
  %1415 = vmatprep.subr.mxu0 0.0
  %1416 = vmatpush1.msra.mxu0 %v218
  %1417 = vmatprep.subr.mxu0 0.0
  %1418 = vmatpush1.msra.mxu0 %v217
  %1419 = vmatprep.subr.mxu0 0.0
  %1420 = vmatpush1.msra.mxu0 %v216
  %1421 = vmatprep.subr.mxu0 0.0
  %1422 = vmatpush2.msra.mxu0 0.0
  %1423 = vmatprep.subr.mxu0 0.0
  %1424 = vmatpush2.msra.mxu0 0.0
  %1425 = vmatprep.subr.mxu0 0.0
  %1426 = vmatpush2.msra.mxu0 0.0
  %1427 = vmatprep.subr.mxu0 0.0
  %1428 = vmatpush2.msra.mxu0 0.0
  %1429 = vmatprep.subr.mxu0 0.0
  %1430 = vmatpush2.msra.mxu0 0.0
  %1431 = vmatprep.subr.mxu0 0.0
  %1432 = vmatpush2.msra.mxu0 0.0
  %1433 = vmatprep.subr.mxu0 0.0
  %1434 = vmatpush2.msra.mxu0 0.0
  %1435 = vmatprep.subr.mxu0 0.0
  %1436 = vmatpush2.msra.mxu0 0.0
  %1437 = vmatprep.subr.mxu0 0.0
  %1438 = vmatpush2.msra.mxu0 0.0
  %1439 = vmatprep.subr.mxu0 0.0
  %1440 = vmatpush2.msra.mxu0 0.0
  %1441 = vmatprep.subr.mxu0 0.0
  %1442 = vmatpush2.msra.mxu0 0.0
  %1443 = vmatprep.subr.mxu0 0.0
  %1444 = vmatpush2.msra.mxu0 0.0
  %1445 = vmatprep.subr.mxu0 0.0
  %1446 = vmatpush2.msra.mxu0 0.0
  %1447 = vmatprep.subr.mxu0 0.0
  %1448 = vmatpush2.msra.mxu0 0.0
  %1449 = vmatprep.subr.mxu0 0.0
  %1450 = vmatpush2.msra.mxu0 0.0
  %1451 = vmatprep.subr.mxu0 0.0
  %1452 = vmatpush2.msra.mxu0 0.0
  %1453 = vmatprep.mubr.f32.mxu0 0.0
  %1454 = vmatmul.mubr.f32.gmra.mxu0 %v1387
  %v1455 = vpop.f32.mrf.mxu0
  %v1456 = vadd.f32 0.0, %v1455
  %v1457 = vpop.f32.mrf.mxu0
  %1458 = vdwg.mxu0
  %v1459 = vadd.f32 %v1384, %v1456
  %v1460 = vld [vmem:[#allocation7] sm:$0x3]
  %v1461 = vxor.u32 %v1459, 2147483648
  %v1462 = vmul.f32 %v1461, 1.442695
  %v1463 = vpow.pop %v1462
  %v1464 = vadd.f32 %v1463, 1.0
  %v1465 = vrcp.pop %v1464
  %v1466 = vmul.f32 1.0, %v1465
  %v1467 = vtanh.pop %v1459
  %1469 = vrot.lane.b32.xlu0 %v1460, 32
  %v1470 = vpop.permute.xlu0 %1469
  %v1472 = vmul.f32 %v1466, %v1470
  %1474 = vrot.lane.b32.xlu0 %v1467, 64
  %v1475 = vpop.permute.xlu0 %1474
  %v1477 = vmul.f32 %v1466, %v1475
  %1479 = vrot.lane.b32.xlu0 %v1477, 32
  %v1480 = vpop.permute.xlu0 %1479
  %v1482 = vadd.f32 %v1472, %v1480
  %v1483 = vtanh.pop %v1482
  %1485 = vrot.lane.b32.xlu0 %v1483, 64
  %v1486 = vpop.permute.xlu0 %1485
  %v1488 = vmul.f32 %v1466, %v1486
  %1490 = vrot.lane.b32.xlu0 %v1488, 32
  %v1491 = vpop.permute.xlu0 %1490
  %1493 = vst.msk [vmem:[#allocation6] sm:$0x3] %vm211, %v1491
  %1495 = vrot.lane.b32.xlu0 %v1482, 96
  %v1496 = vpop.permute.xlu0 %1495
  %1498 = vst.msk [vmem:[#allocation7] sm:$0x3] %vm211, %v1496
  %1499 = vst.msk [vmem:[#allocation4 + $0xa] sm:$0x3] %vm211, %v1491
  %v1500 = vld [vmem:[#allocation3 + $0x4] sm:$0x3]
  %v1501 = vld [vmem:[#allocation8] sm:$0x3]
  %v1503 = vsel %vm39, %v1501, 0
  %1505 = vmatprep.subr.mxu0 0.0
  %1506 = vmatpush1.msra.mxu0 0.0
  %1507 = vmatprep.subr.mxu0 0.0
  %1508 = vmatpush1.msra.mxu0 0.0
  %1509 = vmatprep.subr.mxu0 0.0
  %1510 = vmatpush1.msra.mxu0 0.0
  %1511 = vmatprep.subr.mxu0 0.0
  %1512 = vmatpush1.msra.mxu0 0.0
  %1513 = vmatprep.subr.mxu0 0.0
  %1514 = vmatpush1.msra.mxu0 0.0
  %1515 = vmatprep.subr.mxu0 0.0
  %1516 = vmatpush1.msra.mxu0 0.0
  %1517 = vmatprep.subr.mxu0 0.0
  %1518 = vmatpush1.msra.mxu0 0.0
  %1519 = vmatprep.subr.mxu0 0.0
  %1520 = vmatpush1.msra.mxu0 0.0
  %1521 = vmatprep.subr.mxu0 0.0
  %1522 = vmatpush1.msra.mxu0 0.0
  %1523 = vmatprep.subr.mxu0 0.0
  %1524 = vmatpush1.msra.mxu0 0.0
  %1525 = vmatprep.subr.mxu0 0.0
  %1526 = vmatpush1.msra.mxu0 0.0
  %1527 = vmatprep.subr.mxu0 0.0
  %1528 = vmatpush1.msra.mxu0 0.0
  %1529 = vmatprep.subr.mxu0 0.0
  %1530 = vmatpush1.msra.mxu0 %v223
  %1531 = vmatprep.subr.mxu0 0.0
  %1532 = vmatpush1.msra.mxu0 %v222
  %1533 = vmatprep.subr.mxu0 0.0
  %1534 = vmatpush1.msra.mxu0 %v221
  %1535 = vmatprep.subr.mxu0 0.0
  %1536 = vmatpush1.msra.mxu0 %v220
  %1537 = vmatprep.subr.mxu0 0.0
  %1538 = vmatpush2.msra.mxu0 0.0
  %1539 = vmatprep.subr.mxu0 0.0
  %1540 = vmatpush2.msra.mxu0 0.0
  %1541 = vmatprep.subr.mxu0 0.0
  %1542 = vmatpush2.msra.mxu0 0.0
  %1543 = vmatprep.subr.mxu0 0.0
  %1544 = vmatpush2.msra.mxu0 0.0
  %1545 = vmatprep.subr.mxu0 0.0
  %1546 = vmatpush2.msra.mxu0 0.0
  %1547 = vmatprep.subr.mxu0 0.0
  %1548 = vmatpush2.msra.mxu0 0.0
  %1549 = vmatprep.subr.mxu0 0.0
  %1550 = vmatpush2.msra.mxu0 0.0
  %1551 = vmatprep.subr.mxu0 0.0
  %1552 = vmatpush2.msra.mxu0 0.0
  %1553 = vmatprep.subr.mxu0 0.0
  %1554 = vmatpush2.msra.mxu0 0.0
  %1555 = vmatprep.subr.mxu0 0.0
  %1556 = vmatpush2.msra.mxu0 0.0
  %1557 = vmatprep.subr.mxu0 0.0
  %1558 = vmatpush2.msra.mxu0 0.0
  %1559 = vmatprep.subr.mxu0 0.0
  %1560 = vmatpush2.msra.mxu0 0.0
  %1561 = vmatprep.subr.mxu0 0.0
  %1562 = vmatpush2.msra.mxu0 0.0
  %1563 = vmatprep.subr.mxu0 0.0
  %1564 = vmatpush2.msra.mxu0 0.0
  %1565 = vmatprep.subr.mxu0 0.0
  %1566 = vmatpush2.msra.mxu0 0.0
  %1567 = vmatprep.subr.mxu0 0.0
  %1568 = vmatpush2.msra.mxu0 0.0
  %1569 = vmatprep.mubr.f32.mxu0 0.0
  %1570 = vmatmul.mubr.f32.gmra.mxu0 %v1503
  %v1571 = vpop.f32.mrf.mxu0
  %v1572 = vadd.f32 0.0, %v1571
  %v1573 = vpop.f32.mrf.mxu0
  %1574 = vdwg.mxu0
  %v1575 = vadd.f32 %v1500, %v1572
  %v1576 = vld [vmem:[#allocation9] sm:$0x3]
  %v1577 = vxor.u32 %v1575, 2147483648
  %v1578 = vmul.f32 %v1577, 1.442695
  %v1579 = vpow.pop %v1578
  %v1580 = vadd.f32 %v1579, 1.0
  %v1581 = vrcp.pop %v1580
  %v1582 = vmul.f32 1.0, %v1581
  %v1583 = vtanh.pop %v1575
  %1585 = vrot.lane.b32.xlu0 %v1576, 32
  %v1586 = vpop.permute.xlu0 %1585
  %v1588 = vmul.f32 %v1582, %v1586
  %1590 = vrot.lane.b32.xlu0 %v1583, 64
  %v1591 = vpop.permute.xlu0 %1590
  %v1593 = vmul.f32 %v1582, %v1591
  %1595 = vrot.lane.b32.xlu0 %v1593, 32
  %v1596 = vpop.permute.xlu0 %1595
  %v1598 = vadd.f32 %v1588, %v1596
  %v1599 = vtanh.pop %v1598
  %1601 = vrot.lane.b32.xlu0 %v1599, 64
  %v1602 = vpop.permute.xlu0 %1601
  %v1604 = vmul.f32 %v1582, %v1602
  %1606 = vrot.lane.b32.xlu0 %v1604, 32
  %v1607 = vpop.permute.xlu0 %1606
  %1609 = vst.msk [vmem:[#allocation8] sm:$0x3] %vm211, %v1607
  %1611 = vrot.lane.b32.xlu0 %v1598, 96
  %v1612 = vpop.permute.xlu0 %1611
  %1614 = vst.msk [vmem:[#allocation9] sm:$0x3] %vm211, %v1612
  %1615 = vst.msk [vmem:[#allocation5 + $0x4] sm:$0x3] %vm211, %v1607
  %v1616 = vld [vmem:[#allocation2 + $0xc] sm:$0x3]
  %v1617 = vld [vmem:[#allocation6] sm:$0x3]
  %v1619 = vsel %vm39, %v1617, 0
  %1621 = vmatprep.subr.mxu0 0.0
  %1622 = vmatpush1.msra.mxu0 0.0
  %1623 = vmatprep.subr.mxu0 0.0
  %1624 = vmatpush1.msra.mxu0 0.0
  %1625 = vmatprep.subr.mxu0 0.0
  %1626 = vmatpush1.msra.mxu0 0.0
  %1627 = vmatprep.subr.mxu0 0.0
  %1628 = vmatpush1.msra.mxu0 0.0
  %1629 = vmatprep.subr.mxu0 0.0
  %1630 = vmatpush1.msra.mxu0 0.0
  %1631 = vmatprep.subr.mxu0 0.0
  %1632 = vmatpush1.msra.mxu0 0.0
  %1633 = vmatprep.subr.mxu0 0.0
  %1634 = vmatpush1.msra.mxu0 0.0
  %1635 = vmatprep.subr.mxu0 0.0
  %1636 = vmatpush1.msra.mxu0 0.0
  %1637 = vmatprep.subr.mxu0 0.0
  %1638 = vmatpush1.msra.mxu0 0.0
  %1639 = vmatprep.subr.mxu0 0.0
  %1640 = vmatpush1.msra.mxu0 0.0
  %1641 = vmatprep.subr.mxu0 0.0
  %1642 = vmatpush1.msra.mxu0 0.0
  %1643 = vmatprep.subr.mxu0 0.0
  %1644 = vmatpush1.msra.mxu0 0.0
  %1645 = vmatprep.subr.mxu0 0.0
  %1646 = vmatpush1.msra.mxu0 %v219
  %1647 = vmatprep.subr.mxu0 0.0
  %1648 = vmatpush1.msra.mxu0 %v218
  %1649 = vmatprep.subr.mxu0 0.0
  %1650 = vmatpush1.msra.mxu0 %v217
  %1651 = vmatprep.subr.mxu0 0.0
  %1652 = vmatpush1.msra.mxu0 %v216
  %1653 = vmatprep.subr.mxu0 0.0
  %1654 = vmatpush2.msra.mxu0 0.0
  %1655 = vmatprep.subr.mxu0 0.0
  %1656 = vmatpush2.msra.mxu0 0.0
  %1657 = vmatprep.subr.mxu0 0.0
  %1658 = vmatpush2.msra.mxu0 0.0
  %1659 = vmatprep.subr.mxu0 0.0
  %1660 = vmatpush2.msra.mxu0 0.0
  %1661 = vmatprep.subr.mxu0 0.0
  %1662 = vmatpush2.msra.mxu0 0.0
  %1663 = vmatprep.subr.mxu0 0.0
  %1664 = vmatpush2.msra.mxu0 0.0
  %1665 = vmatprep.subr.mxu0 0.0
  %1666 = vmatpush2.msra.mxu0 0.0
  %1667 = vmatprep.subr.mxu0 0.0
  %1668 = vmatpush2.msra.mxu0 0.0
  %1669 = vmatprep.subr.mxu0 0.0
  %1670 = vmatpush2.msra.mxu0 0.0
  %1671 = vmatprep.subr.mxu0 0.0
  %1672 = vmatpush2.msra.mxu0 0.0
  %1673 = vmatprep.subr.mxu0 0.0
  %1674 = vmatpush2.msra.mxu0 0.0
  %1675 = vmatprep.subr.mxu0 0.0
  %1676 = vmatpush2.msra.mxu0 0.0
  %1677 = vmatprep.subr.mxu0 0.0
  %1678 = vmatpush2.msra.mxu0 0.0
  %1679 = vmatprep.subr.mxu0 0.0
  %1680 = vmatpush2.msra.mxu0 0.0
  %1681 = vmatprep.subr.mxu0 0.0
  %1682 = vmatpush2.msra.mxu0 0.0
  %1683 = vmatprep.subr.mxu0 0.0
  %1684 = vmatpush2.msra.mxu0 0.0
  %1685 = vmatprep.mubr.f32.mxu0 0.0
  %1686 = vmatmul.mubr.f32.gmra.mxu0 %v1619
  %v1687 = vpop.f32.mrf.mxu0
  %v1688 = vadd.f32 0.0, %v1687
  %v1689 = vpop.f32.mrf.mxu0
  %1690 = vdwg.mxu0
  %v1691 = vadd.f32 %v1616, %v1688
  %v1692 = vld [vmem:[#allocation7] sm:$0x3]
  %v1693 = vxor.u32 %v1691, 2147483648
  %v1694 = vmul.f32 %v1693, 1.442695
  %v1695 = vpow.pop %v1694
  %v1696 = vadd.f32 %v1695, 1.0
  %v1697 = vrcp.pop %v1696
  %v1698 = vmul.f32 1.0, %v1697
  %v1699 = vtanh.pop %v1691
  %1701 = vrot.lane.b32.xlu0 %v1692, 32
  %v1702 = vpop.permute.xlu0 %1701
  %v1704 = vmul.f32 %v1698, %v1702
  %1706 = vrot.lane.b32.xlu0 %v1699, 64
  %v1707 = vpop.permute.xlu0 %1706
  %v1709 = vmul.f32 %v1698, %v1707
  %1711 = vrot.lane.b32.xlu0 %v1709, 32
  %v1712 = vpop.permute.xlu0 %1711
  %v1714 = vadd.f32 %v1704, %v1712
  %v1715 = vtanh.pop %v1714
  %1717 = vrot.lane.b32.xlu0 %v1715, 64
  %v1718 = vpop.permute.xlu0 %1717
  %v1720 = vmul.f32 %v1698, %v1718
  %1722 = vrot.lane.b32.xlu0 %v1720, 32
  %v1723 = vpop.permute.xlu0 %1722
  %1725 = vst.msk [vmem:[#allocation6] sm:$0x3] %vm211, %v1723
  %1727 = vrot.lane.b32.xlu0 %v1714, 96
  %v1728 = vpop.permute.xlu0 %1727
  %1730 = vst.msk [vmem:[#allocation7] sm:$0x3] %vm211, %v1728
  %1731 = vst.msk [vmem:[#allocation4 + $0xc] sm:$0x3] %vm211, %v1723
  %v1732 = vld [vmem:[#allocation3 + $0x2] sm:$0x3]
  %v1733 = vld [vmem:[#allocation8] sm:$0x3]
  %v1735 = vsel %vm39, %v1733, 0
  %1737 = vmatprep.subr.mxu0 0.0
  %1738 = vmatpush1.msra.mxu0 0.0
  %1739 = vmatprep.subr.mxu0 0.0
  %1740 = vmatpush1.msra.mxu0 0.0
  %1741 = vmatprep.subr.mxu0 0.0
  %1742 = vmatpush1.msra.mxu0 0.0
  %1743 = vmatprep.subr.mxu0 0.0
  %1744 = vmatpush1.msra.mxu0 0.0
  %1745 = vmatprep.subr.mxu0 0.0
  %1746 = vmatpush1.msra.mxu0 0.0
  %1747 = vmatprep.subr.mxu0 0.0
  %1748 = vmatpush1.msra.mxu0 0.0
  %1749 = vmatprep.subr.mxu0 0.0
  %1750 = vmatpush1.msra.mxu0 0.0
  %1751 = vmatprep.subr.mxu0 0.0
  %1752 = vmatpush1.msra.mxu0 0.0
  %1753 = vmatprep.subr.mxu0 0.0
  %1754 = vmatpush1.msra.mxu0 0.0
  %1755 = vmatprep.subr.mxu0 0.0
  %1756 = vmatpush1.msra.mxu0 0.0
  %1757 = vmatprep.subr.mxu0 0.0
  %1758 = vmatpush1.msra.mxu0 0.0
  %1759 = vmatprep.subr.mxu0 0.0
  %1760 = vmatpush1.msra.mxu0 0.0
  %1761 = vmatprep.subr.mxu0 0.0
  %1762 = vmatpush1.msra.mxu0 %v223
  %1763 = vmatprep.subr.mxu0 0.0
  %1764 = vmatpush1.msra.mxu0 %v222
  %1765 = vmatprep.subr.mxu0 0.0
  %1766 = vmatpush1.msra.mxu0 %v221
  %1767 = vmatprep.subr.mxu0 0.0
  %1768 = vmatpush1.msra.mxu0 %v220
  %1769 = vmatprep.subr.mxu0 0.0
  %1770 = vmatpush2.msra.mxu0 0.0
  %1771 = vmatprep.subr.mxu0 0.0
  %1772 = vmatpush2.msra.mxu0 0.0
  %1773 = vmatprep.subr.mxu0 0.0
  %1774 = vmatpush2.msra.mxu0 0.0
  %1775 = vmatprep.subr.mxu0 0.0
  %1776 = vmatpush2.msra.mxu0 0.0
  %1777 = vmatprep.subr.mxu0 0.0
  %1778 = vmatpush2.msra.mxu0 0.0
  %1779 = vmatprep.subr.mxu0 0.0
  %1780 = vmatpush2.msra.mxu0 0.0
  %1781 = vmatprep.subr.mxu0 0.0
  %1782 = vmatpush2.msra.mxu0 0.0
  %1783 = vmatprep.subr.mxu0 0.0
  %1784 = vmatpush2.msra.mxu0 0.0
  %1785 = vmatprep.subr.mxu0 0.0
  %1786 = vmatpush2.msra.mxu0 0.0
  %1787 = vmatprep.subr.mxu0 0.0
  %1788 = vmatpush2.msra.mxu0 0.0
  %1789 = vmatprep.subr.mxu0 0.0
  %1790 = vmatpush2.msra.mxu0 0.0
  %1791 = vmatprep.subr.mxu0 0.0
  %1792 = vmatpush2.msra.mxu0 0.0
  %1793 = vmatprep.subr.mxu0 0.0
  %1794 = vmatpush2.msra.mxu0 0.0
  %1795 = vmatprep.subr.mxu0 0.0
  %1796 = vmatpush2.msra.mxu0 0.0
  %1797 = vmatprep.subr.mxu0 0.0
  %1798 = vmatpush2.msra.mxu0 0.0
  %1799 = vmatprep.subr.mxu0 0.0
  %1800 = vmatpush2.msra.mxu0 0.0
  %1801 = vmatprep.mubr.f32.mxu0 0.0
  %1802 = vmatmul.mubr.f32.gmra.mxu0 %v1735
  %v1803 = vpop.f32.mrf.mxu0
  %v1804 = vadd.f32 0.0, %v1803
  %v1805 = vpop.f32.mrf.mxu0
  %1806 = vdwg.mxu0
  %v1807 = vadd.f32 %v1732, %v1804
  %v1808 = vld [vmem:[#allocation9] sm:$0x3]
  %v1809 = vxor.u32 %v1807, 2147483648
  %v1810 = vmul.f32 %v1809, 1.442695
  %v1811 = vpow.pop %v1810
  %v1812 = vadd.f32 %v1811, 1.0
  %v1813 = vrcp.pop %v1812
  %v1814 = vmul.f32 1.0, %v1813
  %v1815 = vtanh.pop %v1807
  %1817 = vrot.lane.b32.xlu0 %v1808, 32
  %v1818 = vpop.permute.xlu0 %1817
  %v1820 = vmul.f32 %v1814, %v1818
  %1822 = vrot.lane.b32.xlu0 %v1815, 64
  %v1823 = vpop.permute.xlu0 %1822
  %v1825 = vmul.f32 %v1814, %v1823
  %1827 = vrot.lane.b32.xlu0 %v1825, 32
  %v1828 = vpop.permute.xlu0 %1827
  %v1830 = vadd.f32 %v1820, %v1828
  %v1831 = vtanh.pop %v1830
  %1833 = vrot.lane.b32.xlu0 %v1831, 64
  %v1834 = vpop.permute.xlu0 %1833
  %v1836 = vmul.f32 %v1814, %v1834
  %1838 = vrot.lane.b32.xlu0 %v1836, 32
  %v1839 = vpop.permute.xlu0 %1838
  %1841 = vst.msk [vmem:[#allocation8] sm:$0x3] %vm211, %v1839
  %1843 = vrot.lane.b32.xlu0 %v1830, 96
  %v1844 = vpop.permute.xlu0 %1843
  %1846 = vst.msk [vmem:[#allocation9] sm:$0x3] %vm211, %v1844
  %1847 = vst.msk [vmem:[#allocation5 + $0x2] sm:$0x3] %vm211, %v1839
  %v1848 = vld [vmem:[#allocation2 + $0xe] sm:$0x3]
  %v1849 = vld [vmem:[#allocation6] sm:$0x3]
  %v1851 = vsel %vm39, %v1849, 0
  %1853 = vmatprep.subr.mxu0 0.0
  %1854 = vmatpush1.msra.mxu0 0.0
  %1855 = vmatprep.subr.mxu0 0.0
  %1856 = vmatpush1.msra.mxu0 0.0
  %1857 = vmatprep.subr.mxu0 0.0
  %1858 = vmatpush1.msra.mxu0 0.0
  %1859 = vmatprep.subr.mxu0 0.0
  %1860 = vmatpush1.msra.mxu0 0.0
  %1861 = vmatprep.subr.mxu0 0.0
  %1862 = vmatpush1.msra.mxu0 0.0
  %1863 = vmatprep.subr.mxu0 0.0
  %1864 = vmatpush1.msra.mxu0 0.0
  %1865 = vmatprep.subr.mxu0 0.0
  %1866 = vmatpush1.msra.mxu0 0.0
  %1867 = vmatprep.subr.mxu0 0.0
  %1868 = vmatpush1.msra.mxu0 0.0
  %1869 = vmatprep.subr.mxu0 0.0
  %1870 = vmatpush1.msra.mxu0 0.0
  %1871 = vmatprep.subr.mxu0 0.0
  %1872 = vmatpush1.msra.mxu0 0.0
  %1873 = vmatprep.subr.mxu0 0.0
  %1874 = vmatpush1.msra.mxu0 0.0
  %1875 = vmatprep.subr.mxu0 0.0
  %1876 = vmatpush1.msra.mxu0 0.0
  %1877 = vmatprep.subr.mxu0 0.0
  %1878 = vmatpush1.msra.mxu0 %v219
  %1879 = vmatprep.subr.mxu0 0.0
  %1880 = vmatpush1.msra.mxu0 %v218
  %1881 = vmatprep.subr.mxu0 0.0
  %1882 = vmatpush1.msra.mxu0 %v217
  %1883 = vmatprep.subr.mxu0 0.0
  %1884 = vmatpush1.msra.mxu0 %v216
  %1885 = vmatprep.subr.mxu0 0.0
  %1886 = vmatpush2.msra.mxu0 0.0
  %1887 = vmatprep.subr.mxu0 0.0
  %1888 = vmatpush2.msra.mxu0 0.0
  %1889 = vmatprep.subr.mxu0 0.0
  %1890 = vmatpush2.msra.mxu0 0.0
  %1891 = vmatprep.subr.mxu0 0.0
  %1892 = vmatpush2.msra.mxu0 0.0
  %1893 = vmatprep.subr.mxu0 0.0
  %1894 = vmatpush2.msra.mxu0 0.0
  %1895 = vmatprep.subr.mxu0 0.0
  %1896 = vmatpush2.msra.mxu0 0.0
  %1897 = vmatprep.subr.mxu0 0.0
  %1898 = vmatpush2.msra.mxu0 0.0
  %1899 = vmatprep.subr.mxu0 0.0
  %1900 = vmatpush2.msra.mxu0 0.0
  %1901 = vmatprep.subr.mxu0 0.0
  %1902 = vmatpush2.msra.mxu0 0.0
  %1903 = vmatprep.subr.mxu0 0.0
  %1904 = vmatpush2.msra.mxu0 0.0
  %1905 = vmatprep.subr.mxu0 0.0
  %1906 = vmatpush2.msra.mxu0 0.0
  %1907 = vmatprep.subr.mxu0 0.0
  %1908 = vmatpush2.msra.mxu0 0.0
  %1909 = vmatprep.subr.mxu0 0.0
  %1910 = vmatpush2.msra.mxu0 0.0
  %1911 = vmatprep.subr.mxu0 0.0
  %1912 = vmatpush2.msra.mxu0 0.0
  %1913 = vmatprep.subr.mxu0 0.0
  %1914 = vmatpush2.msra.mxu0 0.0
  %1915 = vmatprep.subr.mxu0 0.0
  %1916 = vmatpush2.msra.mxu0 0.0
  %1917 = vmatprep.mubr.f32.mxu0 0.0
  %1918 = vmatmul.mubr.f32.gmra.mxu0 %v1851
  %v1919 = vpop.f32.mrf.mxu0
  %v1920 = vadd.f32 0.0, %v1919
  %v1921 = vpop.f32.mrf.mxu0
  %1922 = vdwg.mxu0
  %v1923 = vadd.f32 %v1848, %v1920
  %v1924 = vld [vmem:[#allocation7] sm:$0x3]
  %v1925 = vxor.u32 %v1923, 2147483648
  %v1926 = vmul.f32 %v1925, 1.442695
  %v1927 = vpow.pop %v1926
  %v1928 = vadd.f32 %v1927, 1.0
  %v1929 = vrcp.pop %v1928
  %v1930 = vmul.f32 1.0, %v1929
  %v1931 = vtanh.pop %v1923
  %1933 = vrot.lane.b32.xlu0 %v1924, 32
  %v1934 = vpop.permute.xlu0 %1933
  %v1936 = vmul.f32 %v1930, %v1934
  %1938 = vrot.lane.b32.xlu0 %v1931, 64
  %v1939 = vpop.permute.xlu0 %1938
  %v1941 = vmul.f32 %v1930, %v1939
  %1943 = vrot.lane.b32.xlu0 %v1941, 32
  %v1944 = vpop.permute.xlu0 %1943
  %v1946 = vadd.f32 %v1936, %v1944
  %v1947 = vtanh.pop %v1946
  %1949 = vrot.lane.b32.xlu0 %v1947, 64
  %v1950 = vpop.permute.xlu0 %1949
  %v1952 = vmul.f32 %v1930, %v1950
  %1954 = vrot.lane.b32.xlu0 %v1952, 32
  %v1955 = vpop.permute.xlu0 %1954
  %1957 = vst.msk [vmem:[#allocation6] sm:$0x3] %vm211, %v1955
  %1959 = vrot.lane.b32.xlu0 %v1946, 96
  %v1960 = vpop.permute.xlu0 %1959
  %1962 = vst.msk [vmem:[#allocation7] sm:$0x3] %vm211, %v1960
  %1963 = vst.msk [vmem:[#allocation4 + $0xe] sm:$0x3] %vm211, %v1955
  %v1964 = vld [vmem:[#allocation3] sm:$0x3]
  %v1965 = vld [vmem:[#allocation8] sm:$0x3]
  %v1967 = vsel %vm39, %v1965, 0
  %1969 = vmatprep.subr.mxu0 0.0
  %1970 = vmatpush1.msra.mxu0 0.0
  %1971 = vmatprep.subr.mxu0 0.0
  %1972 = vmatpush1.msra.mxu0 0.0
  %1973 = vmatprep.subr.mxu0 0.0
  %1974 = vmatpush1.msra.mxu0 0.0
  %1975 = vmatprep.subr.mxu0 0.0
  %1976 = vmatpush1.msra.mxu0 0.0
  %1977 = vmatprep.subr.mxu0 0.0
  %1978 = vmatpush1.msra.mxu0 0.0
  %1979 = vmatprep.subr.mxu0 0.0
  %1980 = vmatpush1.msra.mxu0 0.0
  %1981 = vmatprep.subr.mxu0 0.0
  %1982 = vmatpush1.msra.mxu0 0.0
  %1983 = vmatprep.subr.mxu0 0.0
  %1984 = vmatpush1.msra.mxu0 0.0
  %1985 = vmatprep.subr.mxu0 0.0
  %1986 = vmatpush1.msra.mxu0 0.0
  %1987 = vmatprep.subr.mxu0 0.0
  %1988 = vmatpush1.msra.mxu0 0.0
  %1989 = vmatprep.subr.mxu0 0.0
  %1990 = vmatpush1.msra.mxu0 0.0
  %1991 = vmatprep.subr.mxu0 0.0
  %1992 = vmatpush1.msra.mxu0 0.0
  %1993 = vmatprep.subr.mxu0 0.0
  %1994 = vmatpush1.msra.mxu0 %v223
  %1995 = vmatprep.subr.mxu0 0.0
  %1996 = vmatpush1.msra.mxu0 %v222
  %1997 = vmatprep.subr.mxu0 0.0
  %1998 = vmatpush1.msra.mxu0 %v221
  %1999 = vmatprep.subr.mxu0 0.0
  %2000 = vmatpush1.msra.mxu0 %v220
  %2001 = vmatprep.subr.mxu0 0.0
  %2002 = vmatpush2.msra.mxu0 0.0
  %2003 = vmatprep.subr.mxu0 0.0
  %2004 = vmatpush2.msra.mxu0 0.0
  %2005 = vmatprep.subr.mxu0 0.0
  %2006 = vmatpush2.msra.mxu0 0.0
  %2007 = vmatprep.subr.mxu0 0.0
  %2008 = vmatpush2.msra.mxu0 0.0
  %2009 = vmatprep.subr.mxu0 0.0
  %2010 = vmatpush2.msra.mxu0 0.0
  %2011 = vmatprep.subr.mxu0 0.0
  %2012 = vmatpush2.msra.mxu0 0.0
  %2013 = vmatprep.subr.mxu0 0.0
  %2014 = vmatpush2.msra.mxu0 0.0
  %2015 = vmatprep.subr.mxu0 0.0
  %2016 = vmatpush2.msra.mxu0 0.0
  %2017 = vmatprep.subr.mxu0 0.0
  %2018 = vmatpush2.msra.mxu0 0.0
  %2019 = vmatprep.subr.mxu0 0.0
  %2020 = vmatpush2.msra.mxu0 0.0
  %2021 = vmatprep.subr.mxu0 0.0
  %2022 = vmatpush2.msra.mxu0 0.0
  %2023 = vmatprep.subr.mxu0 0.0
  %2024 = vmatpush2.msra.mxu0 0.0
  %2025 = vmatprep.subr.mxu0 0.0
  %2026 = vmatpush2.msra.mxu0 0.0
  %2027 = vmatprep.subr.mxu0 0.0
  %2028 = vmatpush2.msra.mxu0 0.0
  %2029 = vmatprep.subr.mxu0 0.0
  %2030 = vmatpush2.msra.mxu0 0.0
  %2031 = vmatprep.subr.mxu0 0.0
  %2032 = vmatpush2.msra.mxu0 0.0
  %2033 = vmatprep.mubr.f32.mxu0 0.0
  %2034 = vmatmul.mubr.f32.gmra.mxu0 %v1967
  %v2035 = vpop.f32.mrf.mxu0
  %v2036 = vadd.f32 0.0, %v2035
  %v2037 = vpop.f32.mrf.mxu0
  %2038 = vdwg.mxu0
  %v2039 = vadd.f32 %v1964, %v2036
  %v2040 = vld [vmem:[#allocation9] sm:$0x3]
  %v2041 = vxor.u32 %v2039, 2147483648
  %v2042 = vmul.f32 %v2041, 1.442695
  %v2043 = vpow.pop %v2042
  %v2044 = vadd.f32 %v2043, 1.0
  %v2045 = vrcp.pop %v2044
  %v2046 = vmul.f32 1.0, %v2045
  %v2047 = vtanh.pop %v2039
  %2049 = vrot.lane.b32.xlu0 %v2040, 32
  %v2050 = vpop.permute.xlu0 %2049
  %v2052 = vmul.f32 %v2046, %v2050
  %2054 = vrot.lane.b32.xlu0 %v2047, 64
  %v2055 = vpop.permute.xlu0 %2054
  %v2057 = vmul.f32 %v2046, %v2055
  %2059 = vrot.lane.b32.xlu0 %v2057, 32
  %v2060 = vpop.permute.xlu0 %2059
  %v2062 = vadd.f32 %v2052, %v2060
  %v2063 = vtanh.pop %v2062
  %2065 = vrot.lane.b32.xlu0 %v2063, 64
  %v2066 = vpop.permute.xlu0 %2065
  %v2068 = vmul.f32 %v2046, %v2066
  %2070 = vrot.lane.b32.xlu0 %v2068, 32
  %v2071 = vpop.permute.xlu0 %2070
  %2073 = vst.msk [vmem:[#allocation8] sm:$0x3] %vm211, %v2071
  %2075 = vrot.lane.b32.xlu0 %v2062, 96
  %v2076 = vpop.permute.xlu0 %2075
  %2078 = vst.msk [vmem:[#allocation9] sm:$0x3] %vm211, %v2076
  %2079 = vst.msk [vmem:[#allocation5] sm:$0x3] %vm211, %v2071
  %v2080 = vld [vmem:[#allocation4] sm:$0xff]
  %v2081 = vld [vmem:[#allocation4 + $0x8] sm:$0xff]
  %v2082 = vld [vmem:[#allocation5] sm:$0xff]
  %v2083 = vld [vmem:[#allocation5 + $0x8] sm:$0xff]
  %2086 = vrot.lane.b32.xlu0 %v2082, 32
  %v2087 = vpop.permute.xlu0 %2086
  %2088 = vrot.lane.b32.xlu0 %v2083, 32
  %v2089 = vpop.permute.xlu0 %2088
  %v2092 = vsel %vm39, %v2080, %v2087
  %v2093 = vsel %vm39, %v2081, %v2089
  %vm2094 = vcmask 523264
  %2095 = vst.msk [vmem:[%s7] sm:$0xff] %vm2094, %v2092
  %2096 = vst.msk [vmem:[%s7 + $0x8] sm:$0xff] %vm2094, %v2093
  // Predicated region
  $region30: #{birnn_forward.2} parent=0 // pred_check
    _
  $region31: #{birnn_forward.2} parent=0 // pred_check_branch
    %2098 = sbr.rel (0) target = $region33
  $region32: #{birnn_forward.2} parent=0 // pred_region
    _
  $region33: #{birnn_forward.2} parent=0 // pred_fallthru
    _
  // Predicated region
  $region34: #{birnn_forward.2} parent=0 // pred_check
    _
  $region35: #{birnn_forward.2} parent=0 // pred_check_branch
    %2100 = sbr.rel (0) target = $region37
  $region36: #{birnn_forward.2} parent=0 // pred_region
    _
  $region37: #{birnn_forward.2} parent=0 // pred_fallthru
    _

// kernel: birnn_forward.3
$region0: #{birnn_forward.3}
  #allocation0 [shape = 'u32[]', space=smem, size = 0x4, offset = 0x4, fixed_abs, tag = 'smem constant byte address 0x4 - core index']
  #allocation1 [shape = 'u32[144,128]{1,0:T(1,128)}', space=vmem, size = 0x12000, scoped, tag = 'internal scratch']
  #allocation2 [shape = 'f32[16,128]{1,0:T(8,128)}', space=vmem, size = 0x2000, scoped, tag = 'scratch operand']
  #allocation3 [shape = 'f32[16,128]{1,0:T(8,128)}', space=vmem, size = 0x2000, scoped, tag = 'scratch operand']
  #allocation4 [shape = 'f32[16,32]{1,0:T(8,128)}', space=vmem, size = 0x2000, scoped, tag = 'scratch operand']
  #allocation5 [shape = 'f32[16,32]{1,0:T(8,128)}', space=vmem, size = 0x2000, scoped, tag = 'scratch operand']
  #allocation6 [shape = 'f32[2,32]{1,0:T(2,128)}', space=vmem, size = 0x400, scoped, tag = 'scratch operand']
  #allocation7 [shape = 'f32[2,32]{1,0:T(2,128)}', space=vmem, size = 0x400, scoped, tag = 'scratch operand']
  #allocation8 [shape = 'f32[2,32]{1,0:T(2,128)}', space=vmem, size = 0x400, scoped, tag = 'scratch operand']
  #allocation9 [shape = 'f32[2,32]{1,0:T(2,128)}', space=vmem, size = 0x400, scoped, tag = 'scratch operand']
  %s0 = inlined_call_operand.vmem [shape: f32[16,64], index: 0, kind: input, shape index: {}]
  %s1 = inlined_call_operand.vmem [shape: f32[64,128], index: 1, kind: input, shape index: {}]
  %s2 = inlined_call_operand.vmem [shape: f32[32,128], index: 2, kind: input, shape index: {}]
  %s3 = inlined_call_operand.vmem [shape: f32[1,128], index: 3, kind: input, shape index: {}]
  %s4 = inlined_call_operand.vmem [shape: f32[64,128], index: 4, kind: input, shape index: {}]
  %s5 = inlined_call_operand.vmem [shape: f32[32,128], index: 5, kind: input, shape index: {}]
  %s6 = inlined_call_operand.vmem [shape: f32[1,128], index: 6, kind: input, shape index: {}]
  %s7 = inlined_call_operand.vmem [shape: f32[16,64], index: 7, kind: output, shape index: {}]
  %s8 = sld [smem:[#allocation0]]
  $region38: #{birnn_forward.3} parent=0
    _
  %s10 = ssub.s32 1, %s8
  %s11 = scalar_select 0, %s10, %s8
  // Predicated region
  $region2: #{birnn_forward.3} parent=0 // pred_check
    _
  $region3: #{birnn_forward.3} parent=0 // pred_check_branch
    %13 = sbr.rel (0) target = $region5
  $region4: #{birnn_forward.3} parent=0 // pred_region
    _
  $region5: #{birnn_forward.3} parent=0 // pred_fallthru
    _
  // Predicated region
  $region6: #{birnn_forward.3} parent=0 // pred_check
    _
  $region7: #{birnn_forward.3} parent=0 // pred_check_branch
    %15 = sbr.rel (0) target = $region9
  $region8: #{birnn_forward.3} parent=0 // pred_region
    _
  $region9: #{birnn_forward.3} parent=0 // pred_fallthru
    _
  // Predicated region
  $region10: #{birnn_forward.3} parent=0 // pred_check
    _
  $region11: #{birnn_forward.3} parent=0 // pred_check_branch
    %17 = sbr.rel (0) target = $region13
  $region12: #{birnn_forward.3} parent=0 // pred_region
    _
  $region13: #{birnn_forward.3} parent=0 // pred_fallthru
    _
  // Predicated region
  $region14: #{birnn_forward.3} parent=0 // pred_check
    _
  $region15: #{birnn_forward.3} parent=0 // pred_check_branch
    %19 = sbr.rel (0) target = $region17
  $region16: #{birnn_forward.3} parent=0 // pred_region
    _
  $region17: #{birnn_forward.3} parent=0 // pred_fallthru
    _
  // Predicated region
  $region18: #{birnn_forward.3} parent=0 // pred_check
    _
  $region19: #{birnn_forward.3} parent=0 // pred_check_branch
    %21 = sbr.rel (0) target = $region21
  $region20: #{birnn_forward.3} parent=0 // pred_region
    _
  $region21: #{birnn_forward.3} parent=0 // pred_fallthru
    _
  // Predicated region
  $region22: #{birnn_forward.3} parent=0 // pred_check
    _
  $region23: #{birnn_forward.3} parent=0 // pred_check_branch
    %23 = sbr.rel (0) target = $region25
  $region24: #{birnn_forward.3} parent=0 // pred_region
    _
  $region25: #{birnn_forward.3} parent=0 // pred_fallthru
    _
  // Predicated region
  $region26: #{birnn_forward.3} parent=0 // pred_check
    _
  $region27: #{birnn_forward.3} parent=0 // pred_check_branch
    %25 = sbr.rel (0) target = $region29
  $region28: #{birnn_forward.3} parent=0 // pred_region
    _
  $region29: #{birnn_forward.3} parent=0 // pred_fallthru
    _
  %v26 = vld [vmem:[%s0] sm:$0xff]
  %v27 = vld [vmem:[%s0 + $0x8] sm:$0xff]
  %v28 = vld [vmem:[%s1] sm:$0xff]
  %v29 = vld [vmem:[%s1 + $0x8] sm:$0xff]
  %v30 = vld [vmem:[%s1 + $0x10] sm:$0xff]
  %v31 = vld [vmem:[%s1 + $0x18] sm:$0xff]
  %v32 = vld [vmem:[%s1 + $0x20] sm:$0xff]
  %v33 = vld [vmem:[%s1 + $0x28] sm:$0xff]
  %v34 = vld [vmem:[%s1 + $0x30] sm:$0xff]
  %v35 = vld [vmem:[%s1 + $0x38] sm:$0xff]
  %v36 = vld [vmem:[%s3] sm:$0x1]
  %v38 = vlaneseq
  %v39 = vshrl.u32 %v38, 7
  %v40 = vsub.s32 0, %v39
  %v41 = vrot.slane %v36, %v40
  %vm43 = vcmask 523264
  %v45 = vsel %vm43, %v26, 0
  %v48 = vsel %vm43, %v27, 0
  %50 = vmatprep.subr.mxu0 0.0
  %51 = vmatpush1.msra.mxu0 0.0
  %52 = vmatprep.subr.mxu0 0.0
  %53 = vmatpush1.msra.mxu0 0.0
  %54 = vmatprep.subr.mxu0 0.0
  %55 = vmatpush1.msra.mxu0 0.0
  %56 = vmatprep.subr.mxu0 0.0
  %57 = vmatpush1.msra.mxu0 0.0
  %58 = vmatprep.subr.mxu0 0.0
  %59 = vmatpush1.msra.mxu0 0.0
  %60 = vmatprep.subr.mxu0 0.0
  %61 = vmatpush1.msra.mxu0 0.0
  %62 = vmatprep.subr.mxu0 0.0
  %63 = vmatpush1.msra.mxu0 0.0
  %64 = vmatprep.subr.mxu0 0.0
  %65 = vmatpush1.msra.mxu0 0.0
  %66 = vmatprep.subr.mxu0 0.0
  %67 = vmatpush1.msra.mxu0 %v35
  %68 = vmatprep.subr.mxu0 0.0
  %69 = vmatpush1.msra.mxu0 %v34
  %70 = vmatprep.subr.mxu0 0.0
  %71 = vmatpush1.msra.mxu0 %v33
  %72 = vmatprep.subr.mxu0 0.0
  %73 = vmatpush1.msra.mxu0 %v32
  %74 = vmatprep.subr.mxu0 0.0
  %75 = vmatpush1.msra.mxu0 %v31
  %76 = vmatprep.subr.mxu0 0.0
  %77 = vmatpush1.msra.mxu0 %v30
  %78 = vmatprep.subr.mxu0 0.0
  %79 = vmatpush1.msra.mxu0 %v29
  %80 = vmatprep.subr.mxu0 0.0
  %81 = vmatpush1.msra.mxu0 %v28
  %82 = vmatprep.subr.mxu0 0.0
  %83 = vmatpush2.msra.mxu0 0.0
  %84 = vmatprep.subr.mxu0 0.0
  %85 = vmatpush2.msra.mxu0 0.0
  %86 = vmatprep.subr.mxu0 0.0
  %87 = vmatpush2.msra.mxu0 0.0
  %88 = vmatprep.subr.mxu0 0.0
  %89 = vmatpush2.msra.mxu0 0.0
  %90 = vmatprep.subr.mxu0 0.0
  %91 = vmatpush2.msra.mxu0 0.0
  %92 = vmatprep.subr.mxu0 0.0
  %93 = vmatpush2.msra.mxu0 0.0
  %94 = vmatprep.subr.mxu0 0.0
  %95 = vmatpush2.msra.mxu0 0.0
  %96 = vmatprep.subr.mxu0 0.0
  %97 = vmatpush2.msra.mxu0 0.0
  %98 = vmatprep.subr.mxu0 0.0
  %99 = vmatpush2.msra.mxu0 0.0
  %100 = vmatprep.subr.mxu0 0.0
  %101 = vmatpush2.msra.mxu0 0.0
  %102 = vmatprep.subr.mxu0 0.0
  %103 = vmatpush2.msra.mxu0 0.0
  %104 = vmatprep.subr.mxu0 0.0
  %105 = vmatpush2.msra.mxu0 0.0
  %106 = vmatprep.subr.mxu0 0.0
  %107 = vmatpush2.msra.mxu0 0.0
  %108 = vmatprep.subr.mxu0 0.0
  %109 = vmatpush2.msra.mxu0 0.0
  %110 = vmatprep.subr.mxu0 0.0
  %111 = vmatpush2.msra.mxu0 0.0
  %112 = vmatprep.subr.mxu0 0.0
  %113 = vmatpush2.msra.mxu0 0.0
  %114 = vmatprep.mubr.f32.mxu0 0.0
  %115 = vmatmul.mubr.f32.gmra.mxu0 %v45
  %v116 = vpop.f32.mrf.mxu0
  %v117 = vadd.f32 %v41, %v116
  %v118 = vpop.f32.mrf.mxu0
  %119 = vmatprep.mubr.f32.mxu0 0.0
  %120 = vmatmul.mubr.f32.gmra.mxu0 %v48
  %v121 = vpop.f32.mrf.mxu0
  %v122 = vadd.f32 %v41, %v121
  %v123 = vpop.f32.mrf.mxu0
  %124 = vdwg.mxu0
  %125 = vst [vmem:[#allocation2] sm:$0xff] %v117
  %126 = vst [vmem:[#allocation2 + $0x8] sm:$0xff] %v122
  %v127 = vld [vmem:[%s4] sm:$0xff]
  %v128 = vld [vmem:[%s4 + $0x8] sm:$0xff]
  %v129 = vld [vmem:[%s4 + $0x10] sm:$0xff]
  %v130 = vld [vmem:[%s4 + $0x18] sm:$0xff]
  %v131 = vld [vmem:[%s4 + $0x20] sm:$0xff]
  %v132 = vld [vmem:[%s4 + $0x28] sm:$0xff]
  %v133 = vld [vmem:[%s4 + $0x30] sm:$0xff]
  %v134 = vld [vmem:[%s4 + $0x38] sm:$0xff]
  %v135 = vld [vmem:[%s6] sm:$0x1]
  %v137 = vlaneseq
  %v138 = vshrl.u32 %v137, 7
  %v139 = vsub.s32 0, %v138
  %v140 = vrot.slane %v135, %v139
  %142 = vmatprep.subr.mxu0 0.0
  %143 = vmatpush1.msra.mxu0 0.0
  %144 = vmatprep.subr.mxu0 0.0
  %145 = vmatpush1.msra.mxu0 0.0
  %146 = vmatprep.subr.mxu0 0.0
  %147 = vmatpush1.msra.mxu0 0.0
  %148 = vmatprep.subr.mxu0 0.0
  %149 = vmatpush1.msra.mxu0 0.0
  %150 = vmatprep.subr.mxu0 0.0
  %151 = vmatpush1.msra.mxu0 0.0
  %152 = vmatprep.subr.mxu0 0.0
  %153 = vmatpush1.msra.mxu0 0.0
  %154 = vmatprep.subr.mxu0 0.0
  %155 = vmatpush1.msra.mxu0 0.0
  %156 = vmatprep.subr.mxu0 0.0
  %157 = vmatpush1.msra.mxu0 0.0
  %158 = vmatprep.subr.mxu0 0.0
  %159 = vmatpush1.msra.mxu0 %v134
  %160 = vmatprep.subr.mxu0 0.0
  %161 = vmatpush1.msra.mxu0 %v133
  %162 = vmatprep.subr.mxu0 0.0
  %163 = vmatpush1.msra.mxu0 %v132
  %164 = vmatprep.subr.mxu0 0.0
  %165 = vmatpush1.msra.mxu0 %v131
  %166 = vmatprep.subr.mxu0 0.0
  %167 = vmatpush1.msra.mxu0 %v130
  %168 = vmatprep.subr.mxu0 0.0
  %169 = vmatpush1.msra.mxu0 %v129
  %170 = vmatprep.subr.mxu0 0.0
  %171 = vmatpush1.msra.mxu0 %v128
  %172 = vmatprep.subr.mxu0 0.0
  %173 = vmatpush1.msra.mxu0 %v127
  %174 = vmatprep.subr.mxu0 0.0
  %175 = vmatpush2.msra.mxu0 0.0
  %176 = vmatprep.subr.mxu0 0.0
  %177 = vmatpush2.msra.mxu0 0.0
  %178 = vmatprep.subr.mxu0 0.0
  %179 = vmatpush2.msra.mxu0 0.0
  %180 = vmatprep.subr.mxu0 0.0
  %181 = vmatpush2.msra.mxu0 0.0
  %182 = vmatprep.subr.mxu0 0.0
  %183 = vmatpush2.msra.mxu0 0.0
  %184 = vmatprep.subr.mxu0 0.0
  %185 = vmatpush2.msra.mxu0 0.0
  %186 = vmatprep.subr.mxu0 0.0
  %187 = vmatpush2.msra.mxu0 0.0
  %188 = vmatprep.subr.mxu0 0.0
  %189 = vmatpush2.msra.mxu0 0.0
  %190 = vmatprep.subr.mxu0 0.0
  %191 = vmatpush2.msra.mxu0 0.0
  %192 = vmatprep.subr.mxu0 0.0
  %193 = vmatpush2.msra.mxu0 0.0
  %194 = vmatprep.subr.mxu0 0.0
  %195 = vmatpush2.msra.mxu0 0.0
  %196 = vmatprep.subr.mxu0 0.0
  %197 = vmatpush2.msra.mxu0 0.0
  %198 = vmatprep.subr.mxu0 0.0
  %199 = vmatpush2.msra.mxu0 0.0
  %200 = vmatprep.subr.mxu0 0.0
  %201 = vmatpush2.msra.mxu0 0.0
  %202 = vmatprep.subr.mxu0 0.0
  %203 = vmatpush2.msra.mxu0 0.0
  %204 = vmatprep.subr.mxu0 0.0
  %205 = vmatpush2.msra.mxu0 0.0
  %206 = vmatprep.mubr.f32.mxu0 0.0
  %207 = vmatmul.mubr.f32.gmra.mxu0 %v45
  %v208 = vpop.f32.mrf.mxu0
  %v209 = vadd.f32 %v140, %v208
  %v210 = vpop.f32.mrf.mxu0
  %211 = vmatprep.mubr.f32.mxu0 0.0
  %212 = vmatmul.mubr.f32.gmra.mxu0 %v48
  %v213 = vpop.f32.mrf.mxu0
  %v214 = vadd.f32 %v140, %v213
  %v215 = vpop.f32.mrf.mxu0
  %216 = vdwg.mxu0
  %217 = vst [vmem:[#allocation3] sm:$0xff] %v209
  %218 = vst [vmem:[#allocation3 + $0x8] sm:$0xff] %v214
  %vm219 = vcmask 254976
  %220 = vst.msk [vmem:[#allocation6] sm:$0x3] %vm219, 0.0
  %221 = vst.msk [vmem:[#allocation7] sm:$0x3] %vm219, 0.0
  %222 = vst.msk [vmem:[#allocation8] sm:$0x3] %vm219, 0.0
  %223 = vst.msk [vmem:[#allocation9] sm:$0x3] %vm219, 0.0
  %v224 = vld [vmem:[%s2] sm:$0xff]
  %v225 = vld [vmem:[%s2 + $0x8] sm:$0xff]
  %v226 = vld [vmem:[%s2 + $0x10] sm:$0xff]
  %v227 = vld [vmem:[%s2 + $0x18] sm:$0xff]
  %v228 = vld [vmem:[%s5] sm:$0xff]
  %v229 = vld [vmem:[%s5 + $0x8] sm:$0xff]
  %v230 = vld [vmem:[%s5 + $0x10] sm:$0xff]
  %v231 = vld [vmem:[%s5 + $0x18] sm:$0xff]
  %v232 = vld [vmem:[#allocation2] sm:$0x3]
  %v233 = vld [vmem:[#allocation6] sm:$0x3]
  %vm234 = vcmask 261120
  %v236 = vsel %vm234, %v233, 0
  %238 = vmatprep.subr.mxu0 0.0
  %239 = vmatpush1.msra.mxu0 0.0
  %240 = vmatprep.subr.mxu0 0.0
  %241 = vmatpush1.msra.mxu0 0.0
  %242 = vmatprep.subr.mxu0 0.0
  %243 = vmatpush1.msra.mxu0 0.0
  %244 = vmatprep.subr.mxu0 0.0
  %245 = vmatpush1.msra.mxu0 0.0
  %246 = vmatprep.subr.mxu0 0.0
  %247 = vmatpush1.msra.mxu0 0.0
  %248 = vmatprep.subr.mxu0 0.0
  %249 = vmatpush1.msra.mxu0 0.0
  %250 = vmatprep.subr.mxu0 0.0
  %251 = vmatpush1.msra.mxu0 0.0
  %252 = vmatprep.subr.mxu0 0.0
  %253 = vmatpush1.msra.mxu0 0.0
  %254 = vmatprep.subr.mxu0 0.0
  %255 = vmatpush1.msra.mxu0 0.0
  %256 = vmatprep.subr.mxu0 0.0
  %257 = vmatpush1.msra.mxu0 0.0
  %258 = vmatprep.subr.mxu0 0.0
  %259 = vmatpush1.msra.mxu0 0.0
  %260 = vmatprep.subr.mxu0 0.0
  %261 = vmatpush1.msra.mxu0 0.0
  %262 = vmatprep.subr.mxu0 0.0
  %263 = vmatpush1.msra.mxu0 %v227
  %264 = vmatprep.subr.mxu0 0.0
  %265 = vmatpush1.msra.mxu0 %v226
  %266 = vmatprep.subr.mxu0 0.0
  %267 = vmatpush1.msra.mxu0 %v225
  %268 = vmatprep.subr.mxu0 0.0
  %269 = vmatpush1.msra.mxu0 %v224
  %270 = vmatprep.subr.mxu0 0.0
  %271 = vmatpush2.msra.mxu0 0.0
  %272 = vmatprep.subr.mxu0 0.0
  %273 = vmatpush2.msra.mxu0 0.0
  %274 = vmatprep.subr.mxu0 0.0
  %275 = vmatpush2.msra.mxu0 0.0
  %276 = vmatprep.subr.mxu0 0.0
  %277 = vmatpush2.msra.mxu0 0.0
  %278 = vmatprep.subr.mxu0 0.0
  %279 = vmatpush2.msra.mxu0 0.0
  %280 = vmatprep.subr.mxu0 0.0
  %281 = vmatpush2.msra.mxu0 0.0
  %282 = vmatprep.subr.mxu0 0.0
  %283 = vmatpush2.msra.mxu0 0.0
  %284 = vmatprep.subr.mxu0 0.0
  %285 = vmatpush2.msra.mxu0 0.0
  %286 = vmatprep.subr.mxu0 0.0
  %287 = vmatpush2.msra.mxu0 0.0
  %288 = vmatprep.subr.mxu0 0.0
  %289 = vmatpush2.msra.mxu0 0.0
  %290 = vmatprep.subr.mxu0 0.0
  %291 = vmatpush2.msra.mxu0 0.0
  %292 = vmatprep.subr.mxu0 0.0
  %293 = vmatpush2.msra.mxu0 0.0
  %294 = vmatprep.subr.mxu0 0.0
  %295 = vmatpush2.msra.mxu0 0.0
  %296 = vmatprep.subr.mxu0 0.0
  %297 = vmatpush2.msra.mxu0 0.0
  %298 = vmatprep.subr.mxu0 0.0
  %299 = vmatpush2.msra.mxu0 0.0
  %300 = vmatprep.subr.mxu0 0.0
  %301 = vmatpush2.msra.mxu0 0.0
  %302 = vmatprep.mubr.f32.mxu0 0.0
  %303 = vmatmul.mubr.f32.gmra.mxu0 %v236
  %v304 = vpop.f32.mrf.mxu0
  %v305 = vadd.f32 0.0, %v304
  %v306 = vpop.f32.mrf.mxu0
  %307 = vdwg.mxu0
  %v308 = vadd.f32 %v232, %v305
  %v309 = vld [vmem:[#allocation7] sm:$0x3]
  %v310 = vxor.u32 %v308, 2147483648
  %v311 = vmul.f32 %v310, 1.442695
  %v312 = vpow.pop %v311
  %v313 = vadd.f32 %v312, 1.0
  %v314 = vrcp.pop %v313
  %v315 = vmul.f32 1.0, %v314
  %v316 = vtanh.pop %v308
  %318 = vrot.lane.b32.xlu0 %v309, 32
  %v319 = vpop.permute.xlu0 %318
  %v321 = vmul.f32 %v315, %v319
  %323 = vrot.lane.b32.xlu0 %v316, 64
  %v324 = vpop.permute.xlu0 %323
  %v326 = vmul.f32 %v315, %v324
  %328 = vrot.lane.b32.xlu0 %v326, 32
  %v329 = vpop.permute.xlu0 %328
  %v331 = vadd.f32 %v321, %v329
  %v332 = vtanh.pop %v331
  %334 = vrot.lane.b32.xlu0 %v332, 64
  %v335 = vpop.permute.xlu0 %334
  %v337 = vmul.f32 %v315, %v335
  %339 = vrot.lane.b32.xlu0 %v337, 32
  %v340 = vpop.permute.xlu0 %339
  %342 = vst.msk [vmem:[#allocation6] sm:$0x3] %vm219, %v340
  %344 = vrot.lane.b32.xlu0 %v331, 96
  %v345 = vpop.permute.xlu0 %344
  %347 = vst.msk [vmem:[#allocation7] sm:$0x3] %vm219, %v345
  %348 = vst.msk [vmem:[#allocation4] sm:$0x3] %vm219, %v340
  %v349 = vld [vmem:[#allocation3 + $0xe] sm:$0x3]
  %v350 = vld [vmem:[#allocation8] sm:$0x3]
  %v352 = vsel %vm234, %v350, 0
  %354 = vmatprep.subr.mxu0 0.0
  %355 = vmatpush1.msra.mxu0 0.0
  %356 = vmatprep.subr.mxu0 0.0
  %357 = vmatpush1.msra.mxu0 0.0
  %358 = vmatprep.subr.mxu0 0.0
  %359 = vmatpush1.msra.mxu0 0.0
  %360 = vmatprep.subr.mxu0 0.0
  %361 = vmatpush1.msra.mxu0 0.0
  %362 = vmatprep.subr.mxu0 0.0
  %363 = vmatpush1.msra.mxu0 0.0
  %364 = vmatprep.subr.mxu0 0.0
  %365 = vmatpush1.msra.mxu0 0.0
  %366 = vmatprep.subr.mxu0 0.0
  %367 = vmatpush1.msra.mxu0 0.0
  %368 = vmatprep.subr.mxu0 0.0
  %369 = vmatpush1.msra.mxu0 0.0
  %370 = vmatprep.subr.mxu0 0.0
  %371 = vmatpush1.msra.mxu0 0.0
  %372 = vmatprep.subr.mxu0 0.0
  %373 = vmatpush1.msra.mxu0 0.0
  %374 = vmatprep.subr.mxu0 0.0
  %375 = vmatpush1.msra.mxu0 0.0
  %376 = vmatprep.subr.mxu0 0.0
  %377 = vmatpush1.msra.mxu0 0.0
  %378 = vmatprep.subr.mxu0 0.0
  %379 = vmatpush1.msra.mxu0 %v231
  %380 = vmatprep.subr.mxu0 0.0
  %381 = vmatpush1.msra.mxu0 %v230
  %382 = vmatprep.subr.mxu0 0.0
  %383 = vmatpush1.msra.mxu0 %v229
  %384 = vmatprep.subr.mxu0 0.0
  %385 = vmatpush1.msra.mxu0 %v228
  %386 = vmatprep.subr.mxu0 0.0
  %387 = vmatpush2.msra.mxu0 0.0
  %388 = vmatprep.subr.mxu0 0.0
  %389 = vmatpush2.msra.mxu0 0.0
  %390 = vmatprep.subr.mxu0 0.0
  %391 = vmatpush2.msra.mxu0 0.0
  %392 = vmatprep.subr.mxu0 0.0
  %393 = vmatpush2.msra.mxu0 0.0
  %394 = vmatprep.subr.mxu0 0.0
  %395 = vmatpush2.msra.mxu0 0.0
  %396 = vmatprep.subr.mxu0 0.0
  %397 = vmatpush2.msra.mxu0 0.0
  %398 = vmatprep.subr.mxu0 0.0
  %399 = vmatpush2.msra.mxu0 0.0
  %400 = vmatprep.subr.mxu0 0.0
  %401 = vmatpush2.msra.mxu0 0.0
  %402 = vmatprep.subr.mxu0 0.0
  %403 = vmatpush2.msra.mxu0 0.0
  %404 = vmatprep.subr.mxu0 0.0
  %405 = vmatpush2.msra.mxu0 0.0
  %406 = vmatprep.subr.mxu0 0.0
  %407 = vmatpush2.msra.mxu0 0.0
  %408 = vmatprep.subr.mxu0 0.0
  %409 = vmatpush2.msra.mxu0 0.0
  %410 = vmatprep.subr.mxu0 0.0
  %411 = vmatpush2.msra.mxu0 0.0
  %412 = vmatprep.subr.mxu0 0.0
  %413 = vmatpush2.msra.mxu0 0.0
  %414 = vmatprep.subr.mxu0 0.0
  %415 = vmatpush2.msra.mxu0 0.0
  %416 = vmatprep.subr.mxu0 0.0
  %417 = vmatpush2.msra.mxu0 0.0
  %418 = vmatprep.mubr.f32.mxu0 0.0
  %419 = vmatmul.mubr.f32.gmra.mxu0 %v352
  %v420 = vpop.f32.mrf.mxu0
  %v421 = vadd.f32 0.0, %v420
  %v422 = vpop.f32.mrf.mxu0
  %423 = vdwg.mxu0
  %v424 = vadd.f32 %v349, %v421
  %v425 = vld [vmem:[#allocation9] sm:$0x3]
  %v426 = vxor.u32 %v424, 2147483648
  %v427 = vmul.f32 %v426, 1.442695
  %v428 = vpow.pop %v427
  %v429 = vadd.f32 %v428, 1.0
  %v430 = vrcp.pop %v429
  %v431 = vmul.f32 1.0, %v430
  %v432 = vtanh.pop %v424
  %434 = vrot.lane.b32.xlu0 %v425, 32
  %v435 = vpop.permute.xlu0 %434
  %v437 = vmul.f32 %v431, %v435
  %439 = vrot.lane.b32.xlu0 %v432, 64
  %v440 = vpop.permute.xlu0 %439
  %v442 = vmul.f32 %v431, %v440
  %444 = vrot.lane.b32.xlu0 %v442, 32
  %v445 = vpop.permute.xlu0 %444
  %v447 = vadd.f32 %v437, %v445
  %v448 = vtanh.pop %v447
  %450 = vrot.lane.b32.xlu0 %v448, 64
  %v451 = vpop.permute.xlu0 %450
  %v453 = vmul.f32 %v431, %v451
  %455 = vrot.lane.b32.xlu0 %v453, 32
  %v456 = vpop.permute.xlu0 %455
  %458 = vst.msk [vmem:[#allocation8] sm:$0x3] %vm219, %v456
  %460 = vrot.lane.b32.xlu0 %v447, 96
  %v461 = vpop.permute.xlu0 %460
  %463 = vst.msk [vmem:[#allocation9] sm:$0x3] %vm219, %v461
  %464 = vst.msk [vmem:[#allocation5 + $0xe] sm:$0x3] %vm219, %v456
  %v465 = vld [vmem:[#allocation2 + $0x2] sm:$0x3]
  %v466 = vld [vmem:[#allocation6] sm:$0x3]
  %v468 = vsel %vm234, %v466, 0
  %470 = vmatprep.subr.mxu0 0.0
  %471 = vmatpush1.msra.mxu0 0.0
  %472 = vmatprep.subr.mxu0 0.0
  %473 = vmatpush1.msra.mxu0 0.0
  %474 = vmatprep.subr.mxu0 0.0
  %475 = vmatpush1.msra.mxu0 0.0
  %476 = vmatprep.subr.mxu0 0.0
  %477 = vmatpush1.msra.mxu0 0.0
  %478 = vmatprep.subr.mxu0 0.0
  %479 = vmatpush1.msra.mxu0 0.0
  %480 = vmatprep.subr.mxu0 0.0
  %481 = vmatpush1.msra.mxu0 0.0
  %482 = vmatprep.subr.mxu0 0.0
  %483 = vmatpush1.msra.mxu0 0.0
  %484 = vmatprep.subr.mxu0 0.0
  %485 = vmatpush1.msra.mxu0 0.0
  %486 = vmatprep.subr.mxu0 0.0
  %487 = vmatpush1.msra.mxu0 0.0
  %488 = vmatprep.subr.mxu0 0.0
  %489 = vmatpush1.msra.mxu0 0.0
  %490 = vmatprep.subr.mxu0 0.0
  %491 = vmatpush1.msra.mxu0 0.0
  %492 = vmatprep.subr.mxu0 0.0
  %493 = vmatpush1.msra.mxu0 0.0
  %494 = vmatprep.subr.mxu0 0.0
  %495 = vmatpush1.msra.mxu0 %v227
  %496 = vmatprep.subr.mxu0 0.0
  %497 = vmatpush1.msra.mxu0 %v226
  %498 = vmatprep.subr.mxu0 0.0
  %499 = vmatpush1.msra.mxu0 %v225
  %500 = vmatprep.subr.mxu0 0.0
  %501 = vmatpush1.msra.mxu0 %v224
  %502 = vmatprep.subr.mxu0 0.0
  %503 = vmatpush2.msra.mxu0 0.0
  %504 = vmatprep.subr.mxu0 0.0
  %505 = vmatpush2.msra.mxu0 0.0
  %506 = vmatprep.subr.mxu0 0.0
  %507 = vmatpush2.msra.mxu0 0.0
  %508 = vmatprep.subr.mxu0 0.0
  %509 = vmatpush2.msra.mxu0 0.0
  %510 = vmatprep.subr.mxu0 0.0
  %511 = vmatpush2.msra.mxu0 0.0
  %512 = vmatprep.subr.mxu0 0.0
  %513 = vmatpush2.msra.mxu0 0.0
  %514 = vmatprep.subr.mxu0 0.0
  %515 = vmatpush2.msra.mxu0 0.0
  %516 = vmatprep.subr.mxu0 0.0
  %517 = vmatpush2.msra.mxu0 0.0
  %518 = vmatprep.subr.mxu0 0.0
  %519 = vmatpush2.msra.mxu0 0.0
  %520 = vmatprep.subr.mxu0 0.0
  %521 = vmatpush2.msra.mxu0 0.0
  %522 = vmatprep.subr.mxu0 0.0
  %523 = vmatpush2.msra.mxu0 0.0
  %524 = vmatprep.subr.mxu0 0.0
  %525 = vmatpush2.msra.mxu0 0.0
  %526 = vmatprep.subr.mxu0 0.0
  %527 = vmatpush2.msra.mxu0 0.0
  %528 = vmatprep.subr.mxu0 0.0
  %529 = vmatpush2.msra.mxu0 0.0
  %530 = vmatprep.subr.mxu0 0.0
  %531 = vmatpush2.msra.mxu0 0.0
  %532 = vmatprep.subr.mxu0 0.0
  %533 = vmatpush2.msra.mxu0 0.0
  %534 = vmatprep.mubr.f32.mxu0 0.0
  %535 = vmatmul.mubr.f32.gmra.mxu0 %v468
  %v536 = vpop.f32.mrf.mxu0
  %v537 = vadd.f32 0.0, %v536
  %v538 = vpop.f32.mrf.mxu0
  %539 = vdwg.mxu0
  %v540 = vadd.f32 %v465, %v537
  %v541 = vld [vmem:[#allocation7] sm:$0x3]
  %v542 = vxor.u32 %v540, 2147483648
  %v543 = vmul.f32 %v542, 1.442695
  %v544 = vpow.pop %v543
  %v545 = vadd.f32 %v544, 1.0
  %v546 = vrcp.pop %v545
  %v547 = vmul.f32 1.0, %v546
  %v548 = vtanh.pop %v540
  %550 = vrot.lane.b32.xlu0 %v541, 32
  %v551 = vpop.permute.xlu0 %550
  %v553 = vmul.f32 %v547, %v551
  %555 = vrot.lane.b32.xlu0 %v548, 64
  %v556 = vpop.permute.xlu0 %555
  %v558 = vmul.f32 %v547, %v556
  %560 = vrot.lane.b32.xlu0 %v558, 32
  %v561 = vpop.permute.xlu0 %560
  %v563 = vadd.f32 %v553, %v561
  %v564 = vtanh.pop %v563
  %566 = vrot.lane.b32.xlu0 %v564, 64
  %v567 = vpop.permute.xlu0 %566
  %v569 = vmul.f32 %v547, %v567
  %571 = vrot.lane.b32.xlu0 %v569, 32
  %v572 = vpop.permute.xlu0 %571
  %574 = vst.msk [vmem:[#allocation6] sm:$0x3] %vm219, %v572
  %576 = vrot.lane.b32.xlu0 %v563, 96
  %v577 = vpop.permute.xlu0 %576
  %579 = vst.msk [vmem:[#allocation7] sm:$0x3] %vm219, %v577
  %580 = vst.msk [vmem:[#allocation4 + $0x2] sm:$0x3] %vm219, %v572
  %v581 = vld [vmem:[#allocation3 + $0xc] sm:$0x3]
  %v582 = vld [vmem:[#allocation8] sm:$0x3]
  %v584 = vsel %vm234, %v582, 0
  %586 = vmatprep.subr.mxu0 0.0
  %587 = vmatpush1.msra.mxu0 0.0
  %588 = vmatprep.subr.mxu0 0.0
  %589 = vmatpush1.msra.mxu0 0.0
  %590 = vmatprep.subr.mxu0 0.0
  %591 = vmatpush1.msra.mxu0 0.0
  %592 = vmatprep.subr.mxu0 0.0
  %593 = vmatpush1.msra.mxu0 0.0
  %594 = vmatprep.subr.mxu0 0.0
  %595 = vmatpush1.msra.mxu0 0.0
  %596 = vmatprep.subr.mxu0 0.0
  %597 = vmatpush1.msra.mxu0 0.0
  %598 = vmatprep.subr.mxu0 0.0
  %599 = vmatpush1.msra.mxu0 0.0
  %600 = vmatprep.subr.mxu0 0.0
  %601 = vmatpush1.msra.mxu0 0.0
  %602 = vmatprep.subr.mxu0 0.0
  %603 = vmatpush1.msra.mxu0 0.0
  %604 = vmatprep.subr.mxu0 0.0
  %605 = vmatpush1.msra.mxu0 0.0
  %606 = vmatprep.subr.mxu0 0.0
  %607 = vmatpush1.msra.mxu0 0.0
  %608 = vmatprep.subr.mxu0 0.0
  %609 = vmatpush1.msra.mxu0 0.0
  %610 = vmatprep.subr.mxu0 0.0
  %611 = vmatpush1.msra.mxu0 %v231
  %612 = vmatprep.subr.mxu0 0.0
  %613 = vmatpush1.msra.mxu0 %v230
  %614 = vmatprep.subr.mxu0 0.0
  %615 = vmatpush1.msra.mxu0 %v229
  %616 = vmatprep.subr.mxu0 0.0
  %617 = vmatpush1.msra.mxu0 %v228
  %618 = vmatprep.subr.mxu0 0.0
  %619 = vmatpush2.msra.mxu0 0.0
  %620 = vmatprep.subr.mxu0 0.0
  %621 = vmatpush2.msra.mxu0 0.0
  %622 = vmatprep.subr.mxu0 0.0
  %623 = vmatpush2.msra.mxu0 0.0
  %624 = vmatprep.subr.mxu0 0.0
  %625 = vmatpush2.msra.mxu0 0.0
  %626 = vmatprep.subr.mxu0 0.0
  %627 = vmatpush2.msra.mxu0 0.0
  %628 = vmatprep.subr.mxu0 0.0
  %629 = vmatpush2.msra.mxu0 0.0
  %630 = vmatprep.subr.mxu0 0.0
  %631 = vmatpush2.msra.mxu0 0.0
  %632 = vmatprep.subr.mxu0 0.0
  %633 = vmatpush2.msra.mxu0 0.0
  %634 = vmatprep.subr.mxu0 0.0
  %635 = vmatpush2.msra.mxu0 0.0
  %636 = vmatprep.subr.mxu0 0.0
  %637 = vmatpush2.msra.mxu0 0.0
  %638 = vmatprep.subr.mxu0 0.0
  %639 = vmatpush2.msra.mxu0 0.0
  %640 = vmatprep.subr.mxu0 0.0
  %641 = vmatpush2.msra.mxu0 0.0
  %642 = vmatprep.subr.mxu0 0.0
  %643 = vmatpush2.msra.mxu0 0.0
  %644 = vmatprep.subr.mxu0 0.0
  %645 = vmatpush2.msra.mxu0 0.0
  %646 = vmatprep.subr.mxu0 0.0
  %647 = vmatpush2.msra.mxu0 0.0
  %648 = vmatprep.subr.mxu0 0.0
  %649 = vmatpush2.msra.mxu0 0.0
  %650 = vmatprep.mubr.f32.mxu0 0.0
  %651 = vmatmul.mubr.f32.gmra.mxu0 %v584
  %v652 = vpop.f32.mrf.mxu0
  %v653 = vadd.f32 0.0, %v652
  %v654 = vpop.f32.mrf.mxu0
  %655 = vdwg.mxu0
  %v656 = vadd.f32 %v581, %v653
  %v657 = vld [vmem:[#allocation9] sm:$0x3]
  %v658 = vxor.u32 %v656, 2147483648
  %v659 = vmul.f32 %v658, 1.442695
  %v660 = vpow.pop %v659
  %v661 = vadd.f32 %v660, 1.0
  %v662 = vrcp.pop %v661
  %v663 = vmul.f32 1.0, %v662
  %v664 = vtanh.pop %v656
  %666 = vrot.lane.b32.xlu0 %v657, 32
  %v667 = vpop.permute.xlu0 %666
  %v669 = vmul.f32 %v663, %v667
  %671 = vrot.lane.b32.xlu0 %v664, 64
  %v672 = vpop.permute.xlu0 %671
  %v674 = vmul.f32 %v663, %v672
  %676 = vrot.lane.b32.xlu0 %v674, 32
  %v677 = vpop.permute.xlu0 %676
  %v679 = vadd.f32 %v669, %v677
  %v680 = vtanh.pop %v679
  %682 = vrot.lane.b32.xlu0 %v680, 64
  %v683 = vpop.permute.xlu0 %682
  %v685 = vmul.f32 %v663, %v683
  %687 = vrot.lane.b32.xlu0 %v685, 32
  %v688 = vpop.permute.xlu0 %687
  %690 = vst.msk [vmem:[#allocation8] sm:$0x3] %vm219, %v688
  %692 = vrot.lane.b32.xlu0 %v679, 96
  %v693 = vpop.permute.xlu0 %692
  %695 = vst.msk [vmem:[#allocation9] sm:$0x3] %vm219, %v693
  %696 = vst.msk [vmem:[#allocation5 + $0xc] sm:$0x3] %vm219, %v688
  %v697 = vld [vmem:[#allocation2 + $0x4] sm:$0x3]
  %v698 = vld [vmem:[#allocation6] sm:$0x3]
  %v700 = vsel %vm234, %v698, 0
  %702 = vmatprep.subr.mxu0 0.0
  %703 = vmatpush1.msra.mxu0 0.0
  %704 = vmatprep.subr.mxu0 0.0
  %705 = vmatpush1.msra.mxu0 0.0
  %706 = vmatprep.subr.mxu0 0.0
  %707 = vmatpush1.msra.mxu0 0.0
  %708 = vmatprep.subr.mxu0 0.0
  %709 = vmatpush1.msra.mxu0 0.0
  %710 = vmatprep.subr.mxu0 0.0
  %711 = vmatpush1.msra.mxu0 0.0
  %712 = vmatprep.subr.mxu0 0.0
  %713 = vmatpush1.msra.mxu0 0.0
  %714 = vmatprep.subr.mxu0 0.0
  %715 = vmatpush1.msra.mxu0 0.0
  %716 = vmatprep.subr.mxu0 0.0
  %717 = vmatpush1.msra.mxu0 0.0
  %718 = vmatprep.subr.mxu0 0.0
  %719 = vmatpush1.msra.mxu0 0.0
  %720 = vmatprep.subr.mxu0 0.0
  %721 = vmatpush1.msra.mxu0 0.0
  %722 = vmatprep.subr.mxu0 0.0
  %723 = vmatpush1.msra.mxu0 0.0
  %724 = vmatprep.subr.mxu0 0.0
  %725 = vmatpush1.msra.mxu0 0.0
  %726 = vmatprep.subr.mxu0 0.0
  %727 = vmatpush1.msra.mxu0 %v227
  %728 = vmatprep.subr.mxu0 0.0
  %729 = vmatpush1.msra.mxu0 %v226
  %730 = vmatprep.subr.mxu0 0.0
  %731 = vmatpush1.msra.mxu0 %v225
  %732 = vmatprep.subr.mxu0 0.0
  %733 = vmatpush1.msra.mxu0 %v224
  %734 = vmatprep.subr.mxu0 0.0
  %735 = vmatpush2.msra.mxu0 0.0
  %736 = vmatprep.subr.mxu0 0.0
  %737 = vmatpush2.msra.mxu0 0.0
  %738 = vmatprep.subr.mxu0 0.0
  %739 = vmatpush2.msra.mxu0 0.0
  %740 = vmatprep.subr.mxu0 0.0
  %741 = vmatpush2.msra.mxu0 0.0
  %742 = vmatprep.subr.mxu0 0.0
  %743 = vmatpush2.msra.mxu0 0.0
  %744 = vmatprep.subr.mxu0 0.0
  %745 = vmatpush2.msra.mxu0 0.0
  %746 = vmatprep.subr.mxu0 0.0
  %747 = vmatpush2.msra.mxu0 0.0
  %748 = vmatprep.subr.mxu0 0.0
  %749 = vmatpush2.msra.mxu0 0.0
  %750 = vmatprep.subr.mxu0 0.0
  %751 = vmatpush2.msra.mxu0 0.0
  %752 = vmatprep.subr.mxu0 0.0
  %753 = vmatpush2.msra.mxu0 0.0
  %754 = vmatprep.subr.mxu0 0.0
  %755 = vmatpush2.msra.mxu0 0.0
  %756 = vmatprep.subr.mxu0 0.0
  %757 = vmatpush2.msra.mxu0 0.0
  %758 = vmatprep.subr.mxu0 0.0
  %759 = vmatpush2.msra.mxu0 0.0
  %760 = vmatprep.subr.mxu0 0.0
  %761 = vmatpush2.msra.mxu0 0.0
  %762 = vmatprep.subr.mxu0 0.0
  %763 = vmatpush2.msra.mxu0 0.0
  %764 = vmatprep.subr.mxu0 0.0
  %765 = vmatpush2.msra.mxu0 0.0
  %766 = vmatprep.mubr.f32.mxu0 0.0
  %767 = vmatmul.mubr.f32.gmra.mxu0 %v700
  %v768 = vpop.f32.mrf.mxu0
  %v769 = vadd.f32 0.0, %v768
  %v770 = vpop.f32.mrf.mxu0
  %771 = vdwg.mxu0
  %v772 = vadd.f32 %v697, %v769
  %v773 = vld [vmem:[#allocation7] sm:$0x3]
  %v774 = vxor.u32 %v772, 2147483648
  %v775 = vmul.f32 %v774, 1.442695
  %v776 = vpow.pop %v775
  %v777 = vadd.f32 %v776, 1.0
  %v778 = vrcp.pop %v777
  %v779 = vmul.f32 1.0, %v778
  %v780 = vtanh.pop %v772
  %782 = vrot.lane.b32.xlu0 %v773, 32
  %v783 = vpop.permute.xlu0 %782
  %v785 = vmul.f32 %v779, %v783
  %787 = vrot.lane.b32.xlu0 %v780, 64
  %v788 = vpop.permute.xlu0 %787
  %v790 = vmul.f32 %v779, %v788
  %792 = vrot.lane.b32.xlu0 %v790, 32
  %v793 = vpop.permute.xlu0 %792
  %v795 = vadd.f32 %v785, %v793
  %v796 = vtanh.pop %v795
  %798 = vrot.lane.b32.xlu0 %v796, 64
  %v799 = vpop.permute.xlu0 %798
  %v801 = vmul.f32 %v779, %v799
  %803 = vrot.lane.b32.xlu0 %v801, 32
  %v804 = vpop.permute.xlu0 %803
  %806 = vst.msk [vmem:[#allocation6] sm:$0x3] %vm219, %v804
  %808 = vrot.lane.b32.xlu0 %v795, 96
  %v809 = vpop.permute.xlu0 %808
  %811 = vst.msk [vmem:[#allocation7] sm:$0x3] %vm219, %v809
  %812 = vst.msk [vmem:[#allocation4 + $0x4] sm:$0x3] %vm219, %v804
  %v813 = vld [vmem:[#allocation3 + $0xa] sm:$0x3]
  %v814 = vld [vmem:[#allocation8] sm:$0x3]
  %v816 = vsel %vm234, %v814, 0
  %818 = vmatprep.subr.mxu0 0.0
  %819 = vmatpush1.msra.mxu0 0.0
  %820 = vmatprep.subr.mxu0 0.0
  %821 = vmatpush1.msra.mxu0 0.0
  %822 = vmatprep.subr.mxu0 0.0
  %823 = vmatpush1.msra.mxu0 0.0
  %824 = vmatprep.subr.mxu0 0.0
  %825 = vmatpush1.msra.mxu0 0.0
  %826 = vmatprep.subr.mxu0 0.0
  %827 = vmatpush1.msra.mxu0 0.0
  %828 = vmatprep.subr.mxu0 0.0
  %829 = vmatpush1.msra.mxu0 0.0
  %830 = vmatprep.subr.mxu0 0.0
  %831 = vmatpush1.msra.mxu0 0.0
  %832 = vmatprep.subr.mxu0 0.0
  %833 = vmatpush1.msra.mxu0 0.0
  %834 = vmatprep.subr.mxu0 0.0
  %835 = vmatpush1.msra.mxu0 0.0
  %836 = vmatprep.subr.mxu0 0.0
  %837 = vmatpush1.msra.mxu0 0.0
  %838 = vmatprep.subr.mxu0 0.0
  %839 = vmatpush1.msra.mxu0 0.0
  %840 = vmatprep.subr.mxu0 0.0
  %841 = vmatpush1.msra.mxu0 0.0
  %842 = vmatprep.subr.mxu0 0.0
  %843 = vmatpush1.msra.mxu0 %v231
  %844 = vmatprep.subr.mxu0 0.0
  %845 = vmatpush1.msra.mxu0 %v230
  %846 = vmatprep.subr.mxu0 0.0
  %847 = vmatpush1.msra.mxu0 %v229
  %848 = vmatprep.subr.mxu0 0.0
  %849 = vmatpush1.msra.mxu0 %v228
  %850 = vmatprep.subr.mxu0 0.0
  %851 = vmatpush2.msra.mxu0 0.0
  %852 = vmatprep.subr.mxu0 0.0
  %853 = vmatpush2.msra.mxu0 0.0
  %854 = vmatprep.subr.mxu0 0.0
  %855 = vmatpush2.msra.mxu0 0.0
  %856 = vmatprep.subr.mxu0 0.0
  %857 = vmatpush2.msra.mxu0 0.0
  %858 = vmatprep.subr.mxu0 0.0
  %859 = vmatpush2.msra.mxu0 0.0
  %860 = vmatprep.subr.mxu0 0.0
  %861 = vmatpush2.msra.mxu0 0.0
  %862 = vmatprep.subr.mxu0 0.0
  %863 = vmatpush2.msra.mxu0 0.0
  %864 = vmatprep.subr.mxu0 0.0
  %865 = vmatpush2.msra.mxu0 0.0
  %866 = vmatprep.subr.mxu0 0.0
  %867 = vmatpush2.msra.mxu0 0.0
  %868 = vmatprep.subr.mxu0 0.0
  %869 = vmatpush2.msra.mxu0 0.0
  %870 = vmatprep.subr.mxu0 0.0
  %871 = vmatpush2.msra.mxu0 0.0
  %872 = vmatprep.subr.mxu0 0.0
  %873 = vmatpush2.msra.mxu0 0.0
  %874 = vmatprep.subr.mxu0 0.0
  %875 = vmatpush2.msra.mxu0 0.0
  %876 = vmatprep.subr.mxu0 0.0
  %877 = vmatpush2.msra.mxu0 0.0
  %878 = vmatprep.subr.mxu0 0.0
  %879 = vmatpush2.msra.mxu0 0.0
  %880 = vmatprep.subr.mxu0 0.0
  %881 = vmatpush2.msra.mxu0 0.0
  %882 = vmatprep.mubr.f32.mxu0 0.0
  %883 = vmatmul.mubr.f32.gmra.mxu0 %v816
  %v884 = vpop.f32.mrf.mxu0
  %v885 = vadd.f32 0.0, %v884
  %v886 = vpop.f32.mrf.mxu0
  %887 = vdwg.mxu0
  %v888 = vadd.f32 %v813, %v885
  %v889 = vld [vmem:[#allocation9] sm:$0x3]
  %v890 = vxor.u32 %v888, 2147483648
  %v891 = vmul.f32 %v890, 1.442695
  %v892 = vpow.pop %v891
  %v893 = vadd.f32 %v892, 1.0
  %v894 = vrcp.pop %v893
  %v895 = vmul.f32 1.0, %v894
  %v896 = vtanh.pop %v888
  %898 = vrot.lane.b32.xlu0 %v889, 32
  %v899 = vpop.permute.xlu0 %898
  %v901 = vmul.f32 %v895, %v899
  %903 = vrot.lane.b32.xlu0 %v896, 64
  %v904 = vpop.permute.xlu0 %903
  %v906 = vmul.f32 %v895, %v904
  %908 = vrot.lane.b32.xlu0 %v906, 32
  %v909 = vpop.permute.xlu0 %908
  %v911 = vadd.f32 %v901, %v909
  %v912 = vtanh.pop %v911
  %914 = vrot.lane.b32.xlu0 %v912, 64
  %v915 = vpop.permute.xlu0 %914
  %v917 = vmul.f32 %v895, %v915
  %919 = vrot.lane.b32.xlu0 %v917, 32
  %v920 = vpop.permute.xlu0 %919
  %922 = vst.msk [vmem:[#allocation8] sm:$0x3] %vm219, %v920
  %924 = vrot.lane.b32.xlu0 %v911, 96
  %v925 = vpop.permute.xlu0 %924
  %927 = vst.msk [vmem:[#allocation9] sm:$0x3] %vm219, %v925
  %928 = vst.msk [vmem:[#allocation5 + $0xa] sm:$0x3] %vm219, %v920
  %v929 = vld [vmem:[#allocation2 + $0x6] sm:$0x3]
  %v930 = vld [vmem:[#allocation6] sm:$0x3]
  %v932 = vsel %vm234, %v930, 0
  %934 = vmatprep.subr.mxu0 0.0
  %935 = vmatpush1.msra.mxu0 0.0
  %936 = vmatprep.subr.mxu0 0.0
  %937 = vmatpush1.msra.mxu0 0.0
  %938 = vmatprep.subr.mxu0 0.0
  %939 = vmatpush1.msra.mxu0 0.0
  %940 = vmatprep.subr.mxu0 0.0
  %941 = vmatpush1.msra.mxu0 0.0
  %942 = vmatprep.subr.mxu0 0.0
  %943 = vmatpush1.msra.mxu0 0.0
  %944 = vmatprep.subr.mxu0 0.0
  %945 = vmatpush1.msra.mxu0 0.0
  %946 = vmatprep.subr.mxu0 0.0
  %947 = vmatpush1.msra.mxu0 0.0
  %948 = vmatprep.subr.mxu0 0.0
  %949 = vmatpush1.msra.mxu0 0.0
  %950 = vmatprep.subr.mxu0 0.0
  %951 = vmatpush1.msra.mxu0 0.0
  %952 = vmatprep.subr.mxu0 0.0
  %953 = vmatpush1.msra.mxu0 0.0
  %954 = vmatprep.subr.mxu0 0.0
  %955 = vmatpush1.msra.mxu0 0.0
  %956 = vmatprep.subr.mxu0 0.0
  %957 = vmatpush1.msra.mxu0 0.0
  %958 = vmatprep.subr.mxu0 0.0
  %959 = vmatpush1.msra.mxu0 %v227
  %960 = vmatprep.subr.mxu0 0.0
  %961 = vmatpush1.msra.mxu0 %v226
  %962 = vmatprep.subr.mxu0 0.0
  %963 = vmatpush1.msra.mxu0 %v225
  %964 = vmatprep.subr.mxu0 0.0
  %965 = vmatpush1.msra.mxu0 %v224
  %966 = vmatprep.subr.mxu0 0.0
  %967 = vmatpush2.msra.mxu0 0.0
  %968 = vmatprep.subr.mxu0 0.0
  %969 = vmatpush2.msra.mxu0 0.0
  %970 = vmatprep.subr.mxu0 0.0
  %971 = vmatpush2.msra.mxu0 0.0
  %972 = vmatprep.subr.mxu0 0.0
  %973 = vmatpush2.msra.mxu0 0.0
  %974 = vmatprep.subr.mxu0 0.0
  %975 = vmatpush2.msra.mxu0 0.0
  %976 = vmatprep.subr.mxu0 0.0
  %977 = vmatpush2.msra.mxu0 0.0
  %978 = vmatprep.subr.mxu0 0.0
  %979 = vmatpush2.msra.mxu0 0.0
  %980 = vmatprep.subr.mxu0 0.0
  %981 = vmatpush2.msra.mxu0 0.0
  %982 = vmatprep.subr.mxu0 0.0
  %983 = vmatpush2.msra.mxu0 0.0
  %984 = vmatprep.subr.mxu0 0.0
  %985 = vmatpush2.msra.mxu0 0.0
  %986 = vmatprep.subr.mxu0 0.0
  %987 = vmatpush2.msra.mxu0 0.0
  %988 = vmatprep.subr.mxu0 0.0
  %989 = vmatpush2.msra.mxu0 0.0
  %990 = vmatprep.subr.mxu0 0.0
  %991 = vmatpush2.msra.mxu0 0.0
  %992 = vmatprep.subr.mxu0 0.0
  %993 = vmatpush2.msra.mxu0 0.0
  %994 = vmatprep.subr.mxu0 0.0
  %995 = vmatpush2.msra.mxu0 0.0
  %996 = vmatprep.subr.mxu0 0.0
  %997 = vmatpush2.msra.mxu0 0.0
  %998 = vmatprep.mubr.f32.mxu0 0.0
  %999 = vmatmul.mubr.f32.gmra.mxu0 %v932
  %v1000 = vpop.f32.mrf.mxu0
  %v1001 = vadd.f32 0.0, %v1000
  %v1002 = vpop.f32.mrf.mxu0
  %1003 = vdwg.mxu0
  %v1004 = vadd.f32 %v929, %v1001
  %v1005 = vld [vmem:[#allocation7] sm:$0x3]
  %v1006 = vxor.u32 %v1004, 2147483648
  %v1007 = vmul.f32 %v1006, 1.442695
  %v1008 = vpow.pop %v1007
  %v1009 = vadd.f32 %v1008, 1.0
  %v1010 = vrcp.pop %v1009
  %v1011 = vmul.f32 1.0, %v1010
  %v1012 = vtanh.pop %v1004
  %1014 = vrot.lane.b32.xlu0 %v1005, 32
  %v1015 = vpop.permute.xlu0 %1014
  %v1017 = vmul.f32 %v1011, %v1015
  %1019 = vrot.lane.b32.xlu0 %v1012, 64
  %v1020 = vpop.permute.xlu0 %1019
  %v1022 = vmul.f32 %v1011, %v1020
  %1024 = vrot.lane.b32.xlu0 %v1022, 32
  %v1025 = vpop.permute.xlu0 %1024
  %v1027 = vadd.f32 %v1017, %v1025
  %v1028 = vtanh.pop %v1027
  %1030 = vrot.lane.b32.xlu0 %v1028, 64
  %v1031 = vpop.permute.xlu0 %1030
  %v1033 = vmul.f32 %v1011, %v1031
  %1035 = vrot.lane.b32.xlu0 %v1033, 32
  %v1036 = vpop.permute.xlu0 %1035
  %1038 = vst.msk [vmem:[#allocation6] sm:$0x3] %vm219, %v1036
  %1040 = vrot.lane.b32.xlu0 %v1027, 96
  %v1041 = vpop.permute.xlu0 %1040
  %1043 = vst.msk [vmem:[#allocation7] sm:$0x3] %vm219, %v1041
  %1044 = vst.msk [vmem:[#allocation4 + $0x6] sm:$0x3] %vm219, %v1036
  %v1045 = vld [vmem:[#allocation3 + $0x8] sm:$0x3]
  %v1046 = vld [vmem:[#allocation8] sm:$0x3]
  %v1048 = vsel %vm234, %v1046, 0
  %1050 = vmatprep.subr.mxu0 0.0
  %1051 = vmatpush1.msra.mxu0 0.0
  %1052 = vmatprep.subr.mxu0 0.0
  %1053 = vmatpush1.msra.mxu0 0.0
  %1054 = vmatprep.subr.mxu0 0.0
  %1055 = vmatpush1.msra.mxu0 0.0
  %1056 = vmatprep.subr.mxu0 0.0
  %1057 = vmatpush1.msra.mxu0 0.0
  %1058 = vmatprep.subr.mxu0 0.0
  %1059 = vmatpush1.msra.mxu0 0.0
  %1060 = vmatprep.subr.mxu0 0.0
  %1061 = vmatpush1.msra.mxu0 0.0
  %1062 = vmatprep.subr.mxu0 0.0
  %1063 = vmatpush1.msra.mxu0 0.0
  %1064 = vmatprep.subr.mxu0 0.0
  %1065 = vmatpush1.msra.mxu0 0.0
  %1066 = vmatprep.subr.mxu0 0.0
  %1067 = vmatpush1.msra.mxu0 0.0
  %1068 = vmatprep.subr.mxu0 0.0
  %1069 = vmatpush1.msra.mxu0 0.0
  %1070 = vmatprep.subr.mxu0 0.0
  %1071 = vmatpush1.msra.mxu0 0.0
  %1072 = vmatprep.subr.mxu0 0.0
  %1073 = vmatpush1.msra.mxu0 0.0
  %1074 = vmatprep.subr.mxu0 0.0
  %1075 = vmatpush1.msra.mxu0 %v231
  %1076 = vmatprep.subr.mxu0 0.0
  %1077 = vmatpush1.msra.mxu0 %v230
  %1078 = vmatprep.subr.mxu0 0.0
  %1079 = vmatpush1.msra.mxu0 %v229
  %1080 = vmatprep.subr.mxu0 0.0
  %1081 = vmatpush1.msra.mxu0 %v228
  %1082 = vmatprep.subr.mxu0 0.0
  %1083 = vmatpush2.msra.mxu0 0.0
  %1084 = vmatprep.subr.mxu0 0.0
  %1085 = vmatpush2.msra.mxu0 0.0
  %1086 = vmatprep.subr.mxu0 0.0
  %1087 = vmatpush2.msra.mxu0 0.0
  %1088 = vmatprep.subr.mxu0 0.0
  %1089 = vmatpush2.msra.mxu0 0.0
  %1090 = vmatprep.subr.mxu0 0.0
  %1091 = vmatpush2.msra.mxu0 0.0
  %1092 = vmatprep.subr.mxu0 0.0
  %1093 = vmatpush2.msra.mxu0 0.0
  %1094 = vmatprep.subr.mxu0 0.0
  %1095 = vmatpush2.msra.mxu0 0.0
  %1096 = vmatprep.subr.mxu0 0.0
  %1097 = vmatpush2.msra.mxu0 0.0
  %1098 = vmatprep.subr.mxu0 0.0
  %1099 = vmatpush2.msra.mxu0 0.0
  %1100 = vmatprep.subr.mxu0 0.0
  %1101 = vmatpush2.msra.mxu0 0.0
  %1102 = vmatprep.subr.mxu0 0.0
  %1103 = vmatpush2.msra.mxu0 0.0
  %1104 = vmatprep.subr.mxu0 0.0
  %1105 = vmatpush2.msra.mxu0 0.0
  %1106 = vmatprep.subr.mxu0 0.0
  %1107 = vmatpush2.msra.mxu0 0.0
  %1108 = vmatprep.subr.mxu0 0.0
  %1109 = vmatpush2.msra.mxu0 0.0
  %1110 = vmatprep.subr.mxu0 0.0
  %1111 = vmatpush2.msra.mxu0 0.0
  %1112 = vmatprep.subr.mxu0 0.0
  %1113 = vmatpush2.msra.mxu0 0.0
  %1114 = vmatprep.mubr.f32.mxu0 0.0
  %1115 = vmatmul.mubr.f32.gmra.mxu0 %v1048
  %v1116 = vpop.f32.mrf.mxu0
  %v1117 = vadd.f32 0.0, %v1116
  %v1118 = vpop.f32.mrf.mxu0
  %1119 = vdwg.mxu0
  %v1120 = vadd.f32 %v1045, %v1117
  %v1121 = vld [vmem:[#allocation9] sm:$0x3]
  %v1122 = vxor.u32 %v1120, 2147483648
  %v1123 = vmul.f32 %v1122, 1.442695
  %v1124 = vpow.pop %v1123
  %v1125 = vadd.f32 %v1124, 1.0
  %v1126 = vrcp.pop %v1125
  %v1127 = vmul.f32 1.0, %v1126
  %v1128 = vtanh.pop %v1120
  %1130 = vrot.lane.b32.xlu0 %v1121, 32
  %v1131 = vpop.permute.xlu0 %1130
  %v1133 = vmul.f32 %v1127, %v1131
  %1135 = vrot.lane.b32.xlu0 %v1128, 64
  %v1136 = vpop.permute.xlu0 %1135
  %v1138 = vmul.f32 %v1127, %v1136
  %1140 = vrot.lane.b32.xlu0 %v1138, 32
  %v1141 = vpop.permute.xlu0 %1140
  %v1143 = vadd.f32 %v1133, %v1141
  %v1144 = vtanh.pop %v1143
  %1146 = vrot.lane.b32.xlu0 %v1144, 64
  %v1147 = vpop.permute.xlu0 %1146
  %v1149 = vmul.f32 %v1127, %v1147
  %1151 = vrot.lane.b32.xlu0 %v1149, 32
  %v1152 = vpop.permute.xlu0 %1151
  %1154 = vst.msk [vmem:[#allocation8] sm:$0x3] %vm219, %v1152
  %1156 = vrot.lane.b32.xlu0 %v1143, 96
  %v1157 = vpop.permute.xlu0 %1156
  %1159 = vst.msk [vmem:[#allocation9] sm:$0x3] %vm219, %v1157
  %1160 = vst.msk [vmem:[#allocation5 + $0x8] sm:$0x3] %vm219, %v1152
  %v1161 = vld [vmem:[#allocation2 + $0x8] sm:$0x3]
  %v1162 = vld [vmem:[#allocation6] sm:$0x3]
  %v1164 = vsel %vm234, %v1162, 0
  %1166 = vmatprep.subr.mxu0 0.0
  %1167 = vmatpush1.msra.mxu0 0.0
  %1168 = vmatprep.subr.mxu0 0.0
  %1169 = vmatpush1.msra.mxu0 0.0
  %1170 = vmatprep.subr.mxu0 0.0
  %1171 = vmatpush1.msra.mxu0 0.0
  %1172 = vmatprep.subr.mxu0 0.0
  %1173 = vmatpush1.msra.mxu0 0.0
  %1174 = vmatprep.subr.mxu0 0.0
  %1175 = vmatpush1.msra.mxu0 0.0
  %1176 = vmatprep.subr.mxu0 0.0
  %1177 = vmatpush1.msra.mxu0 0.0
  %1178 = vmatprep.subr.mxu0 0.0
  %1179 = vmatpush1.msra.mxu0 0.0
  %1180 = vmatprep.subr.mxu0 0.0
  %1181 = vmatpush1.msra.mxu0 0.0
  %1182 = vmatprep.subr.mxu0 0.0
  %1183 = vmatpush1.msra.mxu0 0.0
  %1184 = vmatprep.subr.mxu0 0.0
  %1185 = vmatpush1.msra.mxu0 0.0
  %1186 = vmatprep.subr.mxu0 0.0
  %1187 = vmatpush1.msra.mxu0 0.0
  %1188 = vmatprep.subr.mxu0 0.0
  %1189 = vmatpush1.msra.mxu0 0.0
  %1190 = vmatprep.subr.mxu0 0.0
  %1191 = vmatpush1.msra.mxu0 %v227
  %1192 = vmatprep.subr.mxu0 0.0
  %1193 = vmatpush1.msra.mxu0 %v226
  %1194 = vmatprep.subr.mxu0 0.0
  %1195 = vmatpush1.msra.mxu0 %v225
  %1196 = vmatprep.subr.mxu0 0.0
  %1197 = vmatpush1.msra.mxu0 %v224
  %1198 = vmatprep.subr.mxu0 0.0
  %1199 = vmatpush2.msra.mxu0 0.0
  %1200 = vmatprep.subr.mxu0 0.0
  %1201 = vmatpush2.msra.mxu0 0.0
  %1202 = vmatprep.subr.mxu0 0.0
  %1203 = vmatpush2.msra.mxu0 0.0
  %1204 = vmatprep.subr.mxu0 0.0
  %1205 = vmatpush2.msra.mxu0 0.0
  %1206 = vmatprep.subr.mxu0 0.0
  %1207 = vmatpush2.msra.mxu0 0.0
  %1208 = vmatprep.subr.mxu0 0.0
  %1209 = vmatpush2.msra.mxu0 0.0
  %1210 = vmatprep.subr.mxu0 0.0
  %1211 = vmatpush2.msra.mxu0 0.0
  %1212 = vmatprep.subr.mxu0 0.0
  %1213 = vmatpush2.msra.mxu0 0.0
  %1214 = vmatprep.subr.mxu0 0.0
  %1215 = vmatpush2.msra.mxu0 0.0
  %1216 = vmatprep.subr.mxu0 0.0
  %1217 = vmatpush2.msra.mxu0 0.0
  %1218 = vmatprep.subr.mxu0 0.0
  %1219 = vmatpush2.msra.mxu0 0.0
  %1220 = vmatprep.subr.mxu0 0.0
  %1221 = vmatpush2.msra.mxu0 0.0
  %1222 = vmatprep.subr.mxu0 0.0
  %1223 = vmatpush2.msra.mxu0 0.0
  %1224 = vmatprep.subr.mxu0 0.0
  %1225 = vmatpush2.msra.mxu0 0.0
  %1226 = vmatprep.subr.mxu0 0.0
  %1227 = vmatpush2.msra.mxu0 0.0
  %1228 = vmatprep.subr.mxu0 0.0
  %1229 = vmatpush2.msra.mxu0 0.0
  %1230 = vmatprep.mubr.f32.mxu0 0.0
  %1231 = vmatmul.mubr.f32.gmra.mxu0 %v1164
  %v1232 = vpop.f32.mrf.mxu0
  %v1233 = vadd.f32 0.0, %v1232
  %v1234 = vpop.f32.mrf.mxu0
  %1235 = vdwg.mxu0
  %v1236 = vadd.f32 %v1161, %v1233
  %v1237 = vld [vmem:[#allocation7] sm:$0x3]
  %v1238 = vxor.u32 %v1236, 2147483648
  %v1239 = vmul.f32 %v1238, 1.442695
  %v1240 = vpow.pop %v1239
  %v1241 = vadd.f32 %v1240, 1.0
  %v1242 = vrcp.pop %v1241
  %v1243 = vmul.f32 1.0, %v1242
  %v1244 = vtanh.pop %v1236
  %1246 = vrot.lane.b32.xlu0 %v1237, 32
  %v1247 = vpop.permute.xlu0 %1246
  %v1249 = vmul.f32 %v1243, %v1247
  %1251 = vrot.lane.b32.xlu0 %v1244, 64
  %v1252 = vpop.permute.xlu0 %1251
  %v1254 = vmul.f32 %v1243, %v1252
  %1256 = vrot.lane.b32.xlu0 %v1254, 32
  %v1257 = vpop.permute.xlu0 %1256
  %v1259 = vadd.f32 %v1249, %v1257
  %v1260 = vtanh.pop %v1259
  %1262 = vrot.lane.b32.xlu0 %v1260, 64
  %v1263 = vpop.permute.xlu0 %1262
  %v1265 = vmul.f32 %v1243, %v1263
  %1267 = vrot.lane.b32.xlu0 %v1265, 32
  %v1268 = vpop.permute.xlu0 %1267
  %1270 = vst.msk [vmem:[#allocation6] sm:$0x3] %vm219, %v1268
  %1272 = vrot.lane.b32.xlu0 %v1259, 96
  %v1273 = vpop.permute.xlu0 %1272
  %1275 = vst.msk [vmem:[#allocation7] sm:$0x3] %vm219, %v1273
  %1276 = vst.msk [vmem:[#allocation4 + $0x8] sm:$0x3] %vm219, %v1268
  %v1277 = vld [vmem:[#allocation3 + $0x6] sm:$0x3]
  %v1278 = vld [vmem:[#allocation8] sm:$0x3]
  %v1280 = vsel %vm234, %v1278, 0
  %1282 = vmatprep.subr.mxu0 0.0
  %1283 = vmatpush1.msra.mxu0 0.0
  %1284 = vmatprep.subr.mxu0 0.0
  %1285 = vmatpush1.msra.mxu0 0.0
  %1286 = vmatprep.subr.mxu0 0.0
  %1287 = vmatpush1.msra.mxu0 0.0
  %1288 = vmatprep.subr.mxu0 0.0
  %1289 = vmatpush1.msra.mxu0 0.0
  %1290 = vmatprep.subr.mxu0 0.0
  %1291 = vmatpush1.msra.mxu0 0.0
  %1292 = vmatprep.subr.mxu0 0.0
  %1293 = vmatpush1.msra.mxu0 0.0
  %1294 = vmatprep.subr.mxu0 0.0
  %1295 = vmatpush1.msra.mxu0 0.0
  %1296 = vmatprep.subr.mxu0 0.0
  %1297 = vmatpush1.msra.mxu0 0.0
  %1298 = vmatprep.subr.mxu0 0.0
  %1299 = vmatpush1.msra.mxu0 0.0
  %1300 = vmatprep.subr.mxu0 0.0
  %1301 = vmatpush1.msra.mxu0 0.0
  %1302 = vmatprep.subr.mxu0 0.0
  %1303 = vmatpush1.msra.mxu0 0.0
  %1304 = vmatprep.subr.mxu0 0.0
  %1305 = vmatpush1.msra.mxu0 0.0
  %1306 = vmatprep.subr.mxu0 0.0
  %1307 = vmatpush1.msra.mxu0 %v231
  %1308 = vmatprep.subr.mxu0 0.0
  %1309 = vmatpush1.msra.mxu0 %v230
  %1310 = vmatprep.subr.mxu0 0.0
  %1311 = vmatpush1.msra.mxu0 %v229
  %1312 = vmatprep.subr.mxu0 0.0
  %1313 = vmatpush1.msra.mxu0 %v228
  %1314 = vmatprep.subr.mxu0 0.0
  %1315 = vmatpush2.msra.mxu0 0.0
  %1316 = vmatprep.subr.mxu0 0.0
  %1317 = vmatpush2.msra.mxu0 0.0
  %1318 = vmatprep.subr.mxu0 0.0
  %1319 = vmatpush2.msra.mxu0 0.0
  %1320 = vmatprep.subr.mxu0 0.0
  %1321 = vmatpush2.msra.mxu0 0.0
  %1322 = vmatprep.subr.mxu0 0.0
  %1323 = vmatpush2.msra.mxu0 0.0
  %1324 = vmatprep.subr.mxu0 0.0
  %1325 = vmatpush2.msra.mxu0 0.0
  %1326 = vmatprep.subr.mxu0 0.0
  %1327 = vmatpush2.msra.mxu0 0.0
  %1328 = vmatprep.subr.mxu0 0.0
  %1329 = vmatpush2.msra.mxu0 0.0
  %1330 = vmatprep.subr.mxu0 0.0
  %1331 = vmatpush2.msra.mxu0 0.0
  %1332 = vmatprep.subr.mxu0 0.0
  %1333 = vmatpush2.msra.mxu0 0.0
  %1334 = vmatprep.subr.mxu0 0.0
  %1335 = vmatpush2.msra.mxu0 0.0
  %1336 = vmatprep.subr.mxu0 0.0
  %1337 = vmatpush2.msra.mxu0 0.0
  %1338 = vmatprep.subr.mxu0 0.0
  %1339 = vmatpush2.msra.mxu0 0.0
  %1340 = vmatprep.subr.mxu0 0.0
  %1341 = vmatpush2.msra.mxu0 0.0
  %1342 = vmatprep.subr.mxu0 0.0
  %1343 = vmatpush2.msra.mxu0 0.0
  %1344 = vmatprep.subr.mxu0 0.0
  %1345 = vmatpush2.msra.mxu0 0.0
  %1346 = vmatprep.mubr.f32.mxu0 0.0
  %1347 = vmatmul.mubr.f32.gmra.mxu0 %v1280
  %v1348 = vpop.f32.mrf.mxu0
  %v1349 = vadd.f32 0.0, %v1348
  %v1350 = vpop.f32.mrf.mxu0
  %1351 = vdwg.mxu0
  %v1352 = vadd.f32 %v1277, %v1349
  %v1353 = vld [vmem:[#allocation9] sm:$0x3]
  %v1354 = vxor.u32 %v1352, 2147483648
  %v1355 = vmul.f32 %v1354, 1.442695
  %v1356 = vpow.pop %v1355
  %v1357 = vadd.f32 %v1356, 1.0
  %v1358 = vrcp.pop %v1357
  %v1359 = vmul.f32 1.0, %v1358
  %v1360 = vtanh.pop %v1352
  %1362 = vrot.lane.b32.xlu0 %v1353, 32
  %v1363 = vpop.permute.xlu0 %1362
  %v1365 = vmul.f32 %v1359, %v1363
  %1367 = vrot.lane.b32.xlu0 %v1360, 64
  %v1368 = vpop.permute.xlu0 %1367
  %v1370 = vmul.f32 %v1359, %v1368
  %1372 = vrot.lane.b32.xlu0 %v1370, 32
  %v1373 = vpop.permute.xlu0 %1372
  %v1375 = vadd.f32 %v1365, %v1373
  %v1376 = vtanh.pop %v1375
  %1378 = vrot.lane.b32.xlu0 %v1376, 64
  %v1379 = vpop.permute.xlu0 %1378
  %v1381 = vmul.f32 %v1359, %v1379
  %1383 = vrot.lane.b32.xlu0 %v1381, 32
  %v1384 = vpop.permute.xlu0 %1383
  %1386 = vst.msk [vmem:[#allocation8] sm:$0x3] %vm219, %v1384
  %1388 = vrot.lane.b32.xlu0 %v1375, 96
  %v1389 = vpop.permute.xlu0 %1388
  %1391 = vst.msk [vmem:[#allocation9] sm:$0x3] %vm219, %v1389
  %1392 = vst.msk [vmem:[#allocation5 + $0x6] sm:$0x3] %vm219, %v1384
  %v1393 = vld [vmem:[#allocation2 + $0xa] sm:$0x3]
  %v1394 = vld [vmem:[#allocation6] sm:$0x3]
  %v1396 = vsel %vm234, %v1394, 0
  %1398 = vmatprep.subr.mxu0 0.0
  %1399 = vmatpush1.msra.mxu0 0.0
  %1400 = vmatprep.subr.mxu0 0.0
  %1401 = vmatpush1.msra.mxu0 0.0
  %1402 = vmatprep.subr.mxu0 0.0
  %1403 = vmatpush1.msra.mxu0 0.0
  %1404 = vmatprep.subr.mxu0 0.0
  %1405 = vmatpush1.msra.mxu0 0.0
  %1406 = vmatprep.subr.mxu0 0.0
  %1407 = vmatpush1.msra.mxu0 0.0
  %1408 = vmatprep.subr.mxu0 0.0
  %1409 = vmatpush1.msra.mxu0 0.0
  %1410 = vmatprep.subr.mxu0 0.0
  %1411 = vmatpush1.msra.mxu0 0.0
  %1412 = vmatprep.subr.mxu0 0.0
  %1413 = vmatpush1.msra.mxu0 0.0
  %1414 = vmatprep.subr.mxu0 0.0
  %1415 = vmatpush1.msra.mxu0 0.0
  %1416 = vmatprep.subr.mxu0 0.0
  %1417 = vmatpush1.msra.mxu0 0.0
  %1418 = vmatprep.subr.mxu0 0.0
  %1419 = vmatpush1.msra.mxu0 0.0
  %1420 = vmatprep.subr.mxu0 0.0
  %1421 = vmatpush1.msra.mxu0 0.0
  %1422 = vmatprep.subr.mxu0 0.0
  %1423 = vmatpush1.msra.mxu0 %v227
  %1424 = vmatprep.subr.mxu0 0.0
  %1425 = vmatpush1.msra.mxu0 %v226
  %1426 = vmatprep.subr.mxu0 0.0
  %1427 = vmatpush1.msra.mxu0 %v225
  %1428 = vmatprep.subr.mxu0 0.0
  %1429 = vmatpush1.msra.mxu0 %v224
  %1430 = vmatprep.subr.mxu0 0.0
  %1431 = vmatpush2.msra.mxu0 0.0
  %1432 = vmatprep.subr.mxu0 0.0
  %1433 = vmatpush2.msra.mxu0 0.0
  %1434 = vmatprep.subr.mxu0 0.0
  %1435 = vmatpush2.msra.mxu0 0.0
  %1436 = vmatprep.subr.mxu0 0.0
  %1437 = vmatpush2.msra.mxu0 0.0
  %1438 = vmatprep.subr.mxu0 0.0
  %1439 = vmatpush2.msra.mxu0 0.0
  %1440 = vmatprep.subr.mxu0 0.0
  %1441 = vmatpush2.msra.mxu0 0.0
  %1442 = vmatprep.subr.mxu0 0.0
  %1443 = vmatpush2.msra.mxu0 0.0
  %1444 = vmatprep.subr.mxu0 0.0
  %1445 = vmatpush2.msra.mxu0 0.0
  %1446 = vmatprep.subr.mxu0 0.0
  %1447 = vmatpush2.msra.mxu0 0.0
  %1448 = vmatprep.subr.mxu0 0.0
  %1449 = vmatpush2.msra.mxu0 0.0
  %1450 = vmatprep.subr.mxu0 0.0
  %1451 = vmatpush2.msra.mxu0 0.0
  %1452 = vmatprep.subr.mxu0 0.0
  %1453 = vmatpush2.msra.mxu0 0.0
  %1454 = vmatprep.subr.mxu0 0.0
  %1455 = vmatpush2.msra.mxu0 0.0
  %1456 = vmatprep.subr.mxu0 0.0
  %1457 = vmatpush2.msra.mxu0 0.0
  %1458 = vmatprep.subr.mxu0 0.0
  %1459 = vmatpush2.msra.mxu0 0.0
  %1460 = vmatprep.subr.mxu0 0.0
  %1461 = vmatpush2.msra.mxu0 0.0
  %1462 = vmatprep.mubr.f32.mxu0 0.0
  %1463 = vmatmul.mubr.f32.gmra.mxu0 %v1396
  %v1464 = vpop.f32.mrf.mxu0
  %v1465 = vadd.f32 0.0, %v1464
  %v1466 = vpop.f32.mrf.mxu0
  %1467 = vdwg.mxu0
  %v1468 = vadd.f32 %v1393, %v1465
  %v1469 = vld [vmem:[#allocation7] sm:$0x3]
  %v1470 = vxor.u32 %v1468, 2147483648
  %v1471 = vmul.f32 %v1470, 1.442695
  %v1472 = vpow.pop %v1471
  %v1473 = vadd.f32 %v1472, 1.0
  %v1474 = vrcp.pop %v1473
  %v1475 = vmul.f32 1.0, %v1474
  %v1476 = vtanh.pop %v1468
  %1478 = vrot.lane.b32.xlu0 %v1469, 32
  %v1479 = vpop.permute.xlu0 %1478
  %v1481 = vmul.f32 %v1475, %v1479
  %1483 = vrot.lane.b32.xlu0 %v1476, 64
  %v1484 = vpop.permute.xlu0 %1483
  %v1486 = vmul.f32 %v1475, %v1484
  %1488 = vrot.lane.b32.xlu0 %v1486, 32
  %v1489 = vpop.permute.xlu0 %1488
  %v1491 = vadd.f32 %v1481, %v1489
  %v1492 = vtanh.pop %v1491
  %1494 = vrot.lane.b32.xlu0 %v1492, 64
  %v1495 = vpop.permute.xlu0 %1494
  %v1497 = vmul.f32 %v1475, %v1495
  %1499 = vrot.lane.b32.xlu0 %v1497, 32
  %v1500 = vpop.permute.xlu0 %1499
  %1502 = vst.msk [vmem:[#allocation6] sm:$0x3] %vm219, %v1500
  %1504 = vrot.lane.b32.xlu0 %v1491, 96
  %v1505 = vpop.permute.xlu0 %1504
  %1507 = vst.msk [vmem:[#allocation7] sm:$0x3] %vm219, %v1505
  %1508 = vst.msk [vmem:[#allocation4 + $0xa] sm:$0x3] %vm219, %v1500
  %v1509 = vld [vmem:[#allocation3 + $0x4] sm:$0x3]
  %v1510 = vld [vmem:[#allocation8] sm:$0x3]
  %v1512 = vsel %vm234, %v1510, 0
  %1514 = vmatprep.subr.mxu0 0.0
  %1515 = vmatpush1.msra.mxu0 0.0
  %1516 = vmatprep.subr.mxu0 0.0
  %1517 = vmatpush1.msra.mxu0 0.0
  %1518 = vmatprep.subr.mxu0 0.0
  %1519 = vmatpush1.msra.mxu0 0.0
  %1520 = vmatprep.subr.mxu0 0.0
  %1521 = vmatpush1.msra.mxu0 0.0
  %1522 = vmatprep.subr.mxu0 0.0
  %1523 = vmatpush1.msra.mxu0 0.0
  %1524 = vmatprep.subr.mxu0 0.0
  %1525 = vmatpush1.msra.mxu0 0.0
  %1526 = vmatprep.subr.mxu0 0.0
  %1527 = vmatpush1.msra.mxu0 0.0
  %1528 = vmatprep.subr.mxu0 0.0
  %1529 = vmatpush1.msra.mxu0 0.0
  %1530 = vmatprep.subr.mxu0 0.0
  %1531 = vmatpush1.msra.mxu0 0.0
  %1532 = vmatprep.subr.mxu0 0.0
  %1533 = vmatpush1.msra.mxu0 0.0
  %1534 = vmatprep.subr.mxu0 0.0
  %1535 = vmatpush1.msra.mxu0 0.0
  %1536 = vmatprep.subr.mxu0 0.0
  %1537 = vmatpush1.msra.mxu0 0.0
  %1538 = vmatprep.subr.mxu0 0.0
  %1539 = vmatpush1.msra.mxu0 %v231
  %1540 = vmatprep.subr.mxu0 0.0
  %1541 = vmatpush1.msra.mxu0 %v230
  %1542 = vmatprep.subr.mxu0 0.0
  %1543 = vmatpush1.msra.mxu0 %v229
  %1544 = vmatprep.subr.mxu0 0.0
  %1545 = vmatpush1.msra.mxu0 %v228
  %1546 = vmatprep.subr.mxu0 0.0
  %1547 = vmatpush2.msra.mxu0 0.0
  %1548 = vmatprep.subr.mxu0 0.0
  %1549 = vmatpush2.msra.mxu0 0.0
  %1550 = vmatprep.subr.mxu0 0.0
  %1551 = vmatpush2.msra.mxu0 0.0
  %1552 = vmatprep.subr.mxu0 0.0
  %1553 = vmatpush2.msra.mxu0 0.0
  %1554 = vmatprep.subr.mxu0 0.0
  %1555 = vmatpush2.msra.mxu0 0.0
  %1556 = vmatprep.subr.mxu0 0.0
  %1557 = vmatpush2.msra.mxu0 0.0
  %1558 = vmatprep.subr.mxu0 0.0
  %1559 = vmatpush2.msra.mxu0 0.0
  %1560 = vmatprep.subr.mxu0 0.0
  %1561 = vmatpush2.msra.mxu0 0.0
  %1562 = vmatprep.subr.mxu0 0.0
  %1563 = vmatpush2.msra.mxu0 0.0
  %1564 = vmatprep.subr.mxu0 0.0
  %1565 = vmatpush2.msra.mxu0 0.0
  %1566 = vmatprep.subr.mxu0 0.0
  %1567 = vmatpush2.msra.mxu0 0.0
  %1568 = vmatprep.subr.mxu0 0.0
  %1569 = vmatpush2.msra.mxu0 0.0
  %1570 = vmatprep.subr.mxu0 0.0
  %1571 = vmatpush2.msra.mxu0 0.0
  %1572 = vmatprep.subr.mxu0 0.0
  %1573 = vmatpush2.msra.mxu0 0.0
  %1574 = vmatprep.subr.mxu0 0.0
  %1575 = vmatpush2.msra.mxu0 0.0
  %1576 = vmatprep.subr.mxu0 0.0
  %1577 = vmatpush2.msra.mxu0 0.0
  %1578 = vmatprep.mubr.f32.mxu0 0.0
  %1579 = vmatmul.mubr.f32.gmra.mxu0 %v1512
  %v1580 = vpop.f32.mrf.mxu0
  %v1581 = vadd.f32 0.0, %v1580
  %v1582 = vpop.f32.mrf.mxu0
  %1583 = vdwg.mxu0
  %v1584 = vadd.f32 %v1509, %v1581
  %v1585 = vld [vmem:[#allocation9] sm:$0x3]
  %v1586 = vxor.u32 %v1584, 2147483648
  %v1587 = vmul.f32 %v1586, 1.442695
  %v1588 = vpow.pop %v1587
  %v1589 = vadd.f32 %v1588, 1.0
  %v1590 = vrcp.pop %v1589
  %v1591 = vmul.f32 1.0, %v1590
  %v1592 = vtanh.pop %v1584
  %1594 = vrot.lane.b32.xlu0 %v1585, 32
  %v1595 = vpop.permute.xlu0 %1594
  %v1597 = vmul.f32 %v1591, %v1595
  %1599 = vrot.lane.b32.xlu0 %v1592, 64
  %v1600 = vpop.permute.xlu0 %1599
  %v1602 = vmul.f32 %v1591, %v1600
  %1604 = vrot.lane.b32.xlu0 %v1602, 32
  %v1605 = vpop.permute.xlu0 %1604
  %v1607 = vadd.f32 %v1597, %v1605
  %v1608 = vtanh.pop %v1607
  %1610 = vrot.lane.b32.xlu0 %v1608, 64
  %v1611 = vpop.permute.xlu0 %1610
  %v1613 = vmul.f32 %v1591, %v1611
  %1615 = vrot.lane.b32.xlu0 %v1613, 32
  %v1616 = vpop.permute.xlu0 %1615
  %1618 = vst.msk [vmem:[#allocation8] sm:$0x3] %vm219, %v1616
  %1620 = vrot.lane.b32.xlu0 %v1607, 96
  %v1621 = vpop.permute.xlu0 %1620
  %1623 = vst.msk [vmem:[#allocation9] sm:$0x3] %vm219, %v1621
  %1624 = vst.msk [vmem:[#allocation5 + $0x4] sm:$0x3] %vm219, %v1616
  %v1625 = vld [vmem:[#allocation2 + $0xc] sm:$0x3]
  %v1626 = vld [vmem:[#allocation6] sm:$0x3]
  %v1628 = vsel %vm234, %v1626, 0
  %1630 = vmatprep.subr.mxu0 0.0
  %1631 = vmatpush1.msra.mxu0 0.0
  %1632 = vmatprep.subr.mxu0 0.0
  %1633 = vmatpush1.msra.mxu0 0.0
  %1634 = vmatprep.subr.mxu0 0.0
  %1635 = vmatpush1.msra.mxu0 0.0
  %1636 = vmatprep.subr.mxu0 0.0
  %1637 = vmatpush1.msra.mxu0 0.0
  %1638 = vmatprep.subr.mxu0 0.0
  %1639 = vmatpush1.msra.mxu0 0.0
  %1640 = vmatprep.subr.mxu0 0.0
  %1641 = vmatpush1.msra.mxu0 0.0
  %1642 = vmatprep.subr.mxu0 0.0
  %1643 = vmatpush1.msra.mxu0 0.0
  %1644 = vmatprep.subr.mxu0 0.0
  %1645 = vmatpush1.msra.mxu0 0.0
  %1646 = vmatprep.subr.mxu0 0.0
  %1647 = vmatpush1.msra.mxu0 0.0
  %1648 = vmatprep.subr.mxu0 0.0
  %1649 = vmatpush1.msra.mxu0 0.0
  %1650 = vmatprep.subr.mxu0 0.0
  %1651 = vmatpush1.msra.mxu0 0.0
  %1652 = vmatprep.subr.mxu0 0.0
  %1653 = vmatpush1.msra.mxu0 0.0
  %1654 = vmatprep.subr.mxu0 0.0
  %1655 = vmatpush1.msra.mxu0 %v227
  %1656 = vmatprep.subr.mxu0 0.0
  %1657 = vmatpush1.msra.mxu0 %v226
  %1658 = vmatprep.subr.mxu0 0.0
  %1659 = vmatpush1.msra.mxu0 %v225
  %1660 = vmatprep.subr.mxu0 0.0
  %1661 = vmatpush1.msra.mxu0 %v224
  %1662 = vmatprep.subr.mxu0 0.0
  %1663 = vmatpush2.msra.mxu0 0.0
  %1664 = vmatprep.subr.mxu0 0.0
  %1665 = vmatpush2.msra.mxu0 0.0
  %1666 = vmatprep.subr.mxu0 0.0
  %1667 = vmatpush2.msra.mxu0 0.0
  %1668 = vmatprep.subr.mxu0 0.0
  %1669 = vmatpush2.msra.mxu0 0.0
  %1670 = vmatprep.subr.mxu0 0.0
  %1671 = vmatpush2.msra.mxu0 0.0
  %1672 = vmatprep.subr.mxu0 0.0
  %1673 = vmatpush2.msra.mxu0 0.0
  %1674 = vmatprep.subr.mxu0 0.0
  %1675 = vmatpush2.msra.mxu0 0.0
  %1676 = vmatprep.subr.mxu0 0.0
  %1677 = vmatpush2.msra.mxu0 0.0
  %1678 = vmatprep.subr.mxu0 0.0
  %1679 = vmatpush2.msra.mxu0 0.0
  %1680 = vmatprep.subr.mxu0 0.0
  %1681 = vmatpush2.msra.mxu0 0.0
  %1682 = vmatprep.subr.mxu0 0.0
  %1683 = vmatpush2.msra.mxu0 0.0
  %1684 = vmatprep.subr.mxu0 0.0
  %1685 = vmatpush2.msra.mxu0 0.0
  %1686 = vmatprep.subr.mxu0 0.0
  %1687 = vmatpush2.msra.mxu0 0.0
  %1688 = vmatprep.subr.mxu0 0.0
  %1689 = vmatpush2.msra.mxu0 0.0
  %1690 = vmatprep.subr.mxu0 0.0
  %1691 = vmatpush2.msra.mxu0 0.0
  %1692 = vmatprep.subr.mxu0 0.0
  %1693 = vmatpush2.msra.mxu0 0.0
  %1694 = vmatprep.mubr.f32.mxu0 0.0
  %1695 = vmatmul.mubr.f32.gmra.mxu0 %v1628
  %v1696 = vpop.f32.mrf.mxu0
  %v1697 = vadd.f32 0.0, %v1696
  %v1698 = vpop.f32.mrf.mxu0
  %1699 = vdwg.mxu0
  %v1700 = vadd.f32 %v1625, %v1697
  %v1701 = vld [vmem:[#allocation7] sm:$0x3]
  %v1702 = vxor.u32 %v1700, 2147483648
  %v1703 = vmul.f32 %v1702, 1.442695
  %v1704 = vpow.pop %v1703
  %v1705 = vadd.f32 %v1704, 1.0
  %v1706 = vrcp.pop %v1705
  %v1707 = vmul.f32 1.0, %v1706
  %v1708 = vtanh.pop %v1700
  %1710 = vrot.lane.b32.xlu0 %v1701, 32
  %v1711 = vpop.permute.xlu0 %1710
  %v1713 = vmul.f32 %v1707, %v1711
  %1715 = vrot.lane.b32.xlu0 %v1708, 64
  %v1716 = vpop.permute.xlu0 %1715
  %v1718 = vmul.f32 %v1707, %v1716
  %1720 = vrot.lane.b32.xlu0 %v1718, 32
  %v1721 = vpop.permute.xlu0 %1720
  %v1723 = vadd.f32 %v1713, %v1721
  %v1724 = vtanh.pop %v1723
  %1726 = vrot.lane.b32.xlu0 %v1724, 64
  %v1727 = vpop.permute.xlu0 %1726
  %v1729 = vmul.f32 %v1707, %v1727
  %1731 = vrot.lane.b32.xlu0 %v1729, 32
  %v1732 = vpop.permute.xlu0 %1731
  %1734 = vst.msk [vmem:[#allocation6] sm:$0x3] %vm219, %v1732
  %1736 = vrot.lane.b32.xlu0 %v1723, 96
  %v1737 = vpop.permute.xlu0 %1736
  %1739 = vst.msk [vmem:[#allocation7] sm:$0x3] %vm219, %v1737
  %1740 = vst.msk [vmem:[#allocation4 + $0xc] sm:$0x3] %vm219, %v1732
  %v1741 = vld [vmem:[#allocation3 + $0x2] sm:$0x3]
  %v1742 = vld [vmem:[#allocation8] sm:$0x3]
  %v1744 = vsel %vm234, %v1742, 0
  %1746 = vmatprep.subr.mxu0 0.0
  %1747 = vmatpush1.msra.mxu0 0.0
  %1748 = vmatprep.subr.mxu0 0.0
  %1749 = vmatpush1.msra.mxu0 0.0
  %1750 = vmatprep.subr.mxu0 0.0
  %1751 = vmatpush1.msra.mxu0 0.0
  %1752 = vmatprep.subr.mxu0 0.0
  %1753 = vmatpush1.msra.mxu0 0.0
  %1754 = vmatprep.subr.mxu0 0.0
  %1755 = vmatpush1.msra.mxu0 0.0
  %1756 = vmatprep.subr.mxu0 0.0
  %1757 = vmatpush1.msra.mxu0 0.0
  %1758 = vmatprep.subr.mxu0 0.0
  %1759 = vmatpush1.msra.mxu0 0.0
  %1760 = vmatprep.subr.mxu0 0.0
  %1761 = vmatpush1.msra.mxu0 0.0
  %1762 = vmatprep.subr.mxu0 0.0
  %1763 = vmatpush1.msra.mxu0 0.0
  %1764 = vmatprep.subr.mxu0 0.0
  %1765 = vmatpush1.msra.mxu0 0.0
  %1766 = vmatprep.subr.mxu0 0.0
  %1767 = vmatpush1.msra.mxu0 0.0
  %1768 = vmatprep.subr.mxu0 0.0
  %1769 = vmatpush1.msra.mxu0 0.0
  %1770 = vmatprep.subr.mxu0 0.0
  %1771 = vmatpush1.msra.mxu0 %v231
  %1772 = vmatprep.subr.mxu0 0.0
  %1773 = vmatpush1.msra.mxu0 %v230
  %1774 = vmatprep.subr.mxu0 0.0
  %1775 = vmatpush1.msra.mxu0 %v229
  %1776 = vmatprep.subr.mxu0 0.0
  %1777 = vmatpush1.msra.mxu0 %v228
  %1778 = vmatprep.subr.mxu0 0.0
  %1779 = vmatpush2.msra.mxu0 0.0
  %1780 = vmatprep.subr.mxu0 0.0
  %1781 = vmatpush2.msra.mxu0 0.0
  %1782 = vmatprep.subr.mxu0 0.0
  %1783 = vmatpush2.msra.mxu0 0.0
  %1784 = vmatprep.subr.mxu0 0.0
  %1785 = vmatpush2.msra.mxu0 0.0
  %1786 = vmatprep.subr.mxu0 0.0
  %1787 = vmatpush2.msra.mxu0 0.0
  %1788 = vmatprep.subr.mxu0 0.0
  %1789 = vmatpush2.msra.mxu0 0.0
  %1790 = vmatprep.subr.mxu0 0.0
  %1791 = vmatpush2.msra.mxu0 0.0
  %1792 = vmatprep.subr.mxu0 0.0
  %1793 = vmatpush2.msra.mxu0 0.0
  %1794 = vmatprep.subr.mxu0 0.0
  %1795 = vmatpush2.msra.mxu0 0.0
  %1796 = vmatprep.subr.mxu0 0.0
  %1797 = vmatpush2.msra.mxu0 0.0
  %1798 = vmatprep.subr.mxu0 0.0
  %1799 = vmatpush2.msra.mxu0 0.0
  %1800 = vmatprep.subr.mxu0 0.0
  %1801 = vmatpush2.msra.mxu0 0.0
  %1802 = vmatprep.subr.mxu0 0.0
  %1803 = vmatpush2.msra.mxu0 0.0
  %1804 = vmatprep.subr.mxu0 0.0
  %1805 = vmatpush2.msra.mxu0 0.0
  %1806 = vmatprep.subr.mxu0 0.0
  %1807 = vmatpush2.msra.mxu0 0.0
  %1808 = vmatprep.subr.mxu0 0.0
  %1809 = vmatpush2.msra.mxu0 0.0
  %1810 = vmatprep.mubr.f32.mxu0 0.0
  %1811 = vmatmul.mubr.f32.gmra.mxu0 %v1744
  %v1812 = vpop.f32.mrf.mxu0
  %v1813 = vadd.f32 0.0, %v1812
  %v1814 = vpop.f32.mrf.mxu0
  %1815 = vdwg.mxu0
  %v1816 = vadd.f32 %v1741, %v1813
  %v1817 = vld [vmem:[#allocation9] sm:$0x3]
  %v1818 = vxor.u32 %v1816, 2147483648
  %v1819 = vmul.f32 %v1818, 1.442695
  %v1820 = vpow.pop %v1819
  %v1821 = vadd.f32 %v1820, 1.0
  %v1822 = vrcp.pop %v1821
  %v1823 = vmul.f32 1.0, %v1822
  %v1824 = vtanh.pop %v1816
  %1826 = vrot.lane.b32.xlu0 %v1817, 32
  %v1827 = vpop.permute.xlu0 %1826
  %v1829 = vmul.f32 %v1823, %v1827
  %1831 = vrot.lane.b32.xlu0 %v1824, 64
  %v1832 = vpop.permute.xlu0 %1831
  %v1834 = vmul.f32 %v1823, %v1832
  %1836 = vrot.lane.b32.xlu0 %v1834, 32
  %v1837 = vpop.permute.xlu0 %1836
  %v1839 = vadd.f32 %v1829, %v1837
  %v1840 = vtanh.pop %v1839
  %1842 = vrot.lane.b32.xlu0 %v1840, 64
  %v1843 = vpop.permute.xlu0 %1842
  %v1845 = vmul.f32 %v1823, %v1843
  %1847 = vrot.lane.b32.xlu0 %v1845, 32
  %v1848 = vpop.permute.xlu0 %1847
  %1850 = vst.msk [vmem:[#allocation8] sm:$0x3] %vm219, %v1848
  %1852 = vrot.lane.b32.xlu0 %v1839, 96
  %v1853 = vpop.permute.xlu0 %1852
  %1855 = vst.msk [vmem:[#allocation9] sm:$0x3] %vm219, %v1853
  %1856 = vst.msk [vmem:[#allocation5 + $0x2] sm:$0x3] %vm219, %v1848
  %v1857 = vld [vmem:[#allocation2 + $0xe] sm:$0x3]
  %v1858 = vld [vmem:[#allocation6] sm:$0x3]
  %v1860 = vsel %vm234, %v1858, 0
  %1862 = vmatprep.subr.mxu0 0.0
  %1863 = vmatpush1.msra.mxu0 0.0
  %1864 = vmatprep.subr.mxu0 0.0
  %1865 = vmatpush1.msra.mxu0 0.0
  %1866 = vmatprep.subr.mxu0 0.0
  %1867 = vmatpush1.msra.mxu0 0.0
  %1868 = vmatprep.subr.mxu0 0.0
  %1869 = vmatpush1.msra.mxu0 0.0
  %1870 = vmatprep.subr.mxu0 0.0
  %1871 = vmatpush1.msra.mxu0 0.0
  %1872 = vmatprep.subr.mxu0 0.0
  %1873 = vmatpush1.msra.mxu0 0.0
  %1874 = vmatprep.subr.mxu0 0.0
  %1875 = vmatpush1.msra.mxu0 0.0
  %1876 = vmatprep.subr.mxu0 0.0
  %1877 = vmatpush1.msra.mxu0 0.0
  %1878 = vmatprep.subr.mxu0 0.0
  %1879 = vmatpush1.msra.mxu0 0.0
  %1880 = vmatprep.subr.mxu0 0.0
  %1881 = vmatpush1.msra.mxu0 0.0
  %1882 = vmatprep.subr.mxu0 0.0
  %1883 = vmatpush1.msra.mxu0 0.0
  %1884 = vmatprep.subr.mxu0 0.0
  %1885 = vmatpush1.msra.mxu0 0.0
  %1886 = vmatprep.subr.mxu0 0.0
  %1887 = vmatpush1.msra.mxu0 %v227
  %1888 = vmatprep.subr.mxu0 0.0
  %1889 = vmatpush1.msra.mxu0 %v226
  %1890 = vmatprep.subr.mxu0 0.0
  %1891 = vmatpush1.msra.mxu0 %v225
  %1892 = vmatprep.subr.mxu0 0.0
  %1893 = vmatpush1.msra.mxu0 %v224
  %1894 = vmatprep.subr.mxu0 0.0
  %1895 = vmatpush2.msra.mxu0 0.0
  %1896 = vmatprep.subr.mxu0 0.0
  %1897 = vmatpush2.msra.mxu0 0.0
  %1898 = vmatprep.subr.mxu0 0.0
  %1899 = vmatpush2.msra.mxu0 0.0
  %1900 = vmatprep.subr.mxu0 0.0
  %1901 = vmatpush2.msra.mxu0 0.0
  %1902 = vmatprep.subr.mxu0 0.0
  %1903 = vmatpush2.msra.mxu0 0.0
  %1904 = vmatprep.subr.mxu0 0.0
  %1905 = vmatpush2.msra.mxu0 0.0
  %1906 = vmatprep.subr.mxu0 0.0
  %1907 = vmatpush2.msra.mxu0 0.0
  %1908 = vmatprep.subr.mxu0 0.0
  %1909 = vmatpush2.msra.mxu0 0.0
  %1910 = vmatprep.subr.mxu0 0.0
  %1911 = vmatpush2.msra.mxu0 0.0
  %1912 = vmatprep.subr.mxu0 0.0
  %1913 = vmatpush2.msra.mxu0 0.0
  %1914 = vmatprep.subr.mxu0 0.0
  %1915 = vmatpush2.msra.mxu0 0.0
  %1916 = vmatprep.subr.mxu0 0.0
  %1917 = vmatpush2.msra.mxu0 0.0
  %1918 = vmatprep.subr.mxu0 0.0
  %1919 = vmatpush2.msra.mxu0 0.0
  %1920 = vmatprep.subr.mxu0 0.0
  %1921 = vmatpush2.msra.mxu0 0.0
  %1922 = vmatprep.subr.mxu0 0.0
  %1923 = vmatpush2.msra.mxu0 0.0
  %1924 = vmatprep.subr.mxu0 0.0
  %1925 = vmatpush2.msra.mxu0 0.0
  %1926 = vmatprep.mubr.f32.mxu0 0.0
  %1927 = vmatmul.mubr.f32.gmra.mxu0 %v1860
  %v1928 = vpop.f32.mrf.mxu0
  %v1929 = vadd.f32 0.0, %v1928
  %v1930 = vpop.f32.mrf.mxu0
  %1931 = vdwg.mxu0
  %v1932 = vadd.f32 %v1857, %v1929
  %v1933 = vld [vmem:[#allocation7] sm:$0x3]
  %v1934 = vxor.u32 %v1932, 2147483648
  %v1935 = vmul.f32 %v1934, 1.442695
  %v1936 = vpow.pop %v1935
  %v1937 = vadd.f32 %v1936, 1.0
  %v1938 = vrcp.pop %v1937
  %v1939 = vmul.f32 1.0, %v1938
  %v1940 = vtanh.pop %v1932
  %1942 = vrot.lane.b32.xlu0 %v1933, 32
  %v1943 = vpop.permute.xlu0 %1942
  %v1945 = vmul.f32 %v1939, %v1943
  %1947 = vrot.lane.b32.xlu0 %v1940, 64
  %v1948 = vpop.permute.xlu0 %1947
  %v1950 = vmul.f32 %v1939, %v1948
  %1952 = vrot.lane.b32.xlu0 %v1950, 32
  %v1953 = vpop.permute.xlu0 %1952
  %v1955 = vadd.f32 %v1945, %v1953
  %v1956 = vtanh.pop %v1955
  %1958 = vrot.lane.b32.xlu0 %v1956, 64
  %v1959 = vpop.permute.xlu0 %1958
  %v1961 = vmul.f32 %v1939, %v1959
  %1963 = vrot.lane.b32.xlu0 %v1961, 32
  %v1964 = vpop.permute.xlu0 %1963
  %1966 = vst.msk [vmem:[#allocation6] sm:$0x3] %vm219, %v1964
  %1968 = vrot.lane.b32.xlu0 %v1955, 96
  %v1969 = vpop.permute.xlu0 %1968
  %1971 = vst.msk [vmem:[#allocation7] sm:$0x3] %vm219, %v1969
  %1972 = vst.msk [vmem:[#allocation4 + $0xe] sm:$0x3] %vm219, %v1964
  %v1973 = vld [vmem:[#allocation3] sm:$0x3]
  %v1974 = vld [vmem:[#allocation8] sm:$0x3]
  %v1976 = vsel %vm234, %v1974, 0
  %1978 = vmatprep.subr.mxu0 0.0
  %1979 = vmatpush1.msra.mxu0 0.0
  %1980 = vmatprep.subr.mxu0 0.0
  %1981 = vmatpush1.msra.mxu0 0.0
  %1982 = vmatprep.subr.mxu0 0.0
  %1983 = vmatpush1.msra.mxu0 0.0
  %1984 = vmatprep.subr.mxu0 0.0
  %1985 = vmatpush1.msra.mxu0 0.0
  %1986 = vmatprep.subr.mxu0 0.0
  %1987 = vmatpush1.msra.mxu0 0.0
  %1988 = vmatprep.subr.mxu0 0.0
  %1989 = vmatpush1.msra.mxu0 0.0
  %1990 = vmatprep.subr.mxu0 0.0
  %1991 = vmatpush1.msra.mxu0 0.0
  %1992 = vmatprep.subr.mxu0 0.0
  %1993 = vmatpush1.msra.mxu0 0.0
  %1994 = vmatprep.subr.mxu0 0.0
  %1995 = vmatpush1.msra.mxu0 0.0
  %1996 = vmatprep.subr.mxu0 0.0
  %1997 = vmatpush1.msra.mxu0 0.0
  %1998 = vmatprep.subr.mxu0 0.0
  %1999 = vmatpush1.msra.mxu0 0.0
  %2000 = vmatprep.subr.mxu0 0.0
  %2001 = vmatpush1.msra.mxu0 0.0
  %2002 = vmatprep.subr.mxu0 0.0
  %2003 = vmatpush1.msra.mxu0 %v231
  %2004 = vmatprep.subr.mxu0 0.0
  %2005 = vmatpush1.msra.mxu0 %v230
  %2006 = vmatprep.subr.mxu0 0.0
  %2007 = vmatpush1.msra.mxu0 %v229
  %2008 = vmatprep.subr.mxu0 0.0
  %2009 = vmatpush1.msra.mxu0 %v228
  %2010 = vmatprep.subr.mxu0 0.0
  %2011 = vmatpush2.msra.mxu0 0.0
  %2012 = vmatprep.subr.mxu0 0.0
  %2013 = vmatpush2.msra.mxu0 0.0
  %2014 = vmatprep.subr.mxu0 0.0
  %2015 = vmatpush2.msra.mxu0 0.0
  %2016 = vmatprep.subr.mxu0 0.0
  %2017 = vmatpush2.msra.mxu0 0.0
  %2018 = vmatprep.subr.mxu0 0.0
  %2019 = vmatpush2.msra.mxu0 0.0
  %2020 = vmatprep.subr.mxu0 0.0
  %2021 = vmatpush2.msra.mxu0 0.0
  %2022 = vmatprep.subr.mxu0 0.0
  %2023 = vmatpush2.msra.mxu0 0.0
  %2024 = vmatprep.subr.mxu0 0.0
  %2025 = vmatpush2.msra.mxu0 0.0
  %2026 = vmatprep.subr.mxu0 0.0
  %2027 = vmatpush2.msra.mxu0 0.0
  %2028 = vmatprep.subr.mxu0 0.0
  %2029 = vmatpush2.msra.mxu0 0.0
  %2030 = vmatprep.subr.mxu0 0.0
  %2031 = vmatpush2.msra.mxu0 0.0
  %2032 = vmatprep.subr.mxu0 0.0
  %2033 = vmatpush2.msra.mxu0 0.0
  %2034 = vmatprep.subr.mxu0 0.0
  %2035 = vmatpush2.msra.mxu0 0.0
  %2036 = vmatprep.subr.mxu0 0.0
  %2037 = vmatpush2.msra.mxu0 0.0
  %2038 = vmatprep.subr.mxu0 0.0
  %2039 = vmatpush2.msra.mxu0 0.0
  %2040 = vmatprep.subr.mxu0 0.0
  %2041 = vmatpush2.msra.mxu0 0.0
  %2042 = vmatprep.mubr.f32.mxu0 0.0
  %2043 = vmatmul.mubr.f32.gmra.mxu0 %v1976
  %v2044 = vpop.f32.mrf.mxu0
  %v2045 = vadd.f32 0.0, %v2044
  %v2046 = vpop.f32.mrf.mxu0
  %2047 = vdwg.mxu0
  %v2048 = vadd.f32 %v1973, %v2045
  %v2049 = vld [vmem:[#allocation9] sm:$0x3]
  %v2050 = vxor.u32 %v2048, 2147483648
  %v2051 = vmul.f32 %v2050, 1.442695
  %v2052 = vpow.pop %v2051
  %v2053 = vadd.f32 %v2052, 1.0
  %v2054 = vrcp.pop %v2053
  %v2055 = vmul.f32 1.0, %v2054
  %v2056 = vtanh.pop %v2048
  %2058 = vrot.lane.b32.xlu0 %v2049, 32
  %v2059 = vpop.permute.xlu0 %2058
  %v2061 = vmul.f32 %v2055, %v2059
  %2063 = vrot.lane.b32.xlu0 %v2056, 64
  %v2064 = vpop.permute.xlu0 %2063
  %v2066 = vmul.f32 %v2055, %v2064
  %2068 = vrot.lane.b32.xlu0 %v2066, 32
  %v2069 = vpop.permute.xlu0 %2068
  %v2071 = vadd.f32 %v2061, %v2069
  %v2072 = vtanh.pop %v2071
  %2074 = vrot.lane.b32.xlu0 %v2072, 64
  %v2075 = vpop.permute.xlu0 %2074
  %v2077 = vmul.f32 %v2055, %v2075
  %2079 = vrot.lane.b32.xlu0 %v2077, 32
  %v2080 = vpop.permute.xlu0 %2079
  %2082 = vst.msk [vmem:[#allocation8] sm:$0x3] %vm219, %v2080
  %2084 = vrot.lane.b32.xlu0 %v2071, 96
  %v2085 = vpop.permute.xlu0 %2084
  %2087 = vst.msk [vmem:[#allocation9] sm:$0x3] %vm219, %v2085
  %2088 = vst.msk [vmem:[#allocation5] sm:$0x3] %vm219, %v2080
  %v2089 = vld [vmem:[#allocation4] sm:$0xff]
  %v2090 = vld [vmem:[#allocation4 + $0x8] sm:$0xff]
  %v2091 = vld [vmem:[#allocation5] sm:$0xff]
  %v2092 = vld [vmem:[#allocation5 + $0x8] sm:$0xff]
  %2095 = vrot.lane.b32.xlu0 %v2091, 32
  %v2096 = vpop.permute.xlu0 %2095
  %2097 = vrot.lane.b32.xlu0 %v2092, 32
  %v2098 = vpop.permute.xlu0 %2097
  %v2101 = vsel %vm234, %v2089, %v2096
  %v2102 = vsel %vm234, %v2090, %v2098
  %2103 = vst.msk [vmem:[%s7] sm:$0xff] %vm43, %v2101
  %2104 = vst.msk [vmem:[%s7 + $0x8] sm:$0xff] %vm43, %v2102
  // Predicated region
  $region30: #{birnn_forward.3} parent=0 // pred_check
    _
  $region31: #{birnn_forward.3} parent=0 // pred_check_branch
    %2106 = sbr.rel (0) target = $region33
  $region32: #{birnn_forward.3} parent=0 // pred_region
    _
  $region33: #{birnn_forward.3} parent=0 // pred_fallthru
    _
  // Predicated region
  $region34: #{birnn_forward.3} parent=0 // pred_check
    _
  $region35: #{birnn_forward.3} parent=0 // pred_check_branch
    %2108 = sbr.rel (0) target = $region37
  $region36: #{birnn_forward.3} parent=0 // pred_region
    _
  $region37: #{birnn_forward.3} parent=0 // pred_fallthru
    _

</llo_original>
